<compile_context>
chip_gen: v7x
topology: tpu7x:2x2x1
jax: 0.10.0
libtpu: 0.0.40
codegen_flags: <defaults>
</compile_context>

<pallas_src>
import numpy as np
import jax
import jax.numpy as jnp
from jax.experimental import pallas as pl
from jax.experimental.pallas import tpu as pltpu

NUM_CLASSES = 100
_VMEM_LIMIT = 40 * 1024 * 1024   # well under v7x's 64 MiB physical VMEM


def _round_up(x, m):
    return ((x + m - 1) // m) * m


def _choose_ipb(n):
    """Images folded into one grid step.

    Multiples of 4 keep the per-block row count (ipb*He, He=18/10) a multiple of 8 so
    blocked (non-full-dim) row tiles stay sublane aligned; tiny batches get a single
    full-array block (2 or 4 images) to avoid the old pad-to-8 waste on v5e/v6e.
    """
    if n <= 4:
        return n + (n % 2)        # 2 or 4 -> single grid block, full-dim tiles
    if n <= 16:
        return 4
    if n <= 64:
        return 8
    return 16


# ----------------------------------------------------------------------------
# Kernels
# ----------------------------------------------------------------------------
def _conv_bn_relu_pool_kernel(x_ref, g_ref, sc_ref, sh_ref, o_ref):
    """Fused Conv2d(5x5, pad=2) + BatchNorm + ReLU + MaxPool(2x2) for one batch block.

    x_ref : (6, R, K) bf16  -- 6 (row-parity, row-shift) slabs of the padded input,
                               R = ipb*He rows (He = Ho+2), K = (W+4)*Cin lanes.
    g_ref : (6, K, 4*Q) bf16 -- banded (block-Toeplitz) conv weights; the 4*Q output
                               lanes are the 4 pool-window parities (dy,dx), each Q =
                               Wo*Cout wide with lane = pw*Cout + o.
    sc_ref, sh_ref : (1, 4*Q) f32 -- folded BatchNorm scale / shift, lane-tiled.
    o_ref : (R, Q) bf16     -- pooled activations, row = image*He + ph, lane = pw*Cout+o.
    """
    q = o_ref.shape[-1]
    # Single fused accumulation chain over the 6 slabs (one 1024-lane result slab).
    acc = jnp.dot(x_ref[0], g_ref[0], preferred_element_type=jnp.float32)
    for j in range(1, 6):
        acc = acc + jnp.dot(x_ref[j], g_ref[j], preferred_element_type=jnp.float32)
    # Per-parity affine BEFORE the pool max (BN scale can be negative), then the 2x2
    # max-pool as a max over the four 256-lane quarters, then a single trailing ReLU.
    a = acc * sc_ref[...] + sh_ref[...]
    p = jnp.maximum(jnp.maximum(a[:, :q], a[:, q:2 * q]),
                    jnp.maximum(a[:, 2 * q:3 * q], a[:, 3 * q:]))
    o_ref[...] = jnp.maximum(p, 0.0).astype(o_ref.dtype)


def _fc_kernel(x_ref, w_ref, b_ref, o_ref):
    o_ref[...] = (jnp.dot(x_ref[...], w_ref[...],
                          preferred_element_type=jnp.float32)
                  + b_ref[...]).astype(o_ref.dtype)


# ----------------------------------------------------------------------------
# One-time parameter preparation (banded weights, BN folding, FC permutation)
# ----------------------------------------------------------------------------
def _banded_conv_weights(conv_w, W):
    """conv_w (Cout, Cin, 5, 5) torch layout -> G (6, (W+4)*Cin, 4*(W//2)*Cout) bf16.

    G[j] is the block-Toeplitz matrix applied to input-row slab j, where the slabs are
    (row parity, row shift) = (even,0),(odd,0),(even,1),(odd,1),(even,2),(odd,2) of the
    spatially padded image.  Output lanes: [dy=0,dx=0 | dy=0,dx=1 | dy=1,dx=0 | dy=1,dx=1],
    each Q = Wo*Cout wide with lane = pw*Cout + o, i.e. conv output (h=2ph+dy, w=2pw+dx).
    """
    w = np.asarray(conv_w, np.float32)
    Cout, Cin = w.shape[:2]
    Wp, Wo = W + 4, W // 2
    Q = Wo * Cout
    B = np.zeros((5, Wp * Cin, 2 * Q), np.float32)       # per-kernel-row banded matrix
    for kh in range(5):
        for kw in range(5):
            tap = w[:, :, kh, kw].T                      # (Cin, Cout)
            for dx in range(2):
                for pw in range(Wo):
                    wp = 2 * pw + dx + kw                # padded input column
                    B[kh, wp * Cin:(wp + 1) * Cin,
                      dx * Q + pw * Cout:dx * Q + (pw + 1) * Cout] = tap
    G = np.zeros((6, Wp * Cin, 4 * Q), np.float32)
    G[0:5, :, :2 * Q] = B      # even output rows (dy=0): slab j carries kernel row j
    G[1:6, :, 2 * Q:] = B      # odd  output rows (dy=1): slab j carries kernel row j-1
    return jnp.asarray(G, jnp.bfloat16)


def _fold_bn_tiled(conv_b, gamma, beta, mean, var, Wo, eps=1e-5):
    scale = np.asarray(gamma, np.float32) / np.sqrt(np.asarray(var, np.float32) + eps)
    shift = (np.asarray(beta, np.float32)
             + (np.asarray(conv_b, np.float32) - np.asarray(mean, np.float32)) * scale)
    sc = np.tile(scale, 4 * Wo)[None, :]                 # lane = (quarter*Wo+pw)*Cout + o
    sh = np.tile(shift, 4 * Wo)[None, :]
    return jnp.asarray(sc, jnp.float32), jnp.asarray(sh, jnp.float32)


def prepare_params(p):
    """Convert PyTorch-layout parameters into kernel-friendly layouts once."""
    kp = {}
    kp["conv1_G"] = _banded_conv_weights(p["conv1_w"], 32)
    kp["conv1_sc"], kp["conv1_sh"] = _fold_bn_tiled(
        p["conv1_b"], p["bn1_gamma"], p["bn1_beta"], p["bn1_mean"], p["bn1_var"], 16)
    kp["conv2_G"] = _banded_conv_weights(p["conv2_w"], 16)
    kp["conv2_sc"], kp["conv2_sh"] = _fold_bn_tiled(
        p["conv2_b"], p["bn2_gamma"], p["bn2_beta"], p["bn2_mean"], p["bn2_var"], 8)

    # FC: PyTorch flattens NCHW (index c*64 + h*8 + w); our features are NHWC-flattened
    # (index h*256 + w*32 + c).  Permute weight rows once and pad 100 -> 128 lanes.
    M, Kf = p["fc_w"].shape
    wr = np.asarray(p["fc_w"], np.float32).reshape(M, 32, 8, 8)          # (m, c, h, w)
    wr = np.transpose(wr, (2, 3, 1, 0)).reshape(Kf, M)                   # (h*256+w*32+c, m)
    m_pad = _round_up(M, 128)
    kp["fc_w"] = jnp.asarray(np.pad(wr, ((0, 0), (0, m_pad - M))), jnp.bfloat16)
    kp["fc_b"] = jnp.asarray(
        np.pad(np.asarray(p["fc_b"], np.float32), (0, m_pad - M))[None, :], jnp.float32)
    return kp


# ----------------------------------------------------------------------------
# Layer wrappers
# ----------------------------------------------------------------------------
def _build_row_slabs(x_nhwc, ipb):
    """(N, H, W, C) -> (N//ipb, 6, ipb*He, (W+4)*C) bf16, He = H//2 + 2.

    Slab j = (row parity, row shift 0/1/2) of the spatially padded image with W and C
    folded into lanes.  Combined with the banded weights this realizes the 5-row conv
    stencil and the pool row-parity without any strided access inside the kernel.
    Cheap (~3x raw activation bytes) and one contiguous HBM slab per grid step.
    """
    N, H, W, C = x_nhwc.shape
    He = H // 2 + 2
    xp = jnp.pad(x_nhwc.astype(jnp.bfloat16), ((0, 0), (2, 6), (2, 2), (0, 0)))
    xp = xp.reshape(N, He + 2, 2, (W + 4) * C)
    slabs = [xp[:, s:s + He, par, :] for s in range(3) for par in range(2)]
    x6 = jnp.stack(slabs, axis=1)                                  # (N, 6, He, Wp*C)
    nb = N // ipb
    x6 = x6.reshape(nb, ipb, 6, He, (W + 4) * C).transpose(0, 2, 1, 3, 4)
    return x6.reshape(nb, 6, ipb * He, (W + 4) * C)


def conv_bn_relu_pool(x_nhwc, G, sc, sh, ipb):
    """x: (N, H, W, Cin); returns (N, H//2, W//2, Cout) bf16."""
    N, H, W, Cin = x_nhwc.shape
    Ho, Wo = H // 2, W // 2
    He = Ho + 2
    K = (W + 4) * Cin
    Q = G.shape[2] // 4
    Cout = Q // Wo
    nb = N // ipb
    R = ipb * He
    slabs = _build_row_slabs(x_nhwc, ipb)                # (nb, 6, R, K) bf16

    out = pl.pallas_call(
        _conv_bn_relu_pool_kernel,
        out_shape=jax.ShapeDtypeStruct((nb * R, Q), jnp.bfloat16),
        grid_spec=pltpu.PrefetchScalarGridSpec(
            num_scalar_prefetch=0,
            grid=(nb,),
            in_specs=[
                pl.BlockSpec((None, 6, R, K), lambda i: (i, 0, 0, 0)),
                pl.BlockSpec((6, K, 4 * Q), lambda i: (0, 0, 0)),
                pl.BlockSpec((1, 4 * Q), lambda i: (0, 0)),
                pl.BlockSpec((1, 4 * Q), lambda i: (0, 0)),
            ],
            out_specs=pl.BlockSpec((R, Q), lambda i: (i, 0)),
        ),
        compiler_params=pltpu.CompilerParams(
            dimension_semantics=("parallel",),           # shard blocks across v7x's 2 TCs
            vmem_limit_bytes=_VMEM_LIMIT,
        ),
    )(slabs, G, sc, sh)
    # rows: image*He + ph (2 garbage rows per image); lanes: pw*Cout + o
    return out.reshape(N, He, Wo, Cout)[:, :Ho]


def fc_linear(feat_bf16, w_bf16, b_f32):
    """feat: (Np, 2048) bf16; w: (2048, 128) bf16; b: (1, 128) f32 -> (Np, 128) f32."""
    Np, Kf = feat_bf16.shape
    Mp = w_bf16.shape[1]
    rb = Np if Np <= 512 else 512
    np2 = _round_up(Np, rb)
    if np2 != Np:
        feat_bf16 = jnp.pad(feat_bf16, ((0, np2 - Np), (0, 0)))
    out = pl.pallas_call(
        _fc_kernel,
        out_shape=jax.ShapeDtypeStruct((np2, Mp), jnp.float32),
        grid_spec=pltpu.PrefetchScalarGridSpec(
            num_scalar_prefetch=0,
            grid=(np2 // rb,),
            in_specs=[
                pl.BlockSpec((rb, Kf), lambda i: (i, 0)),
                pl.BlockSpec((Kf, Mp), lambda i: (0, 0)),
                pl.BlockSpec((1, Mp), lambda i: (0, 0)),
            ],
            out_specs=pl.BlockSpec((rb, Mp), lambda i: (i, 0)),
        ),
        compiler_params=pltpu.CompilerParams(
            dimension_semantics=("parallel",),
            vmem_limit_bytes=_VMEM_LIMIT,
        ),
    )(feat_bf16, w_bf16, b_f32)
    return out[:Np]


# ----------------------------------------------------------------------------
# Full forward
# ----------------------------------------------------------------------------
@jax.jit
def convnet_forward(x_nchw, kp):
    N = x_nchw.shape[0]
    ipb = _choose_ipb(N)
    n_pad = _round_up(N, ipb)
    x = jnp.transpose(x_nchw, (0, 2, 3, 1)).astype(jnp.float32)      # NCHW -> NHWC
    if n_pad != N:
        x = jnp.pad(x, ((0, n_pad - N), (0, 0), (0, 0), (0, 0)))

    o1 = conv_bn_relu_pool(x, kp["conv1_G"], kp["conv1_sc"], kp["conv1_sh"], ipb)
    # o1: (n_pad, 16, 16, 16) bf16
    o2 = conv_bn_relu_pool(o1, kp["conv2_G"], kp["conv2_sc"], kp["conv2_sh"], ipb)
    # o2: (n_pad, 8, 8, 32) bf16

    feat = o2.reshape(n_pad, -1)                                     # NHWC flatten (bf16)
    logits = fc_linear(feat, kp["fc_w"], kp["fc_b"])                 # (n_pad, 128) f32
    return logits[:N, :NUM_CLASSES]


# ----------------------------------------------------------------------------
# Reference (pure JAX / f32) and example parameters
# ----------------------------------------------------------------------------
def reference_forward(x_nchw, p, eps=1e-5):
    hi = jax.lax.Precision.HIGHEST

    def layer(x, w, b, g, bt, mean, var):
        y = jax.lax.conv_general_dilated(
            x, w, window_strides=(1, 1), padding=((2, 2), (2, 2)),
            dimension_numbers=("NCHW", "OIHW", "NCHW"), precision=hi)
        y = y + b[None, :, None, None]
        y = ((y - mean[None, :, None, None])
             * (g * jax.lax.rsqrt(var + eps))[None, :, None, None]
             + bt[None, :, None, None])
        y = jnp.maximum(y, 0.0)
        n, c, h, w_ = y.shape
        return y.reshape(n, c, h // 2, 2, w_ // 2, 2).max(axis=(3, 5))

    y = layer(x_nchw, p["conv1_w"], p["conv1_b"], p["bn1_gamma"], p["bn1_beta"],
              p["bn1_mean"], p["bn1_var"])
    y = layer(y, p["conv2_w"], p["conv2_b"], p["bn2_gamma"], p["bn2_beta"],
              p["bn2_mean"], p["bn2_var"])
    feat = y.reshape(y.shape[0], -1)
    return jnp.dot(feat, p["fc_w"].T, precision=hi) + p["fc_b"][None, :]


def init_params(key):
    ks = jax.random.split(key, 16)
    p = {}
    p["conv1_w"] = 0.1 * jax.random.normal(ks[0], (16, 3, 5, 5), jnp.float32)
    p["conv1_b"] = 0.1 * jax.random.normal(ks[1], (16,), jnp.float32)
    p["bn1_gamma"] = 1.0 + 0.1 * jax.random.normal(ks[2], (16,), jnp.float32)
    p["bn1_beta"] = 0.1 * jax.random.normal(ks[3], (16,), jnp.float32)
    p["bn1_mean"] = 0.1 * jax.random.normal(ks[4], (16,), jnp.float32)
    p["bn1_var"] = jax.random.uniform(ks[5], (16,), jnp.float32, 0.5, 1.5)
    p["conv2_w"] = 0.1 * jax.random.normal(ks[6], (32, 16, 5, 5), jnp.float32)
    p["conv2_b"] = 0.1 * jax.random.normal(ks[7], (32,), jnp.float32)
    p["bn2_gamma"] = 1.0 + 0.1 * jax.random.normal(ks[8], (32,), jnp.float32)
    p["bn2_beta"] = 0.1 * jax.random.normal(ks[9], (32,), jnp.float32)
    p["bn2_mean"] = 0.1 * jax.random.normal(ks[10], (32,), jnp.float32)
    p["bn2_var"] = jax.random.uniform(ks[11], (32,), jnp.float32, 0.5, 1.5)
    p["fc_w"] = 0.02 * jax.random.normal(ks[12], (NUM_CLASSES, 8 * 8 * 32), jnp.float32)
    p["fc_b"] = 0.02 * jax.random.normal(ks[13], (NUM_CLASSES,), jnp.float32)
    return p


if __name__ == "__main__":
    key = jax.random.PRNGKey(0)
    pkey, xkey1, xkey2 = jax.random.split(key, 3)
    params = init_params(pkey)
    kparams = prepare_params(params)

    # fc = Linear(8*8*32, 100) implies 32x32 input spatial (two 2x pools), NCHW like PyTorch.
    x = jax.random.normal(xkey1, (2, 3, 32, 32), jnp.float32)
    out = jax.block_until_ready(convnet_forward(x, kparams))
    assert out.shape == (2, NUM_CLASSES) and out.dtype == jnp.float32
    ref = reference_forward(x, params)
    np.testing.assert_allclose(np.asarray(out), np.asarray(ref), atol=0.3, rtol=0.05)

    # Also exercise the multi-block grid + batch-padding path (5 -> pad to 8, 2 blocks).
    x5 = jax.random.normal(xkey2, (5, 3, 32, 32), jnp.float32)
    out5 = jax.block_until_ready(convnet_forward(x5, kparams))
    assert out5.shape == (5, NUM_CLASSES)
    ref5 = reference_forward(x5, params)
    np.testing.assert_allclose(np.asarray(out5), np.asarray(ref5), atol=0.3, rtol=0.05)

    print("KERNEL_OK")
</pallas_src>

<mosaic_0001>
module attributes {stable_mosaic.version = 11 : i64} {
  func.func @_conv_bn_relu_pool_kernel(%arg0: i32, %arg1: memref<1x6x36x108xbf16, #tpu.memory_space<vmem>>, %arg2: memref<6x108x1024xbf16, #tpu.memory_space<vmem>>, %arg3: memref<1x1024xf32, #tpu.memory_space<vmem>>, %arg4: memref<1x1024xf32, #tpu.memory_space<vmem>>, %arg5: memref<36x256xbf16, #tpu.memory_space<vmem>>) attributes {dimension_semantics = [#tpu.dimension_semantics<parallel>], iteration_bounds = array<i64: 1>, scalar_prefetch = 0 : i64, scratch_operands = 0 : i64, tpu.core_type = #tpu.core_type<tc>, window_params = [{transform_indices = @transform_0, window_bounds = array<i64: 1, 6, 36, 108>}, {pipeline_mode = #tpu.pipeline_mode<synchronous>, transform_indices = @transform_1, window_bounds = array<i64: 6, 108, 1024>}, {pipeline_mode = #tpu.pipeline_mode<synchronous>, transform_indices = @transform_2, window_bounds = array<i64: 1, 1024>}, {pipeline_mode = #tpu.pipeline_mode<synchronous>, transform_indices = @transform_3, window_bounds = array<i64: 1, 1024>}, {transform_indices = @transform_4, window_bounds = array<i64: 36, 256>}]} {
    %c0 = arith.constant 0 : index
    %c0_0 = arith.constant 0 : index
    %c0_1 = arith.constant 0 : index
    %c0_2 = arith.constant 0 : index
    %0 = vector.load %arg1[%c0, %c0_0, %c0_1, %c0_2] : memref<1x6x36x108xbf16, #tpu.memory_space<vmem>>, vector<1x1x36x108xbf16>
    %1 = vector.shape_cast %0 : vector<1x1x36x108xbf16> to vector<36x108xbf16>
    %c0_3 = arith.constant 0 : index
    %c0_4 = arith.constant 0 : index
    %c0_5 = arith.constant 0 : index
    %2 = vector.load %arg2[%c0_3, %c0_4, %c0_5] : memref<6x108x1024xbf16, #tpu.memory_space<vmem>>, vector<1x108x1024xbf16>
    %3 = vector.shape_cast %2 : vector<1x108x1024xbf16> to vector<108x1024xbf16>
    %cst = arith.constant dense<0.000000e+00> : vector<36x1024xf32>
    %4 = tpu.matmul %1, %3, %cst {dimension_numbers = #tpu.dot_dimension_numbers<[1], [0], [0], [1], [0, 0, 1, 1], [], []>} : vector<36x108xbf16>, vector<108x1024xbf16>, vector<36x1024xf32> -> vector<36x1024xf32>
    %c0_6 = arith.constant 0 : index
    %c1 = arith.constant 1 : index
    %c0_7 = arith.constant 0 : index
    %c0_8 = arith.constant 0 : index
    %5 = vector.load %arg1[%c0_6, %c1, %c0_7, %c0_8] : memref<1x6x36x108xbf16, #tpu.memory_space<vmem>>, vector<1x1x36x108xbf16>
    %6 = vector.shape_cast %5 : vector<1x1x36x108xbf16> to vector<36x108xbf16>
    %c1_9 = arith.constant 1 : index
    %c0_10 = arith.constant 0 : index
    %c0_11 = arith.constant 0 : index
    %7 = vector.load %arg2[%c1_9, %c0_10, %c0_11] : memref<6x108x1024xbf16, #tpu.memory_space<vmem>>, vector<1x108x1024xbf16>
    %8 = vector.shape_cast %7 : vector<1x108x1024xbf16> to vector<108x1024xbf16>
    %cst_12 = arith.constant dense<0.000000e+00> : vector<36x1024xf32>
    %9 = tpu.matmul %6, %8, %cst_12 {dimension_numbers = #tpu.dot_dimension_numbers<[1], [0], [0], [1], [0, 0, 1, 1], [], []>} : vector<36x108xbf16>, vector<108x1024xbf16>, vector<36x1024xf32> -> vector<36x1024xf32>
    %10 = arith.addf %4, %9 : vector<36x1024xf32>
    %c0_13 = arith.constant 0 : index
    %c2 = arith.constant 2 : index
    %c0_14 = arith.constant 0 : index
    %c0_15 = arith.constant 0 : index
    %11 = vector.load %arg1[%c0_13, %c2, %c0_14, %c0_15] : memref<1x6x36x108xbf16, #tpu.memory_space<vmem>>, vector<1x1x36x108xbf16>
    %12 = vector.shape_cast %11 : vector<1x1x36x108xbf16> to vector<36x108xbf16>
    %c2_16 = arith.constant 2 : index
    %c0_17 = arith.constant 0 : index
    %c0_18 = arith.constant 0 : index
    %13 = vector.load %arg2[%c2_16, %c0_17, %c0_18] : memref<6x108x1024xbf16, #tpu.memory_space<vmem>>, vector<1x108x1024xbf16>
    %14 = vector.shape_cast %13 : vector<1x108x1024xbf16> to vector<108x1024xbf16>
    %cst_19 = arith.constant dense<0.000000e+00> : vector<36x1024xf32>
    %15 = tpu.matmul %12, %14, %cst_19 {dimension_numbers = #tpu.dot_dimension_numbers<[1], [0], [0], [1], [0, 0, 1, 1], [], []>} : vector<36x108xbf16>, vector<108x1024xbf16>, vector<36x1024xf32> -> vector<36x1024xf32>
    %16 = arith.addf %10, %15 : vector<36x1024xf32>
    %c0_20 = arith.constant 0 : index
    %c3 = arith.constant 3 : index
    %c0_21 = arith.constant 0 : index
    %c0_22 = arith.constant 0 : index
    %17 = vector.load %arg1[%c0_20, %c3, %c0_21, %c0_22] : memref<1x6x36x108xbf16, #tpu.memory_space<vmem>>, vector<1x1x36x108xbf16>
    %18 = vector.shape_cast %17 : vector<1x1x36x108xbf16> to vector<36x108xbf16>
    %c3_23 = arith.constant 3 : index
    %c0_24 = arith.constant 0 : index
    %c0_25 = arith.constant 0 : index
    %19 = vector.load %arg2[%c3_23, %c0_24, %c0_25] : memref<6x108x1024xbf16, #tpu.memory_space<vmem>>, vector<1x108x1024xbf16>
    %20 = vector.shape_cast %19 : vector<1x108x1024xbf16> to vector<108x1024xbf16>
    %cst_26 = arith.constant dense<0.000000e+00> : vector<36x1024xf32>
    %21 = tpu.matmul %18, %20, %cst_26 {dimension_numbers = #tpu.dot_dimension_numbers<[1], [0], [0], [1], [0, 0, 1, 1], [], []>} : vector<36x108xbf16>, vector<108x1024xbf16>, vector<36x1024xf32> -> vector<36x1024xf32>
    %22 = arith.addf %16, %21 : vector<36x1024xf32>
    %c0_27 = arith.constant 0 : index
    %c4 = arith.constant 4 : index
    %c0_28 = arith.constant 0 : index
    %c0_29 = arith.constant 0 : index
    %23 = vector.load %arg1[%c0_27, %c4, %c0_28, %c0_29] : memref<1x6x36x108xbf16, #tpu.memory_space<vmem>>, vector<1x1x36x108xbf16>
    %24 = vector.shape_cast %23 : vector<1x1x36x108xbf16> to vector<36x108xbf16>
    %c4_30 = arith.constant 4 : index
    %c0_31 = arith.constant 0 : index
    %c0_32 = arith.constant 0 : index
    %25 = vector.load %arg2[%c4_30, %c0_31, %c0_32] : memref<6x108x1024xbf16, #tpu.memory_space<vmem>>, vector<1x108x1024xbf16>
    %26 = vector.shape_cast %25 : vector<1x108x1024xbf16> to vector<108x1024xbf16>
    %cst_33 = arith.constant dense<0.000000e+00> : vector<36x1024xf32>
    %27 = tpu.matmul %24, %26, %cst_33 {dimension_numbers = #tpu.dot_dimension_numbers<[1], [0], [0], [1], [0, 0, 1, 1], [], []>} : vector<36x108xbf16>, vector<108x1024xbf16>, vector<36x1024xf32> -> vector<36x1024xf32>
    %28 = arith.addf %22, %27 : vector<36x1024xf32>
    %c0_34 = arith.constant 0 : index
    %c5 = arith.constant 5 : index
    %c0_35 = arith.constant 0 : index
    %c0_36 = arith.constant 0 : index
    %29 = vector.load %arg1[%c0_34, %c5, %c0_35, %c0_36] : memref<1x6x36x108xbf16, #tpu.memory_space<vmem>>, vector<1x1x36x108xbf16>
    %30 = vector.shape_cast %29 : vector<1x1x36x108xbf16> to vector<36x108xbf16>
    %c5_37 = arith.constant 5 : index
    %c0_38 = arith.constant 0 : index
    %c0_39 = arith.constant 0 : index
    %31 = vector.load %arg2[%c5_37, %c0_38, %c0_39] : memref<6x108x1024xbf16, #tpu.memory_space<vmem>>, vector<1x108x1024xbf16>
    %32 = vector.shape_cast %31 : vector<1x108x1024xbf16> to vector<108x1024xbf16>
    %cst_40 = arith.constant dense<0.000000e+00> : vector<36x1024xf32>
    %33 = tpu.matmul %30, %32, %cst_40 {dimension_numbers = #tpu.dot_dimension_numbers<[1], [0], [0], [1], [0, 0, 1, 1], [], []>} : vector<36x108xbf16>, vector<108x1024xbf16>, vector<36x1024xf32> -> vector<36x1024xf32>
    %34 = arith.addf %28, %33 : vector<36x1024xf32>
    %c0_41 = arith.constant 0 : index
    %c0_42 = arith.constant 0 : index
    %35 = vector.load %arg3[%c0_41, %c0_42] : memref<1x1024xf32, #tpu.memory_space<vmem>>, vector<1x1024xf32>
    %36 = vector.broadcast %35 : vector<1x1024xf32> to vector<36x1024xf32>
    %37 = arith.mulf %34, %36 : vector<36x1024xf32>
    %c0_43 = arith.constant 0 : index
    %c0_44 = arith.constant 0 : index
    %38 = vector.load %arg4[%c0_43, %c0_44] : memref<1x1024xf32, #tpu.memory_space<vmem>>, vector<1x1024xf32>
    %39 = vector.broadcast %38 : vector<1x1024xf32> to vector<36x1024xf32>
    %40 = arith.addf %37, %39 : vector<36x1024xf32>
    %41 = vector.extract_strided_slice %40 {offsets = [0, 0], sizes = [36, 256], strides = [1, 1]} : vector<36x1024xf32> to vector<36x256xf32>
    %42 = vector.extract_strided_slice %40 {offsets = [0, 256], sizes = [36, 256], strides = [1, 1]} : vector<36x1024xf32> to vector<36x256xf32>
    %43 = arith.maximumf %41, %42 : vector<36x256xf32>
    %44 = vector.extract_strided_slice %40 {offsets = [0, 512], sizes = [36, 256], strides = [1, 1]} : vector<36x1024xf32> to vector<36x256xf32>
    %45 = vector.extract_strided_slice %40 {offsets = [0, 768], sizes = [36, 256], strides = [1, 1]} : vector<36x1024xf32> to vector<36x256xf32>
    %46 = arith.maximumf %44, %45 : vector<36x256xf32>
    %47 = arith.maximumf %43, %46 : vector<36x256xf32>
    %cst_45 = arith.constant 0.000000e+00 : f32
    %48 = vector.broadcast %cst_45 : f32 to vector<36x256xf32>
    %49 = arith.maximumf %47, %48 : vector<36x256xf32>
    %50 = arith.truncf %49 : vector<36x256xf32> to vector<36x256xbf16>
    %c0_46 = arith.constant 0 : index
    %c0_47 = arith.constant 0 : index
    %51 = vector.load %arg5[%c0_46, %c0_47] : memref<36x256xbf16, #tpu.memory_space<vmem>>, vector<36x256xbf16>
    tpu.vector_store %arg5[%c0_46, %c0_47], %50 {strides = array<i32>} : memref<36x256xbf16, #tpu.memory_space<vmem>>, vector<36x256xbf16>,
    return
  }
  func.func @transform_0(%arg0: i32) -> (i32, i32, i32, i32) {
    %c0_i32 = arith.constant 0 : i32
    %c0_i32_0 = arith.constant 0 : i32
    %c0_i32_1 = arith.constant 0 : i32
    %c0_i32_2 = arith.constant 0 : i32
    return %arg0, %c0_i32, %c0_i32_0, %c0_i32_1 : i32, i32, i32, i32
  }
  func.func @transform_1(%arg0: i32) -> (i32, i32, i32) {
    %c0_i32 = arith.constant 0 : i32
    %c0_i32_0 = arith.constant 0 : i32
    %c0_i32_1 = arith.constant 0 : i32
    %c0_i32_2 = arith.constant 0 : i32
    return %c0_i32, %c0_i32_0, %c0_i32_1 : i32, i32, i32
  }
  func.func @transform_2(%arg0: i32) -> (i32, i32) {
    %c0_i32 = arith.constant 0 : i32
    %c0_i32_0 = arith.constant 0 : i32
    %c0_i32_1 = arith.constant 0 : i32
    return %c0_i32, %c0_i32_0 : i32, i32
  }
  func.func @transform_3(%arg0: i32) -> (i32, i32) {
    %c0_i32 = arith.constant 0 : i32
    %c0_i32_0 = arith.constant 0 : i32
    %c0_i32_1 = arith.constant 0 : i32
    return %c0_i32, %c0_i32_0 : i32, i32
  }
  func.func @transform_4(%arg0: i32) -> (i32, i32) {
    %c0_i32 = arith.constant 0 : i32
    %c0_i32_0 = arith.constant 0 : i32
    return %arg0, %c0_i32 : i32, i32
  }
}

module attributes {stable_mosaic.version = 11 : i64} {
  func.func @_conv_bn_relu_pool_kernel(%arg0: i32, %arg1: memref<1x6x20x320xbf16, #tpu.memory_space<vmem>>, %arg2: memref<6x320x1024xbf16, #tpu.memory_space<vmem>>, %arg3: memref<1x1024xf32, #tpu.memory_space<vmem>>, %arg4: memref<1x1024xf32, #tpu.memory_space<vmem>>, %arg5: memref<20x256xbf16, #tpu.memory_space<vmem>>) attributes {dimension_semantics = [#tpu.dimension_semantics<parallel>], iteration_bounds = array<i64: 1>, scalar_prefetch = 0 : i64, scratch_operands = 0 : i64, tpu.core_type = #tpu.core_type<tc>, window_params = [{transform_indices = @transform_0, window_bounds = array<i64: 1, 6, 20, 320>}, {pipeline_mode = #tpu.pipeline_mode<synchronous>, transform_indices = @transform_1, window_bounds = array<i64: 6, 320, 1024>}, {pipeline_mode = #tpu.pipeline_mode<synchronous>, transform_indices = @transform_2, window_bounds = array<i64: 1, 1024>}, {pipeline_mode = #tpu.pipeline_mode<synchronous>, transform_indices = @transform_3, window_bounds = array<i64: 1, 1024>}, {transform_indices = @transform_4, window_bounds = array<i64: 20, 256>}]} {
    %c0 = arith.constant 0 : index
    %c0_0 = arith.constant 0 : index
    %c0_1 = arith.constant 0 : index
    %c0_2 = arith.constant 0 : index
    %0 = vector.load %arg1[%c0, %c0_0, %c0_1, %c0_2] : memref<1x6x20x320xbf16, #tpu.memory_space<vmem>>, vector<1x1x20x320xbf16>
    %1 = vector.shape_cast %0 : vector<1x1x20x320xbf16> to vector<20x320xbf16>
    %c0_3 = arith.constant 0 : index
    %c0_4 = arith.constant 0 : index
    %c0_5 = arith.constant 0 : index
    %2 = vector.load %arg2[%c0_3, %c0_4, %c0_5] : memref<6x320x1024xbf16, #tpu.memory_space<vmem>>, vector<1x320x1024xbf16>
    %3 = vector.shape_cast %2 : vector<1x320x1024xbf16> to vector<320x1024xbf16>
    %cst = arith.constant dense<0.000000e+00> : vector<20x1024xf32>
    %4 = tpu.matmul %1, %3, %cst {dimension_numbers = #tpu.dot_dimension_numbers<[1], [0], [0], [1], [0, 0, 1, 1], [], []>} : vector<20x320xbf16>, vector<320x1024xbf16>, vector<20x1024xf32> -> vector<20x1024xf32>
    %c0_6 = arith.constant 0 : index
    %c1 = arith.constant 1 : index
    %c0_7 = arith.constant 0 : index
    %c0_8 = arith.constant 0 : index
    %5 = vector.load %arg1[%c0_6, %c1, %c0_7, %c0_8] : memref<1x6x20x320xbf16, #tpu.memory_space<vmem>>, vector<1x1x20x320xbf16>
    %6 = vector.shape_cast %5 : vector<1x1x20x320xbf16> to vector<20x320xbf16>
    %c1_9 = arith.constant 1 : index
    %c0_10 = arith.constant 0 : index
    %c0_11 = arith.constant 0 : index
    %7 = vector.load %arg2[%c1_9, %c0_10, %c0_11] : memref<6x320x1024xbf16, #tpu.memory_space<vmem>>, vector<1x320x1024xbf16>
    %8 = vector.shape_cast %7 : vector<1x320x1024xbf16> to vector<320x1024xbf16>
    %cst_12 = arith.constant dense<0.000000e+00> : vector<20x1024xf32>
    %9 = tpu.matmul %6, %8, %cst_12 {dimension_numbers = #tpu.dot_dimension_numbers<[1], [0], [0], [1], [0, 0, 1, 1], [], []>} : vector<20x320xbf16>, vector<320x1024xbf16>, vector<20x1024xf32> -> vector<20x1024xf32>
    %10 = arith.addf %4, %9 : vector<20x1024xf32>
    %c0_13 = arith.constant 0 : index
    %c2 = arith.constant 2 : index
    %c0_14 = arith.constant 0 : index
    %c0_15 = arith.constant 0 : index
    %11 = vector.load %arg1[%c0_13, %c2, %c0_14, %c0_15] : memref<1x6x20x320xbf16, #tpu.memory_space<vmem>>, vector<1x1x20x320xbf16>
    %12 = vector.shape_cast %11 : vector<1x1x20x320xbf16> to vector<20x320xbf16>
    %c2_16 = arith.constant 2 : index
    %c0_17 = arith.constant 0 : index
    %c0_18 = arith.constant 0 : index
    %13 = vector.load %arg2[%c2_16, %c0_17, %c0_18] : memref<6x320x1024xbf16, #tpu.memory_space<vmem>>, vector<1x320x1024xbf16>
    %14 = vector.shape_cast %13 : vector<1x320x1024xbf16> to vector<320x1024xbf16>
    %cst_19 = arith.constant dense<0.000000e+00> : vector<20x1024xf32>
    %15 = tpu.matmul %12, %14, %cst_19 {dimension_numbers = #tpu.dot_dimension_numbers<[1], [0], [0], [1], [0, 0, 1, 1], [], []>} : vector<20x320xbf16>, vector<320x1024xbf16>, vector<20x1024xf32> -> vector<20x1024xf32>
    %16 = arith.addf %10, %15 : vector<20x1024xf32>
    %c0_20 = arith.constant 0 : index
    %c3 = arith.constant 3 : index
    %c0_21 = arith.constant 0 : index
    %c0_22 = arith.constant 0 : index
    %17 = vector.load %arg1[%c0_20, %c3, %c0_21, %c0_22] : memref<1x6x20x320xbf16, #tpu.memory_space<vmem>>, vector<1x1x20x320xbf16>
    %18 = vector.shape_cast %17 : vector<1x1x20x320xbf16> to vector<20x320xbf16>
    %c3_23 = arith.constant 3 : index
    %c0_24 = arith.constant 0 : index
    %c0_25 = arith.constant 0 : index
    %19 = vector.load %arg2[%c3_23, %c0_24, %c0_25] : memref<6x320x1024xbf16, #tpu.memory_space<vmem>>, vector<1x320x1024xbf16>
    %20 = vector.shape_cast %19 : vector<1x320x1024xbf16> to vector<320x1024xbf16>
    %cst_26 = arith.constant dense<0.000000e+00> : vector<20x1024xf32>
    %21 = tpu.matmul %18, %20, %cst_26 {dimension_numbers = #tpu.dot_dimension_numbers<[1], [0], [0], [1], [0, 0, 1, 1], [], []>} : vector<20x320xbf16>, vector<320x1024xbf16>, vector<20x1024xf32> -> vector<20x1024xf32>
    %22 = arith.addf %16, %21 : vector<20x1024xf32>
    %c0_27 = arith.constant 0 : index
    %c4 = arith.constant 4 : index
    %c0_28 = arith.constant 0 : index
    %c0_29 = arith.constant 0 : index
    %23 = vector.load %arg1[%c0_27, %c4, %c0_28, %c0_29] : memref<1x6x20x320xbf16, #tpu.memory_space<vmem>>, vector<1x1x20x320xbf16>
    %24 = vector.shape_cast %23 : vector<1x1x20x320xbf16> to vector<20x320xbf16>
    %c4_30 = arith.constant 4 : index
    %c0_31 = arith.constant 0 : index
    %c0_32 = arith.constant 0 : index
    %25 = vector.load %arg2[%c4_30, %c0_31, %c0_32] : memref<6x320x1024xbf16, #tpu.memory_space<vmem>>, vector<1x320x1024xbf16>
    %26 = vector.shape_cast %25 : vector<1x320x1024xbf16> to vector<320x1024xbf16>
    %cst_33 = arith.constant dense<0.000000e+00> : vector<20x1024xf32>
    %27 = tpu.matmul %24, %26, %cst_33 {dimension_numbers = #tpu.dot_dimension_numbers<[1], [0], [0], [1], [0, 0, 1, 1], [], []>} : vector<20x320xbf16>, vector<320x1024xbf16>, vector<20x1024xf32> -> vector<20x1024xf32>
    %28 = arith.addf %22, %27 : vector<20x1024xf32>
    %c0_34 = arith.constant 0 : index
    %c5 = arith.constant 5 : index
    %c0_35 = arith.constant 0 : index
    %c0_36 = arith.constant 0 : index
    %29 = vector.load %arg1[%c0_34, %c5, %c0_35, %c0_36] : memref<1x6x20x320xbf16, #tpu.memory_space<vmem>>, vector<1x1x20x320xbf16>
    %30 = vector.shape_cast %29 : vector<1x1x20x320xbf16> to vector<20x320xbf16>
    %c5_37 = arith.constant 5 : index
    %c0_38 = arith.constant 0 : index
    %c0_39 = arith.constant 0 : index
    %31 = vector.load %arg2[%c5_37, %c0_38, %c0_39] : memref<6x320x1024xbf16, #tpu.memory_space<vmem>>, vector<1x320x1024xbf16>
    %32 = vector.shape_cast %31 : vector<1x320x1024xbf16> to vector<320x1024xbf16>
    %cst_40 = arith.constant dense<0.000000e+00> : vector<20x1024xf32>
    %33 = tpu.matmul %30, %32, %cst_40 {dimension_numbers = #tpu.dot_dimension_numbers<[1], [0], [0], [1], [0, 0, 1, 1], [], []>} : vector<20x320xbf16>, vector<320x1024xbf16>, vector<20x1024xf32> -> vector<20x1024xf32>
    %34 = arith.addf %28, %33 : vector<20x1024xf32>
    %c0_41 = arith.constant 0 : index
    %c0_42 = arith.constant 0 : index
    %35 = vector.load %arg3[%c0_41, %c0_42] : memref<1x1024xf32, #tpu.memory_space<vmem>>, vector<1x1024xf32>
    %36 = vector.broadcast %35 : vector<1x1024xf32> to vector<20x1024xf32>
    %37 = arith.mulf %34, %36 : vector<20x1024xf32>
    %c0_43 = arith.constant 0 : index
    %c0_44 = arith.constant 0 : index
    %38 = vector.load %arg4[%c0_43, %c0_44] : memref<1x1024xf32, #tpu.memory_space<vmem>>, vector<1x1024xf32>
    %39 = vector.broadcast %38 : vector<1x1024xf32> to vector<20x1024xf32>
    %40 = arith.addf %37, %39 : vector<20x1024xf32>
    %41 = vector.extract_strided_slice %40 {offsets = [0, 0], sizes = [20, 256], strides = [1, 1]} : vector<20x1024xf32> to vector<20x256xf32>
    %42 = vector.extract_strided_slice %40 {offsets = [0, 256], sizes = [20, 256], strides = [1, 1]} : vector<20x1024xf32> to vector<20x256xf32>
    %43 = arith.maximumf %41, %42 : vector<20x256xf32>
    %44 = vector.extract_strided_slice %40 {offsets = [0, 512], sizes = [20, 256], strides = [1, 1]} : vector<20x1024xf32> to vector<20x256xf32>
    %45 = vector.extract_strided_slice %40 {offsets = [0, 768], sizes = [20, 256], strides = [1, 1]} : vector<20x1024xf32> to vector<20x256xf32>
    %46 = arith.maximumf %44, %45 : vector<20x256xf32>
    %47 = arith.maximumf %43, %46 : vector<20x256xf32>
    %cst_45 = arith.constant 0.000000e+00 : f32
    %48 = vector.broadcast %cst_45 : f32 to vector<20x256xf32>
    %49 = arith.maximumf %47, %48 : vector<20x256xf32>
    %50 = arith.truncf %49 : vector<20x256xf32> to vector<20x256xbf16>
    %c0_46 = arith.constant 0 : index
    %c0_47 = arith.constant 0 : index
    %51 = vector.load %arg5[%c0_46, %c0_47] : memref<20x256xbf16, #tpu.memory_space<vmem>>, vector<20x256xbf16>
    tpu.vector_store %arg5[%c0_46, %c0_47], %50 {strides = array<i32>} : memref<20x256xbf16, #tpu.memory_space<vmem>>, vector<20x256xbf16>,
    return
  }
  func.func @transform_0(%arg0: i32) -> (i32, i32, i32, i32) {
    %c0_i32 = arith.constant 0 : i32
    %c0_i32_0 = arith.constant 0 : i32
    %c0_i32_1 = arith.constant 0 : i32
    %c0_i32_2 = arith.constant 0 : i32
    return %arg0, %c0_i32, %c0_i32_0, %c0_i32_1 : i32, i32, i32, i32
  }
  func.func @transform_1(%arg0: i32) -> (i32, i32, i32) {
    %c0_i32 = arith.constant 0 : i32
    %c0_i32_0 = arith.constant 0 : i32
    %c0_i32_1 = arith.constant 0 : i32
    %c0_i32_2 = arith.constant 0 : i32
    return %c0_i32, %c0_i32_0, %c0_i32_1 : i32, i32, i32
  }
  func.func @transform_2(%arg0: i32) -> (i32, i32) {
    %c0_i32 = arith.constant 0 : i32
    %c0_i32_0 = arith.constant 0 : i32
    %c0_i32_1 = arith.constant 0 : i32
    return %c0_i32, %c0_i32_0 : i32, i32
  }
  func.func @transform_3(%arg0: i32) -> (i32, i32) {
    %c0_i32 = arith.constant 0 : i32
    %c0_i32_0 = arith.constant 0 : i32
    %c0_i32_1 = arith.constant 0 : i32
    return %c0_i32, %c0_i32_0 : i32, i32
  }
  func.func @transform_4(%arg0: i32) -> (i32, i32) {
    %c0_i32 = arith.constant 0 : i32
    %c0_i32_0 = arith.constant 0 : i32
    return %arg0, %c0_i32 : i32, i32
  }
}

module attributes {stable_mosaic.version = 11 : i64} {
  func.func @_fc_kernel(%arg0: i32, %arg1: memref<2x2048xbf16, #tpu.memory_space<vmem>>, %arg2: memref<2048x128xbf16, #tpu.memory_space<vmem>>, %arg3: memref<1x128xf32, #tpu.memory_space<vmem>>, %arg4: memref<2x128xf32, #tpu.memory_space<vmem>>) attributes {dimension_semantics = [#tpu.dimension_semantics<parallel>], iteration_bounds = array<i64: 1>, scalar_prefetch = 0 : i64, scratch_operands = 0 : i64, tpu.core_type = #tpu.core_type<tc>, window_params = [{transform_indices = @transform_0, window_bounds = array<i64: 2, 2048>}, {pipeline_mode = #tpu.pipeline_mode<synchronous>, transform_indices = @transform_1, window_bounds = array<i64: 2048, 128>}, {pipeline_mode = #tpu.pipeline_mode<synchronous>, transform_indices = @transform_2, window_bounds = array<i64: 1, 128>}, {transform_indices = @transform_3, window_bounds = array<i64: 2, 128>}]} {
    %c0 = arith.constant 0 : index
    %c0_0 = arith.constant 0 : index
    %0 = vector.load %arg1[%c0, %c0_0] : memref<2x2048xbf16, #tpu.memory_space<vmem>>, vector<2x2048xbf16>
    %c0_1 = arith.constant 0 : index
    %c0_2 = arith.constant 0 : index
    %1 = vector.load %arg2[%c0_1, %c0_2] : memref<2048x128xbf16, #tpu.memory_space<vmem>>, vector<2048x128xbf16>
    %cst = arith.constant dense<0.000000e+00> : vector<2x128xf32>
    %2 = tpu.matmul %0, %1, %cst {dimension_numbers = #tpu.dot_dimension_numbers<[1], [0], [0], [1], [0, 0, 1, 1], [], []>} : vector<2x2048xbf16>, vector<2048x128xbf16>, vector<2x128xf32> -> vector<2x128xf32>
    %c0_3 = arith.constant 0 : index
    %c0_4 = arith.constant 0 : index
    %3 = vector.load %arg3[%c0_3, %c0_4] : memref<1x128xf32, #tpu.memory_space<vmem>>, vector<1x128xf32>
    %4 = vector.broadcast %3 : vector<1x128xf32> to vector<2x128xf32>
    %5 = arith.addf %2, %4 : vector<2x128xf32>
    %c0_5 = arith.constant 0 : index
    %c0_6 = arith.constant 0 : index
    %6 = vector.load %arg4[%c0_5, %c0_6] : memref<2x128xf32, #tpu.memory_space<vmem>>, vector<2x128xf32>
    tpu.vector_store %arg4[%c0_5, %c0_6], %5 {strides = array<i32>} : memref<2x128xf32, #tpu.memory_space<vmem>>, vector<2x128xf32>,
    return
  }
  func.func @transform_0(%arg0: i32) -> (i32, i32) {
    %c0_i32 = arith.constant 0 : i32
    %c0_i32_0 = arith.constant 0 : i32
    return %arg0, %c0_i32 : i32, i32
  }
  func.func @transform_1(%arg0: i32) -> (i32, i32) {
    %c0_i32 = arith.constant 0 : i32
    %c0_i32_0 = arith.constant 0 : i32
    %c0_i32_1 = arith.constant 0 : i32
    return %c0_i32, %c0_i32_0 : i32, i32
  }
  func.func @transform_2(%arg0: i32) -> (i32, i32) {
    %c0_i32 = arith.constant 0 : i32
    %c0_i32_0 = arith.constant 0 : i32
    %c0_i32_1 = arith.constant 0 : i32
    return %c0_i32, %c0_i32_0 : i32, i32
  }
  func.func @transform_3(%arg0: i32) -> (i32, i32) {
    %c0_i32 = arith.constant 0 : i32
    %c0_i32_0 = arith.constant 0 : i32
    return %arg0, %c0_i32 : i32, i32
  }
}

</mosaic_0001>

<llo_original>
// kernel: convnet_forward.3
$region0: #{convnet_forward.3}
  #allocation0 [shape = 'u32[]', space=smem, size = 0x4, offset = 0x4, fixed_abs, tag = 'smem constant byte address 0x4 - core index']
  #allocation1 [shape = 'u32[144,128]{1,0:T(1,128)}', space=vmem, size = 0x12000, scoped, tag = 'internal scratch']
  %s0 = inlined_call_operand.vmem [shape: bf16[1,6,36,108], index: 0, kind: input, shape index: {}]
  %s1 = inlined_call_operand.hbm [shape: bf16[6,108,1024], index: 1, kind: input, shape index: {}]
  %s2 = inlined_call_operand.hbm [shape: f32[1,1024], index: 2, kind: input, shape index: {}]
  %s3 = inlined_call_operand.hbm [shape: f32[1,1024], index: 3, kind: input, shape index: {}]
  %s4 = inlined_call_operand.vmem [shape: bf16[36,256], index: 4, kind: output, shape index: {}]
  %s5 = sld [smem:[#allocation0]]
  $region38: #{convnet_forward.3} parent=0
    _
  %s7 = ssub.s32 1, %s5
  %s8 = scalar_select 0, %s7, %s5
  $region1: #{convnet_forward.3} parent=0
    #allocation2 [shape = 'u8[1376256]{0}', space=vmem, size = 0x150000, scoped, tag = 'input window, operand 1, single buffered']
    #allocation3 [shape = 's32[1]{0}', space=sflag, size = 0x4, scoped, tag = 'scoped memory for convnet_forward.3']
    #allocation4 [shape = 'u8[4096]{0}', space=vmem, size = 0x1000, scoped, tag = 'input window, operand 2, single buffered']
    #allocation5 [shape = 's32[1]{0}', space=sflag, size = 0x4, scoped, tag = 'scoped memory for convnet_forward.3']
    #allocation6 [shape = 'u8[4096]{0}', space=vmem, size = 0x1000, scoped, tag = 'input window, operand 3, single buffered']
    %9 = vsyncpa [#allocation3], 0
    %10 = vsyncpa [#allocation5], 0
    // Predicated region
    $region2: #{convnet_forward.3} parent=1 // pred_check
      _
    $region3: #{convnet_forward.3} parent=1 // pred_check_branch
      %12 = sbr.rel (0) target = $region5
    $region4: #{convnet_forward.3} parent=1 // pred_region
      _
    $region5: #{convnet_forward.3} parent=1 // pred_fallthru
      _
    // Predicated region
    $region6: #{convnet_forward.3} parent=1 // pred_check
      _
    $region7: #{convnet_forward.3} parent=1 // pred_check_branch
      %14 = sbr.rel (0) target = $region9
    $region8: #{convnet_forward.3} parent=1 // pred_region
      %s16 = ssub.s32 43008, 43008
      %17 = vsyncadd [#allocation3], %s16
      %s18 = sshll.u32 [#allocation2], 4
      %s19 = int_to_ptr.vmem [resolvable:$true] %s18
      %24 = dma.hbm_to_vmem [thread:$0]  %s1, 43008, %s19, [#allocation3], 512, 512, 32
    $region9: #{convnet_forward.3} parent=1 // pred_fallthru
      _
    // Predicated region
    $region10: #{convnet_forward.3} parent=1 // pred_check
      _
    $region11: #{convnet_forward.3} parent=1 // pred_check_branch
      %26 = sbr.rel (0) target = $region13
    $region12: #{convnet_forward.3} parent=1 // pred_region
      %s28 = ssub.s32 128, 128
      %29 = vsyncadd [#allocation5], %s28
      %s31 = sshll.u32 [#allocation4], 4
      %s32 = int_to_ptr.vmem [resolvable:$true] %s31
      %34 = dma.hbm_to_vmem [thread:$0]  %s2, 128, %s32, [#allocation5]
    $region13: #{convnet_forward.3} parent=1 // pred_fallthru
      _
    // Predicated region
    $region14: #{convnet_forward.3} parent=1 // pred_check
      _
    $region15: #{convnet_forward.3} parent=1 // pred_check_branch
      %36 = sbr.rel (0) target = $region17
    $region16: #{convnet_forward.3} parent=1 // pred_region
      %s38 = ssub.s32 128, 128
      %39 = vsyncadd [#allocation5], %s38
      %s41 = sshll.u32 [#allocation6], 4
      %s42 = int_to_ptr.vmem [resolvable:$true] %s41
      %44 = dma.hbm_to_vmem [thread:$0]  %s3, 128, %s42, [#allocation5]
    $region17: #{convnet_forward.3} parent=1 // pred_fallthru
      _
    // Predicated region
    $region18: #{convnet_forward.3} parent=1 // pred_check
      _
    $region19: #{convnet_forward.3} parent=1 // pred_check_branch
      %46 = sbr.rel (0) target = $region21
    $region20: #{convnet_forward.3} parent=1 // pred_region
      %47 = dma.done [#allocation3], 43008
    $region21: #{convnet_forward.3} parent=1 // pred_fallthru
      _
    // Predicated region
    $region22: #{convnet_forward.3} parent=1 // pred_check
      _
    $region23: #{convnet_forward.3} parent=1 // pred_check_branch
      %49 = sbr.rel (0) target = $region25
    $region24: #{convnet_forward.3} parent=1 // pred_region
      %50 = dma.done [#allocation5], 128
    $region25: #{convnet_forward.3} parent=1 // pred_fallthru
      _
    // Predicated region
    $region26: #{convnet_forward.3} parent=1 // pred_check
      _
    $region27: #{convnet_forward.3} parent=1 // pred_check_branch
      %52 = sbr.rel (0) target = $region29
    $region28: #{convnet_forward.3} parent=1 // pred_region
      %53 = dma.done [#allocation5], 128
    $region29: #{convnet_forward.3} parent=1 // pred_fallthru
      _
    %v55 = vld [vmem:[%s0] sm:$0xf]
    %v56 = vld [vmem:[%s0 + $0x4] sm:$0xf]
    %v57 = vld [vmem:[%s0 + $0x8] sm:$0xf]
    %v58 = vld [vmem:[%s0 + $0xc] sm:$0xf]
    %v59 = vld [vmem:[%s0 + $0x10] sm:$0x3]
    %v60 = vld [vmem:[#allocation2] sm:$0xff]
    %v61 = vld [vmem:[#allocation2 + $0x8] sm:$0xff]
    %v62 = vld [vmem:[#allocation2 + $0x10] sm:$0xff]
    %v63 = vld [vmem:[#allocation2 + $0x18] sm:$0xff]
    %v64 = vld [vmem:[#allocation2 + $0x20] sm:$0xff]
    %v65 = vld [vmem:[#allocation2 + $0x28] sm:$0xff]
    %v66 = vld [vmem:[#allocation2 + $0x30] sm:$0xff]
    %v67 = vld [vmem:[#allocation2 + $0x38] sm:$0xff]
    %v68 = vld [vmem:[#allocation2 + $0x40] sm:$0xff]
    %v69 = vld [vmem:[#allocation2 + $0x48] sm:$0xff]
    %v70 = vld [vmem:[#allocation2 + $0x50] sm:$0xff]
    %v71 = vld [vmem:[#allocation2 + $0x58] sm:$0xff]
    %v72 = vld [vmem:[#allocation2 + $0x60] sm:$0xff]
    %v73 = vld [vmem:[#allocation2 + $0x68] sm:$0xff]
    %v74 = vld [vmem:[#allocation2 + $0x70] sm:$0xff]
    %v75 = vld [vmem:[#allocation2 + $0x78] sm:$0xff]
    %v76 = vld [vmem:[#allocation2 + $0x80] sm:$0xff]
    %v77 = vld [vmem:[#allocation2 + $0x88] sm:$0xff]
    %v78 = vld [vmem:[#allocation2 + $0x90] sm:$0xff]
    %v79 = vld [vmem:[#allocation2 + $0x98] sm:$0xff]
    %v80 = vld [vmem:[#allocation2 + $0xa0] sm:$0xff]
    %v81 = vld [vmem:[#allocation2 + $0xa8] sm:$0xff]
    %v82 = vld [vmem:[#allocation2 + $0xb0] sm:$0xff]
    %v83 = vld [vmem:[#allocation2 + $0xb8] sm:$0xff]
    %v84 = vld [vmem:[#allocation2 + $0xc0] sm:$0xff]
    %v85 = vld [vmem:[#allocation2 + $0xc8] sm:$0xff]
    %v86 = vld [vmem:[#allocation2 + $0xd0] sm:$0xff]
    %v87 = vld [vmem:[#allocation2 + $0xd8] sm:$0xff]
    %v88 = vld [vmem:[#allocation2 + $0xe0] sm:$0xff]
    %v89 = vld [vmem:[#allocation2 + $0xe8] sm:$0xff]
    %v90 = vld [vmem:[#allocation2 + $0xf0] sm:$0xff]
    %v91 = vld [vmem:[#allocation2 + $0xf8] sm:$0xff]
    %v92 = vld [vmem:[#allocation2 + $0x100] sm:$0xff]
    %v93 = vld [vmem:[#allocation2 + $0x108] sm:$0xff]
    %v94 = vld [vmem:[#allocation2 + $0x110] sm:$0xff]
    %v95 = vld [vmem:[#allocation2 + $0x118] sm:$0xff]
    %v96 = vld [vmem:[#allocation2 + $0x120] sm:$0xff]
    %v97 = vld [vmem:[#allocation2 + $0x128] sm:$0xff]
    %v98 = vld [vmem:[#allocation2 + $0x130] sm:$0xff]
    %v99 = vld [vmem:[#allocation2 + $0x138] sm:$0xff]
    %v100 = vld [vmem:[#allocation2 + $0x140] sm:$0xff]
    %v101 = vld [vmem:[#allocation2 + $0x148] sm:$0xff]
    %v102 = vld [vmem:[#allocation2 + $0x150] sm:$0xff]
    %v103 = vld [vmem:[#allocation2 + $0x158] sm:$0xff]
    %v104 = vld [vmem:[#allocation2 + $0x160] sm:$0xff]
    %v105 = vld [vmem:[#allocation2 + $0x168] sm:$0xff]
    %v106 = vld [vmem:[#allocation2 + $0x170] sm:$0xff]
    %v107 = vld [vmem:[#allocation2 + $0x178] sm:$0xff]
    %v108 = vld [vmem:[#allocation2 + $0x180] sm:$0xff]
    %v109 = vld [vmem:[#allocation2 + $0x188] sm:$0xff]
    %v110 = vld [vmem:[#allocation2 + $0x190] sm:$0xff]
    %v111 = vld [vmem:[#allocation2 + $0x198] sm:$0xff]
    %v112 = vld [vmem:[#allocation2 + $0x1a0] sm:$0x33]
    %v113 = vld [vmem:[#allocation2 + $0x1a8] sm:$0x33]
    %v114 = vld [vmem:[#allocation2 + $0x1b0] sm:$0x33]
    %v115 = vld [vmem:[#allocation2 + $0x1b8] sm:$0x33]
    %s116 = scalar_lea.vmem %s0, 20
    %v117 = vld [vmem:[%s116] sm:$0xf]
    %v118 = vld [vmem:[%s116 + $0x4] sm:$0xf]
    %v119 = vld [vmem:[%s116 + $0x8] sm:$0xf]
    %v120 = vld [vmem:[%s116 + $0xc] sm:$0xf]
    %v121 = vld [vmem:[%s116 + $0x10] sm:$0x3]
    %s122 = scalar_lea.vmem [#allocation2], 448
    %v123 = vld [vmem:[%s122] sm:$0xff]
    %v124 = vld [vmem:[%s122 + $0x8] sm:$0xff]
    %v125 = vld [vmem:[%s122 + $0x10] sm:$0xff]
    %v126 = vld [vmem:[%s122 + $0x18] sm:$0xff]
    %v127 = vld [vmem:[%s122 + $0x20] sm:$0xff]
    %v128 = vld [vmem:[%s122 + $0x28] sm:$0xff]
    %v129 = vld [vmem:[%s122 + $0x30] sm:$0xff]
    %v130 = vld [vmem:[%s122 + $0x38] sm:$0xff]
    %v131 = vld [vmem:[%s122 + $0x40] sm:$0xff]
    %v132 = vld [vmem:[%s122 + $0x48] sm:$0xff]
    %v133 = vld [vmem:[%s122 + $0x50] sm:$0xff]
    %v134 = vld [vmem:[%s122 + $0x58] sm:$0xff]
    %v135 = vld [vmem:[%s122 + $0x60] sm:$0xff]
    %v136 = vld [vmem:[%s122 + $0x68] sm:$0xff]
    %v137 = vld [vmem:[%s122 + $0x70] sm:$0xff]
    %v138 = vld [vmem:[%s122 + $0x78] sm:$0xff]
    %v139 = vld [vmem:[%s122 + $0x80] sm:$0xff]
    %v140 = vld [vmem:[%s122 + $0x88] sm:$0xff]
    %v141 = vld [vmem:[%s122 + $0x90] sm:$0xff]
    %v142 = vld [vmem:[%s122 + $0x98] sm:$0xff]
    %v143 = vld [vmem:[%s122 + $0xa0] sm:$0xff]
    %v144 = vld [vmem:[%s122 + $0xa8] sm:$0xff]
    %v145 = vld [vmem:[%s122 + $0xb0] sm:$0xff]
    %v146 = vld [vmem:[%s122 + $0xb8] sm:$0xff]
    %v147 = vld [vmem:[%s122 + $0xc0] sm:$0xff]
    %v148 = vld [vmem:[%s122 + $0xc8] sm:$0xff]
    %v149 = vld [vmem:[%s122 + $0xd0] sm:$0xff]
    %v150 = vld [vmem:[%s122 + $0xd8] sm:$0xff]
    %v151 = vld [vmem:[%s122 + $0xe0] sm:$0xff]
    %v152 = vld [vmem:[%s122 + $0xe8] sm:$0xff]
    %v153 = vld [vmem:[%s122 + $0xf0] sm:$0xff]
    %v154 = vld [vmem:[%s122 + $0xf8] sm:$0xff]
    %v155 = vld [vmem:[%s122 + $0x100] sm:$0xff]
    %v156 = vld [vmem:[%s122 + $0x108] sm:$0xff]
    %v157 = vld [vmem:[%s122 + $0x110] sm:$0xff]
    %v158 = vld [vmem:[%s122 + $0x118] sm:$0xff]
    %v159 = vld [vmem:[%s122 + $0x120] sm:$0xff]
    %v160 = vld [vmem:[%s122 + $0x128] sm:$0xff]
    %v161 = vld [vmem:[%s122 + $0x130] sm:$0xff]
    %v162 = vld [vmem:[%s122 + $0x138] sm:$0xff]
    %v163 = vld [vmem:[%s122 + $0x140] sm:$0xff]
    %v164 = vld [vmem:[%s122 + $0x148] sm:$0xff]
    %v165 = vld [vmem:[%s122 + $0x150] sm:$0xff]
    %v166 = vld [vmem:[%s122 + $0x158] sm:$0xff]
    %v167 = vld [vmem:[%s122 + $0x160] sm:$0xff]
    %v168 = vld [vmem:[%s122 + $0x168] sm:$0xff]
    %v169 = vld [vmem:[%s122 + $0x170] sm:$0xff]
    %v170 = vld [vmem:[%s122 + $0x178] sm:$0xff]
    %v171 = vld [vmem:[%s122 + $0x180] sm:$0xff]
    %v172 = vld [vmem:[%s122 + $0x188] sm:$0xff]
    %v173 = vld [vmem:[%s122 + $0x190] sm:$0xff]
    %v174 = vld [vmem:[%s122 + $0x198] sm:$0xff]
    %v175 = vld [vmem:[%s122 + $0x1a0] sm:$0x33]
    %v176 = vld [vmem:[%s122 + $0x1a8] sm:$0x33]
    %v177 = vld [vmem:[%s122 + $0x1b0] sm:$0x33]
    %v178 = vld [vmem:[%s122 + $0x1b8] sm:$0x33]
    %v184 = vunpack.c.l.b16 %v117
    %v185 = vunpack.c.l.b16 %v118
    %v186 = vunpack.c.l.b16 %v119
    %v187 = vunpack.c.l.b16 %v120
    %v188 = vunpack.c.l.b16 %v121
    %v189 = vpack.c.b16 %v185, %v184
    %v190 = vpack.c.b16 %v187, %v186
    %v191 = vpack.c.b16 %v188, %v188
    %v248 = vunpack.c.l.b16 %v123
    %v249 = vunpack.c.h.b16 %v123
    %v250 = vunpack.c.l.b16 %v124
    %v251 = vunpack.c.h.b16 %v124
    %v252 = vunpack.c.l.b16 %v125
    %v253 = vunpack.c.h.b16 %v125
    %v254 = vunpack.c.l.b16 %v126
    %v255 = vunpack.c.h.b16 %v126
    %v256 = vunpack.c.l.b16 %v127
    %v257 = vunpack.c.h.b16 %v127
    %v258 = vunpack.c.l.b16 %v128
    %v259 = vunpack.c.h.b16 %v128
    %v260 = vunpack.c.l.b16 %v129
    %v261 = vunpack.c.h.b16 %v129
    %v262 = vunpack.c.l.b16 %v130
    %v263 = vunpack.c.h.b16 %v130
    %v264 = vunpack.c.l.b16 %v131
    %v265 = vunpack.c.h.b16 %v131
    %v266 = vunpack.c.l.b16 %v132
    %v267 = vunpack.c.h.b16 %v132
    %v268 = vunpack.c.l.b16 %v133
    %v269 = vunpack.c.h.b16 %v133
    %v270 = vunpack.c.l.b16 %v134
    %v271 = vunpack.c.h.b16 %v134
    %v272 = vunpack.c.l.b16 %v135
    %v273 = vunpack.c.h.b16 %v135
    %v274 = vunpack.c.l.b16 %v136
    %v275 = vunpack.c.h.b16 %v136
    %v276 = vunpack.c.l.b16 %v137
    %v277 = vunpack.c.h.b16 %v137
    %v278 = vunpack.c.l.b16 %v138
    %v279 = vunpack.c.h.b16 %v138
    %v280 = vunpack.c.l.b16 %v139
    %v281 = vunpack.c.h.b16 %v139
    %v282 = vunpack.c.l.b16 %v140
    %v283 = vunpack.c.h.b16 %v140
    %v284 = vunpack.c.l.b16 %v141
    %v285 = vunpack.c.h.b16 %v141
    %v286 = vunpack.c.l.b16 %v142
    %v287 = vunpack.c.h.b16 %v142
    %v288 = vunpack.c.l.b16 %v143
    %v289 = vunpack.c.h.b16 %v143
    %v290 = vunpack.c.l.b16 %v144
    %v291 = vunpack.c.h.b16 %v144
    %v292 = vunpack.c.l.b16 %v145
    %v293 = vunpack.c.h.b16 %v145
    %v294 = vunpack.c.l.b16 %v146
    %v295 = vunpack.c.h.b16 %v146
    %v296 = vunpack.c.l.b16 %v147
    %v297 = vunpack.c.h.b16 %v147
    %v298 = vunpack.c.l.b16 %v148
    %v299 = vunpack.c.h.b16 %v148
    %v300 = vunpack.c.l.b16 %v149
    %v301 = vunpack.c.h.b16 %v149
    %v302 = vunpack.c.l.b16 %v150
    %v303 = vunpack.c.h.b16 %v150
    %v304 = vunpack.c.l.b16 %v151
    %v305 = vunpack.c.h.b16 %v151
    %v306 = vunpack.c.l.b16 %v152
    %v307 = vunpack.c.h.b16 %v152
    %v308 = vunpack.c.l.b16 %v153
    %v309 = vunpack.c.h.b16 %v153
    %v310 = vunpack.c.l.b16 %v154
    %v311 = vunpack.c.h.b16 %v154
    %v312 = vunpack.c.l.b16 %v155
    %v313 = vunpack.c.h.b16 %v155
    %v314 = vunpack.c.l.b16 %v156
    %v315 = vunpack.c.h.b16 %v156
    %v316 = vunpack.c.l.b16 %v157
    %v317 = vunpack.c.h.b16 %v157
    %v318 = vunpack.c.l.b16 %v158
    %v319 = vunpack.c.h.b16 %v158
    %v320 = vunpack.c.l.b16 %v159
    %v321 = vunpack.c.h.b16 %v159
    %v322 = vunpack.c.l.b16 %v160
    %v323 = vunpack.c.h.b16 %v160
    %v324 = vunpack.c.l.b16 %v161
    %v325 = vunpack.c.h.b16 %v161
    %v326 = vunpack.c.l.b16 %v162
    %v327 = vunpack.c.h.b16 %v162
    %v328 = vunpack.c.l.b16 %v163
    %v329 = vunpack.c.h.b16 %v163
    %v330 = vunpack.c.l.b16 %v164
    %v331 = vunpack.c.h.b16 %v164
    %v332 = vunpack.c.l.b16 %v165
    %v333 = vunpack.c.h.b16 %v165
    %v334 = vunpack.c.l.b16 %v166
    %v335 = vunpack.c.h.b16 %v166
    %v336 = vunpack.c.l.b16 %v167
    %v337 = vunpack.c.h.b16 %v167
    %v338 = vunpack.c.l.b16 %v168
    %v339 = vunpack.c.h.b16 %v168
    %v340 = vunpack.c.l.b16 %v169
    %v341 = vunpack.c.h.b16 %v169
    %v342 = vunpack.c.l.b16 %v170
    %v343 = vunpack.c.h.b16 %v170
    %v344 = vunpack.c.l.b16 %v171
    %v345 = vunpack.c.h.b16 %v171
    %v346 = vunpack.c.l.b16 %v172
    %v347 = vunpack.c.h.b16 %v172
    %v348 = vunpack.c.l.b16 %v173
    %v349 = vunpack.c.h.b16 %v173
    %v350 = vunpack.c.l.b16 %v174
    %v351 = vunpack.c.h.b16 %v174
    %v352 = vunpack.c.l.b16 %v175
    %v353 = vunpack.c.h.b16 %v175
    %v354 = vunpack.c.l.b16 %v176
    %v355 = vunpack.c.h.b16 %v176
    %v356 = vunpack.c.l.b16 %v177
    %v357 = vunpack.c.h.b16 %v177
    %v358 = vunpack.c.l.b16 %v178
    %v359 = vunpack.c.h.b16 %v178
    %v360 = vpack.c.b16 %v256, %v248
    %v361 = vpack.c.b16 %v257, %v249
    %v362 = vpack.c.b16 %v258, %v250
    %v363 = vpack.c.b16 %v259, %v251
    %v364 = vpack.c.b16 %v260, %v252
    %v365 = vpack.c.b16 %v261, %v253
    %v366 = vpack.c.b16 %v262, %v254
    %v367 = vpack.c.b16 %v263, %v255
    %v368 = vpack.c.b16 %v272, %v264
    %v369 = vpack.c.b16 %v273, %v265
    %v370 = vpack.c.b16 %v274, %v266
    %v371 = vpack.c.b16 %v275, %v267
    %v372 = vpack.c.b16 %v276, %v268
    %v373 = vpack.c.b16 %v277, %v269
    %v374 = vpack.c.b16 %v278, %v270
    %v375 = vpack.c.b16 %v279, %v271
    %v376 = vpack.c.b16 %v288, %v280
    %v377 = vpack.c.b16 %v289, %v281
    %v378 = vpack.c.b16 %v290, %v282
    %v379 = vpack.c.b16 %v291, %v283
    %v380 = vpack.c.b16 %v292, %v284
    %v381 = vpack.c.b16 %v293, %v285
    %v382 = vpack.c.b16 %v294, %v286
    %v383 = vpack.c.b16 %v295, %v287
    %v384 = vpack.c.b16 %v304, %v296
    %v385 = vpack.c.b16 %v305, %v297
    %v386 = vpack.c.b16 %v306, %v298
    %v387 = vpack.c.b16 %v307, %v299
    %v388 = vpack.c.b16 %v308, %v300
    %v389 = vpack.c.b16 %v309, %v301
    %v390 = vpack.c.b16 %v310, %v302
    %v391 = vpack.c.b16 %v311, %v303
    %v392 = vpack.c.b16 %v320, %v312
    %v393 = vpack.c.b16 %v321, %v313
    %v394 = vpack.c.b16 %v322, %v314
    %v395 = vpack.c.b16 %v323, %v315
    %v396 = vpack.c.b16 %v324, %v316
    %v397 = vpack.c.b16 %v325, %v317
    %v398 = vpack.c.b16 %v326, %v318
    %v399 = vpack.c.b16 %v327, %v319
    %v400 = vpack.c.b16 %v336, %v328
    %v401 = vpack.c.b16 %v337, %v329
    %v402 = vpack.c.b16 %v338, %v330
    %v403 = vpack.c.b16 %v339, %v331
    %v404 = vpack.c.b16 %v340, %v332
    %v405 = vpack.c.b16 %v341, %v333
    %v406 = vpack.c.b16 %v342, %v334
    %v407 = vpack.c.b16 %v343, %v335
    %v408 = vpack.c.b16 %v352, %v344
    %v409 = vpack.c.b16 %v353, %v345
    %v410 = vpack.c.b16 %v354, %v346
    %v411 = vpack.c.b16 %v355, %v347
    %v412 = vpack.c.b16 %v356, %v348
    %v413 = vpack.c.b16 %v357, %v349
    %v414 = vpack.c.b16 %v358, %v350
    %v415 = vpack.c.b16 %v359, %v351
    %vm464 = vcmask 883712
    %v466 = vsel %vm464, %v189, 0
    %v469 = vsel %vm464, %v190, 0
    %v472 = vsel %vm464, %v191, 0
    %vm474 = vcmask 1045504
    %v476 = vsel %vm474, %v408, 0
    %v479 = vsel %vm474, %v409, 0
    %v482 = vsel %vm474, %v410, 0
    %v485 = vsel %vm474, %v411, 0
    %v488 = vsel %vm474, %v412, 0
    %v491 = vsel %vm474, %v413, 0
    %v494 = vsel %vm474, %v414, 0
    %v497 = vsel %vm474, %v415, 0
    %499 = vmatprep.subr.bf16.mxu0 %v361
    %500 = vmatpush1.bf16.msra.mxu0 %v360
    %501 = vmatprep.subr.bf16.mxu0 %v369
    %502 = vmatpush1.bf16.msra.mxu0 %v368
    %503 = vmatprep.subr.bf16.mxu0 %v377
    %504 = vmatpush1.bf16.msra.mxu0 %v376
    %505 = vmatprep.subr.bf16.mxu0 %v385
    %506 = vmatpush1.bf16.msra.mxu0 %v384
    %507 = vmatprep.subr.bf16.mxu0 %v393
    %508 = vmatpush1.bf16.msra.mxu0 %v392
    %509 = vmatprep.subr.bf16.mxu0 %v401
    %510 = vmatpush1.bf16.msra.mxu0 %v400
    %511 = vmatprep.subr.bf16.mxu0 %v479
    %512 = vmatpush1.bf16.msra.mxu0 %v476
    %513 = vmatprep.subr.bf16.mxu0 0
    %514 = vmatpush1.bf16.msra.mxu0 0
    %515 = vmatprep.subr.bf16.mxu0 0
    %516 = vmatpush1.bf16.msra.mxu0 0
    %517 = vmatprep.subr.bf16.mxu0 0
    %518 = vmatpush1.bf16.msra.mxu0 0
    %519 = vmatprep.subr.bf16.mxu0 0
    %520 = vmatpush1.bf16.msra.mxu0 0
    %521 = vmatprep.subr.bf16.mxu0 0
    %522 = vmatpush1.bf16.msra.mxu0 0
    %523 = vmatprep.subr.bf16.mxu0 0
    %524 = vmatpush1.bf16.msra.mxu0 0
    %525 = vmatprep.subr.bf16.mxu0 0
    %526 = vmatpush1.bf16.msra.mxu0 0
    %527 = vmatprep.subr.bf16.mxu0 0
    %528 = vmatpush1.bf16.msra.mxu0 0
    %529 = vmatprep.subr.bf16.mxu0 0
    %530 = vmatpush1.bf16.msra.mxu0 0
    %531 = vmatprep.mubr.bf16.mxu0 0
    %532 = vmatmul.mubr.bf16.gmra.mrb[0].mxu0 %v466
    %v533 = vpop.f32.mrb[0].mxu0
    %v534 = vadd.f32 0.0, %v533
    %v535 = vpop.f32.mrb[0].mxu0
    %v536 = vadd.f32 0.0, %v535
    %v537 = vpop.f32.mrb[0].mxu0
    %v538 = vadd.f32 0.0, %v537
    %v539 = vpop.f32.mrb[0].mxu0
    %v540 = vadd.f32 0.0, %v539
    %541 = vmatprep.mubr.bf16.mxu0 0
    %542 = vmatmul.mubr.bf16.gmra.mrb[0].mxu0 %v469
    %v543 = vpop.f32.mrb[0].mxu0
    %v544 = vadd.f32 0.0, %v543
    %v545 = vpop.f32.mrb[0].mxu0
    %v546 = vadd.f32 0.0, %v545
    %v547 = vpop.f32.mrb[0].mxu0
    %v548 = vadd.f32 0.0, %v547
    %v549 = vpop.f32.mrb[0].mxu0
    %v550 = vadd.f32 0.0, %v549
    %551 = vmatprep.mubr.bf16.mxu0 0
    %552 = vmatmul.mubr.bf16.gmra.mrb[0].mxu0 %v472
    %v553 = vpop.f32.mrb[0].mxu0
    %v554 = vadd.f32 0.0, %v553
    %v555 = vpop.f32.mrb[0].mxu0
    %v556 = vadd.f32 0.0, %v555
    %v557 = vpop.f32.mrb[0].mxu0
    %v558 = vpop.f32.mrb[0].mxu0
    %559 = vdwg.mxu0
    %560 = vmatprep.subr.bf16.mxu0 %v363
    %561 = vmatpush1.bf16.msra.mxu0 %v362
    %562 = vmatprep.subr.bf16.mxu0 %v371
    %563 = vmatpush1.bf16.msra.mxu0 %v370
    %564 = vmatprep.subr.bf16.mxu0 %v379
    %565 = vmatpush1.bf16.msra.mxu0 %v378
    %566 = vmatprep.subr.bf16.mxu0 %v387
    %567 = vmatpush1.bf16.msra.mxu0 %v386
    %568 = vmatprep.subr.bf16.mxu0 %v395
    %569 = vmatpush1.bf16.msra.mxu0 %v394
    %570 = vmatprep.subr.bf16.mxu0 %v403
    %571 = vmatpush1.bf16.msra.mxu0 %v402
    %572 = vmatprep.subr.bf16.mxu0 %v485
    %573 = vmatpush1.bf16.msra.mxu0 %v482
    %574 = vmatprep.subr.bf16.mxu0 0
    %575 = vmatpush1.bf16.msra.mxu0 0
    %576 = vmatprep.subr.bf16.mxu0 0
    %577 = vmatpush1.bf16.msra.mxu0 0
    %578 = vmatprep.subr.bf16.mxu0 0
    %579 = vmatpush1.bf16.msra.mxu0 0
    %580 = vmatprep.subr.bf16.mxu0 0
    %581 = vmatpush1.bf16.msra.mxu0 0
    %582 = vmatprep.subr.bf16.mxu0 0
    %583 = vmatpush1.bf16.msra.mxu0 0
    %584 = vmatprep.subr.bf16.mxu0 0
    %585 = vmatpush1.bf16.msra.mxu0 0
    %586 = vmatprep.subr.bf16.mxu0 0
    %587 = vmatpush1.bf16.msra.mxu0 0
    %588 = vmatprep.subr.bf16.mxu0 0
    %589 = vmatpush1.bf16.msra.mxu0 0
    %590 = vmatprep.subr.bf16.mxu0 0
    %591 = vmatpush1.bf16.msra.mxu0 0
    %592 = vmatprep.mubr.bf16.mxu0 0
    %593 = vmatmul.mubr.bf16.gmra.mrb[0].mxu0 %v466
    %v594 = vpop.f32.mrb[0].mxu0
    %v595 = vadd.f32 0.0, %v594
    %v596 = vpop.f32.mrb[0].mxu0
    %v597 = vadd.f32 0.0, %v596
    %v598 = vpop.f32.mrb[0].mxu0
    %v599 = vadd.f32 0.0, %v598
    %v600 = vpop.f32.mrb[0].mxu0
    %v601 = vadd.f32 0.0, %v600
    %602 = vmatprep.mubr.bf16.mxu0 0
    %603 = vmatmul.mubr.bf16.gmra.mrb[0].mxu0 %v469
    %v604 = vpop.f32.mrb[0].mxu0
    %v605 = vadd.f32 0.0, %v604
    %v606 = vpop.f32.mrb[0].mxu0
    %v607 = vadd.f32 0.0, %v606
    %v608 = vpop.f32.mrb[0].mxu0
    %v609 = vadd.f32 0.0, %v608
    %v610 = vpop.f32.mrb[0].mxu0
    %v611 = vadd.f32 0.0, %v610
    %612 = vmatprep.mubr.bf16.mxu0 0
    %613 = vmatmul.mubr.bf16.gmra.mrb[0].mxu0 %v472
    %v614 = vpop.f32.mrb[0].mxu0
    %v615 = vadd.f32 0.0, %v614
    %v616 = vpop.f32.mrb[0].mxu0
    %v617 = vadd.f32 0.0, %v616
    %v618 = vpop.f32.mrb[0].mxu0
    %v619 = vpop.f32.mrb[0].mxu0
    %620 = vdwg.mxu0
    %621 = vmatprep.subr.bf16.mxu0 %v365
    %622 = vmatpush1.bf16.msra.mxu0 %v364
    %623 = vmatprep.subr.bf16.mxu0 %v373
    %624 = vmatpush1.bf16.msra.mxu0 %v372
    %625 = vmatprep.subr.bf16.mxu0 %v381
    %626 = vmatpush1.bf16.msra.mxu0 %v380
    %627 = vmatprep.subr.bf16.mxu0 %v389
    %628 = vmatpush1.bf16.msra.mxu0 %v388
    %629 = vmatprep.subr.bf16.mxu0 %v397
    %630 = vmatpush1.bf16.msra.mxu0 %v396
    %631 = vmatprep.subr.bf16.mxu0 %v405
    %632 = vmatpush1.bf16.msra.mxu0 %v404
    %633 = vmatprep.subr.bf16.mxu0 %v491
    %634 = vmatpush1.bf16.msra.mxu0 %v488
    %635 = vmatprep.subr.bf16.mxu0 0
    %636 = vmatpush1.bf16.msra.mxu0 0
    %637 = vmatprep.subr.bf16.mxu0 0
    %638 = vmatpush1.bf16.msra.mxu0 0
    %639 = vmatprep.subr.bf16.mxu0 0
    %640 = vmatpush1.bf16.msra.mxu0 0
    %641 = vmatprep.subr.bf16.mxu0 0
    %642 = vmatpush1.bf16.msra.mxu0 0
    %643 = vmatprep.subr.bf16.mxu0 0
    %644 = vmatpush1.bf16.msra.mxu0 0
    %645 = vmatprep.subr.bf16.mxu0 0
    %646 = vmatpush1.bf16.msra.mxu0 0
    %647 = vmatprep.subr.bf16.mxu0 0
    %648 = vmatpush1.bf16.msra.mxu0 0
    %649 = vmatprep.subr.bf16.mxu0 0
    %650 = vmatpush1.bf16.msra.mxu0 0
    %651 = vmatprep.subr.bf16.mxu0 0
    %652 = vmatpush1.bf16.msra.mxu0 0
    %653 = vmatprep.mubr.bf16.mxu0 0
    %654 = vmatmul.mubr.bf16.gmra.mrb[0].mxu0 %v466
    %v655 = vpop.f32.mrb[0].mxu0
    %v656 = vadd.f32 0.0, %v655
    %v657 = vpop.f32.mrb[0].mxu0
    %v658 = vadd.f32 0.0, %v657
    %v659 = vpop.f32.mrb[0].mxu0
    %v660 = vadd.f32 0.0, %v659
    %v661 = vpop.f32.mrb[0].mxu0
    %v662 = vadd.f32 0.0, %v661
    %663 = vmatprep.mubr.bf16.mxu0 0
    %664 = vmatmul.mubr.bf16.gmra.mrb[0].mxu0 %v469
    %v665 = vpop.f32.mrb[0].mxu0
    %v666 = vadd.f32 0.0, %v665
    %v667 = vpop.f32.mrb[0].mxu0
    %v668 = vadd.f32 0.0, %v667
    %v669 = vpop.f32.mrb[0].mxu0
    %v670 = vadd.f32 0.0, %v669
    %v671 = vpop.f32.mrb[0].mxu0
    %v672 = vadd.f32 0.0, %v671
    %673 = vmatprep.mubr.bf16.mxu0 0
    %674 = vmatmul.mubr.bf16.gmra.mrb[0].mxu0 %v472
    %v675 = vpop.f32.mrb[0].mxu0
    %v676 = vadd.f32 0.0, %v675
    %v677 = vpop.f32.mrb[0].mxu0
    %v678 = vadd.f32 0.0, %v677
    %v679 = vpop.f32.mrb[0].mxu0
    %v680 = vpop.f32.mrb[0].mxu0
    %681 = vdwg.mxu0
    %682 = vmatprep.subr.bf16.mxu0 %v367
    %683 = vmatpush1.bf16.msra.mxu0 %v366
    %684 = vmatprep.subr.bf16.mxu0 %v375
    %685 = vmatpush1.bf16.msra.mxu0 %v374
    %686 = vmatprep.subr.bf16.mxu0 %v383
    %687 = vmatpush1.bf16.msra.mxu0 %v382
    %688 = vmatprep.subr.bf16.mxu0 %v391
    %689 = vmatpush1.bf16.msra.mxu0 %v390
    %690 = vmatprep.subr.bf16.mxu0 %v399
    %691 = vmatpush1.bf16.msra.mxu0 %v398
    %692 = vmatprep.subr.bf16.mxu0 %v407
    %693 = vmatpush1.bf16.msra.mxu0 %v406
    %694 = vmatprep.subr.bf16.mxu0 %v497
    %695 = vmatpush1.bf16.msra.mxu0 %v494
    %696 = vmatprep.subr.bf16.mxu0 0
    %697 = vmatpush1.bf16.msra.mxu0 0
    %698 = vmatprep.subr.bf16.mxu0 0
    %699 = vmatpush1.bf16.msra.mxu0 0
    %700 = vmatprep.subr.bf16.mxu0 0
    %701 = vmatpush1.bf16.msra.mxu0 0
    %702 = vmatprep.subr.bf16.mxu0 0
    %703 = vmatpush1.bf16.msra.mxu0 0
    %704 = vmatprep.subr.bf16.mxu0 0
    %705 = vmatpush1.bf16.msra.mxu0 0
    %706 = vmatprep.subr.bf16.mxu0 0
    %707 = vmatpush1.bf16.msra.mxu0 0
    %708 = vmatprep.subr.bf16.mxu0 0
    %709 = vmatpush1.bf16.msra.mxu0 0
    %710 = vmatprep.subr.bf16.mxu0 0
    %711 = vmatpush1.bf16.msra.mxu0 0
    %712 = vmatprep.subr.bf16.mxu0 0
    %713 = vmatpush1.bf16.msra.mxu0 0
    %714 = vmatprep.mubr.bf16.mxu0 0
    %715 = vmatmul.mubr.bf16.gmra.mrb[0].mxu0 %v466
    %v716 = vpop.f32.mrb[0].mxu0
    %v717 = vadd.f32 0.0, %v716
    %v718 = vpop.f32.mrb[0].mxu0
    %v719 = vadd.f32 0.0, %v718
    %v720 = vpop.f32.mrb[0].mxu0
    %v721 = vadd.f32 0.0, %v720
    %v722 = vpop.f32.mrb[0].mxu0
    %v723 = vadd.f32 0.0, %v722
    %724 = vmatprep.mubr.bf16.mxu0 0
    %725 = vmatmul.mubr.bf16.gmra.mrb[0].mxu0 %v469
    %v726 = vpop.f32.mrb[0].mxu0
    %v727 = vadd.f32 0.0, %v726
    %v728 = vpop.f32.mrb[0].mxu0
    %v729 = vadd.f32 0.0, %v728
    %v730 = vpop.f32.mrb[0].mxu0
    %v731 = vadd.f32 0.0, %v730
    %v732 = vpop.f32.mrb[0].mxu0
    %v733 = vadd.f32 0.0, %v732
    %734 = vmatprep.mubr.bf16.mxu0 0
    %735 = vmatmul.mubr.bf16.gmra.mrb[0].mxu0 %v472
    %v736 = vpop.f32.mrb[0].mxu0
    %v737 = vadd.f32 0.0, %v736
    %v738 = vpop.f32.mrb[0].mxu0
    %v739 = vadd.f32 0.0, %v738
    %v740 = vpop.f32.mrb[0].mxu0
    %v741 = vpop.f32.mrb[0].mxu0
    %742 = vdwg.mxu0
    %v748 = vunpack.c.l.b16 %v55
    %v749 = vunpack.c.l.b16 %v56
    %v750 = vunpack.c.l.b16 %v57
    %v751 = vunpack.c.l.b16 %v58
    %v752 = vunpack.c.l.b16 %v59
    %v753 = vpack.c.b16 %v749, %v748
    %v754 = vpack.c.b16 %v751, %v750
    %v755 = vpack.c.b16 %v752, %v752
    %v812 = vunpack.c.l.b16 %v60
    %v813 = vunpack.c.h.b16 %v60
    %v814 = vunpack.c.l.b16 %v61
    %v815 = vunpack.c.h.b16 %v61
    %v816 = vunpack.c.l.b16 %v62
    %v817 = vunpack.c.h.b16 %v62
    %v818 = vunpack.c.l.b16 %v63
    %v819 = vunpack.c.h.b16 %v63
    %v820 = vunpack.c.l.b16 %v64
    %v821 = vunpack.c.h.b16 %v64
    %v822 = vunpack.c.l.b16 %v65
    %v823 = vunpack.c.h.b16 %v65
    %v824 = vunpack.c.l.b16 %v66
    %v825 = vunpack.c.h.b16 %v66
    %v826 = vunpack.c.l.b16 %v67
    %v827 = vunpack.c.h.b16 %v67
    %v828 = vunpack.c.l.b16 %v68
    %v829 = vunpack.c.h.b16 %v68
    %v830 = vunpack.c.l.b16 %v69
    %v831 = vunpack.c.h.b16 %v69
    %v832 = vunpack.c.l.b16 %v70
    %v833 = vunpack.c.h.b16 %v70
    %v834 = vunpack.c.l.b16 %v71
    %v835 = vunpack.c.h.b16 %v71
    %v836 = vunpack.c.l.b16 %v72
    %v837 = vunpack.c.h.b16 %v72
    %v838 = vunpack.c.l.b16 %v73
    %v839 = vunpack.c.h.b16 %v73
    %v840 = vunpack.c.l.b16 %v74
    %v841 = vunpack.c.h.b16 %v74
    %v842 = vunpack.c.l.b16 %v75
    %v843 = vunpack.c.h.b16 %v75
    %v844 = vunpack.c.l.b16 %v76
    %v845 = vunpack.c.h.b16 %v76
    %v846 = vunpack.c.l.b16 %v77
    %v847 = vunpack.c.h.b16 %v77
    %v848 = vunpack.c.l.b16 %v78
    %v849 = vunpack.c.h.b16 %v78
    %v850 = vunpack.c.l.b16 %v79
    %v851 = vunpack.c.h.b16 %v79
    %v852 = vunpack.c.l.b16 %v80
    %v853 = vunpack.c.h.b16 %v80
    %v854 = vunpack.c.l.b16 %v81
    %v855 = vunpack.c.h.b16 %v81
    %v856 = vunpack.c.l.b16 %v82
    %v857 = vunpack.c.h.b16 %v82
    %v858 = vunpack.c.l.b16 %v83
    %v859 = vunpack.c.h.b16 %v83
    %v860 = vunpack.c.l.b16 %v84
    %v861 = vunpack.c.h.b16 %v84
    %v862 = vunpack.c.l.b16 %v85
    %v863 = vunpack.c.h.b16 %v85
    %v864 = vunpack.c.l.b16 %v86
    %v865 = vunpack.c.h.b16 %v86
    %v866 = vunpack.c.l.b16 %v87
    %v867 = vunpack.c.h.b16 %v87
    %v868 = vunpack.c.l.b16 %v88
    %v869 = vunpack.c.h.b16 %v88
    %v870 = vunpack.c.l.b16 %v89
    %v871 = vunpack.c.h.b16 %v89
    %v872 = vunpack.c.l.b16 %v90
    %v873 = vunpack.c.h.b16 %v90
    %v874 = vunpack.c.l.b16 %v91
    %v875 = vunpack.c.h.b16 %v91
    %v876 = vunpack.c.l.b16 %v92
    %v877 = vunpack.c.h.b16 %v92
    %v878 = vunpack.c.l.b16 %v93
    %v879 = vunpack.c.h.b16 %v93
    %v880 = vunpack.c.l.b16 %v94
    %v881 = vunpack.c.h.b16 %v94
    %v882 = vunpack.c.l.b16 %v95
    %v883 = vunpack.c.h.b16 %v95
    %v884 = vunpack.c.l.b16 %v96
    %v885 = vunpack.c.h.b16 %v96
    %v886 = vunpack.c.l.b16 %v97
    %v887 = vunpack.c.h.b16 %v97
    %v888 = vunpack.c.l.b16 %v98
    %v889 = vunpack.c.h.b16 %v98
    %v890 = vunpack.c.l.b16 %v99
    %v891 = vunpack.c.h.b16 %v99
    %v892 = vunpack.c.l.b16 %v100
    %v893 = vunpack.c.h.b16 %v100
    %v894 = vunpack.c.l.b16 %v101
    %v895 = vunpack.c.h.b16 %v101
    %v896 = vunpack.c.l.b16 %v102
    %v897 = vunpack.c.h.b16 %v102
    %v898 = vunpack.c.l.b16 %v103
    %v899 = vunpack.c.h.b16 %v103
    %v900 = vunpack.c.l.b16 %v104
    %v901 = vunpack.c.h.b16 %v104
    %v902 = vunpack.c.l.b16 %v105
    %v903 = vunpack.c.h.b16 %v105
    %v904 = vunpack.c.l.b16 %v106
    %v905 = vunpack.c.h.b16 %v106
    %v906 = vunpack.c.l.b16 %v107
    %v907 = vunpack.c.h.b16 %v107
    %v908 = vunpack.c.l.b16 %v108
    %v909 = vunpack.c.h.b16 %v108
    %v910 = vunpack.c.l.b16 %v109
    %v911 = vunpack.c.h.b16 %v109
    %v912 = vunpack.c.l.b16 %v110
    %v913 = vunpack.c.h.b16 %v110
    %v914 = vunpack.c.l.b16 %v111
    %v915 = vunpack.c.h.b16 %v111
    %v916 = vunpack.c.l.b16 %v112
    %v917 = vunpack.c.h.b16 %v112
    %v918 = vunpack.c.l.b16 %v113
    %v919 = vunpack.c.h.b16 %v113
    %v920 = vunpack.c.l.b16 %v114
    %v921 = vunpack.c.h.b16 %v114
    %v922 = vunpack.c.l.b16 %v115
    %v923 = vunpack.c.h.b16 %v115
    %v924 = vpack.c.b16 %v820, %v812
    %v925 = vpack.c.b16 %v821, %v813
    %v926 = vpack.c.b16 %v822, %v814
    %v927 = vpack.c.b16 %v823, %v815
    %v928 = vpack.c.b16 %v824, %v816
    %v929 = vpack.c.b16 %v825, %v817
    %v930 = vpack.c.b16 %v826, %v818
    %v931 = vpack.c.b16 %v827, %v819
    %v932 = vpack.c.b16 %v836, %v828
    %v933 = vpack.c.b16 %v837, %v829
    %v934 = vpack.c.b16 %v838, %v830
    %v935 = vpack.c.b16 %v839, %v831
    %v936 = vpack.c.b16 %v840, %v832
    %v937 = vpack.c.b16 %v841, %v833
    %v938 = vpack.c.b16 %v842, %v834
    %v939 = vpack.c.b16 %v843, %v835
    %v940 = vpack.c.b16 %v852, %v844
    %v941 = vpack.c.b16 %v853, %v845
    %v942 = vpack.c.b16 %v854, %v846
    %v943 = vpack.c.b16 %v855, %v847
    %v944 = vpack.c.b16 %v856, %v848
    %v945 = vpack.c.b16 %v857, %v849
    %v946 = vpack.c.b16 %v858, %v850
    %v947 = vpack.c.b16 %v859, %v851
    %v948 = vpack.c.b16 %v868, %v860
    %v949 = vpack.c.b16 %v869, %v861
    %v950 = vpack.c.b16 %v870, %v862
    %v951 = vpack.c.b16 %v871, %v863
    %v952 = vpack.c.b16 %v872, %v864
    %v953 = vpack.c.b16 %v873, %v865
    %v954 = vpack.c.b16 %v874, %v866
    %v955 = vpack.c.b16 %v875, %v867
    %v956 = vpack.c.b16 %v884, %v876
    %v957 = vpack.c.b16 %v885, %v877
    %v958 = vpack.c.b16 %v886, %v878
    %v959 = vpack.c.b16 %v887, %v879
    %v960 = vpack.c.b16 %v888, %v880
    %v961 = vpack.c.b16 %v889, %v881
    %v962 = vpack.c.b16 %v890, %v882
    %v963 = vpack.c.b16 %v891, %v883
    %v964 = vpack.c.b16 %v900, %v892
    %v965 = vpack.c.b16 %v901, %v893
    %v966 = vpack.c.b16 %v902, %v894
    %v967 = vpack.c.b16 %v903, %v895
    %v968 = vpack.c.b16 %v904, %v896
    %v969 = vpack.c.b16 %v905, %v897
    %v970 = vpack.c.b16 %v906, %v898
    %v971 = vpack.c.b16 %v907, %v899
    %v972 = vpack.c.b16 %v916, %v908
    %v973 = vpack.c.b16 %v917, %v909
    %v974 = vpack.c.b16 %v918, %v910
    %v975 = vpack.c.b16 %v919, %v911
    %v976 = vpack.c.b16 %v920, %v912
    %v977 = vpack.c.b16 %v921, %v913
    %v978 = vpack.c.b16 %v922, %v914
    %v979 = vpack.c.b16 %v923, %v915
    %v1029 = vsel %vm464, %v753, 0
    %v1032 = vsel %vm464, %v754, 0
    %v1035 = vsel %vm464, %v755, 0
    %v1038 = vsel %vm474, %v972, 0
    %v1041 = vsel %vm474, %v973, 0
    %v1044 = vsel %vm474, %v974, 0
    %v1047 = vsel %vm474, %v975, 0
    %v1050 = vsel %vm474, %v976, 0
    %v1053 = vsel %vm474, %v977, 0
    %v1056 = vsel %vm474, %v978, 0
    %v1059 = vsel %vm474, %v979, 0
    %1061 = vmatprep.subr.bf16.mxu0 %v925
    %1062 = vmatpush1.bf16.msra.mxu0 %v924
    %1063 = vmatprep.subr.bf16.mxu0 %v933
    %1064 = vmatpush1.bf16.msra.mxu0 %v932
    %1065 = vmatprep.subr.bf16.mxu0 %v941
    %1066 = vmatpush1.bf16.msra.mxu0 %v940
    %1067 = vmatprep.subr.bf16.mxu0 %v949
    %1068 = vmatpush1.bf16.msra.mxu0 %v948
    %1069 = vmatprep.subr.bf16.mxu0 %v957
    %1070 = vmatpush1.bf16.msra.mxu0 %v956
    %1071 = vmatprep.subr.bf16.mxu0 %v965
    %1072 = vmatpush1.bf16.msra.mxu0 %v964
    %1073 = vmatprep.subr.bf16.mxu0 %v1041
    %1074 = vmatpush1.bf16.msra.mxu0 %v1038
    %1075 = vmatprep.subr.bf16.mxu0 0
    %1076 = vmatpush1.bf16.msra.mxu0 0
    %1077 = vmatprep.subr.bf16.mxu0 0
    %1078 = vmatpush1.bf16.msra.mxu0 0
    %1079 = vmatprep.subr.bf16.mxu0 0
    %1080 = vmatpush1.bf16.msra.mxu0 0
    %1081 = vmatprep.subr.bf16.mxu0 0
    %1082 = vmatpush1.bf16.msra.mxu0 0
    %1083 = vmatprep.subr.bf16.mxu0 0
    %1084 = vmatpush1.bf16.msra.mxu0 0
    %1085 = vmatprep.subr.bf16.mxu0 0
    %1086 = vmatpush1.bf16.msra.mxu0 0
    %1087 = vmatprep.subr.bf16.mxu0 0
    %1088 = vmatpush1.bf16.msra.mxu0 0
    %1089 = vmatprep.subr.bf16.mxu0 0
    %1090 = vmatpush1.bf16.msra.mxu0 0
    %1091 = vmatprep.subr.bf16.mxu0 0
    %1092 = vmatpush1.bf16.msra.mxu0 0
    %1093 = vmatprep.mubr.bf16.mxu0 0
    %1094 = vmatmul.mubr.bf16.gmra.mrb[0].mxu0 %v1029
    %v1095 = vpop.f32.mrb[0].mxu0
    %v1096 = vadd.f32 %v534, %v1095
    %v1097 = vpop.f32.mrb[0].mxu0
    %v1098 = vadd.f32 %v536, %v1097
    %v1099 = vpop.f32.mrb[0].mxu0
    %v1100 = vadd.f32 %v538, %v1099
    %v1101 = vpop.f32.mrb[0].mxu0
    %v1102 = vadd.f32 %v540, %v1101
    %1103 = vmatprep.mubr.bf16.mxu0 0
    %1104 = vmatmul.mubr.bf16.gmra.mrb[0].mxu0 %v1032
    %v1105 = vpop.f32.mrb[0].mxu0
    %v1106 = vadd.f32 %v544, %v1105
    %v1107 = vpop.f32.mrb[0].mxu0
    %v1108 = vadd.f32 %v546, %v1107
    %v1109 = vpop.f32.mrb[0].mxu0
    %v1110 = vadd.f32 %v548, %v1109
    %v1111 = vpop.f32.mrb[0].mxu0
    %v1112 = vadd.f32 %v550, %v1111
    %1113 = vmatprep.mubr.bf16.mxu0 0
    %1114 = vmatmul.mubr.bf16.gmra.mrb[0].mxu0 %v1035
    %v1115 = vpop.f32.mrb[0].mxu0
    %v1116 = vadd.f32 %v554, %v1115
    %v1117 = vpop.f32.mrb[0].mxu0
    %v1118 = vadd.f32 %v556, %v1117
    %v1119 = vpop.f32.mrb[0].mxu0
    %v1120 = vpop.f32.mrb[0].mxu0
    %1121 = vdwg.mxu0
    %1122 = vmatprep.subr.bf16.mxu0 %v927
    %1123 = vmatpush1.bf16.msra.mxu0 %v926
    %1124 = vmatprep.subr.bf16.mxu0 %v935
    %1125 = vmatpush1.bf16.msra.mxu0 %v934
    %1126 = vmatprep.subr.bf16.mxu0 %v943
    %1127 = vmatpush1.bf16.msra.mxu0 %v942
    %1128 = vmatprep.subr.bf16.mxu0 %v951
    %1129 = vmatpush1.bf16.msra.mxu0 %v950
    %1130 = vmatprep.subr.bf16.mxu0 %v959
    %1131 = vmatpush1.bf16.msra.mxu0 %v958
    %1132 = vmatprep.subr.bf16.mxu0 %v967
    %1133 = vmatpush1.bf16.msra.mxu0 %v966
    %1134 = vmatprep.subr.bf16.mxu0 %v1047
    %1135 = vmatpush1.bf16.msra.mxu0 %v1044
    %1136 = vmatprep.subr.bf16.mxu0 0
    %1137 = vmatpush1.bf16.msra.mxu0 0
    %1138 = vmatprep.subr.bf16.mxu0 0
    %1139 = vmatpush1.bf16.msra.mxu0 0
    %1140 = vmatprep.subr.bf16.mxu0 0
    %1141 = vmatpush1.bf16.msra.mxu0 0
    %1142 = vmatprep.subr.bf16.mxu0 0
    %1143 = vmatpush1.bf16.msra.mxu0 0
    %1144 = vmatprep.subr.bf16.mxu0 0
    %1145 = vmatpush1.bf16.msra.mxu0 0
    %1146 = vmatprep.subr.bf16.mxu0 0
    %1147 = vmatpush1.bf16.msra.mxu0 0
    %1148 = vmatprep.subr.bf16.mxu0 0
    %1149 = vmatpush1.bf16.msra.mxu0 0
    %1150 = vmatprep.subr.bf16.mxu0 0
    %1151 = vmatpush1.bf16.msra.mxu0 0
    %1152 = vmatprep.subr.bf16.mxu0 0
    %1153 = vmatpush1.bf16.msra.mxu0 0
    %1154 = vmatprep.mubr.bf16.mxu0 0
    %1155 = vmatmul.mubr.bf16.gmra.mrb[0].mxu0 %v1029
    %v1156 = vpop.f32.mrb[0].mxu0
    %v1157 = vadd.f32 %v595, %v1156
    %v1158 = vpop.f32.mrb[0].mxu0
    %v1159 = vadd.f32 %v597, %v1158
    %v1160 = vpop.f32.mrb[0].mxu0
    %v1161 = vadd.f32 %v599, %v1160
    %v1162 = vpop.f32.mrb[0].mxu0
    %v1163 = vadd.f32 %v601, %v1162
    %1164 = vmatprep.mubr.bf16.mxu0 0
    %1165 = vmatmul.mubr.bf16.gmra.mrb[0].mxu0 %v1032
    %v1166 = vpop.f32.mrb[0].mxu0
    %v1167 = vadd.f32 %v605, %v1166
    %v1168 = vpop.f32.mrb[0].mxu0
    %v1169 = vadd.f32 %v607, %v1168
    %v1170 = vpop.f32.mrb[0].mxu0
    %v1171 = vadd.f32 %v609, %v1170
    %v1172 = vpop.f32.mrb[0].mxu0
    %v1173 = vadd.f32 %v611, %v1172
    %1174 = vmatprep.mubr.bf16.mxu0 0
    %1175 = vmatmul.mubr.bf16.gmra.mrb[0].mxu0 %v1035
    %v1176 = vpop.f32.mrb[0].mxu0
    %v1177 = vadd.f32 %v615, %v1176
    %v1178 = vpop.f32.mrb[0].mxu0
    %v1179 = vadd.f32 %v617, %v1178
    %v1180 = vpop.f32.mrb[0].mxu0
    %v1181 = vpop.f32.mrb[0].mxu0
    %1182 = vdwg.mxu0
    %1183 = vmatprep.subr.bf16.mxu0 %v929
    %1184 = vmatpush1.bf16.msra.mxu0 %v928
    %1185 = vmatprep.subr.bf16.mxu0 %v937
    %1186 = vmatpush1.bf16.msra.mxu0 %v936
    %1187 = vmatprep.subr.bf16.mxu0 %v945
    %1188 = vmatpush1.bf16.msra.mxu0 %v944
    %1189 = vmatprep.subr.bf16.mxu0 %v953
    %1190 = vmatpush1.bf16.msra.mxu0 %v952
    %1191 = vmatprep.subr.bf16.mxu0 %v961
    %1192 = vmatpush1.bf16.msra.mxu0 %v960
    %1193 = vmatprep.subr.bf16.mxu0 %v969
    %1194 = vmatpush1.bf16.msra.mxu0 %v968
    %1195 = vmatprep.subr.bf16.mxu0 %v1053
    %1196 = vmatpush1.bf16.msra.mxu0 %v1050
    %1197 = vmatprep.subr.bf16.mxu0 0
    %1198 = vmatpush1.bf16.msra.mxu0 0
    %1199 = vmatprep.subr.bf16.mxu0 0
    %1200 = vmatpush1.bf16.msra.mxu0 0
    %1201 = vmatprep.subr.bf16.mxu0 0
    %1202 = vmatpush1.bf16.msra.mxu0 0
    %1203 = vmatprep.subr.bf16.mxu0 0
    %1204 = vmatpush1.bf16.msra.mxu0 0
    %1205 = vmatprep.subr.bf16.mxu0 0
    %1206 = vmatpush1.bf16.msra.mxu0 0
    %1207 = vmatprep.subr.bf16.mxu0 0
    %1208 = vmatpush1.bf16.msra.mxu0 0
    %1209 = vmatprep.subr.bf16.mxu0 0
    %1210 = vmatpush1.bf16.msra.mxu0 0
    %1211 = vmatprep.subr.bf16.mxu0 0
    %1212 = vmatpush1.bf16.msra.mxu0 0
    %1213 = vmatprep.subr.bf16.mxu0 0
    %1214 = vmatpush1.bf16.msra.mxu0 0
    %1215 = vmatprep.mubr.bf16.mxu0 0
    %1216 = vmatmul.mubr.bf16.gmra.mrb[0].mxu0 %v1029
    %v1217 = vpop.f32.mrb[0].mxu0
    %v1218 = vadd.f32 %v656, %v1217
    %v1219 = vpop.f32.mrb[0].mxu0
    %v1220 = vadd.f32 %v658, %v1219
    %v1221 = vpop.f32.mrb[0].mxu0
    %v1222 = vadd.f32 %v660, %v1221
    %v1223 = vpop.f32.mrb[0].mxu0
    %v1224 = vadd.f32 %v662, %v1223
    %1225 = vmatprep.mubr.bf16.mxu0 0
    %1226 = vmatmul.mubr.bf16.gmra.mrb[0].mxu0 %v1032
    %v1227 = vpop.f32.mrb[0].mxu0
    %v1228 = vadd.f32 %v666, %v1227
    %v1229 = vpop.f32.mrb[0].mxu0
    %v1230 = vadd.f32 %v668, %v1229
    %v1231 = vpop.f32.mrb[0].mxu0
    %v1232 = vadd.f32 %v670, %v1231
    %v1233 = vpop.f32.mrb[0].mxu0
    %v1234 = vadd.f32 %v672, %v1233
    %1235 = vmatprep.mubr.bf16.mxu0 0
    %1236 = vmatmul.mubr.bf16.gmra.mrb[0].mxu0 %v1035
    %v1237 = vpop.f32.mrb[0].mxu0
    %v1238 = vadd.f32 %v676, %v1237
    %v1239 = vpop.f32.mrb[0].mxu0
    %v1240 = vadd.f32 %v678, %v1239
    %v1241 = vpop.f32.mrb[0].mxu0
    %v1242 = vpop.f32.mrb[0].mxu0
    %1243 = vdwg.mxu0
    %1244 = vmatprep.subr.bf16.mxu0 %v931
    %1245 = vmatpush1.bf16.msra.mxu0 %v930
    %1246 = vmatprep.subr.bf16.mxu0 %v939
    %1247 = vmatpush1.bf16.msra.mxu0 %v938
    %1248 = vmatprep.subr.bf16.mxu0 %v947
    %1249 = vmatpush1.bf16.msra.mxu0 %v946
    %1250 = vmatprep.subr.bf16.mxu0 %v955
    %1251 = vmatpush1.bf16.msra.mxu0 %v954
    %1252 = vmatprep.subr.bf16.mxu0 %v963
    %1253 = vmatpush1.bf16.msra.mxu0 %v962
    %1254 = vmatprep.subr.bf16.mxu0 %v971
    %1255 = vmatpush1.bf16.msra.mxu0 %v970
    %1256 = vmatprep.subr.bf16.mxu0 %v1059
    %1257 = vmatpush1.bf16.msra.mxu0 %v1056
    %1258 = vmatprep.subr.bf16.mxu0 0
    %1259 = vmatpush1.bf16.msra.mxu0 0
    %1260 = vmatprep.subr.bf16.mxu0 0
    %1261 = vmatpush1.bf16.msra.mxu0 0
    %1262 = vmatprep.subr.bf16.mxu0 0
    %1263 = vmatpush1.bf16.msra.mxu0 0
    %1264 = vmatprep.subr.bf16.mxu0 0
    %1265 = vmatpush1.bf16.msra.mxu0 0
    %1266 = vmatprep.subr.bf16.mxu0 0
    %1267 = vmatpush1.bf16.msra.mxu0 0
    %1268 = vmatprep.subr.bf16.mxu0 0
    %1269 = vmatpush1.bf16.msra.mxu0 0
    %1270 = vmatprep.subr.bf16.mxu0 0
    %1271 = vmatpush1.bf16.msra.mxu0 0
    %1272 = vmatprep.subr.bf16.mxu0 0
    %1273 = vmatpush1.bf16.msra.mxu0 0
    %1274 = vmatprep.subr.bf16.mxu0 0
    %1275 = vmatpush1.bf16.msra.mxu0 0
    %1276 = vmatprep.mubr.bf16.mxu0 0
    %1277 = vmatmul.mubr.bf16.gmra.mrb[0].mxu0 %v1029
    %v1278 = vpop.f32.mrb[0].mxu0
    %v1279 = vadd.f32 %v717, %v1278
    %v1280 = vpop.f32.mrb[0].mxu0
    %v1281 = vadd.f32 %v719, %v1280
    %v1282 = vpop.f32.mrb[0].mxu0
    %v1283 = vadd.f32 %v721, %v1282
    %v1284 = vpop.f32.mrb[0].mxu0
    %v1285 = vadd.f32 %v723, %v1284
    %1286 = vmatprep.mubr.bf16.mxu0 0
    %1287 = vmatmul.mubr.bf16.gmra.mrb[0].mxu0 %v1032
    %v1288 = vpop.f32.mrb[0].mxu0
    %v1289 = vadd.f32 %v727, %v1288
    %v1290 = vpop.f32.mrb[0].mxu0
    %v1291 = vadd.f32 %v729, %v1290
    %v1292 = vpop.f32.mrb[0].mxu0
    %v1293 = vadd.f32 %v731, %v1292
    %v1294 = vpop.f32.mrb[0].mxu0
    %v1295 = vadd.f32 %v733, %v1294
    %1296 = vmatprep.mubr.bf16.mxu0 0
    %1297 = vmatmul.mubr.bf16.gmra.mrb[0].mxu0 %v1035
    %v1298 = vpop.f32.mrb[0].mxu0
    %v1299 = vadd.f32 %v737, %v1298
    %v1300 = vpop.f32.mrb[0].mxu0
    %v1301 = vadd.f32 %v739, %v1300
    %v1302 = vpop.f32.mrb[0].mxu0
    %v1303 = vpop.f32.mrb[0].mxu0
    %1304 = vdwg.mxu0
    %s1305 = scalar_lea.vmem %s0, 40
    %v1306 = vld [vmem:[%s1305] sm:$0xf]
    %v1307 = vld [vmem:[%s1305 + $0x4] sm:$0xf]
    %v1308 = vld [vmem:[%s1305 + $0x8] sm:$0xf]
    %v1309 = vld [vmem:[%s1305 + $0xc] sm:$0xf]
    %v1310 = vld [vmem:[%s1305 + $0x10] sm:$0x3]
    %s1311 = scalar_lea.vmem [#allocation2], 896
    %v1312 = vld [vmem:[%s1311] sm:$0xff]
    %v1313 = vld [vmem:[%s1311 + $0x8] sm:$0xff]
    %v1314 = vld [vmem:[%s1311 + $0x10] sm:$0xff]
    %v1315 = vld [vmem:[%s1311 + $0x18] sm:$0xff]
    %v1316 = vld [vmem:[%s1311 + $0x20] sm:$0xff]
    %v1317 = vld [vmem:[%s1311 + $0x28] sm:$0xff]
    %v1318 = vld [vmem:[%s1311 + $0x30] sm:$0xff]
    %v1319 = vld [vmem:[%s1311 + $0x38] sm:$0xff]
    %v1320 = vld [vmem:[%s1311 + $0x40] sm:$0xff]
    %v1321 = vld [vmem:[%s1311 + $0x48] sm:$0xff]
    %v1322 = vld [vmem:[%s1311 + $0x50] sm:$0xff]
    %v1323 = vld [vmem:[%s1311 + $0x58] sm:$0xff]
    %v1324 = vld [vmem:[%s1311 + $0x60] sm:$0xff]
    %v1325 = vld [vmem:[%s1311 + $0x68] sm:$0xff]
    %v1326 = vld [vmem:[%s1311 + $0x70] sm:$0xff]
    %v1327 = vld [vmem:[%s1311 + $0x78] sm:$0xff]
    %v1328 = vld [vmem:[%s1311 + $0x80] sm:$0xff]
    %v1329 = vld [vmem:[%s1311 + $0x88] sm:$0xff]
    %v1330 = vld [vmem:[%s1311 + $0x90] sm:$0xff]
    %v1331 = vld [vmem:[%s1311 + $0x98] sm:$0xff]
    %v1332 = vld [vmem:[%s1311 + $0xa0] sm:$0xff]
    %v1333 = vld [vmem:[%s1311 + $0xa8] sm:$0xff]
    %v1334 = vld [vmem:[%s1311 + $0xb0] sm:$0xff]
    %v1335 = vld [vmem:[%s1311 + $0xb8] sm:$0xff]
    %v1336 = vld [vmem:[%s1311 + $0xc0] sm:$0xff]
    %v1337 = vld [vmem:[%s1311 + $0xc8] sm:$0xff]
    %v1338 = vld [vmem:[%s1311 + $0xd0] sm:$0xff]
    %v1339 = vld [vmem:[%s1311 + $0xd8] sm:$0xff]
    %v1340 = vld [vmem:[%s1311 + $0xe0] sm:$0xff]
    %v1341 = vld [vmem:[%s1311 + $0xe8] sm:$0xff]
    %v1342 = vld [vmem:[%s1311 + $0xf0] sm:$0xff]
    %v1343 = vld [vmem:[%s1311 + $0xf8] sm:$0xff]
    %v1344 = vld [vmem:[%s1311 + $0x100] sm:$0xff]
    %v1345 = vld [vmem:[%s1311 + $0x108] sm:$0xff]
    %v1346 = vld [vmem:[%s1311 + $0x110] sm:$0xff]
    %v1347 = vld [vmem:[%s1311 + $0x118] sm:$0xff]
    %v1348 = vld [vmem:[%s1311 + $0x120] sm:$0xff]
    %v1349 = vld [vmem:[%s1311 + $0x128] sm:$0xff]
    %v1350 = vld [vmem:[%s1311 + $0x130] sm:$0xff]
    %v1351 = vld [vmem:[%s1311 + $0x138] sm:$0xff]
    %v1352 = vld [vmem:[%s1311 + $0x140] sm:$0xff]
    %v1353 = vld [vmem:[%s1311 + $0x148] sm:$0xff]
    %v1354 = vld [vmem:[%s1311 + $0x150] sm:$0xff]
    %v1355 = vld [vmem:[%s1311 + $0x158] sm:$0xff]
    %v1356 = vld [vmem:[%s1311 + $0x160] sm:$0xff]
    %v1357 = vld [vmem:[%s1311 + $0x168] sm:$0xff]
    %v1358 = vld [vmem:[%s1311 + $0x170] sm:$0xff]
    %v1359 = vld [vmem:[%s1311 + $0x178] sm:$0xff]
    %v1360 = vld [vmem:[%s1311 + $0x180] sm:$0xff]
    %v1361 = vld [vmem:[%s1311 + $0x188] sm:$0xff]
    %v1362 = vld [vmem:[%s1311 + $0x190] sm:$0xff]
    %v1363 = vld [vmem:[%s1311 + $0x198] sm:$0xff]
    %v1364 = vld [vmem:[%s1311 + $0x1a0] sm:$0x33]
    %v1365 = vld [vmem:[%s1311 + $0x1a8] sm:$0x33]
    %v1366 = vld [vmem:[%s1311 + $0x1b0] sm:$0x33]
    %v1367 = vld [vmem:[%s1311 + $0x1b8] sm:$0x33]
    %v1373 = vunpack.c.l.b16 %v1306
    %v1374 = vunpack.c.l.b16 %v1307
    %v1375 = vunpack.c.l.b16 %v1308
    %v1376 = vunpack.c.l.b16 %v1309
    %v1377 = vunpack.c.l.b16 %v1310
    %v1378 = vpack.c.b16 %v1374, %v1373
    %v1379 = vpack.c.b16 %v1376, %v1375
    %v1380 = vpack.c.b16 %v1377, %v1377
    %v1437 = vunpack.c.l.b16 %v1312
    %v1438 = vunpack.c.h.b16 %v1312
    %v1439 = vunpack.c.l.b16 %v1313
    %v1440 = vunpack.c.h.b16 %v1313
    %v1441 = vunpack.c.l.b16 %v1314
    %v1442 = vunpack.c.h.b16 %v1314
    %v1443 = vunpack.c.l.b16 %v1315
    %v1444 = vunpack.c.h.b16 %v1315
    %v1445 = vunpack.c.l.b16 %v1316
    %v1446 = vunpack.c.h.b16 %v1316
    %v1447 = vunpack.c.l.b16 %v1317
    %v1448 = vunpack.c.h.b16 %v1317
    %v1449 = vunpack.c.l.b16 %v1318
    %v1450 = vunpack.c.h.b16 %v1318
    %v1451 = vunpack.c.l.b16 %v1319
    %v1452 = vunpack.c.h.b16 %v1319
    %v1453 = vunpack.c.l.b16 %v1320
    %v1454 = vunpack.c.h.b16 %v1320
    %v1455 = vunpack.c.l.b16 %v1321
    %v1456 = vunpack.c.h.b16 %v1321
    %v1457 = vunpack.c.l.b16 %v1322
    %v1458 = vunpack.c.h.b16 %v1322
    %v1459 = vunpack.c.l.b16 %v1323
    %v1460 = vunpack.c.h.b16 %v1323
    %v1461 = vunpack.c.l.b16 %v1324
    %v1462 = vunpack.c.h.b16 %v1324
    %v1463 = vunpack.c.l.b16 %v1325
    %v1464 = vunpack.c.h.b16 %v1325
    %v1465 = vunpack.c.l.b16 %v1326
    %v1466 = vunpack.c.h.b16 %v1326
    %v1467 = vunpack.c.l.b16 %v1327
    %v1468 = vunpack.c.h.b16 %v1327
    %v1469 = vunpack.c.l.b16 %v1328
    %v1470 = vunpack.c.h.b16 %v1328
    %v1471 = vunpack.c.l.b16 %v1329
    %v1472 = vunpack.c.h.b16 %v1329
    %v1473 = vunpack.c.l.b16 %v1330
    %v1474 = vunpack.c.h.b16 %v1330
    %v1475 = vunpack.c.l.b16 %v1331
    %v1476 = vunpack.c.h.b16 %v1331
    %v1477 = vunpack.c.l.b16 %v1332
    %v1478 = vunpack.c.h.b16 %v1332
    %v1479 = vunpack.c.l.b16 %v1333
    %v1480 = vunpack.c.h.b16 %v1333
    %v1481 = vunpack.c.l.b16 %v1334
    %v1482 = vunpack.c.h.b16 %v1334
    %v1483 = vunpack.c.l.b16 %v1335
    %v1484 = vunpack.c.h.b16 %v1335
    %v1485 = vunpack.c.l.b16 %v1336
    %v1486 = vunpack.c.h.b16 %v1336
    %v1487 = vunpack.c.l.b16 %v1337
    %v1488 = vunpack.c.h.b16 %v1337
    %v1489 = vunpack.c.l.b16 %v1338
    %v1490 = vunpack.c.h.b16 %v1338
    %v1491 = vunpack.c.l.b16 %v1339
    %v1492 = vunpack.c.h.b16 %v1339
    %v1493 = vunpack.c.l.b16 %v1340
    %v1494 = vunpack.c.h.b16 %v1340
    %v1495 = vunpack.c.l.b16 %v1341
    %v1496 = vunpack.c.h.b16 %v1341
    %v1497 = vunpack.c.l.b16 %v1342
    %v1498 = vunpack.c.h.b16 %v1342
    %v1499 = vunpack.c.l.b16 %v1343
    %v1500 = vunpack.c.h.b16 %v1343
    %v1501 = vunpack.c.l.b16 %v1344
    %v1502 = vunpack.c.h.b16 %v1344
    %v1503 = vunpack.c.l.b16 %v1345
    %v1504 = vunpack.c.h.b16 %v1345
    %v1505 = vunpack.c.l.b16 %v1346
    %v1506 = vunpack.c.h.b16 %v1346
    %v1507 = vunpack.c.l.b16 %v1347
    %v1508 = vunpack.c.h.b16 %v1347
    %v1509 = vunpack.c.l.b16 %v1348
    %v1510 = vunpack.c.h.b16 %v1348
    %v1511 = vunpack.c.l.b16 %v1349
    %v1512 = vunpack.c.h.b16 %v1349
    %v1513 = vunpack.c.l.b16 %v1350
    %v1514 = vunpack.c.h.b16 %v1350
    %v1515 = vunpack.c.l.b16 %v1351
    %v1516 = vunpack.c.h.b16 %v1351
    %v1517 = vunpack.c.l.b16 %v1352
    %v1518 = vunpack.c.h.b16 %v1352
    %v1519 = vunpack.c.l.b16 %v1353
    %v1520 = vunpack.c.h.b16 %v1353
    %v1521 = vunpack.c.l.b16 %v1354
    %v1522 = vunpack.c.h.b16 %v1354
    %v1523 = vunpack.c.l.b16 %v1355
    %v1524 = vunpack.c.h.b16 %v1355
    %v1525 = vunpack.c.l.b16 %v1356
    %v1526 = vunpack.c.h.b16 %v1356
    %v1527 = vunpack.c.l.b16 %v1357
    %v1528 = vunpack.c.h.b16 %v1357
    %v1529 = vunpack.c.l.b16 %v1358
    %v1530 = vunpack.c.h.b16 %v1358
    %v1531 = vunpack.c.l.b16 %v1359
    %v1532 = vunpack.c.h.b16 %v1359
    %v1533 = vunpack.c.l.b16 %v1360
    %v1534 = vunpack.c.h.b16 %v1360
    %v1535 = vunpack.c.l.b16 %v1361
    %v1536 = vunpack.c.h.b16 %v1361
    %v1537 = vunpack.c.l.b16 %v1362
    %v1538 = vunpack.c.h.b16 %v1362
    %v1539 = vunpack.c.l.b16 %v1363
    %v1540 = vunpack.c.h.b16 %v1363
    %v1541 = vunpack.c.l.b16 %v1364
    %v1542 = vunpack.c.h.b16 %v1364
    %v1543 = vunpack.c.l.b16 %v1365
    %v1544 = vunpack.c.h.b16 %v1365
    %v1545 = vunpack.c.l.b16 %v1366
    %v1546 = vunpack.c.h.b16 %v1366
    %v1547 = vunpack.c.l.b16 %v1367
    %v1548 = vunpack.c.h.b16 %v1367
    %v1549 = vpack.c.b16 %v1445, %v1437
    %v1550 = vpack.c.b16 %v1446, %v1438
    %v1551 = vpack.c.b16 %v1447, %v1439
    %v1552 = vpack.c.b16 %v1448, %v1440
    %v1553 = vpack.c.b16 %v1449, %v1441
    %v1554 = vpack.c.b16 %v1450, %v1442
    %v1555 = vpack.c.b16 %v1451, %v1443
    %v1556 = vpack.c.b16 %v1452, %v1444
    %v1557 = vpack.c.b16 %v1461, %v1453
    %v1558 = vpack.c.b16 %v1462, %v1454
    %v1559 = vpack.c.b16 %v1463, %v1455
    %v1560 = vpack.c.b16 %v1464, %v1456
    %v1561 = vpack.c.b16 %v1465, %v1457
    %v1562 = vpack.c.b16 %v1466, %v1458
    %v1563 = vpack.c.b16 %v1467, %v1459
    %v1564 = vpack.c.b16 %v1468, %v1460
    %v1565 = vpack.c.b16 %v1477, %v1469
    %v1566 = vpack.c.b16 %v1478, %v1470
    %v1567 = vpack.c.b16 %v1479, %v1471
    %v1568 = vpack.c.b16 %v1480, %v1472
    %v1569 = vpack.c.b16 %v1481, %v1473
    %v1570 = vpack.c.b16 %v1482, %v1474
    %v1571 = vpack.c.b16 %v1483, %v1475
    %v1572 = vpack.c.b16 %v1484, %v1476
    %v1573 = vpack.c.b16 %v1493, %v1485
    %v1574 = vpack.c.b16 %v1494, %v1486
    %v1575 = vpack.c.b16 %v1495, %v1487
    %v1576 = vpack.c.b16 %v1496, %v1488
    %v1577 = vpack.c.b16 %v1497, %v1489
    %v1578 = vpack.c.b16 %v1498, %v1490
    %v1579 = vpack.c.b16 %v1499, %v1491
    %v1580 = vpack.c.b16 %v1500, %v1492
    %v1581 = vpack.c.b16 %v1509, %v1501
    %v1582 = vpack.c.b16 %v1510, %v1502
    %v1583 = vpack.c.b16 %v1511, %v1503
    %v1584 = vpack.c.b16 %v1512, %v1504
    %v1585 = vpack.c.b16 %v1513, %v1505
    %v1586 = vpack.c.b16 %v1514, %v1506
    %v1587 = vpack.c.b16 %v1515, %v1507
    %v1588 = vpack.c.b16 %v1516, %v1508
    %v1589 = vpack.c.b16 %v1525, %v1517
    %v1590 = vpack.c.b16 %v1526, %v1518
    %v1591 = vpack.c.b16 %v1527, %v1519
    %v1592 = vpack.c.b16 %v1528, %v1520
    %v1593 = vpack.c.b16 %v1529, %v1521
    %v1594 = vpack.c.b16 %v1530, %v1522
    %v1595 = vpack.c.b16 %v1531, %v1523
    %v1596 = vpack.c.b16 %v1532, %v1524
    %v1597 = vpack.c.b16 %v1541, %v1533
    %v1598 = vpack.c.b16 %v1542, %v1534
    %v1599 = vpack.c.b16 %v1543, %v1535
    %v1600 = vpack.c.b16 %v1544, %v1536
    %v1601 = vpack.c.b16 %v1545, %v1537
    %v1602 = vpack.c.b16 %v1546, %v1538
    %v1603 = vpack.c.b16 %v1547, %v1539
    %v1604 = vpack.c.b16 %v1548, %v1540
    %v1654 = vsel %vm464, %v1378, 0
    %v1657 = vsel %vm464, %v1379, 0
    %v1660 = vsel %vm464, %v1380, 0
    %v1663 = vsel %vm474, %v1597, 0
    %v1666 = vsel %vm474, %v1598, 0
    %v1669 = vsel %vm474, %v1599, 0
    %v1672 = vsel %vm474, %v1600, 0
    %v1675 = vsel %vm474, %v1601, 0
    %v1678 = vsel %vm474, %v1602, 0
    %v1681 = vsel %vm474, %v1603, 0
    %v1684 = vsel %vm474, %v1604, 0
    %1686 = vmatprep.subr.bf16.mxu0 %v1550
    %1687 = vmatpush1.bf16.msra.mxu0 %v1549
    %1688 = vmatprep.subr.bf16.mxu0 %v1558
    %1689 = vmatpush1.bf16.msra.mxu0 %v1557
    %1690 = vmatprep.subr.bf16.mxu0 %v1566
    %1691 = vmatpush1.bf16.msra.mxu0 %v1565
    %1692 = vmatprep.subr.bf16.mxu0 %v1574
    %1693 = vmatpush1.bf16.msra.mxu0 %v1573
    %1694 = vmatprep.subr.bf16.mxu0 %v1582
    %1695 = vmatpush1.bf16.msra.mxu0 %v1581
    %1696 = vmatprep.subr.bf16.mxu0 %v1590
    %1697 = vmatpush1.bf16.msra.mxu0 %v1589
    %1698 = vmatprep.subr.bf16.mxu0 %v1666
    %1699 = vmatpush1.bf16.msra.mxu0 %v1663
    %1700 = vmatprep.subr.bf16.mxu0 0
    %1701 = vmatpush1.bf16.msra.mxu0 0
    %1702 = vmatprep.subr.bf16.mxu0 0
    %1703 = vmatpush1.bf16.msra.mxu0 0
    %1704 = vmatprep.subr.bf16.mxu0 0
    %1705 = vmatpush1.bf16.msra.mxu0 0
    %1706 = vmatprep.subr.bf16.mxu0 0
    %1707 = vmatpush1.bf16.msra.mxu0 0
    %1708 = vmatprep.subr.bf16.mxu0 0
    %1709 = vmatpush1.bf16.msra.mxu0 0
    %1710 = vmatprep.subr.bf16.mxu0 0
    %1711 = vmatpush1.bf16.msra.mxu0 0
    %1712 = vmatprep.subr.bf16.mxu0 0
    %1713 = vmatpush1.bf16.msra.mxu0 0
    %1714 = vmatprep.subr.bf16.mxu0 0
    %1715 = vmatpush1.bf16.msra.mxu0 0
    %1716 = vmatprep.subr.bf16.mxu0 0
    %1717 = vmatpush1.bf16.msra.mxu0 0
    %1718 = vmatprep.mubr.bf16.mxu0 0
    %1719 = vmatmul.mubr.bf16.gmra.mrb[0].mxu0 %v1654
    %v1720 = vpop.f32.mrb[0].mxu0
    %v1721 = vadd.f32 0.0, %v1720
    %v1722 = vpop.f32.mrb[0].mxu0
    %v1723 = vadd.f32 0.0, %v1722
    %v1724 = vpop.f32.mrb[0].mxu0
    %v1725 = vadd.f32 0.0, %v1724
    %v1726 = vpop.f32.mrb[0].mxu0
    %v1727 = vadd.f32 0.0, %v1726
    %1728 = vmatprep.mubr.bf16.mxu0 0
    %1729 = vmatmul.mubr.bf16.gmra.mrb[0].mxu0 %v1657
    %v1730 = vpop.f32.mrb[0].mxu0
    %v1731 = vadd.f32 0.0, %v1730
    %v1732 = vpop.f32.mrb[0].mxu0
    %v1733 = vadd.f32 0.0, %v1732
    %v1734 = vpop.f32.mrb[0].mxu0
    %v1735 = vadd.f32 0.0, %v1734
    %v1736 = vpop.f32.mrb[0].mxu0
    %v1737 = vadd.f32 0.0, %v1736
    %1738 = vmatprep.mubr.bf16.mxu0 0
    %1739 = vmatmul.mubr.bf16.gmra.mrb[0].mxu0 %v1660
    %v1740 = vpop.f32.mrb[0].mxu0
    %v1741 = vadd.f32 0.0, %v1740
    %v1742 = vpop.f32.mrb[0].mxu0
    %v1743 = vadd.f32 0.0, %v1742
    %v1744 = vpop.f32.mrb[0].mxu0
    %v1745 = vpop.f32.mrb[0].mxu0
    %1746 = vdwg.mxu0
    %1747 = vmatprep.subr.bf16.mxu0 %v1552
    %1748 = vmatpush1.bf16.msra.mxu0 %v1551
    %1749 = vmatprep.subr.bf16.mxu0 %v1560
    %1750 = vmatpush1.bf16.msra.mxu0 %v1559
    %1751 = vmatprep.subr.bf16.mxu0 %v1568
    %1752 = vmatpush1.bf16.msra.mxu0 %v1567
    %1753 = vmatprep.subr.bf16.mxu0 %v1576
    %1754 = vmatpush1.bf16.msra.mxu0 %v1575
    %1755 = vmatprep.subr.bf16.mxu0 %v1584
    %1756 = vmatpush1.bf16.msra.mxu0 %v1583
    %1757 = vmatprep.subr.bf16.mxu0 %v1592
    %1758 = vmatpush1.bf16.msra.mxu0 %v1591
    %1759 = vmatprep.subr.bf16.mxu0 %v1672
    %1760 = vmatpush1.bf16.msra.mxu0 %v1669
    %1761 = vmatprep.subr.bf16.mxu0 0
    %1762 = vmatpush1.bf16.msra.mxu0 0
    %1763 = vmatprep.subr.bf16.mxu0 0
    %1764 = vmatpush1.bf16.msra.mxu0 0
    %1765 = vmatprep.subr.bf16.mxu0 0
    %1766 = vmatpush1.bf16.msra.mxu0 0
    %1767 = vmatprep.subr.bf16.mxu0 0
    %1768 = vmatpush1.bf16.msra.mxu0 0
    %1769 = vmatprep.subr.bf16.mxu0 0
    %1770 = vmatpush1.bf16.msra.mxu0 0
    %1771 = vmatprep.subr.bf16.mxu0 0
    %1772 = vmatpush1.bf16.msra.mxu0 0
    %1773 = vmatprep.subr.bf16.mxu0 0
    %1774 = vmatpush1.bf16.msra.mxu0 0
    %1775 = vmatprep.subr.bf16.mxu0 0
    %1776 = vmatpush1.bf16.msra.mxu0 0
    %1777 = vmatprep.subr.bf16.mxu0 0
    %1778 = vmatpush1.bf16.msra.mxu0 0
    %1779 = vmatprep.mubr.bf16.mxu0 0
    %1780 = vmatmul.mubr.bf16.gmra.mrb[0].mxu0 %v1654
    %v1781 = vpop.f32.mrb[0].mxu0
    %v1782 = vadd.f32 0.0, %v1781
    %v1783 = vpop.f32.mrb[0].mxu0
    %v1784 = vadd.f32 0.0, %v1783
    %v1785 = vpop.f32.mrb[0].mxu0
    %v1786 = vadd.f32 0.0, %v1785
    %v1787 = vpop.f32.mrb[0].mxu0
    %v1788 = vadd.f32 0.0, %v1787
    %1789 = vmatprep.mubr.bf16.mxu0 0
    %1790 = vmatmul.mubr.bf16.gmra.mrb[0].mxu0 %v1657
    %v1791 = vpop.f32.mrb[0].mxu0
    %v1792 = vadd.f32 0.0, %v1791
    %v1793 = vpop.f32.mrb[0].mxu0
    %v1794 = vadd.f32 0.0, %v1793
    %v1795 = vpop.f32.mrb[0].mxu0
    %v1796 = vadd.f32 0.0, %v1795
    %v1797 = vpop.f32.mrb[0].mxu0
    %v1798 = vadd.f32 0.0, %v1797
    %1799 = vmatprep.mubr.bf16.mxu0 0
    %1800 = vmatmul.mubr.bf16.gmra.mrb[0].mxu0 %v1660
    %v1801 = vpop.f32.mrb[0].mxu0
    %v1802 = vadd.f32 0.0, %v1801
    %v1803 = vpop.f32.mrb[0].mxu0
    %v1804 = vadd.f32 0.0, %v1803
    %v1805 = vpop.f32.mrb[0].mxu0
    %v1806 = vpop.f32.mrb[0].mxu0
    %1807 = vdwg.mxu0
    %1808 = vmatprep.subr.bf16.mxu0 %v1554
    %1809 = vmatpush1.bf16.msra.mxu0 %v1553
    %1810 = vmatprep.subr.bf16.mxu0 %v1562
    %1811 = vmatpush1.bf16.msra.mxu0 %v1561
    %1812 = vmatprep.subr.bf16.mxu0 %v1570
    %1813 = vmatpush1.bf16.msra.mxu0 %v1569
    %1814 = vmatprep.subr.bf16.mxu0 %v1578
    %1815 = vmatpush1.bf16.msra.mxu0 %v1577
    %1816 = vmatprep.subr.bf16.mxu0 %v1586
    %1817 = vmatpush1.bf16.msra.mxu0 %v1585
    %1818 = vmatprep.subr.bf16.mxu0 %v1594
    %1819 = vmatpush1.bf16.msra.mxu0 %v1593
    %1820 = vmatprep.subr.bf16.mxu0 %v1678
    %1821 = vmatpush1.bf16.msra.mxu0 %v1675
    %1822 = vmatprep.subr.bf16.mxu0 0
    %1823 = vmatpush1.bf16.msra.mxu0 0
    %1824 = vmatprep.subr.bf16.mxu0 0
    %1825 = vmatpush1.bf16.msra.mxu0 0
    %1826 = vmatprep.subr.bf16.mxu0 0
    %1827 = vmatpush1.bf16.msra.mxu0 0
    %1828 = vmatprep.subr.bf16.mxu0 0
    %1829 = vmatpush1.bf16.msra.mxu0 0
    %1830 = vmatprep.subr.bf16.mxu0 0
    %1831 = vmatpush1.bf16.msra.mxu0 0
    %1832 = vmatprep.subr.bf16.mxu0 0
    %1833 = vmatpush1.bf16.msra.mxu0 0
    %1834 = vmatprep.subr.bf16.mxu0 0
    %1835 = vmatpush1.bf16.msra.mxu0 0
    %1836 = vmatprep.subr.bf16.mxu0 0
    %1837 = vmatpush1.bf16.msra.mxu0 0
    %1838 = vmatprep.subr.bf16.mxu0 0
    %1839 = vmatpush1.bf16.msra.mxu0 0
    %1840 = vmatprep.mubr.bf16.mxu0 0
    %1841 = vmatmul.mubr.bf16.gmra.mrb[0].mxu0 %v1654
    %v1842 = vpop.f32.mrb[0].mxu0
    %v1843 = vadd.f32 0.0, %v1842
    %v1844 = vpop.f32.mrb[0].mxu0
    %v1845 = vadd.f32 0.0, %v1844
    %v1846 = vpop.f32.mrb[0].mxu0
    %v1847 = vadd.f32 0.0, %v1846
    %v1848 = vpop.f32.mrb[0].mxu0
    %v1849 = vadd.f32 0.0, %v1848
    %1850 = vmatprep.mubr.bf16.mxu0 0
    %1851 = vmatmul.mubr.bf16.gmra.mrb[0].mxu0 %v1657
    %v1852 = vpop.f32.mrb[0].mxu0
    %v1853 = vadd.f32 0.0, %v1852
    %v1854 = vpop.f32.mrb[0].mxu0
    %v1855 = vadd.f32 0.0, %v1854
    %v1856 = vpop.f32.mrb[0].mxu0
    %v1857 = vadd.f32 0.0, %v1856
    %v1858 = vpop.f32.mrb[0].mxu0
    %v1859 = vadd.f32 0.0, %v1858
    %1860 = vmatprep.mubr.bf16.mxu0 0
    %1861 = vmatmul.mubr.bf16.gmra.mrb[0].mxu0 %v1660
    %v1862 = vpop.f32.mrb[0].mxu0
    %v1863 = vadd.f32 0.0, %v1862
    %v1864 = vpop.f32.mrb[0].mxu0
    %v1865 = vadd.f32 0.0, %v1864
    %v1866 = vpop.f32.mrb[0].mxu0
    %v1867 = vpop.f32.mrb[0].mxu0
    %1868 = vdwg.mxu0
    %1869 = vmatprep.subr.bf16.mxu0 %v1556
    %1870 = vmatpush1.bf16.msra.mxu0 %v1555
    %1871 = vmatprep.subr.bf16.mxu0 %v1564
    %1872 = vmatpush1.bf16.msra.mxu0 %v1563
    %1873 = vmatprep.subr.bf16.mxu0 %v1572
    %1874 = vmatpush1.bf16.msra.mxu0 %v1571
    %1875 = vmatprep.subr.bf16.mxu0 %v1580
    %1876 = vmatpush1.bf16.msra.mxu0 %v1579
    %1877 = vmatprep.subr.bf16.mxu0 %v1588
    %1878 = vmatpush1.bf16.msra.mxu0 %v1587
    %1879 = vmatprep.subr.bf16.mxu0 %v1596
    %1880 = vmatpush1.bf16.msra.mxu0 %v1595
    %1881 = vmatprep.subr.bf16.mxu0 %v1684
    %1882 = vmatpush1.bf16.msra.mxu0 %v1681
    %1883 = vmatprep.subr.bf16.mxu0 0
    %1884 = vmatpush1.bf16.msra.mxu0 0
    %1885 = vmatprep.subr.bf16.mxu0 0
    %1886 = vmatpush1.bf16.msra.mxu0 0
    %1887 = vmatprep.subr.bf16.mxu0 0
    %1888 = vmatpush1.bf16.msra.mxu0 0
    %1889 = vmatprep.subr.bf16.mxu0 0
    %1890 = vmatpush1.bf16.msra.mxu0 0
    %1891 = vmatprep.subr.bf16.mxu0 0
    %1892 = vmatpush1.bf16.msra.mxu0 0
    %1893 = vmatprep.subr.bf16.mxu0 0
    %1894 = vmatpush1.bf16.msra.mxu0 0
    %1895 = vmatprep.subr.bf16.mxu0 0
    %1896 = vmatpush1.bf16.msra.mxu0 0
    %1897 = vmatprep.subr.bf16.mxu0 0
    %1898 = vmatpush1.bf16.msra.mxu0 0
    %1899 = vmatprep.subr.bf16.mxu0 0
    %1900 = vmatpush1.bf16.msra.mxu0 0
    %1901 = vmatprep.mubr.bf16.mxu0 0
    %1902 = vmatmul.mubr.bf16.gmra.mrb[0].mxu0 %v1654
    %v1903 = vpop.f32.mrb[0].mxu0
    %v1904 = vadd.f32 0.0, %v1903
    %v1905 = vpop.f32.mrb[0].mxu0
    %v1906 = vadd.f32 0.0, %v1905
    %v1907 = vpop.f32.mrb[0].mxu0
    %v1908 = vadd.f32 0.0, %v1907
    %v1909 = vpop.f32.mrb[0].mxu0
    %v1910 = vadd.f32 0.0, %v1909
    %1911 = vmatprep.mubr.bf16.mxu0 0
    %1912 = vmatmul.mubr.bf16.gmra.mrb[0].mxu0 %v1657
    %v1913 = vpop.f32.mrb[0].mxu0
    %v1914 = vadd.f32 0.0, %v1913
    %v1915 = vpop.f32.mrb[0].mxu0
    %v1916 = vadd.f32 0.0, %v1915
    %v1917 = vpop.f32.mrb[0].mxu0
    %v1918 = vadd.f32 0.0, %v1917
    %v1919 = vpop.f32.mrb[0].mxu0
    %v1920 = vadd.f32 0.0, %v1919
    %1921 = vmatprep.mubr.bf16.mxu0 0
    %1922 = vmatmul.mubr.bf16.gmra.mrb[0].mxu0 %v1660
    %v1923 = vpop.f32.mrb[0].mxu0
    %v1924 = vadd.f32 0.0, %v1923
    %v1925 = vpop.f32.mrb[0].mxu0
    %v1926 = vadd.f32 0.0, %v1925
    %v1927 = vpop.f32.mrb[0].mxu0
    %v1928 = vpop.f32.mrb[0].mxu0
    %1929 = vdwg.mxu0
    %v1930 = vadd.f32 %v1096, %v1721
    %v1931 = vadd.f32 %v1098, %v1723
    %v1932 = vadd.f32 %v1157, %v1782
    %v1933 = vadd.f32 %v1159, %v1784
    %v1934 = vadd.f32 %v1218, %v1843
    %v1935 = vadd.f32 %v1220, %v1845
    %v1936 = vadd.f32 %v1279, %v1904
    %v1937 = vadd.f32 %v1281, %v1906
    %v1938 = vadd.f32 %v1100, %v1725
    %v1939 = vadd.f32 %v1102, %v1727
    %v1940 = vadd.f32 %v1161, %v1786
    %v1941 = vadd.f32 %v1163, %v1788
    %v1942 = vadd.f32 %v1222, %v1847
    %v1943 = vadd.f32 %v1224, %v1849
    %v1944 = vadd.f32 %v1283, %v1908
    %v1945 = vadd.f32 %v1285, %v1910
    %v1946 = vadd.f32 %v1106, %v1731
    %v1947 = vadd.f32 %v1108, %v1733
    %v1948 = vadd.f32 %v1167, %v1792
    %v1949 = vadd.f32 %v1169, %v1794
    %v1950 = vadd.f32 %v1228, %v1853
    %v1951 = vadd.f32 %v1230, %v1855
    %v1952 = vadd.f32 %v1289, %v1914
    %v1953 = vadd.f32 %v1291, %v1916
    %v1954 = vadd.f32 %v1110, %v1735
    %v1955 = vadd.f32 %v1112, %v1737
    %v1956 = vadd.f32 %v1171, %v1796
    %v1957 = vadd.f32 %v1173, %v1798
    %v1958 = vadd.f32 %v1232, %v1857
    %v1959 = vadd.f32 %v1234, %v1859
    %v1960 = vadd.f32 %v1293, %v1918
    %v1961 = vadd.f32 %v1295, %v1920
    %v1962 = vadd.f32 %v1116, %v1741
    %v1963 = vadd.f32 %v1118, %v1743
    %v1964 = vadd.f32 %v1177, %v1802
    %v1965 = vadd.f32 %v1179, %v1804
    %v1966 = vadd.f32 %v1238, %v1863
    %v1967 = vadd.f32 %v1240, %v1865
    %v1968 = vadd.f32 %v1299, %v1924
    %v1969 = vadd.f32 %v1301, %v1926
    %s1970 = scalar_lea.vmem %s0, 60
    %v1971 = vld [vmem:[%s1970] sm:$0xf]
    %v1972 = vld [vmem:[%s1970 + $0x4] sm:$0xf]
    %v1973 = vld [vmem:[%s1970 + $0x8] sm:$0xf]
    %v1974 = vld [vmem:[%s1970 + $0xc] sm:$0xf]
    %v1975 = vld [vmem:[%s1970 + $0x10] sm:$0x3]
    %s1976 = scalar_lea.vmem [#allocation2], 1344
    %v1977 = vld [vmem:[%s1976] sm:$0xff]
    %v1978 = vld [vmem:[%s1976 + $0x8] sm:$0xff]
    %v1979 = vld [vmem:[%s1976 + $0x10] sm:$0xff]
    %v1980 = vld [vmem:[%s1976 + $0x18] sm:$0xff]
    %v1981 = vld [vmem:[%s1976 + $0x20] sm:$0xff]
    %v1982 = vld [vmem:[%s1976 + $0x28] sm:$0xff]
    %v1983 = vld [vmem:[%s1976 + $0x30] sm:$0xff]
    %v1984 = vld [vmem:[%s1976 + $0x38] sm:$0xff]
    %v1985 = vld [vmem:[%s1976 + $0x40] sm:$0xff]
    %v1986 = vld [vmem:[%s1976 + $0x48] sm:$0xff]
    %v1987 = vld [vmem:[%s1976 + $0x50] sm:$0xff]
    %v1988 = vld [vmem:[%s1976 + $0x58] sm:$0xff]
    %v1989 = vld [vmem:[%s1976 + $0x60] sm:$0xff]
    %v1990 = vld [vmem:[%s1976 + $0x68] sm:$0xff]
    %v1991 = vld [vmem:[%s1976 + $0x70] sm:$0xff]
    %v1992 = vld [vmem:[%s1976 + $0x78] sm:$0xff]
    %v1993 = vld [vmem:[%s1976 + $0x80] sm:$0xff]
    %v1994 = vld [vmem:[%s1976 + $0x88] sm:$0xff]
    %v1995 = vld [vmem:[%s1976 + $0x90] sm:$0xff]
    %v1996 = vld [vmem:[%s1976 + $0x98] sm:$0xff]
    %v1997 = vld [vmem:[%s1976 + $0xa0] sm:$0xff]
    %v1998 = vld [vmem:[%s1976 + $0xa8] sm:$0xff]
    %v1999 = vld [vmem:[%s1976 + $0xb0] sm:$0xff]
    %v2000 = vld [vmem:[%s1976 + $0xb8] sm:$0xff]
    %v2001 = vld [vmem:[%s1976 + $0xc0] sm:$0xff]
    %v2002 = vld [vmem:[%s1976 + $0xc8] sm:$0xff]
    %v2003 = vld [vmem:[%s1976 + $0xd0] sm:$0xff]
    %v2004 = vld [vmem:[%s1976 + $0xd8] sm:$0xff]
    %v2005 = vld [vmem:[%s1976 + $0xe0] sm:$0xff]
    %v2006 = vld [vmem:[%s1976 + $0xe8] sm:$0xff]
    %v2007 = vld [vmem:[%s1976 + $0xf0] sm:$0xff]
    %v2008 = vld [vmem:[%s1976 + $0xf8] sm:$0xff]
    %v2009 = vld [vmem:[%s1976 + $0x100] sm:$0xff]
    %v2010 = vld [vmem:[%s1976 + $0x108] sm:$0xff]
    %v2011 = vld [vmem:[%s1976 + $0x110] sm:$0xff]
    %v2012 = vld [vmem:[%s1976 + $0x118] sm:$0xff]
    %v2013 = vld [vmem:[%s1976 + $0x120] sm:$0xff]
    %v2014 = vld [vmem:[%s1976 + $0x128] sm:$0xff]
    %v2015 = vld [vmem:[%s1976 + $0x130] sm:$0xff]
    %v2016 = vld [vmem:[%s1976 + $0x138] sm:$0xff]
    %v2017 = vld [vmem:[%s1976 + $0x140] sm:$0xff]
    %v2018 = vld [vmem:[%s1976 + $0x148] sm:$0xff]
    %v2019 = vld [vmem:[%s1976 + $0x150] sm:$0xff]
    %v2020 = vld [vmem:[%s1976 + $0x158] sm:$0xff]
    %v2021 = vld [vmem:[%s1976 + $0x160] sm:$0xff]
    %v2022 = vld [vmem:[%s1976 + $0x168] sm:$0xff]
    %v2023 = vld [vmem:[%s1976 + $0x170] sm:$0xff]
    %v2024 = vld [vmem:[%s1976 + $0x178] sm:$0xff]
    %v2025 = vld [vmem:[%s1976 + $0x180] sm:$0xff]
    %v2026 = vld [vmem:[%s1976 + $0x188] sm:$0xff]
    %v2027 = vld [vmem:[%s1976 + $0x190] sm:$0xff]
    %v2028 = vld [vmem:[%s1976 + $0x198] sm:$0xff]
    %v2029 = vld [vmem:[%s1976 + $0x1a0] sm:$0x33]
    %v2030 = vld [vmem:[%s1976 + $0x1a8] sm:$0x33]
    %v2031 = vld [vmem:[%s1976 + $0x1b0] sm:$0x33]
    %v2032 = vld [vmem:[%s1976 + $0x1b8] sm:$0x33]
    %v2038 = vunpack.c.l.b16 %v1971
    %v2039 = vunpack.c.l.b16 %v1972
    %v2040 = vunpack.c.l.b16 %v1973
    %v2041 = vunpack.c.l.b16 %v1974
    %v2042 = vunpack.c.l.b16 %v1975
    %v2043 = vpack.c.b16 %v2039, %v2038
    %v2044 = vpack.c.b16 %v2041, %v2040
    %v2045 = vpack.c.b16 %v2042, %v2042
    %v2102 = vunpack.c.l.b16 %v1977
    %v2103 = vunpack.c.h.b16 %v1977
    %v2104 = vunpack.c.l.b16 %v1978
    %v2105 = vunpack.c.h.b16 %v1978
    %v2106 = vunpack.c.l.b16 %v1979
    %v2107 = vunpack.c.h.b16 %v1979
    %v2108 = vunpack.c.l.b16 %v1980
    %v2109 = vunpack.c.h.b16 %v1980
    %v2110 = vunpack.c.l.b16 %v1981
    %v2111 = vunpack.c.h.b16 %v1981
    %v2112 = vunpack.c.l.b16 %v1982
    %v2113 = vunpack.c.h.b16 %v1982
    %v2114 = vunpack.c.l.b16 %v1983
    %v2115 = vunpack.c.h.b16 %v1983
    %v2116 = vunpack.c.l.b16 %v1984
    %v2117 = vunpack.c.h.b16 %v1984
    %v2118 = vunpack.c.l.b16 %v1985
    %v2119 = vunpack.c.h.b16 %v1985
    %v2120 = vunpack.c.l.b16 %v1986
    %v2121 = vunpack.c.h.b16 %v1986
    %v2122 = vunpack.c.l.b16 %v1987
    %v2123 = vunpack.c.h.b16 %v1987
    %v2124 = vunpack.c.l.b16 %v1988
    %v2125 = vunpack.c.h.b16 %v1988
    %v2126 = vunpack.c.l.b16 %v1989
    %v2127 = vunpack.c.h.b16 %v1989
    %v2128 = vunpack.c.l.b16 %v1990
    %v2129 = vunpack.c.h.b16 %v1990
    %v2130 = vunpack.c.l.b16 %v1991
    %v2131 = vunpack.c.h.b16 %v1991
    %v2132 = vunpack.c.l.b16 %v1992
    %v2133 = vunpack.c.h.b16 %v1992
    %v2134 = vunpack.c.l.b16 %v1993
    %v2135 = vunpack.c.h.b16 %v1993
    %v2136 = vunpack.c.l.b16 %v1994
    %v2137 = vunpack.c.h.b16 %v1994
    %v2138 = vunpack.c.l.b16 %v1995
    %v2139 = vunpack.c.h.b16 %v1995
    %v2140 = vunpack.c.l.b16 %v1996
    %v2141 = vunpack.c.h.b16 %v1996
    %v2142 = vunpack.c.l.b16 %v1997
    %v2143 = vunpack.c.h.b16 %v1997
    %v2144 = vunpack.c.l.b16 %v1998
    %v2145 = vunpack.c.h.b16 %v1998
    %v2146 = vunpack.c.l.b16 %v1999
    %v2147 = vunpack.c.h.b16 %v1999
    %v2148 = vunpack.c.l.b16 %v2000
    %v2149 = vunpack.c.h.b16 %v2000
    %v2150 = vunpack.c.l.b16 %v2001
    %v2151 = vunpack.c.h.b16 %v2001
    %v2152 = vunpack.c.l.b16 %v2002
    %v2153 = vunpack.c.h.b16 %v2002
    %v2154 = vunpack.c.l.b16 %v2003
    %v2155 = vunpack.c.h.b16 %v2003
    %v2156 = vunpack.c.l.b16 %v2004
    %v2157 = vunpack.c.h.b16 %v2004
    %v2158 = vunpack.c.l.b16 %v2005
    %v2159 = vunpack.c.h.b16 %v2005
    %v2160 = vunpack.c.l.b16 %v2006
    %v2161 = vunpack.c.h.b16 %v2006
    %v2162 = vunpack.c.l.b16 %v2007
    %v2163 = vunpack.c.h.b16 %v2007
    %v2164 = vunpack.c.l.b16 %v2008
    %v2165 = vunpack.c.h.b16 %v2008
    %v2166 = vunpack.c.l.b16 %v2009
    %v2167 = vunpack.c.h.b16 %v2009
    %v2168 = vunpack.c.l.b16 %v2010
    %v2169 = vunpack.c.h.b16 %v2010
    %v2170 = vunpack.c.l.b16 %v2011
    %v2171 = vunpack.c.h.b16 %v2011
    %v2172 = vunpack.c.l.b16 %v2012
    %v2173 = vunpack.c.h.b16 %v2012
    %v2174 = vunpack.c.l.b16 %v2013
    %v2175 = vunpack.c.h.b16 %v2013
    %v2176 = vunpack.c.l.b16 %v2014
    %v2177 = vunpack.c.h.b16 %v2014
    %v2178 = vunpack.c.l.b16 %v2015
    %v2179 = vunpack.c.h.b16 %v2015
    %v2180 = vunpack.c.l.b16 %v2016
    %v2181 = vunpack.c.h.b16 %v2016
    %v2182 = vunpack.c.l.b16 %v2017
    %v2183 = vunpack.c.h.b16 %v2017
    %v2184 = vunpack.c.l.b16 %v2018
    %v2185 = vunpack.c.h.b16 %v2018
    %v2186 = vunpack.c.l.b16 %v2019
    %v2187 = vunpack.c.h.b16 %v2019
    %v2188 = vunpack.c.l.b16 %v2020
    %v2189 = vunpack.c.h.b16 %v2020
    %v2190 = vunpack.c.l.b16 %v2021
    %v2191 = vunpack.c.h.b16 %v2021
    %v2192 = vunpack.c.l.b16 %v2022
    %v2193 = vunpack.c.h.b16 %v2022
    %v2194 = vunpack.c.l.b16 %v2023
    %v2195 = vunpack.c.h.b16 %v2023
    %v2196 = vunpack.c.l.b16 %v2024
    %v2197 = vunpack.c.h.b16 %v2024
    %v2198 = vunpack.c.l.b16 %v2025
    %v2199 = vunpack.c.h.b16 %v2025
    %v2200 = vunpack.c.l.b16 %v2026
    %v2201 = vunpack.c.h.b16 %v2026
    %v2202 = vunpack.c.l.b16 %v2027
    %v2203 = vunpack.c.h.b16 %v2027
    %v2204 = vunpack.c.l.b16 %v2028
    %v2205 = vunpack.c.h.b16 %v2028
    %v2206 = vunpack.c.l.b16 %v2029
    %v2207 = vunpack.c.h.b16 %v2029
    %v2208 = vunpack.c.l.b16 %v2030
    %v2209 = vunpack.c.h.b16 %v2030
    %v2210 = vunpack.c.l.b16 %v2031
    %v2211 = vunpack.c.h.b16 %v2031
    %v2212 = vunpack.c.l.b16 %v2032
    %v2213 = vunpack.c.h.b16 %v2032
    %v2214 = vpack.c.b16 %v2110, %v2102
    %v2215 = vpack.c.b16 %v2111, %v2103
    %v2216 = vpack.c.b16 %v2112, %v2104
    %v2217 = vpack.c.b16 %v2113, %v2105
    %v2218 = vpack.c.b16 %v2114, %v2106
    %v2219 = vpack.c.b16 %v2115, %v2107
    %v2220 = vpack.c.b16 %v2116, %v2108
    %v2221 = vpack.c.b16 %v2117, %v2109
    %v2222 = vpack.c.b16 %v2126, %v2118
    %v2223 = vpack.c.b16 %v2127, %v2119
    %v2224 = vpack.c.b16 %v2128, %v2120
    %v2225 = vpack.c.b16 %v2129, %v2121
    %v2226 = vpack.c.b16 %v2130, %v2122
    %v2227 = vpack.c.b16 %v2131, %v2123
    %v2228 = vpack.c.b16 %v2132, %v2124
    %v2229 = vpack.c.b16 %v2133, %v2125
    %v2230 = vpack.c.b16 %v2142, %v2134
    %v2231 = vpack.c.b16 %v2143, %v2135
    %v2232 = vpack.c.b16 %v2144, %v2136
    %v2233 = vpack.c.b16 %v2145, %v2137
    %v2234 = vpack.c.b16 %v2146, %v2138
    %v2235 = vpack.c.b16 %v2147, %v2139
    %v2236 = vpack.c.b16 %v2148, %v2140
    %v2237 = vpack.c.b16 %v2149, %v2141
    %v2238 = vpack.c.b16 %v2158, %v2150
    %v2239 = vpack.c.b16 %v2159, %v2151
    %v2240 = vpack.c.b16 %v2160, %v2152
    %v2241 = vpack.c.b16 %v2161, %v2153
    %v2242 = vpack.c.b16 %v2162, %v2154
    %v2243 = vpack.c.b16 %v2163, %v2155
    %v2244 = vpack.c.b16 %v2164, %v2156
    %v2245 = vpack.c.b16 %v2165, %v2157
    %v2246 = vpack.c.b16 %v2174, %v2166
    %v2247 = vpack.c.b16 %v2175, %v2167
    %v2248 = vpack.c.b16 %v2176, %v2168
    %v2249 = vpack.c.b16 %v2177, %v2169
    %v2250 = vpack.c.b16 %v2178, %v2170
    %v2251 = vpack.c.b16 %v2179, %v2171
    %v2252 = vpack.c.b16 %v2180, %v2172
    %v2253 = vpack.c.b16 %v2181, %v2173
    %v2254 = vpack.c.b16 %v2190, %v2182
    %v2255 = vpack.c.b16 %v2191, %v2183
    %v2256 = vpack.c.b16 %v2192, %v2184
    %v2257 = vpack.c.b16 %v2193, %v2185
    %v2258 = vpack.c.b16 %v2194, %v2186
    %v2259 = vpack.c.b16 %v2195, %v2187
    %v2260 = vpack.c.b16 %v2196, %v2188
    %v2261 = vpack.c.b16 %v2197, %v2189
    %v2262 = vpack.c.b16 %v2206, %v2198
    %v2263 = vpack.c.b16 %v2207, %v2199
    %v2264 = vpack.c.b16 %v2208, %v2200
    %v2265 = vpack.c.b16 %v2209, %v2201
    %v2266 = vpack.c.b16 %v2210, %v2202
    %v2267 = vpack.c.b16 %v2211, %v2203
    %v2268 = vpack.c.b16 %v2212, %v2204
    %v2269 = vpack.c.b16 %v2213, %v2205
    %v2319 = vsel %vm464, %v2043, 0
    %v2322 = vsel %vm464, %v2044, 0
    %v2325 = vsel %vm464, %v2045, 0
    %v2328 = vsel %vm474, %v2262, 0
    %v2331 = vsel %vm474, %v2263, 0
    %v2334 = vsel %vm474, %v2264, 0
    %v2337 = vsel %vm474, %v2265, 0
    %v2340 = vsel %vm474, %v2266, 0
    %v2343 = vsel %vm474, %v2267, 0
    %v2346 = vsel %vm474, %v2268, 0
    %v2349 = vsel %vm474, %v2269, 0
    %2351 = vmatprep.subr.bf16.mxu0 %v2215
    %2352 = vmatpush1.bf16.msra.mxu0 %v2214
    %2353 = vmatprep.subr.bf16.mxu0 %v2223
    %2354 = vmatpush1.bf16.msra.mxu0 %v2222
    %2355 = vmatprep.subr.bf16.mxu0 %v2231
    %2356 = vmatpush1.bf16.msra.mxu0 %v2230
    %2357 = vmatprep.subr.bf16.mxu0 %v2239
    %2358 = vmatpush1.bf16.msra.mxu0 %v2238
    %2359 = vmatprep.subr.bf16.mxu0 %v2247
    %2360 = vmatpush1.bf16.msra.mxu0 %v2246
    %2361 = vmatprep.subr.bf16.mxu0 %v2255
    %2362 = vmatpush1.bf16.msra.mxu0 %v2254
    %2363 = vmatprep.subr.bf16.mxu0 %v2331
    %2364 = vmatpush1.bf16.msra.mxu0 %v2328
    %2365 = vmatprep.subr.bf16.mxu0 0
    %2366 = vmatpush1.bf16.msra.mxu0 0
    %2367 = vmatprep.subr.bf16.mxu0 0
    %2368 = vmatpush1.bf16.msra.mxu0 0
    %2369 = vmatprep.subr.bf16.mxu0 0
    %2370 = vmatpush1.bf16.msra.mxu0 0
    %2371 = vmatprep.subr.bf16.mxu0 0
    %2372 = vmatpush1.bf16.msra.mxu0 0
    %2373 = vmatprep.subr.bf16.mxu0 0
    %2374 = vmatpush1.bf16.msra.mxu0 0
    %2375 = vmatprep.subr.bf16.mxu0 0
    %2376 = vmatpush1.bf16.msra.mxu0 0
    %2377 = vmatprep.subr.bf16.mxu0 0
    %2378 = vmatpush1.bf16.msra.mxu0 0
    %2379 = vmatprep.subr.bf16.mxu0 0
    %2380 = vmatpush1.bf16.msra.mxu0 0
    %2381 = vmatprep.subr.bf16.mxu0 0
    %2382 = vmatpush1.bf16.msra.mxu0 0
    %2383 = vmatprep.mubr.bf16.mxu0 0
    %2384 = vmatmul.mubr.bf16.gmra.mrb[0].mxu0 %v2319
    %v2385 = vpop.f32.mrb[0].mxu0
    %v2386 = vadd.f32 0.0, %v2385
    %v2387 = vpop.f32.mrb[0].mxu0
    %v2388 = vadd.f32 0.0, %v2387
    %v2389 = vpop.f32.mrb[0].mxu0
    %v2390 = vadd.f32 0.0, %v2389
    %v2391 = vpop.f32.mrb[0].mxu0
    %v2392 = vadd.f32 0.0, %v2391
    %2393 = vmatprep.mubr.bf16.mxu0 0
    %2394 = vmatmul.mubr.bf16.gmra.mrb[0].mxu0 %v2322
    %v2395 = vpop.f32.mrb[0].mxu0
    %v2396 = vadd.f32 0.0, %v2395
    %v2397 = vpop.f32.mrb[0].mxu0
    %v2398 = vadd.f32 0.0, %v2397
    %v2399 = vpop.f32.mrb[0].mxu0
    %v2400 = vadd.f32 0.0, %v2399
    %v2401 = vpop.f32.mrb[0].mxu0
    %v2402 = vadd.f32 0.0, %v2401
    %2403 = vmatprep.mubr.bf16.mxu0 0
    %2404 = vmatmul.mubr.bf16.gmra.mrb[0].mxu0 %v2325
    %v2405 = vpop.f32.mrb[0].mxu0
    %v2406 = vadd.f32 0.0, %v2405
    %v2407 = vpop.f32.mrb[0].mxu0
    %v2408 = vadd.f32 0.0, %v2407
    %v2409 = vpop.f32.mrb[0].mxu0
    %v2410 = vpop.f32.mrb[0].mxu0
    %2411 = vdwg.mxu0
    %2412 = vmatprep.subr.bf16.mxu0 %v2217
    %2413 = vmatpush1.bf16.msra.mxu0 %v2216
    %2414 = vmatprep.subr.bf16.mxu0 %v2225
    %2415 = vmatpush1.bf16.msra.mxu0 %v2224
    %2416 = vmatprep.subr.bf16.mxu0 %v2233
    %2417 = vmatpush1.bf16.msra.mxu0 %v2232
    %2418 = vmatprep.subr.bf16.mxu0 %v2241
    %2419 = vmatpush1.bf16.msra.mxu0 %v2240
    %2420 = vmatprep.subr.bf16.mxu0 %v2249
    %2421 = vmatpush1.bf16.msra.mxu0 %v2248
    %2422 = vmatprep.subr.bf16.mxu0 %v2257
    %2423 = vmatpush1.bf16.msra.mxu0 %v2256
    %2424 = vmatprep.subr.bf16.mxu0 %v2337
    %2425 = vmatpush1.bf16.msra.mxu0 %v2334
    %2426 = vmatprep.subr.bf16.mxu0 0
    %2427 = vmatpush1.bf16.msra.mxu0 0
    %2428 = vmatprep.subr.bf16.mxu0 0
    %2429 = vmatpush1.bf16.msra.mxu0 0
    %2430 = vmatprep.subr.bf16.mxu0 0
    %2431 = vmatpush1.bf16.msra.mxu0 0
    %2432 = vmatprep.subr.bf16.mxu0 0
    %2433 = vmatpush1.bf16.msra.mxu0 0
    %2434 = vmatprep.subr.bf16.mxu0 0
    %2435 = vmatpush1.bf16.msra.mxu0 0
    %2436 = vmatprep.subr.bf16.mxu0 0
    %2437 = vmatpush1.bf16.msra.mxu0 0
    %2438 = vmatprep.subr.bf16.mxu0 0
    %2439 = vmatpush1.bf16.msra.mxu0 0
    %2440 = vmatprep.subr.bf16.mxu0 0
    %2441 = vmatpush1.bf16.msra.mxu0 0
    %2442 = vmatprep.subr.bf16.mxu0 0
    %2443 = vmatpush1.bf16.msra.mxu0 0
    %2444 = vmatprep.mubr.bf16.mxu0 0
    %2445 = vmatmul.mubr.bf16.gmra.mrb[0].mxu0 %v2319
    %v2446 = vpop.f32.mrb[0].mxu0
    %v2447 = vadd.f32 0.0, %v2446
    %v2448 = vpop.f32.mrb[0].mxu0
    %v2449 = vadd.f32 0.0, %v2448
    %v2450 = vpop.f32.mrb[0].mxu0
    %v2451 = vadd.f32 0.0, %v2450
    %v2452 = vpop.f32.mrb[0].mxu0
    %v2453 = vadd.f32 0.0, %v2452
    %2454 = vmatprep.mubr.bf16.mxu0 0
    %2455 = vmatmul.mubr.bf16.gmra.mrb[0].mxu0 %v2322
    %v2456 = vpop.f32.mrb[0].mxu0
    %v2457 = vadd.f32 0.0, %v2456
    %v2458 = vpop.f32.mrb[0].mxu0
    %v2459 = vadd.f32 0.0, %v2458
    %v2460 = vpop.f32.mrb[0].mxu0
    %v2461 = vadd.f32 0.0, %v2460
    %v2462 = vpop.f32.mrb[0].mxu0
    %v2463 = vadd.f32 0.0, %v2462
    %2464 = vmatprep.mubr.bf16.mxu0 0
    %2465 = vmatmul.mubr.bf16.gmra.mrb[0].mxu0 %v2325
    %v2466 = vpop.f32.mrb[0].mxu0
    %v2467 = vadd.f32 0.0, %v2466
    %v2468 = vpop.f32.mrb[0].mxu0
    %v2469 = vadd.f32 0.0, %v2468
    %v2470 = vpop.f32.mrb[0].mxu0
    %v2471 = vpop.f32.mrb[0].mxu0
    %2472 = vdwg.mxu0
    %2473 = vmatprep.subr.bf16.mxu0 %v2219
    %2474 = vmatpush1.bf16.msra.mxu0 %v2218
    %2475 = vmatprep.subr.bf16.mxu0 %v2227
    %2476 = vmatpush1.bf16.msra.mxu0 %v2226
    %2477 = vmatprep.subr.bf16.mxu0 %v2235
    %2478 = vmatpush1.bf16.msra.mxu0 %v2234
    %2479 = vmatprep.subr.bf16.mxu0 %v2243
    %2480 = vmatpush1.bf16.msra.mxu0 %v2242
    %2481 = vmatprep.subr.bf16.mxu0 %v2251
    %2482 = vmatpush1.bf16.msra.mxu0 %v2250
    %2483 = vmatprep.subr.bf16.mxu0 %v2259
    %2484 = vmatpush1.bf16.msra.mxu0 %v2258
    %2485 = vmatprep.subr.bf16.mxu0 %v2343
    %2486 = vmatpush1.bf16.msra.mxu0 %v2340
    %2487 = vmatprep.subr.bf16.mxu0 0
    %2488 = vmatpush1.bf16.msra.mxu0 0
    %2489 = vmatprep.subr.bf16.mxu0 0
    %2490 = vmatpush1.bf16.msra.mxu0 0
    %2491 = vmatprep.subr.bf16.mxu0 0
    %2492 = vmatpush1.bf16.msra.mxu0 0
    %2493 = vmatprep.subr.bf16.mxu0 0
    %2494 = vmatpush1.bf16.msra.mxu0 0
    %2495 = vmatprep.subr.bf16.mxu0 0
    %2496 = vmatpush1.bf16.msra.mxu0 0
    %2497 = vmatprep.subr.bf16.mxu0 0
    %2498 = vmatpush1.bf16.msra.mxu0 0
    %2499 = vmatprep.subr.bf16.mxu0 0
    %2500 = vmatpush1.bf16.msra.mxu0 0
    %2501 = vmatprep.subr.bf16.mxu0 0
    %2502 = vmatpush1.bf16.msra.mxu0 0
    %2503 = vmatprep.subr.bf16.mxu0 0
    %2504 = vmatpush1.bf16.msra.mxu0 0
    %2505 = vmatprep.mubr.bf16.mxu0 0
    %2506 = vmatmul.mubr.bf16.gmra.mrb[0].mxu0 %v2319
    %v2507 = vpop.f32.mrb[0].mxu0
    %v2508 = vadd.f32 0.0, %v2507
    %v2509 = vpop.f32.mrb[0].mxu0
    %v2510 = vadd.f32 0.0, %v2509
    %v2511 = vpop.f32.mrb[0].mxu0
    %v2512 = vadd.f32 0.0, %v2511
    %v2513 = vpop.f32.mrb[0].mxu0
    %v2514 = vadd.f32 0.0, %v2513
    %2515 = vmatprep.mubr.bf16.mxu0 0
    %2516 = vmatmul.mubr.bf16.gmra.mrb[0].mxu0 %v2322
    %v2517 = vpop.f32.mrb[0].mxu0
    %v2518 = vadd.f32 0.0, %v2517
    %v2519 = vpop.f32.mrb[0].mxu0
    %v2520 = vadd.f32 0.0, %v2519
    %v2521 = vpop.f32.mrb[0].mxu0
    %v2522 = vadd.f32 0.0, %v2521
    %v2523 = vpop.f32.mrb[0].mxu0
    %v2524 = vadd.f32 0.0, %v2523
    %2525 = vmatprep.mubr.bf16.mxu0 0
    %2526 = vmatmul.mubr.bf16.gmra.mrb[0].mxu0 %v2325
    %v2527 = vpop.f32.mrb[0].mxu0
    %v2528 = vadd.f32 0.0, %v2527
    %v2529 = vpop.f32.mrb[0].mxu0
    %v2530 = vadd.f32 0.0, %v2529
    %v2531 = vpop.f32.mrb[0].mxu0
    %v2532 = vpop.f32.mrb[0].mxu0
    %2533 = vdwg.mxu0
    %2534 = vmatprep.subr.bf16.mxu0 %v2221
    %2535 = vmatpush1.bf16.msra.mxu0 %v2220
    %2536 = vmatprep.subr.bf16.mxu0 %v2229
    %2537 = vmatpush1.bf16.msra.mxu0 %v2228
    %2538 = vmatprep.subr.bf16.mxu0 %v2237
    %2539 = vmatpush1.bf16.msra.mxu0 %v2236
    %2540 = vmatprep.subr.bf16.mxu0 %v2245
    %2541 = vmatpush1.bf16.msra.mxu0 %v2244
    %2542 = vmatprep.subr.bf16.mxu0 %v2253
    %2543 = vmatpush1.bf16.msra.mxu0 %v2252
    %2544 = vmatprep.subr.bf16.mxu0 %v2261
    %2545 = vmatpush1.bf16.msra.mxu0 %v2260
    %2546 = vmatprep.subr.bf16.mxu0 %v2349
    %2547 = vmatpush1.bf16.msra.mxu0 %v2346
    %2548 = vmatprep.subr.bf16.mxu0 0
    %2549 = vmatpush1.bf16.msra.mxu0 0
    %2550 = vmatprep.subr.bf16.mxu0 0
    %2551 = vmatpush1.bf16.msra.mxu0 0
    %2552 = vmatprep.subr.bf16.mxu0 0
    %2553 = vmatpush1.bf16.msra.mxu0 0
    %2554 = vmatprep.subr.bf16.mxu0 0
    %2555 = vmatpush1.bf16.msra.mxu0 0
    %2556 = vmatprep.subr.bf16.mxu0 0
    %2557 = vmatpush1.bf16.msra.mxu0 0
    %2558 = vmatprep.subr.bf16.mxu0 0
    %2559 = vmatpush1.bf16.msra.mxu0 0
    %2560 = vmatprep.subr.bf16.mxu0 0
    %2561 = vmatpush1.bf16.msra.mxu0 0
    %2562 = vmatprep.subr.bf16.mxu0 0
    %2563 = vmatpush1.bf16.msra.mxu0 0
    %2564 = vmatprep.subr.bf16.mxu0 0
    %2565 = vmatpush1.bf16.msra.mxu0 0
    %2566 = vmatprep.mubr.bf16.mxu0 0
    %2567 = vmatmul.mubr.bf16.gmra.mrb[0].mxu0 %v2319
    %v2568 = vpop.f32.mrb[0].mxu0
    %v2569 = vadd.f32 0.0, %v2568
    %v2570 = vpop.f32.mrb[0].mxu0
    %v2571 = vadd.f32 0.0, %v2570
    %v2572 = vpop.f32.mrb[0].mxu0
    %v2573 = vadd.f32 0.0, %v2572
    %v2574 = vpop.f32.mrb[0].mxu0
    %v2575 = vadd.f32 0.0, %v2574
    %2576 = vmatprep.mubr.bf16.mxu0 0
    %2577 = vmatmul.mubr.bf16.gmra.mrb[0].mxu0 %v2322
    %v2578 = vpop.f32.mrb[0].mxu0
    %v2579 = vadd.f32 0.0, %v2578
    %v2580 = vpop.f32.mrb[0].mxu0
    %v2581 = vadd.f32 0.0, %v2580
    %v2582 = vpop.f32.mrb[0].mxu0
    %v2583 = vadd.f32 0.0, %v2582
    %v2584 = vpop.f32.mrb[0].mxu0
    %v2585 = vadd.f32 0.0, %v2584
    %2586 = vmatprep.mubr.bf16.mxu0 0
    %2587 = vmatmul.mubr.bf16.gmra.mrb[0].mxu0 %v2325
    %v2588 = vpop.f32.mrb[0].mxu0
    %v2589 = vadd.f32 0.0, %v2588
    %v2590 = vpop.f32.mrb[0].mxu0
    %v2591 = vadd.f32 0.0, %v2590
    %v2592 = vpop.f32.mrb[0].mxu0
    %v2593 = vpop.f32.mrb[0].mxu0
    %2594 = vdwg.mxu0
    %v2595 = vadd.f32 %v1930, %v2386
    %v2596 = vadd.f32 %v1931, %v2388
    %v2597 = vadd.f32 %v1932, %v2447
    %v2598 = vadd.f32 %v1933, %v2449
    %v2599 = vadd.f32 %v1934, %v2508
    %v2600 = vadd.f32 %v1935, %v2510
    %v2601 = vadd.f32 %v1936, %v2569
    %v2602 = vadd.f32 %v1937, %v2571
    %v2603 = vadd.f32 %v1938, %v2390
    %v2604 = vadd.f32 %v1939, %v2392
    %v2605 = vadd.f32 %v1940, %v2451
    %v2606 = vadd.f32 %v1941, %v2453
    %v2607 = vadd.f32 %v1942, %v2512
    %v2608 = vadd.f32 %v1943, %v2514
    %v2609 = vadd.f32 %v1944, %v2573
    %v2610 = vadd.f32 %v1945, %v2575
    %v2611 = vadd.f32 %v1946, %v2396
    %v2612 = vadd.f32 %v1947, %v2398
    %v2613 = vadd.f32 %v1948, %v2457
    %v2614 = vadd.f32 %v1949, %v2459
    %v2615 = vadd.f32 %v1950, %v2518
    %v2616 = vadd.f32 %v1951, %v2520
    %v2617 = vadd.f32 %v1952, %v2579
    %v2618 = vadd.f32 %v1953, %v2581
    %v2619 = vadd.f32 %v1954, %v2400
    %v2620 = vadd.f32 %v1955, %v2402
    %v2621 = vadd.f32 %v1956, %v2461
    %v2622 = vadd.f32 %v1957, %v2463
    %v2623 = vadd.f32 %v1958, %v2522
    %v2624 = vadd.f32 %v1959, %v2524
    %v2625 = vadd.f32 %v1960, %v2583
    %v2626 = vadd.f32 %v1961, %v2585
    %v2627 = vadd.f32 %v1962, %v2406
    %v2628 = vadd.f32 %v1963, %v2408
    %v2629 = vadd.f32 %v1964, %v2467
    %v2630 = vadd.f32 %v1965, %v2469
    %v2631 = vadd.f32 %v1966, %v2528
    %v2632 = vadd.f32 %v1967, %v2530
    %v2633 = vadd.f32 %v1968, %v2589
    %v2634 = vadd.f32 %v1969, %v2591
    %s2635 = scalar_lea.vmem %s0, 80
    %v2636 = vld [vmem:[%s2635] sm:$0xf]
    %v2637 = vld [vmem:[%s2635 + $0x4] sm:$0xf]
    %v2638 = vld [vmem:[%s2635 + $0x8] sm:$0xf]
    %v2639 = vld [vmem:[%s2635 + $0xc] sm:$0xf]
    %v2640 = vld [vmem:[%s2635 + $0x10] sm:$0x3]
    %s2641 = scalar_lea.vmem [#allocation2], 1792
    %v2642 = vld [vmem:[%s2641] sm:$0xff]
    %v2643 = vld [vmem:[%s2641 + $0x8] sm:$0xff]
    %v2644 = vld [vmem:[%s2641 + $0x10] sm:$0xff]
    %v2645 = vld [vmem:[%s2641 + $0x18] sm:$0xff]
    %v2646 = vld [vmem:[%s2641 + $0x20] sm:$0xff]
    %v2647 = vld [vmem:[%s2641 + $0x28] sm:$0xff]
    %v2648 = vld [vmem:[%s2641 + $0x30] sm:$0xff]
    %v2649 = vld [vmem:[%s2641 + $0x38] sm:$0xff]
    %v2650 = vld [vmem:[%s2641 + $0x40] sm:$0xff]
    %v2651 = vld [vmem:[%s2641 + $0x48] sm:$0xff]
    %v2652 = vld [vmem:[%s2641 + $0x50] sm:$0xff]
    %v2653 = vld [vmem:[%s2641 + $0x58] sm:$0xff]
    %v2654 = vld [vmem:[%s2641 + $0x60] sm:$0xff]
    %v2655 = vld [vmem:[%s2641 + $0x68] sm:$0xff]
    %v2656 = vld [vmem:[%s2641 + $0x70] sm:$0xff]
    %v2657 = vld [vmem:[%s2641 + $0x78] sm:$0xff]
    %v2658 = vld [vmem:[%s2641 + $0x80] sm:$0xff]
    %v2659 = vld [vmem:[%s2641 + $0x88] sm:$0xff]
    %v2660 = vld [vmem:[%s2641 + $0x90] sm:$0xff]
    %v2661 = vld [vmem:[%s2641 + $0x98] sm:$0xff]
    %v2662 = vld [vmem:[%s2641 + $0xa0] sm:$0xff]
    %v2663 = vld [vmem:[%s2641 + $0xa8] sm:$0xff]
    %v2664 = vld [vmem:[%s2641 + $0xb0] sm:$0xff]
    %v2665 = vld [vmem:[%s2641 + $0xb8] sm:$0xff]
    %v2666 = vld [vmem:[%s2641 + $0xc0] sm:$0xff]
    %v2667 = vld [vmem:[%s2641 + $0xc8] sm:$0xff]
    %v2668 = vld [vmem:[%s2641 + $0xd0] sm:$0xff]
    %v2669 = vld [vmem:[%s2641 + $0xd8] sm:$0xff]
    %v2670 = vld [vmem:[%s2641 + $0xe0] sm:$0xff]
    %v2671 = vld [vmem:[%s2641 + $0xe8] sm:$0xff]
    %v2672 = vld [vmem:[%s2641 + $0xf0] sm:$0xff]
    %v2673 = vld [vmem:[%s2641 + $0xf8] sm:$0xff]
    %v2674 = vld [vmem:[%s2641 + $0x100] sm:$0xff]
    %v2675 = vld [vmem:[%s2641 + $0x108] sm:$0xff]
    %v2676 = vld [vmem:[%s2641 + $0x110] sm:$0xff]
    %v2677 = vld [vmem:[%s2641 + $0x118] sm:$0xff]
    %v2678 = vld [vmem:[%s2641 + $0x120] sm:$0xff]
    %v2679 = vld [vmem:[%s2641 + $0x128] sm:$0xff]
    %v2680 = vld [vmem:[%s2641 + $0x130] sm:$0xff]
    %v2681 = vld [vmem:[%s2641 + $0x138] sm:$0xff]
    %v2682 = vld [vmem:[%s2641 + $0x140] sm:$0xff]
    %v2683 = vld [vmem:[%s2641 + $0x148] sm:$0xff]
    %v2684 = vld [vmem:[%s2641 + $0x150] sm:$0xff]
    %v2685 = vld [vmem:[%s2641 + $0x158] sm:$0xff]
    %v2686 = vld [vmem:[%s2641 + $0x160] sm:$0xff]
    %v2687 = vld [vmem:[%s2641 + $0x168] sm:$0xff]
    %v2688 = vld [vmem:[%s2641 + $0x170] sm:$0xff]
    %v2689 = vld [vmem:[%s2641 + $0x178] sm:$0xff]
    %v2690 = vld [vmem:[%s2641 + $0x180] sm:$0xff]
    %v2691 = vld [vmem:[%s2641 + $0x188] sm:$0xff]
    %v2692 = vld [vmem:[%s2641 + $0x190] sm:$0xff]
    %v2693 = vld [vmem:[%s2641 + $0x198] sm:$0xff]
    %v2694 = vld [vmem:[%s2641 + $0x1a0] sm:$0x33]
    %v2695 = vld [vmem:[%s2641 + $0x1a8] sm:$0x33]
    %v2696 = vld [vmem:[%s2641 + $0x1b0] sm:$0x33]
    %v2697 = vld [vmem:[%s2641 + $0x1b8] sm:$0x33]
    %v2703 = vunpack.c.l.b16 %v2636
    %v2704 = vunpack.c.l.b16 %v2637
    %v2705 = vunpack.c.l.b16 %v2638
    %v2706 = vunpack.c.l.b16 %v2639
    %v2707 = vunpack.c.l.b16 %v2640
    %v2708 = vpack.c.b16 %v2704, %v2703
    %v2709 = vpack.c.b16 %v2706, %v2705
    %v2710 = vpack.c.b16 %v2707, %v2707
    %v2767 = vunpack.c.l.b16 %v2642
    %v2768 = vunpack.c.h.b16 %v2642
    %v2769 = vunpack.c.l.b16 %v2643
    %v2770 = vunpack.c.h.b16 %v2643
    %v2771 = vunpack.c.l.b16 %v2644
    %v2772 = vunpack.c.h.b16 %v2644
    %v2773 = vunpack.c.l.b16 %v2645
    %v2774 = vunpack.c.h.b16 %v2645
    %v2775 = vunpack.c.l.b16 %v2646
    %v2776 = vunpack.c.h.b16 %v2646
    %v2777 = vunpack.c.l.b16 %v2647
    %v2778 = vunpack.c.h.b16 %v2647
    %v2779 = vunpack.c.l.b16 %v2648
    %v2780 = vunpack.c.h.b16 %v2648
    %v2781 = vunpack.c.l.b16 %v2649
    %v2782 = vunpack.c.h.b16 %v2649
    %v2783 = vunpack.c.l.b16 %v2650
    %v2784 = vunpack.c.h.b16 %v2650
    %v2785 = vunpack.c.l.b16 %v2651
    %v2786 = vunpack.c.h.b16 %v2651
    %v2787 = vunpack.c.l.b16 %v2652
    %v2788 = vunpack.c.h.b16 %v2652
    %v2789 = vunpack.c.l.b16 %v2653
    %v2790 = vunpack.c.h.b16 %v2653
    %v2791 = vunpack.c.l.b16 %v2654
    %v2792 = vunpack.c.h.b16 %v2654
    %v2793 = vunpack.c.l.b16 %v2655
    %v2794 = vunpack.c.h.b16 %v2655
    %v2795 = vunpack.c.l.b16 %v2656
    %v2796 = vunpack.c.h.b16 %v2656
    %v2797 = vunpack.c.l.b16 %v2657
    %v2798 = vunpack.c.h.b16 %v2657
    %v2799 = vunpack.c.l.b16 %v2658
    %v2800 = vunpack.c.h.b16 %v2658
    %v2801 = vunpack.c.l.b16 %v2659
    %v2802 = vunpack.c.h.b16 %v2659
    %v2803 = vunpack.c.l.b16 %v2660
    %v2804 = vunpack.c.h.b16 %v2660
    %v2805 = vunpack.c.l.b16 %v2661
    %v2806 = vunpack.c.h.b16 %v2661
    %v2807 = vunpack.c.l.b16 %v2662
    %v2808 = vunpack.c.h.b16 %v2662
    %v2809 = vunpack.c.l.b16 %v2663
    %v2810 = vunpack.c.h.b16 %v2663
    %v2811 = vunpack.c.l.b16 %v2664
    %v2812 = vunpack.c.h.b16 %v2664
    %v2813 = vunpack.c.l.b16 %v2665
    %v2814 = vunpack.c.h.b16 %v2665
    %v2815 = vunpack.c.l.b16 %v2666
    %v2816 = vunpack.c.h.b16 %v2666
    %v2817 = vunpack.c.l.b16 %v2667
    %v2818 = vunpack.c.h.b16 %v2667
    %v2819 = vunpack.c.l.b16 %v2668
    %v2820 = vunpack.c.h.b16 %v2668
    %v2821 = vunpack.c.l.b16 %v2669
    %v2822 = vunpack.c.h.b16 %v2669
    %v2823 = vunpack.c.l.b16 %v2670
    %v2824 = vunpack.c.h.b16 %v2670
    %v2825 = vunpack.c.l.b16 %v2671
    %v2826 = vunpack.c.h.b16 %v2671
    %v2827 = vunpack.c.l.b16 %v2672
    %v2828 = vunpack.c.h.b16 %v2672
    %v2829 = vunpack.c.l.b16 %v2673
    %v2830 = vunpack.c.h.b16 %v2673
    %v2831 = vunpack.c.l.b16 %v2674
    %v2832 = vunpack.c.h.b16 %v2674
    %v2833 = vunpack.c.l.b16 %v2675
    %v2834 = vunpack.c.h.b16 %v2675
    %v2835 = vunpack.c.l.b16 %v2676
    %v2836 = vunpack.c.h.b16 %v2676
    %v2837 = vunpack.c.l.b16 %v2677
    %v2838 = vunpack.c.h.b16 %v2677
    %v2839 = vunpack.c.l.b16 %v2678
    %v2840 = vunpack.c.h.b16 %v2678
    %v2841 = vunpack.c.l.b16 %v2679
    %v2842 = vunpack.c.h.b16 %v2679
    %v2843 = vunpack.c.l.b16 %v2680
    %v2844 = vunpack.c.h.b16 %v2680
    %v2845 = vunpack.c.l.b16 %v2681
    %v2846 = vunpack.c.h.b16 %v2681
    %v2847 = vunpack.c.l.b16 %v2682
    %v2848 = vunpack.c.h.b16 %v2682
    %v2849 = vunpack.c.l.b16 %v2683
    %v2850 = vunpack.c.h.b16 %v2683
    %v2851 = vunpack.c.l.b16 %v2684
    %v2852 = vunpack.c.h.b16 %v2684
    %v2853 = vunpack.c.l.b16 %v2685
    %v2854 = vunpack.c.h.b16 %v2685
    %v2855 = vunpack.c.l.b16 %v2686
    %v2856 = vunpack.c.h.b16 %v2686
    %v2857 = vunpack.c.l.b16 %v2687
    %v2858 = vunpack.c.h.b16 %v2687
    %v2859 = vunpack.c.l.b16 %v2688
    %v2860 = vunpack.c.h.b16 %v2688
    %v2861 = vunpack.c.l.b16 %v2689
    %v2862 = vunpack.c.h.b16 %v2689
    %v2863 = vunpack.c.l.b16 %v2690
    %v2864 = vunpack.c.h.b16 %v2690
    %v2865 = vunpack.c.l.b16 %v2691
    %v2866 = vunpack.c.h.b16 %v2691
    %v2867 = vunpack.c.l.b16 %v2692
    %v2868 = vunpack.c.h.b16 %v2692
    %v2869 = vunpack.c.l.b16 %v2693
    %v2870 = vunpack.c.h.b16 %v2693
    %v2871 = vunpack.c.l.b16 %v2694
    %v2872 = vunpack.c.h.b16 %v2694
    %v2873 = vunpack.c.l.b16 %v2695
    %v2874 = vunpack.c.h.b16 %v2695
    %v2875 = vunpack.c.l.b16 %v2696
    %v2876 = vunpack.c.h.b16 %v2696
    %v2877 = vunpack.c.l.b16 %v2697
    %v2878 = vunpack.c.h.b16 %v2697
    %v2879 = vpack.c.b16 %v2775, %v2767
    %v2880 = vpack.c.b16 %v2776, %v2768
    %v2881 = vpack.c.b16 %v2777, %v2769
    %v2882 = vpack.c.b16 %v2778, %v2770
    %v2883 = vpack.c.b16 %v2779, %v2771
    %v2884 = vpack.c.b16 %v2780, %v2772
    %v2885 = vpack.c.b16 %v2781, %v2773
    %v2886 = vpack.c.b16 %v2782, %v2774
    %v2887 = vpack.c.b16 %v2791, %v2783
    %v2888 = vpack.c.b16 %v2792, %v2784
    %v2889 = vpack.c.b16 %v2793, %v2785
    %v2890 = vpack.c.b16 %v2794, %v2786
    %v2891 = vpack.c.b16 %v2795, %v2787
    %v2892 = vpack.c.b16 %v2796, %v2788
    %v2893 = vpack.c.b16 %v2797, %v2789
    %v2894 = vpack.c.b16 %v2798, %v2790
    %v2895 = vpack.c.b16 %v2807, %v2799
    %v2896 = vpack.c.b16 %v2808, %v2800
    %v2897 = vpack.c.b16 %v2809, %v2801
    %v2898 = vpack.c.b16 %v2810, %v2802
    %v2899 = vpack.c.b16 %v2811, %v2803
    %v2900 = vpack.c.b16 %v2812, %v2804
    %v2901 = vpack.c.b16 %v2813, %v2805
    %v2902 = vpack.c.b16 %v2814, %v2806
    %v2903 = vpack.c.b16 %v2823, %v2815
    %v2904 = vpack.c.b16 %v2824, %v2816
    %v2905 = vpack.c.b16 %v2825, %v2817
    %v2906 = vpack.c.b16 %v2826, %v2818
    %v2907 = vpack.c.b16 %v2827, %v2819
    %v2908 = vpack.c.b16 %v2828, %v2820
    %v2909 = vpack.c.b16 %v2829, %v2821
    %v2910 = vpack.c.b16 %v2830, %v2822
    %v2911 = vpack.c.b16 %v2839, %v2831
    %v2912 = vpack.c.b16 %v2840, %v2832
    %v2913 = vpack.c.b16 %v2841, %v2833
    %v2914 = vpack.c.b16 %v2842, %v2834
    %v2915 = vpack.c.b16 %v2843, %v2835
    %v2916 = vpack.c.b16 %v2844, %v2836
    %v2917 = vpack.c.b16 %v2845, %v2837
    %v2918 = vpack.c.b16 %v2846, %v2838
    %v2919 = vpack.c.b16 %v2855, %v2847
    %v2920 = vpack.c.b16 %v2856, %v2848
    %v2921 = vpack.c.b16 %v2857, %v2849
    %v2922 = vpack.c.b16 %v2858, %v2850
    %v2923 = vpack.c.b16 %v2859, %v2851
    %v2924 = vpack.c.b16 %v2860, %v2852
    %v2925 = vpack.c.b16 %v2861, %v2853
    %v2926 = vpack.c.b16 %v2862, %v2854
    %v2927 = vpack.c.b16 %v2871, %v2863
    %v2928 = vpack.c.b16 %v2872, %v2864
    %v2929 = vpack.c.b16 %v2873, %v2865
    %v2930 = vpack.c.b16 %v2874, %v2866
    %v2931 = vpack.c.b16 %v2875, %v2867
    %v2932 = vpack.c.b16 %v2876, %v2868
    %v2933 = vpack.c.b16 %v2877, %v2869
    %v2934 = vpack.c.b16 %v2878, %v2870
    %v2984 = vsel %vm464, %v2708, 0
    %v2987 = vsel %vm464, %v2709, 0
    %v2990 = vsel %vm464, %v2710, 0
    %v2993 = vsel %vm474, %v2927, 0
    %v2996 = vsel %vm474, %v2928, 0
    %v2999 = vsel %vm474, %v2929, 0
    %v3002 = vsel %vm474, %v2930, 0
    %v3005 = vsel %vm474, %v2931, 0
    %v3008 = vsel %vm474, %v2932, 0
    %v3011 = vsel %vm474, %v2933, 0
    %v3014 = vsel %vm474, %v2934, 0
    %3016 = vmatprep.subr.bf16.mxu0 %v2880
    %3017 = vmatpush1.bf16.msra.mxu0 %v2879
    %3018 = vmatprep.subr.bf16.mxu0 %v2888
    %3019 = vmatpush1.bf16.msra.mxu0 %v2887
    %3020 = vmatprep.subr.bf16.mxu0 %v2896
    %3021 = vmatpush1.bf16.msra.mxu0 %v2895
    %3022 = vmatprep.subr.bf16.mxu0 %v2904
    %3023 = vmatpush1.bf16.msra.mxu0 %v2903
    %3024 = vmatprep.subr.bf16.mxu0 %v2912
    %3025 = vmatpush1.bf16.msra.mxu0 %v2911
    %3026 = vmatprep.subr.bf16.mxu0 %v2920
    %3027 = vmatpush1.bf16.msra.mxu0 %v2919
    %3028 = vmatprep.subr.bf16.mxu0 %v2996
    %3029 = vmatpush1.bf16.msra.mxu0 %v2993
    %3030 = vmatprep.subr.bf16.mxu0 0
    %3031 = vmatpush1.bf16.msra.mxu0 0
    %3032 = vmatprep.subr.bf16.mxu0 0
    %3033 = vmatpush1.bf16.msra.mxu0 0
    %3034 = vmatprep.subr.bf16.mxu0 0
    %3035 = vmatpush1.bf16.msra.mxu0 0
    %3036 = vmatprep.subr.bf16.mxu0 0
    %3037 = vmatpush1.bf16.msra.mxu0 0
    %3038 = vmatprep.subr.bf16.mxu0 0
    %3039 = vmatpush1.bf16.msra.mxu0 0
    %3040 = vmatprep.subr.bf16.mxu0 0
    %3041 = vmatpush1.bf16.msra.mxu0 0
    %3042 = vmatprep.subr.bf16.mxu0 0
    %3043 = vmatpush1.bf16.msra.mxu0 0
    %3044 = vmatprep.subr.bf16.mxu0 0
    %3045 = vmatpush1.bf16.msra.mxu0 0
    %3046 = vmatprep.subr.bf16.mxu0 0
    %3047 = vmatpush1.bf16.msra.mxu0 0
    %3048 = vmatprep.mubr.bf16.mxu0 0
    %3049 = vmatmul.mubr.bf16.gmra.mrb[0].mxu0 %v2984
    %v3050 = vpop.f32.mrb[0].mxu0
    %v3051 = vadd.f32 0.0, %v3050
    %v3052 = vpop.f32.mrb[0].mxu0
    %v3053 = vadd.f32 0.0, %v3052
    %v3054 = vpop.f32.mrb[0].mxu0
    %v3055 = vadd.f32 0.0, %v3054
    %v3056 = vpop.f32.mrb[0].mxu0
    %v3057 = vadd.f32 0.0, %v3056
    %3058 = vmatprep.mubr.bf16.mxu0 0
    %3059 = vmatmul.mubr.bf16.gmra.mrb[0].mxu0 %v2987
    %v3060 = vpop.f32.mrb[0].mxu0
    %v3061 = vadd.f32 0.0, %v3060
    %v3062 = vpop.f32.mrb[0].mxu0
    %v3063 = vadd.f32 0.0, %v3062
    %v3064 = vpop.f32.mrb[0].mxu0
    %v3065 = vadd.f32 0.0, %v3064
    %v3066 = vpop.f32.mrb[0].mxu0
    %v3067 = vadd.f32 0.0, %v3066
    %3068 = vmatprep.mubr.bf16.mxu0 0
    %3069 = vmatmul.mubr.bf16.gmra.mrb[0].mxu0 %v2990
    %v3070 = vpop.f32.mrb[0].mxu0
    %v3071 = vadd.f32 0.0, %v3070
    %v3072 = vpop.f32.mrb[0].mxu0
    %v3073 = vadd.f32 0.0, %v3072
    %v3074 = vpop.f32.mrb[0].mxu0
    %v3075 = vpop.f32.mrb[0].mxu0
    %3076 = vdwg.mxu0
    %3077 = vmatprep.subr.bf16.mxu0 %v2882
    %3078 = vmatpush1.bf16.msra.mxu0 %v2881
    %3079 = vmatprep.subr.bf16.mxu0 %v2890
    %3080 = vmatpush1.bf16.msra.mxu0 %v2889
    %3081 = vmatprep.subr.bf16.mxu0 %v2898
    %3082 = vmatpush1.bf16.msra.mxu0 %v2897
    %3083 = vmatprep.subr.bf16.mxu0 %v2906
    %3084 = vmatpush1.bf16.msra.mxu0 %v2905
    %3085 = vmatprep.subr.bf16.mxu0 %v2914
    %3086 = vmatpush1.bf16.msra.mxu0 %v2913
    %3087 = vmatprep.subr.bf16.mxu0 %v2922
    %3088 = vmatpush1.bf16.msra.mxu0 %v2921
    %3089 = vmatprep.subr.bf16.mxu0 %v3002
    %3090 = vmatpush1.bf16.msra.mxu0 %v2999
    %3091 = vmatprep.subr.bf16.mxu0 0
    %3092 = vmatpush1.bf16.msra.mxu0 0
    %3093 = vmatprep.subr.bf16.mxu0 0
    %3094 = vmatpush1.bf16.msra.mxu0 0
    %3095 = vmatprep.subr.bf16.mxu0 0
    %3096 = vmatpush1.bf16.msra.mxu0 0
    %3097 = vmatprep.subr.bf16.mxu0 0
    %3098 = vmatpush1.bf16.msra.mxu0 0
    %3099 = vmatprep.subr.bf16.mxu0 0
    %3100 = vmatpush1.bf16.msra.mxu0 0
    %3101 = vmatprep.subr.bf16.mxu0 0
    %3102 = vmatpush1.bf16.msra.mxu0 0
    %3103 = vmatprep.subr.bf16.mxu0 0
    %3104 = vmatpush1.bf16.msra.mxu0 0
    %3105 = vmatprep.subr.bf16.mxu0 0
    %3106 = vmatpush1.bf16.msra.mxu0 0
    %3107 = vmatprep.subr.bf16.mxu0 0
    %3108 = vmatpush1.bf16.msra.mxu0 0
    %3109 = vmatprep.mubr.bf16.mxu0 0
    %3110 = vmatmul.mubr.bf16.gmra.mrb[0].mxu0 %v2984
    %v3111 = vpop.f32.mrb[0].mxu0
    %v3112 = vadd.f32 0.0, %v3111
    %v3113 = vpop.f32.mrb[0].mxu0
    %v3114 = vadd.f32 0.0, %v3113
    %v3115 = vpop.f32.mrb[0].mxu0
    %v3116 = vadd.f32 0.0, %v3115
    %v3117 = vpop.f32.mrb[0].mxu0
    %v3118 = vadd.f32 0.0, %v3117
    %3119 = vmatprep.mubr.bf16.mxu0 0
    %3120 = vmatmul.mubr.bf16.gmra.mrb[0].mxu0 %v2987
    %v3121 = vpop.f32.mrb[0].mxu0
    %v3122 = vadd.f32 0.0, %v3121
    %v3123 = vpop.f32.mrb[0].mxu0
    %v3124 = vadd.f32 0.0, %v3123
    %v3125 = vpop.f32.mrb[0].mxu0
    %v3126 = vadd.f32 0.0, %v3125
    %v3127 = vpop.f32.mrb[0].mxu0
    %v3128 = vadd.f32 0.0, %v3127
    %3129 = vmatprep.mubr.bf16.mxu0 0
    %3130 = vmatmul.mubr.bf16.gmra.mrb[0].mxu0 %v2990
    %v3131 = vpop.f32.mrb[0].mxu0
    %v3132 = vadd.f32 0.0, %v3131
    %v3133 = vpop.f32.mrb[0].mxu0
    %v3134 = vadd.f32 0.0, %v3133
    %v3135 = vpop.f32.mrb[0].mxu0
    %v3136 = vpop.f32.mrb[0].mxu0
    %3137 = vdwg.mxu0
    %3138 = vmatprep.subr.bf16.mxu0 %v2884
    %3139 = vmatpush1.bf16.msra.mxu0 %v2883
    %3140 = vmatprep.subr.bf16.mxu0 %v2892
    %3141 = vmatpush1.bf16.msra.mxu0 %v2891
    %3142 = vmatprep.subr.bf16.mxu0 %v2900
    %3143 = vmatpush1.bf16.msra.mxu0 %v2899
    %3144 = vmatprep.subr.bf16.mxu0 %v2908
    %3145 = vmatpush1.bf16.msra.mxu0 %v2907
    %3146 = vmatprep.subr.bf16.mxu0 %v2916
    %3147 = vmatpush1.bf16.msra.mxu0 %v2915
    %3148 = vmatprep.subr.bf16.mxu0 %v2924
    %3149 = vmatpush1.bf16.msra.mxu0 %v2923
    %3150 = vmatprep.subr.bf16.mxu0 %v3008
    %3151 = vmatpush1.bf16.msra.mxu0 %v3005
    %3152 = vmatprep.subr.bf16.mxu0 0
    %3153 = vmatpush1.bf16.msra.mxu0 0
    %3154 = vmatprep.subr.bf16.mxu0 0
    %3155 = vmatpush1.bf16.msra.mxu0 0
    %3156 = vmatprep.subr.bf16.mxu0 0
    %3157 = vmatpush1.bf16.msra.mxu0 0
    %3158 = vmatprep.subr.bf16.mxu0 0
    %3159 = vmatpush1.bf16.msra.mxu0 0
    %3160 = vmatprep.subr.bf16.mxu0 0
    %3161 = vmatpush1.bf16.msra.mxu0 0
    %3162 = vmatprep.subr.bf16.mxu0 0
    %3163 = vmatpush1.bf16.msra.mxu0 0
    %3164 = vmatprep.subr.bf16.mxu0 0
    %3165 = vmatpush1.bf16.msra.mxu0 0
    %3166 = vmatprep.subr.bf16.mxu0 0
    %3167 = vmatpush1.bf16.msra.mxu0 0
    %3168 = vmatprep.subr.bf16.mxu0 0
    %3169 = vmatpush1.bf16.msra.mxu0 0
    %3170 = vmatprep.mubr.bf16.mxu0 0
    %3171 = vmatmul.mubr.bf16.gmra.mrb[0].mxu0 %v2984
    %v3172 = vpop.f32.mrb[0].mxu0
    %v3173 = vadd.f32 0.0, %v3172
    %v3174 = vpop.f32.mrb[0].mxu0
    %v3175 = vadd.f32 0.0, %v3174
    %v3176 = vpop.f32.mrb[0].mxu0
    %v3177 = vadd.f32 0.0, %v3176
    %v3178 = vpop.f32.mrb[0].mxu0
    %v3179 = vadd.f32 0.0, %v3178
    %3180 = vmatprep.mubr.bf16.mxu0 0
    %3181 = vmatmul.mubr.bf16.gmra.mrb[0].mxu0 %v2987
    %v3182 = vpop.f32.mrb[0].mxu0
    %v3183 = vadd.f32 0.0, %v3182
    %v3184 = vpop.f32.mrb[0].mxu0
    %v3185 = vadd.f32 0.0, %v3184
    %v3186 = vpop.f32.mrb[0].mxu0
    %v3187 = vadd.f32 0.0, %v3186
    %v3188 = vpop.f32.mrb[0].mxu0
    %v3189 = vadd.f32 0.0, %v3188
    %3190 = vmatprep.mubr.bf16.mxu0 0
    %3191 = vmatmul.mubr.bf16.gmra.mrb[0].mxu0 %v2990
    %v3192 = vpop.f32.mrb[0].mxu0
    %v3193 = vadd.f32 0.0, %v3192
    %v3194 = vpop.f32.mrb[0].mxu0
    %v3195 = vadd.f32 0.0, %v3194
    %v3196 = vpop.f32.mrb[0].mxu0
    %v3197 = vpop.f32.mrb[0].mxu0
    %3198 = vdwg.mxu0
    %3199 = vmatprep.subr.bf16.mxu0 %v2886
    %3200 = vmatpush1.bf16.msra.mxu0 %v2885
    %3201 = vmatprep.subr.bf16.mxu0 %v2894
    %3202 = vmatpush1.bf16.msra.mxu0 %v2893
    %3203 = vmatprep.subr.bf16.mxu0 %v2902
    %3204 = vmatpush1.bf16.msra.mxu0 %v2901
    %3205 = vmatprep.subr.bf16.mxu0 %v2910
    %3206 = vmatpush1.bf16.msra.mxu0 %v2909
    %3207 = vmatprep.subr.bf16.mxu0 %v2918
    %3208 = vmatpush1.bf16.msra.mxu0 %v2917
    %3209 = vmatprep.subr.bf16.mxu0 %v2926
    %3210 = vmatpush1.bf16.msra.mxu0 %v2925
    %3211 = vmatprep.subr.bf16.mxu0 %v3014
    %3212 = vmatpush1.bf16.msra.mxu0 %v3011
    %3213 = vmatprep.subr.bf16.mxu0 0
    %3214 = vmatpush1.bf16.msra.mxu0 0
    %3215 = vmatprep.subr.bf16.mxu0 0
    %3216 = vmatpush1.bf16.msra.mxu0 0
    %3217 = vmatprep.subr.bf16.mxu0 0
    %3218 = vmatpush1.bf16.msra.mxu0 0
    %3219 = vmatprep.subr.bf16.mxu0 0
    %3220 = vmatpush1.bf16.msra.mxu0 0
    %3221 = vmatprep.subr.bf16.mxu0 0
    %3222 = vmatpush1.bf16.msra.mxu0 0
    %3223 = vmatprep.subr.bf16.mxu0 0
    %3224 = vmatpush1.bf16.msra.mxu0 0
    %3225 = vmatprep.subr.bf16.mxu0 0
    %3226 = vmatpush1.bf16.msra.mxu0 0
    %3227 = vmatprep.subr.bf16.mxu0 0
    %3228 = vmatpush1.bf16.msra.mxu0 0
    %3229 = vmatprep.subr.bf16.mxu0 0
    %3230 = vmatpush1.bf16.msra.mxu0 0
    %3231 = vmatprep.mubr.bf16.mxu0 0
    %3232 = vmatmul.mubr.bf16.gmra.mrb[0].mxu0 %v2984
    %v3233 = vpop.f32.mrb[0].mxu0
    %v3234 = vadd.f32 0.0, %v3233
    %v3235 = vpop.f32.mrb[0].mxu0
    %v3236 = vadd.f32 0.0, %v3235
    %v3237 = vpop.f32.mrb[0].mxu0
    %v3238 = vadd.f32 0.0, %v3237
    %v3239 = vpop.f32.mrb[0].mxu0
    %v3240 = vadd.f32 0.0, %v3239
    %3241 = vmatprep.mubr.bf16.mxu0 0
    %3242 = vmatmul.mubr.bf16.gmra.mrb[0].mxu0 %v2987
    %v3243 = vpop.f32.mrb[0].mxu0
    %v3244 = vadd.f32 0.0, %v3243
    %v3245 = vpop.f32.mrb[0].mxu0
    %v3246 = vadd.f32 0.0, %v3245
    %v3247 = vpop.f32.mrb[0].mxu0
    %v3248 = vadd.f32 0.0, %v3247
    %v3249 = vpop.f32.mrb[0].mxu0
    %v3250 = vadd.f32 0.0, %v3249
    %3251 = vmatprep.mubr.bf16.mxu0 0
    %3252 = vmatmul.mubr.bf16.gmra.mrb[0].mxu0 %v2990
    %v3253 = vpop.f32.mrb[0].mxu0
    %v3254 = vadd.f32 0.0, %v3253
    %v3255 = vpop.f32.mrb[0].mxu0
    %v3256 = vadd.f32 0.0, %v3255
    %v3257 = vpop.f32.mrb[0].mxu0
    %v3258 = vpop.f32.mrb[0].mxu0
    %3259 = vdwg.mxu0
    %v3260 = vadd.f32 %v2595, %v3051
    %v3261 = vadd.f32 %v2596, %v3053
    %v3262 = vadd.f32 %v2597, %v3112
    %v3263 = vadd.f32 %v2598, %v3114
    %v3264 = vadd.f32 %v2599, %v3173
    %v3265 = vadd.f32 %v2600, %v3175
    %v3266 = vadd.f32 %v2601, %v3234
    %v3267 = vadd.f32 %v2602, %v3236
    %v3268 = vadd.f32 %v2603, %v3055
    %v3269 = vadd.f32 %v2604, %v3057
    %v3270 = vadd.f32 %v2605, %v3116
    %v3271 = vadd.f32 %v2606, %v3118
    %v3272 = vadd.f32 %v2607, %v3177
    %v3273 = vadd.f32 %v2608, %v3179
    %v3274 = vadd.f32 %v2609, %v3238
    %v3275 = vadd.f32 %v2610, %v3240
    %v3276 = vadd.f32 %v2611, %v3061
    %v3277 = vadd.f32 %v2612, %v3063
    %v3278 = vadd.f32 %v2613, %v3122
    %v3279 = vadd.f32 %v2614, %v3124
    %v3280 = vadd.f32 %v2615, %v3183
    %v3281 = vadd.f32 %v2616, %v3185
    %v3282 = vadd.f32 %v2617, %v3244
    %v3283 = vadd.f32 %v2618, %v3246
    %v3284 = vadd.f32 %v2619, %v3065
    %v3285 = vadd.f32 %v2620, %v3067
    %v3286 = vadd.f32 %v2621, %v3126
    %v3287 = vadd.f32 %v2622, %v3128
    %v3288 = vadd.f32 %v2623, %v3187
    %v3289 = vadd.f32 %v2624, %v3189
    %v3290 = vadd.f32 %v2625, %v3248
    %v3291 = vadd.f32 %v2626, %v3250
    %v3292 = vadd.f32 %v2627, %v3071
    %v3293 = vadd.f32 %v2628, %v3073
    %v3294 = vadd.f32 %v2629, %v3132
    %v3295 = vadd.f32 %v2630, %v3134
    %v3296 = vadd.f32 %v2631, %v3193
    %v3297 = vadd.f32 %v2632, %v3195
    %v3298 = vadd.f32 %v2633, %v3254
    %v3299 = vadd.f32 %v2634, %v3256
    %s3300 = scalar_lea.vmem %s0, 100
    %v3301 = vld [vmem:[%s3300] sm:$0xf]
    %v3302 = vld [vmem:[%s3300 + $0x4] sm:$0xf]
    %v3303 = vld [vmem:[%s3300 + $0x8] sm:$0xf]
    %v3304 = vld [vmem:[%s3300 + $0xc] sm:$0xf]
    %v3305 = vld [vmem:[%s3300 + $0x10] sm:$0x3]
    %s3306 = scalar_lea.vmem [#allocation2], 2240
    %v3307 = vld [vmem:[%s3306] sm:$0xff]
    %v3308 = vld [vmem:[%s3306 + $0x8] sm:$0xff]
    %v3309 = vld [vmem:[%s3306 + $0x10] sm:$0xff]
    %v3310 = vld [vmem:[%s3306 + $0x18] sm:$0xff]
    %v3311 = vld [vmem:[%s3306 + $0x20] sm:$0xff]
    %v3312 = vld [vmem:[%s3306 + $0x28] sm:$0xff]
    %v3313 = vld [vmem:[%s3306 + $0x30] sm:$0xff]
    %v3314 = vld [vmem:[%s3306 + $0x38] sm:$0xff]
    %v3315 = vld [vmem:[%s3306 + $0x40] sm:$0xff]
    %v3316 = vld [vmem:[%s3306 + $0x48] sm:$0xff]
    %v3317 = vld [vmem:[%s3306 + $0x50] sm:$0xff]
    %v3318 = vld [vmem:[%s3306 + $0x58] sm:$0xff]
    %v3319 = vld [vmem:[%s3306 + $0x60] sm:$0xff]
    %v3320 = vld [vmem:[%s3306 + $0x68] sm:$0xff]
    %v3321 = vld [vmem:[%s3306 + $0x70] sm:$0xff]
    %v3322 = vld [vmem:[%s3306 + $0x78] sm:$0xff]
    %v3323 = vld [vmem:[%s3306 + $0x80] sm:$0xff]
    %v3324 = vld [vmem:[%s3306 + $0x88] sm:$0xff]
    %v3325 = vld [vmem:[%s3306 + $0x90] sm:$0xff]
    %v3326 = vld [vmem:[%s3306 + $0x98] sm:$0xff]
    %v3327 = vld [vmem:[%s3306 + $0xa0] sm:$0xff]
    %v3328 = vld [vmem:[%s3306 + $0xa8] sm:$0xff]
    %v3329 = vld [vmem:[%s3306 + $0xb0] sm:$0xff]
    %v3330 = vld [vmem:[%s3306 + $0xb8] sm:$0xff]
    %v3331 = vld [vmem:[%s3306 + $0xc0] sm:$0xff]
    %v3332 = vld [vmem:[%s3306 + $0xc8] sm:$0xff]
    %v3333 = vld [vmem:[%s3306 + $0xd0] sm:$0xff]
    %v3334 = vld [vmem:[%s3306 + $0xd8] sm:$0xff]
    %v3335 = vld [vmem:[%s3306 + $0xe0] sm:$0xff]
    %v3336 = vld [vmem:[%s3306 + $0xe8] sm:$0xff]
    %v3337 = vld [vmem:[%s3306 + $0xf0] sm:$0xff]
    %v3338 = vld [vmem:[%s3306 + $0xf8] sm:$0xff]
    %v3339 = vld [vmem:[%s3306 + $0x100] sm:$0xff]
    %v3340 = vld [vmem:[%s3306 + $0x108] sm:$0xff]
    %v3341 = vld [vmem:[%s3306 + $0x110] sm:$0xff]
    %v3342 = vld [vmem:[%s3306 + $0x118] sm:$0xff]
    %v3343 = vld [vmem:[%s3306 + $0x120] sm:$0xff]
    %v3344 = vld [vmem:[%s3306 + $0x128] sm:$0xff]
    %v3345 = vld [vmem:[%s3306 + $0x130] sm:$0xff]
    %v3346 = vld [vmem:[%s3306 + $0x138] sm:$0xff]
    %v3347 = vld [vmem:[%s3306 + $0x140] sm:$0xff]
    %v3348 = vld [vmem:[%s3306 + $0x148] sm:$0xff]
    %v3349 = vld [vmem:[%s3306 + $0x150] sm:$0xff]
    %v3350 = vld [vmem:[%s3306 + $0x158] sm:$0xff]
    %v3351 = vld [vmem:[%s3306 + $0x160] sm:$0xff]
    %v3352 = vld [vmem:[%s3306 + $0x168] sm:$0xff]
    %v3353 = vld [vmem:[%s3306 + $0x170] sm:$0xff]
    %v3354 = vld [vmem:[%s3306 + $0x178] sm:$0xff]
    %v3355 = vld [vmem:[%s3306 + $0x180] sm:$0xff]
    %v3356 = vld [vmem:[%s3306 + $0x188] sm:$0xff]
    %v3357 = vld [vmem:[%s3306 + $0x190] sm:$0xff]
    %v3358 = vld [vmem:[%s3306 + $0x198] sm:$0xff]
    %v3359 = vld [vmem:[%s3306 + $0x1a0] sm:$0x33]
    %v3360 = vld [vmem:[%s3306 + $0x1a8] sm:$0x33]
    %v3361 = vld [vmem:[%s3306 + $0x1b0] sm:$0x33]
    %v3362 = vld [vmem:[%s3306 + $0x1b8] sm:$0x33]
    %v3368 = vunpack.c.l.b16 %v3301
    %v3369 = vunpack.c.l.b16 %v3302
    %v3370 = vunpack.c.l.b16 %v3303
    %v3371 = vunpack.c.l.b16 %v3304
    %v3372 = vunpack.c.l.b16 %v3305
    %v3373 = vpack.c.b16 %v3369, %v3368
    %v3374 = vpack.c.b16 %v3371, %v3370
    %v3375 = vpack.c.b16 %v3372, %v3372
    %v3432 = vunpack.c.l.b16 %v3307
    %v3433 = vunpack.c.h.b16 %v3307
    %v3434 = vunpack.c.l.b16 %v3308
    %v3435 = vunpack.c.h.b16 %v3308
    %v3436 = vunpack.c.l.b16 %v3309
    %v3437 = vunpack.c.h.b16 %v3309
    %v3438 = vunpack.c.l.b16 %v3310
    %v3439 = vunpack.c.h.b16 %v3310
    %v3440 = vunpack.c.l.b16 %v3311
    %v3441 = vunpack.c.h.b16 %v3311
    %v3442 = vunpack.c.l.b16 %v3312
    %v3443 = vunpack.c.h.b16 %v3312
    %v3444 = vunpack.c.l.b16 %v3313
    %v3445 = vunpack.c.h.b16 %v3313
    %v3446 = vunpack.c.l.b16 %v3314
    %v3447 = vunpack.c.h.b16 %v3314
    %v3448 = vunpack.c.l.b16 %v3315
    %v3449 = vunpack.c.h.b16 %v3315
    %v3450 = vunpack.c.l.b16 %v3316
    %v3451 = vunpack.c.h.b16 %v3316
    %v3452 = vunpack.c.l.b16 %v3317
    %v3453 = vunpack.c.h.b16 %v3317
    %v3454 = vunpack.c.l.b16 %v3318
    %v3455 = vunpack.c.h.b16 %v3318
    %v3456 = vunpack.c.l.b16 %v3319
    %v3457 = vunpack.c.h.b16 %v3319
    %v3458 = vunpack.c.l.b16 %v3320
    %v3459 = vunpack.c.h.b16 %v3320
    %v3460 = vunpack.c.l.b16 %v3321
    %v3461 = vunpack.c.h.b16 %v3321
    %v3462 = vunpack.c.l.b16 %v3322
    %v3463 = vunpack.c.h.b16 %v3322
    %v3464 = vunpack.c.l.b16 %v3323
    %v3465 = vunpack.c.h.b16 %v3323
    %v3466 = vunpack.c.l.b16 %v3324
    %v3467 = vunpack.c.h.b16 %v3324
    %v3468 = vunpack.c.l.b16 %v3325
    %v3469 = vunpack.c.h.b16 %v3325
    %v3470 = vunpack.c.l.b16 %v3326
    %v3471 = vunpack.c.h.b16 %v3326
    %v3472 = vunpack.c.l.b16 %v3327
    %v3473 = vunpack.c.h.b16 %v3327
    %v3474 = vunpack.c.l.b16 %v3328
    %v3475 = vunpack.c.h.b16 %v3328
    %v3476 = vunpack.c.l.b16 %v3329
    %v3477 = vunpack.c.h.b16 %v3329
    %v3478 = vunpack.c.l.b16 %v3330
    %v3479 = vunpack.c.h.b16 %v3330
    %v3480 = vunpack.c.l.b16 %v3331
    %v3481 = vunpack.c.h.b16 %v3331
    %v3482 = vunpack.c.l.b16 %v3332
    %v3483 = vunpack.c.h.b16 %v3332
    %v3484 = vunpack.c.l.b16 %v3333
    %v3485 = vunpack.c.h.b16 %v3333
    %v3486 = vunpack.c.l.b16 %v3334
    %v3487 = vunpack.c.h.b16 %v3334
    %v3488 = vunpack.c.l.b16 %v3335
    %v3489 = vunpack.c.h.b16 %v3335
    %v3490 = vunpack.c.l.b16 %v3336
    %v3491 = vunpack.c.h.b16 %v3336
    %v3492 = vunpack.c.l.b16 %v3337
    %v3493 = vunpack.c.h.b16 %v3337
    %v3494 = vunpack.c.l.b16 %v3338
    %v3495 = vunpack.c.h.b16 %v3338
    %v3496 = vunpack.c.l.b16 %v3339
    %v3497 = vunpack.c.h.b16 %v3339
    %v3498 = vunpack.c.l.b16 %v3340
    %v3499 = vunpack.c.h.b16 %v3340
    %v3500 = vunpack.c.l.b16 %v3341
    %v3501 = vunpack.c.h.b16 %v3341
    %v3502 = vunpack.c.l.b16 %v3342
    %v3503 = vunpack.c.h.b16 %v3342
    %v3504 = vunpack.c.l.b16 %v3343
    %v3505 = vunpack.c.h.b16 %v3343
    %v3506 = vunpack.c.l.b16 %v3344
    %v3507 = vunpack.c.h.b16 %v3344
    %v3508 = vunpack.c.l.b16 %v3345
    %v3509 = vunpack.c.h.b16 %v3345
    %v3510 = vunpack.c.l.b16 %v3346
    %v3511 = vunpack.c.h.b16 %v3346
    %v3512 = vunpack.c.l.b16 %v3347
    %v3513 = vunpack.c.h.b16 %v3347
    %v3514 = vunpack.c.l.b16 %v3348
    %v3515 = vunpack.c.h.b16 %v3348
    %v3516 = vunpack.c.l.b16 %v3349
    %v3517 = vunpack.c.h.b16 %v3349
    %v3518 = vunpack.c.l.b16 %v3350
    %v3519 = vunpack.c.h.b16 %v3350
    %v3520 = vunpack.c.l.b16 %v3351
    %v3521 = vunpack.c.h.b16 %v3351
    %v3522 = vunpack.c.l.b16 %v3352
    %v3523 = vunpack.c.h.b16 %v3352
    %v3524 = vunpack.c.l.b16 %v3353
    %v3525 = vunpack.c.h.b16 %v3353
    %v3526 = vunpack.c.l.b16 %v3354
    %v3527 = vunpack.c.h.b16 %v3354
    %v3528 = vunpack.c.l.b16 %v3355
    %v3529 = vunpack.c.h.b16 %v3355
    %v3530 = vunpack.c.l.b16 %v3356
    %v3531 = vunpack.c.h.b16 %v3356
    %v3532 = vunpack.c.l.b16 %v3357
    %v3533 = vunpack.c.h.b16 %v3357
    %v3534 = vunpack.c.l.b16 %v3358
    %v3535 = vunpack.c.h.b16 %v3358
    %v3536 = vunpack.c.l.b16 %v3359
    %v3537 = vunpack.c.h.b16 %v3359
    %v3538 = vunpack.c.l.b16 %v3360
    %v3539 = vunpack.c.h.b16 %v3360
    %v3540 = vunpack.c.l.b16 %v3361
    %v3541 = vunpack.c.h.b16 %v3361
    %v3542 = vunpack.c.l.b16 %v3362
    %v3543 = vunpack.c.h.b16 %v3362
    %v3544 = vpack.c.b16 %v3440, %v3432
    %v3545 = vpack.c.b16 %v3441, %v3433
    %v3546 = vpack.c.b16 %v3442, %v3434
    %v3547 = vpack.c.b16 %v3443, %v3435
    %v3548 = vpack.c.b16 %v3444, %v3436
    %v3549 = vpack.c.b16 %v3445, %v3437
    %v3550 = vpack.c.b16 %v3446, %v3438
    %v3551 = vpack.c.b16 %v3447, %v3439
    %v3552 = vpack.c.b16 %v3456, %v3448
    %v3553 = vpack.c.b16 %v3457, %v3449
    %v3554 = vpack.c.b16 %v3458, %v3450
    %v3555 = vpack.c.b16 %v3459, %v3451
    %v3556 = vpack.c.b16 %v3460, %v3452
    %v3557 = vpack.c.b16 %v3461, %v3453
    %v3558 = vpack.c.b16 %v3462, %v3454
    %v3559 = vpack.c.b16 %v3463, %v3455
    %v3560 = vpack.c.b16 %v3472, %v3464
    %v3561 = vpack.c.b16 %v3473, %v3465
    %v3562 = vpack.c.b16 %v3474, %v3466
    %v3563 = vpack.c.b16 %v3475, %v3467
    %v3564 = vpack.c.b16 %v3476, %v3468
    %v3565 = vpack.c.b16 %v3477, %v3469
    %v3566 = vpack.c.b16 %v3478, %v3470
    %v3567 = vpack.c.b16 %v3479, %v3471
    %v3568 = vpack.c.b16 %v3488, %v3480
    %v3569 = vpack.c.b16 %v3489, %v3481
    %v3570 = vpack.c.b16 %v3490, %v3482
    %v3571 = vpack.c.b16 %v3491, %v3483
    %v3572 = vpack.c.b16 %v3492, %v3484
    %v3573 = vpack.c.b16 %v3493, %v3485
    %v3574 = vpack.c.b16 %v3494, %v3486
    %v3575 = vpack.c.b16 %v3495, %v3487
    %v3576 = vpack.c.b16 %v3504, %v3496
    %v3577 = vpack.c.b16 %v3505, %v3497
    %v3578 = vpack.c.b16 %v3506, %v3498
    %v3579 = vpack.c.b16 %v3507, %v3499
    %v3580 = vpack.c.b16 %v3508, %v3500
    %v3581 = vpack.c.b16 %v3509, %v3501
    %v3582 = vpack.c.b16 %v3510, %v3502
    %v3583 = vpack.c.b16 %v3511, %v3503
    %v3584 = vpack.c.b16 %v3520, %v3512
    %v3585 = vpack.c.b16 %v3521, %v3513
    %v3586 = vpack.c.b16 %v3522, %v3514
    %v3587 = vpack.c.b16 %v3523, %v3515
    %v3588 = vpack.c.b16 %v3524, %v3516
    %v3589 = vpack.c.b16 %v3525, %v3517
    %v3590 = vpack.c.b16 %v3526, %v3518
    %v3591 = vpack.c.b16 %v3527, %v3519
    %v3592 = vpack.c.b16 %v3536, %v3528
    %v3593 = vpack.c.b16 %v3537, %v3529
    %v3594 = vpack.c.b16 %v3538, %v3530
    %v3595 = vpack.c.b16 %v3539, %v3531
    %v3596 = vpack.c.b16 %v3540, %v3532
    %v3597 = vpack.c.b16 %v3541, %v3533
    %v3598 = vpack.c.b16 %v3542, %v3534
    %v3599 = vpack.c.b16 %v3543, %v3535
    %v3649 = vsel %vm464, %v3373, 0
    %v3652 = vsel %vm464, %v3374, 0
    %v3655 = vsel %vm464, %v3375, 0
    %v3658 = vsel %vm474, %v3592, 0
    %v3661 = vsel %vm474, %v3593, 0
    %v3664 = vsel %vm474, %v3594, 0
    %v3667 = vsel %vm474, %v3595, 0
    %v3670 = vsel %vm474, %v3596, 0
    %v3673 = vsel %vm474, %v3597, 0
    %v3676 = vsel %vm474, %v3598, 0
    %v3679 = vsel %vm474, %v3599, 0
    %3681 = vmatprep.subr.bf16.mxu0 %v3545
    %3682 = vmatpush1.bf16.msra.mxu0 %v3544
    %3683 = vmatprep.subr.bf16.mxu0 %v3553
    %3684 = vmatpush1.bf16.msra.mxu0 %v3552
    %3685 = vmatprep.subr.bf16.mxu0 %v3561
    %3686 = vmatpush1.bf16.msra.mxu0 %v3560
    %3687 = vmatprep.subr.bf16.mxu0 %v3569
    %3688 = vmatpush1.bf16.msra.mxu0 %v3568
    %3689 = vmatprep.subr.bf16.mxu0 %v3577
    %3690 = vmatpush1.bf16.msra.mxu0 %v3576
    %3691 = vmatprep.subr.bf16.mxu0 %v3585
    %3692 = vmatpush1.bf16.msra.mxu0 %v3584
    %3693 = vmatprep.subr.bf16.mxu0 %v3661
    %3694 = vmatpush1.bf16.msra.mxu0 %v3658
    %3695 = vmatprep.subr.bf16.mxu0 0
    %3696 = vmatpush1.bf16.msra.mxu0 0
    %3697 = vmatprep.subr.bf16.mxu0 0
    %3698 = vmatpush1.bf16.msra.mxu0 0
    %3699 = vmatprep.subr.bf16.mxu0 0
    %3700 = vmatpush1.bf16.msra.mxu0 0
    %3701 = vmatprep.subr.bf16.mxu0 0
    %3702 = vmatpush1.bf16.msra.mxu0 0
    %3703 = vmatprep.subr.bf16.mxu0 0
    %3704 = vmatpush1.bf16.msra.mxu0 0
    %3705 = vmatprep.subr.bf16.mxu0 0
    %3706 = vmatpush1.bf16.msra.mxu0 0
    %3707 = vmatprep.subr.bf16.mxu0 0
    %3708 = vmatpush1.bf16.msra.mxu0 0
    %3709 = vmatprep.subr.bf16.mxu0 0
    %3710 = vmatpush1.bf16.msra.mxu0 0
    %3711 = vmatprep.subr.bf16.mxu0 0
    %3712 = vmatpush1.bf16.msra.mxu0 0
    %3713 = vmatprep.mubr.bf16.mxu0 0
    %3714 = vmatmul.mubr.bf16.gmra.mrb[0].mxu0 %v3649
    %v3715 = vpop.f32.mrb[0].mxu0
    %v3716 = vadd.f32 0.0, %v3715
    %v3717 = vpop.f32.mrb[0].mxu0
    %v3718 = vadd.f32 0.0, %v3717
    %v3719 = vpop.f32.mrb[0].mxu0
    %v3720 = vadd.f32 0.0, %v3719
    %v3721 = vpop.f32.mrb[0].mxu0
    %v3722 = vadd.f32 0.0, %v3721
    %3723 = vmatprep.mubr.bf16.mxu0 0
    %3724 = vmatmul.mubr.bf16.gmra.mrb[0].mxu0 %v3652
    %v3725 = vpop.f32.mrb[0].mxu0
    %v3726 = vadd.f32 0.0, %v3725
    %v3727 = vpop.f32.mrb[0].mxu0
    %v3728 = vadd.f32 0.0, %v3727
    %v3729 = vpop.f32.mrb[0].mxu0
    %v3730 = vadd.f32 0.0, %v3729
    %v3731 = vpop.f32.mrb[0].mxu0
    %v3732 = vadd.f32 0.0, %v3731
    %3733 = vmatprep.mubr.bf16.mxu0 0
    %3734 = vmatmul.mubr.bf16.gmra.mrb[0].mxu0 %v3655
    %v3735 = vpop.f32.mrb[0].mxu0
    %v3736 = vadd.f32 0.0, %v3735
    %v3737 = vpop.f32.mrb[0].mxu0
    %v3738 = vadd.f32 0.0, %v3737
    %v3739 = vpop.f32.mrb[0].mxu0
    %v3740 = vpop.f32.mrb[0].mxu0
    %3741 = vdwg.mxu0
    %3742 = vmatprep.subr.bf16.mxu0 %v3547
    %3743 = vmatpush1.bf16.msra.mxu0 %v3546
    %3744 = vmatprep.subr.bf16.mxu0 %v3555
    %3745 = vmatpush1.bf16.msra.mxu0 %v3554
    %3746 = vmatprep.subr.bf16.mxu0 %v3563
    %3747 = vmatpush1.bf16.msra.mxu0 %v3562
    %3748 = vmatprep.subr.bf16.mxu0 %v3571
    %3749 = vmatpush1.bf16.msra.mxu0 %v3570
    %3750 = vmatprep.subr.bf16.mxu0 %v3579
    %3751 = vmatpush1.bf16.msra.mxu0 %v3578
    %3752 = vmatprep.subr.bf16.mxu0 %v3587
    %3753 = vmatpush1.bf16.msra.mxu0 %v3586
    %3754 = vmatprep.subr.bf16.mxu0 %v3667
    %3755 = vmatpush1.bf16.msra.mxu0 %v3664
    %3756 = vmatprep.subr.bf16.mxu0 0
    %3757 = vmatpush1.bf16.msra.mxu0 0
    %3758 = vmatprep.subr.bf16.mxu0 0
    %3759 = vmatpush1.bf16.msra.mxu0 0
    %3760 = vmatprep.subr.bf16.mxu0 0
    %3761 = vmatpush1.bf16.msra.mxu0 0
    %3762 = vmatprep.subr.bf16.mxu0 0
    %3763 = vmatpush1.bf16.msra.mxu0 0
    %3764 = vmatprep.subr.bf16.mxu0 0
    %3765 = vmatpush1.bf16.msra.mxu0 0
    %3766 = vmatprep.subr.bf16.mxu0 0
    %3767 = vmatpush1.bf16.msra.mxu0 0
    %3768 = vmatprep.subr.bf16.mxu0 0
    %3769 = vmatpush1.bf16.msra.mxu0 0
    %3770 = vmatprep.subr.bf16.mxu0 0
    %3771 = vmatpush1.bf16.msra.mxu0 0
    %3772 = vmatprep.subr.bf16.mxu0 0
    %3773 = vmatpush1.bf16.msra.mxu0 0
    %3774 = vmatprep.mubr.bf16.mxu0 0
    %3775 = vmatmul.mubr.bf16.gmra.mrb[0].mxu0 %v3649
    %v3776 = vpop.f32.mrb[0].mxu0
    %v3777 = vadd.f32 0.0, %v3776
    %v3778 = vpop.f32.mrb[0].mxu0
    %v3779 = vadd.f32 0.0, %v3778
    %v3780 = vpop.f32.mrb[0].mxu0
    %v3781 = vadd.f32 0.0, %v3780
    %v3782 = vpop.f32.mrb[0].mxu0
    %v3783 = vadd.f32 0.0, %v3782
    %3784 = vmatprep.mubr.bf16.mxu0 0
    %3785 = vmatmul.mubr.bf16.gmra.mrb[0].mxu0 %v3652
    %v3786 = vpop.f32.mrb[0].mxu0
    %v3787 = vadd.f32 0.0, %v3786
    %v3788 = vpop.f32.mrb[0].mxu0
    %v3789 = vadd.f32 0.0, %v3788
    %v3790 = vpop.f32.mrb[0].mxu0
    %v3791 = vadd.f32 0.0, %v3790
    %v3792 = vpop.f32.mrb[0].mxu0
    %v3793 = vadd.f32 0.0, %v3792
    %3794 = vmatprep.mubr.bf16.mxu0 0
    %3795 = vmatmul.mubr.bf16.gmra.mrb[0].mxu0 %v3655
    %v3796 = vpop.f32.mrb[0].mxu0
    %v3797 = vadd.f32 0.0, %v3796
    %v3798 = vpop.f32.mrb[0].mxu0
    %v3799 = vadd.f32 0.0, %v3798
    %v3800 = vpop.f32.mrb[0].mxu0
    %v3801 = vpop.f32.mrb[0].mxu0
    %3802 = vdwg.mxu0
    %3803 = vmatprep.subr.bf16.mxu0 %v3549
    %3804 = vmatpush1.bf16.msra.mxu0 %v3548
    %3805 = vmatprep.subr.bf16.mxu0 %v3557
    %3806 = vmatpush1.bf16.msra.mxu0 %v3556
    %3807 = vmatprep.subr.bf16.mxu0 %v3565
    %3808 = vmatpush1.bf16.msra.mxu0 %v3564
    %3809 = vmatprep.subr.bf16.mxu0 %v3573
    %3810 = vmatpush1.bf16.msra.mxu0 %v3572
    %3811 = vmatprep.subr.bf16.mxu0 %v3581
    %3812 = vmatpush1.bf16.msra.mxu0 %v3580
    %3813 = vmatprep.subr.bf16.mxu0 %v3589
    %3814 = vmatpush1.bf16.msra.mxu0 %v3588
    %3815 = vmatprep.subr.bf16.mxu0 %v3673
    %3816 = vmatpush1.bf16.msra.mxu0 %v3670
    %3817 = vmatprep.subr.bf16.mxu0 0
    %3818 = vmatpush1.bf16.msra.mxu0 0
    %3819 = vmatprep.subr.bf16.mxu0 0
    %3820 = vmatpush1.bf16.msra.mxu0 0
    %3821 = vmatprep.subr.bf16.mxu0 0
    %3822 = vmatpush1.bf16.msra.mxu0 0
    %3823 = vmatprep.subr.bf16.mxu0 0
    %3824 = vmatpush1.bf16.msra.mxu0 0
    %3825 = vmatprep.subr.bf16.mxu0 0
    %3826 = vmatpush1.bf16.msra.mxu0 0
    %3827 = vmatprep.subr.bf16.mxu0 0
    %3828 = vmatpush1.bf16.msra.mxu0 0
    %3829 = vmatprep.subr.bf16.mxu0 0
    %3830 = vmatpush1.bf16.msra.mxu0 0
    %3831 = vmatprep.subr.bf16.mxu0 0
    %3832 = vmatpush1.bf16.msra.mxu0 0
    %3833 = vmatprep.subr.bf16.mxu0 0
    %3834 = vmatpush1.bf16.msra.mxu0 0
    %3835 = vmatprep.mubr.bf16.mxu0 0
    %3836 = vmatmul.mubr.bf16.gmra.mrb[0].mxu0 %v3649
    %v3837 = vpop.f32.mrb[0].mxu0
    %v3838 = vadd.f32 0.0, %v3837
    %v3839 = vpop.f32.mrb[0].mxu0
    %v3840 = vadd.f32 0.0, %v3839
    %v3841 = vpop.f32.mrb[0].mxu0
    %v3842 = vadd.f32 0.0, %v3841
    %v3843 = vpop.f32.mrb[0].mxu0
    %v3844 = vadd.f32 0.0, %v3843
    %3845 = vmatprep.mubr.bf16.mxu0 0
    %3846 = vmatmul.mubr.bf16.gmra.mrb[0].mxu0 %v3652
    %v3847 = vpop.f32.mrb[0].mxu0
    %v3848 = vadd.f32 0.0, %v3847
    %v3849 = vpop.f32.mrb[0].mxu0
    %v3850 = vadd.f32 0.0, %v3849
    %v3851 = vpop.f32.mrb[0].mxu0
    %v3852 = vadd.f32 0.0, %v3851
    %v3853 = vpop.f32.mrb[0].mxu0
    %v3854 = vadd.f32 0.0, %v3853
    %3855 = vmatprep.mubr.bf16.mxu0 0
    %3856 = vmatmul.mubr.bf16.gmra.mrb[0].mxu0 %v3655
    %v3857 = vpop.f32.mrb[0].mxu0
    %v3858 = vadd.f32 0.0, %v3857
    %v3859 = vpop.f32.mrb[0].mxu0
    %v3860 = vadd.f32 0.0, %v3859
    %v3861 = vpop.f32.mrb[0].mxu0
    %v3862 = vpop.f32.mrb[0].mxu0
    %3863 = vdwg.mxu0
    %3864 = vmatprep.subr.bf16.mxu0 %v3551
    %3865 = vmatpush1.bf16.msra.mxu0 %v3550
    %3866 = vmatprep.subr.bf16.mxu0 %v3559
    %3867 = vmatpush1.bf16.msra.mxu0 %v3558
    %3868 = vmatprep.subr.bf16.mxu0 %v3567
    %3869 = vmatpush1.bf16.msra.mxu0 %v3566
    %3870 = vmatprep.subr.bf16.mxu0 %v3575
    %3871 = vmatpush1.bf16.msra.mxu0 %v3574
    %3872 = vmatprep.subr.bf16.mxu0 %v3583
    %3873 = vmatpush1.bf16.msra.mxu0 %v3582
    %3874 = vmatprep.subr.bf16.mxu0 %v3591
    %3875 = vmatpush1.bf16.msra.mxu0 %v3590
    %3876 = vmatprep.subr.bf16.mxu0 %v3679
    %3877 = vmatpush1.bf16.msra.mxu0 %v3676
    %3878 = vmatprep.subr.bf16.mxu0 0
    %3879 = vmatpush1.bf16.msra.mxu0 0
    %3880 = vmatprep.subr.bf16.mxu0 0
    %3881 = vmatpush1.bf16.msra.mxu0 0
    %3882 = vmatprep.subr.bf16.mxu0 0
    %3883 = vmatpush1.bf16.msra.mxu0 0
    %3884 = vmatprep.subr.bf16.mxu0 0
    %3885 = vmatpush1.bf16.msra.mxu0 0
    %3886 = vmatprep.subr.bf16.mxu0 0
    %3887 = vmatpush1.bf16.msra.mxu0 0
    %3888 = vmatprep.subr.bf16.mxu0 0
    %3889 = vmatpush1.bf16.msra.mxu0 0
    %3890 = vmatprep.subr.bf16.mxu0 0
    %3891 = vmatpush1.bf16.msra.mxu0 0
    %3892 = vmatprep.subr.bf16.mxu0 0
    %3893 = vmatpush1.bf16.msra.mxu0 0
    %3894 = vmatprep.subr.bf16.mxu0 0
    %3895 = vmatpush1.bf16.msra.mxu0 0
    %3896 = vmatprep.mubr.bf16.mxu0 0
    %3897 = vmatmul.mubr.bf16.gmra.mrb[0].mxu0 %v3649
    %v3898 = vpop.f32.mrb[0].mxu0
    %v3899 = vadd.f32 0.0, %v3898
    %v3900 = vpop.f32.mrb[0].mxu0
    %v3901 = vadd.f32 0.0, %v3900
    %v3902 = vpop.f32.mrb[0].mxu0
    %v3903 = vadd.f32 0.0, %v3902
    %v3904 = vpop.f32.mrb[0].mxu0
    %v3905 = vadd.f32 0.0, %v3904
    %3906 = vmatprep.mubr.bf16.mxu0 0
    %3907 = vmatmul.mubr.bf16.gmra.mrb[0].mxu0 %v3652
    %v3908 = vpop.f32.mrb[0].mxu0
    %v3909 = vadd.f32 0.0, %v3908
    %v3910 = vpop.f32.mrb[0].mxu0
    %v3911 = vadd.f32 0.0, %v3910
    %v3912 = vpop.f32.mrb[0].mxu0
    %v3913 = vadd.f32 0.0, %v3912
    %v3914 = vpop.f32.mrb[0].mxu0
    %v3915 = vadd.f32 0.0, %v3914
    %3916 = vmatprep.mubr.bf16.mxu0 0
    %3917 = vmatmul.mubr.bf16.gmra.mrb[0].mxu0 %v3655
    %v3918 = vpop.f32.mrb[0].mxu0
    %v3919 = vadd.f32 0.0, %v3918
    %v3920 = vpop.f32.mrb[0].mxu0
    %v3921 = vadd.f32 0.0, %v3920
    %v3922 = vpop.f32.mrb[0].mxu0
    %v3923 = vpop.f32.mrb[0].mxu0
    %3924 = vdwg.mxu0
    %v3925 = vadd.f32 %v3260, %v3716
    %v3926 = vadd.f32 %v3261, %v3718
    %v3927 = vadd.f32 %v3262, %v3777
    %v3928 = vadd.f32 %v3263, %v3779
    %v3929 = vadd.f32 %v3264, %v3838
    %v3930 = vadd.f32 %v3265, %v3840
    %v3931 = vadd.f32 %v3266, %v3899
    %v3932 = vadd.f32 %v3267, %v3901
    %v3933 = vadd.f32 %v3268, %v3720
    %v3934 = vadd.f32 %v3269, %v3722
    %v3935 = vadd.f32 %v3270, %v3781
    %v3936 = vadd.f32 %v3271, %v3783
    %v3937 = vadd.f32 %v3272, %v3842
    %v3938 = vadd.f32 %v3273, %v3844
    %v3939 = vadd.f32 %v3274, %v3903
    %v3940 = vadd.f32 %v3275, %v3905
    %v3941 = vadd.f32 %v3276, %v3726
    %v3942 = vadd.f32 %v3277, %v3728
    %v3943 = vadd.f32 %v3278, %v3787
    %v3944 = vadd.f32 %v3279, %v3789
    %v3945 = vadd.f32 %v3280, %v3848
    %v3946 = vadd.f32 %v3281, %v3850
    %v3947 = vadd.f32 %v3282, %v3909
    %v3948 = vadd.f32 %v3283, %v3911
    %v3949 = vadd.f32 %v3284, %v3730
    %v3950 = vadd.f32 %v3285, %v3732
    %v3951 = vadd.f32 %v3286, %v3791
    %v3952 = vadd.f32 %v3287, %v3793
    %v3953 = vadd.f32 %v3288, %v3852
    %v3954 = vadd.f32 %v3289, %v3854
    %v3955 = vadd.f32 %v3290, %v3913
    %v3956 = vadd.f32 %v3291, %v3915
    %v3957 = vadd.f32 %v3292, %v3736
    %v3958 = vadd.f32 %v3293, %v3738
    %v3959 = vadd.f32 %v3294, %v3797
    %v3960 = vadd.f32 %v3295, %v3799
    %v3961 = vadd.f32 %v3296, %v3858
    %v3962 = vadd.f32 %v3297, %v3860
    %v3963 = vadd.f32 %v3298, %v3919
    %v3964 = vadd.f32 %v3299, %v3921
    %v3965 = vld [vmem:[#allocation4] sm:$0xff]
    %v3967 = vlaneseq
    %v3968 = vshrl.u32 %v3967, 7
    %v3969 = vsub.s32 0, %v3968
    %v3970 = vrot.slane %v3965, %v3969
    %v3971 = vlaneseq
    %v3972 = vshrl.u32 %v3971, 7
    %v3973 = vsub.s32 1, %v3972
    %v3974 = vrot.slane %v3965, %v3973
    %v3975 = vlaneseq
    %v3976 = vshrl.u32 %v3975, 7
    %v3977 = vsub.s32 2, %v3976
    %v3978 = vrot.slane %v3965, %v3977
    %v3979 = vlaneseq
    %v3980 = vshrl.u32 %v3979, 7
    %v3981 = vsub.s32 3, %v3980
    %v3982 = vrot.slane %v3965, %v3981
    %v3983 = vlaneseq
    %v3984 = vshrl.u32 %v3983, 7
    %v3985 = vsub.s32 4, %v3984
    %v3986 = vrot.slane %v3965, %v3985
    %v3987 = vlaneseq
    %v3988 = vshrl.u32 %v3987, 7
    %v3989 = vsub.s32 5, %v3988
    %v3990 = vrot.slane %v3965, %v3989
    %v3991 = vlaneseq
    %v3992 = vshrl.u32 %v3991, 7
    %v3993 = vsub.s32 6, %v3992
    %v3994 = vrot.slane %v3965, %v3993
    %v3995 = vlaneseq
    %v3996 = vshrl.u32 %v3995, 7
    %v3997 = vsub.s32 7, %v3996
    %v3998 = vrot.slane %v3965, %v3997
    %v4007 = vmul.f32 %v3925, %v3970
    %v4008 = vmul.f32 %v3926, %v3974
    %v4009 = vmul.f32 %v3927, %v3978
    %v4010 = vmul.f32 %v3928, %v3982
    %v4011 = vmul.f32 %v3929, %v3986
    %v4012 = vmul.f32 %v3930, %v3990
    %v4013 = vmul.f32 %v3931, %v3994
    %v4014 = vmul.f32 %v3932, %v3998
    %v4015 = vmul.f32 %v3933, %v3970
    %v4016 = vmul.f32 %v3934, %v3974
    %v4017 = vmul.f32 %v3935, %v3978
    %v4018 = vmul.f32 %v3936, %v3982
    %v4019 = vmul.f32 %v3937, %v3986
    %v4020 = vmul.f32 %v3938, %v3990
    %v4021 = vmul.f32 %v3939, %v3994
    %v4022 = vmul.f32 %v3940, %v3998
    %v4023 = vmul.f32 %v3941, %v3970
    %v4024 = vmul.f32 %v3942, %v3974
    %v4025 = vmul.f32 %v3943, %v3978
    %v4026 = vmul.f32 %v3944, %v3982
    %v4027 = vmul.f32 %v3945, %v3986
    %v4028 = vmul.f32 %v3946, %v3990
    %v4029 = vmul.f32 %v3947, %v3994
    %v4030 = vmul.f32 %v3948, %v3998
    %v4031 = vmul.f32 %v3949, %v3970
    %v4032 = vmul.f32 %v3950, %v3974
    %v4033 = vmul.f32 %v3951, %v3978
    %v4034 = vmul.f32 %v3952, %v3982
    %v4035 = vmul.f32 %v3953, %v3986
    %v4036 = vmul.f32 %v3954, %v3990
    %v4037 = vmul.f32 %v3955, %v3994
    %v4038 = vmul.f32 %v3956, %v3998
    %v4039 = vmul.f32 %v3957, %v3970
    %v4040 = vmul.f32 %v3958, %v3974
    %v4041 = vmul.f32 %v3959, %v3978
    %v4042 = vmul.f32 %v3960, %v3982
    %v4043 = vmul.f32 %v3961, %v3986
    %v4044 = vmul.f32 %v3962, %v3990
    %v4045 = vmul.f32 %v3963, %v3994
    %v4046 = vmul.f32 %v3964, %v3998
    %v4047 = vld [vmem:[#allocation6] sm:$0xff]
    %v4049 = vlaneseq
    %v4050 = vshrl.u32 %v4049, 7
    %v4051 = vsub.s32 0, %v4050
    %v4052 = vrot.slane %v4047, %v4051
    %v4053 = vlaneseq
    %v4054 = vshrl.u32 %v4053, 7
    %v4055 = vsub.s32 1, %v4054
    %v4056 = vrot.slane %v4047, %v4055
    %v4057 = vlaneseq
    %v4058 = vshrl.u32 %v4057, 7
    %v4059 = vsub.s32 2, %v4058
    %v4060 = vrot.slane %v4047, %v4059
    %v4061 = vlaneseq
    %v4062 = vshrl.u32 %v4061, 7
    %v4063 = vsub.s32 3, %v4062
    %v4064 = vrot.slane %v4047, %v4063
    %v4065 = vlaneseq
    %v4066 = vshrl.u32 %v4065, 7
    %v4067 = vsub.s32 4, %v4066
    %v4068 = vrot.slane %v4047, %v4067
    %v4069 = vlaneseq
    %v4070 = vshrl.u32 %v4069, 7
    %v4071 = vsub.s32 5, %v4070
    %v4072 = vrot.slane %v4047, %v4071
    %v4073 = vlaneseq
    %v4074 = vshrl.u32 %v4073, 7
    %v4075 = vsub.s32 6, %v4074
    %v4076 = vrot.slane %v4047, %v4075
    %v4077 = vlaneseq
    %v4078 = vshrl.u32 %v4077, 7
    %v4079 = vsub.s32 7, %v4078
    %v4080 = vrot.slane %v4047, %v4079
    %v4089 = vadd.f32 %v4007, %v4052
    %v4090 = vadd.f32 %v4008, %v4056
    %v4091 = vadd.f32 %v4009, %v4060
    %v4092 = vadd.f32 %v4010, %v4064
    %v4093 = vadd.f32 %v4011, %v4068
    %v4094 = vadd.f32 %v4012, %v4072
    %v4095 = vadd.f32 %v4013, %v4076
    %v4096 = vadd.f32 %v4014, %v4080
    %v4097 = vadd.f32 %v4015, %v4052
    %v4098 = vadd.f32 %v4016, %v4056
    %v4099 = vadd.f32 %v4017, %v4060
    %v4100 = vadd.f32 %v4018, %v4064
    %v4101 = vadd.f32 %v4019, %v4068
    %v4102 = vadd.f32 %v4020, %v4072
    %v4103 = vadd.f32 %v4021, %v4076
    %v4104 = vadd.f32 %v4022, %v4080
    %v4105 = vadd.f32 %v4023, %v4052
    %v4106 = vadd.f32 %v4024, %v4056
    %v4107 = vadd.f32 %v4025, %v4060
    %v4108 = vadd.f32 %v4026, %v4064
    %v4109 = vadd.f32 %v4027, %v4068
    %v4110 = vadd.f32 %v4028, %v4072
    %v4111 = vadd.f32 %v4029, %v4076
    %v4112 = vadd.f32 %v4030, %v4080
    %v4113 = vadd.f32 %v4031, %v4052
    %v4114 = vadd.f32 %v4032, %v4056
    %v4115 = vadd.f32 %v4033, %v4060
    %v4116 = vadd.f32 %v4034, %v4064
    %v4117 = vadd.f32 %v4035, %v4068
    %v4118 = vadd.f32 %v4036, %v4072
    %v4119 = vadd.f32 %v4037, %v4076
    %v4120 = vadd.f32 %v4038, %v4080
    %v4121 = vadd.f32 %v4039, %v4052
    %v4122 = vadd.f32 %v4040, %v4056
    %v4123 = vadd.f32 %v4041, %v4060
    %v4124 = vadd.f32 %v4042, %v4064
    %v4125 = vadd.f32 %v4043, %v4068
    %v4126 = vadd.f32 %v4044, %v4072
    %v4127 = vadd.f32 %v4045, %v4076
    %v4128 = vadd.f32 %v4046, %v4080
    %v4129 = vmax.f32 %v4089, %v4091
    %v4130 = vmax.f32 %v4090, %v4092
    %v4131 = vmax.f32 %v4097, %v4099
    %v4132 = vmax.f32 %v4098, %v4100
    %v4133 = vmax.f32 %v4105, %v4107
    %v4134 = vmax.f32 %v4106, %v4108
    %v4135 = vmax.f32 %v4113, %v4115
    %v4136 = vmax.f32 %v4114, %v4116
    %v4137 = vmax.f32 %v4121, %v4123
    %v4138 = vmax.f32 %v4122, %v4124
    %v4139 = vmax.f32 %v4093, %v4095
    %v4140 = vmax.f32 %v4094, %v4096
    %v4141 = vmax.f32 %v4101, %v4103
    %v4142 = vmax.f32 %v4102, %v4104
    %v4143 = vmax.f32 %v4109, %v4111
    %v4144 = vmax.f32 %v4110, %v4112
    %v4145 = vmax.f32 %v4117, %v4119
    %v4146 = vmax.f32 %v4118, %v4120
    %v4147 = vmax.f32 %v4125, %v4127
    %v4148 = vmax.f32 %v4126, %v4128
    %v4149 = vmax.f32 %v4129, %v4139
    %v4150 = vmax.f32 %v4130, %v4140
    %v4151 = vmax.f32 %v4131, %v4141
    %v4152 = vmax.f32 %v4132, %v4142
    %v4153 = vmax.f32 %v4133, %v4143
    %v4154 = vmax.f32 %v4134, %v4144
    %v4155 = vmax.f32 %v4135, %v4145
    %v4156 = vmax.f32 %v4136, %v4146
    %v4157 = vmax.f32 %v4137, %v4147
    %v4158 = vmax.f32 %v4138, %v4148
    %v4159 = vmax.f32 %v4149, 0.0
    %v4160 = vmax.f32 %v4150, 0.0
    %v4161 = vmax.f32 %v4151, 0.0
    %v4162 = vmax.f32 %v4152, 0.0
    %v4163 = vmax.f32 %v4153, 0.0
    %v4164 = vmax.f32 %v4154, 0.0
    %v4165 = vmax.f32 %v4155, 0.0
    %v4166 = vmax.f32 %v4156, 0.0
    %v4167 = vmax.f32 %v4157, 0.0
    %v4168 = vmax.f32 %v4158, 0.0
    %v4169 = vpack.c.bf16 %v4161, %v4159
    %v4170 = vpack.c.bf16 %v4162, %v4160
    %v4171 = vpack.c.bf16 %v4165, %v4163
    %v4172 = vpack.c.bf16 %v4166, %v4164
    %v4173 = vpack.c.bf16 %v4167, %v4167
    %v4174 = vpack.c.bf16 %v4168, %v4168
    %v4181 = vunpack.c.l.b16 %v4169
    %v4182 = vunpack.c.l.b16 %v4170
    %v4183 = vunpack.c.h.b16 %v4169
    %v4184 = vunpack.c.h.b16 %v4170
    %v4185 = vunpack.c.l.b16 %v4171
    %v4186 = vunpack.c.l.b16 %v4172
    %v4187 = vunpack.c.h.b16 %v4171
    %v4188 = vunpack.c.h.b16 %v4172
    %v4189 = vunpack.c.l.b16 %v4173
    %v4190 = vunpack.c.l.b16 %v4174
    %v4191 = vpack.c.b16 %v4182, %v4181
    %v4192 = vpack.c.b16 %v4184, %v4183
    %v4193 = vpack.c.b16 %v4186, %v4185
    %v4194 = vpack.c.b16 %v4188, %v4187
    %v4195 = vpack.c.b16 %v4190, %v4189
    %4201 = vst [vmem:[%s4] sm:$0xff] %v4191
    %4202 = vst [vmem:[%s4 + $0x8] sm:$0xff] %v4192
    %4203 = vst [vmem:[%s4 + $0x10] sm:$0xff] %v4193
    %4204 = vst [vmem:[%s4 + $0x18] sm:$0xff] %v4194
    %4205 = vst [vmem:[%s4 + $0x20] sm:$0x33] %v4195
    // Predicated region
    $region30: #{convnet_forward.3} parent=1 // pred_check
      _
    $region31: #{convnet_forward.3} parent=1 // pred_check_branch
      %4207 = sbr.rel (0) target = $region33
    $region32: #{convnet_forward.3} parent=1 // pred_region
      _
    $region33: #{convnet_forward.3} parent=1 // pred_fallthru
      _
    // Predicated region
    $region34: #{convnet_forward.3} parent=1 // pred_check
      _
    $region35: #{convnet_forward.3} parent=1 // pred_check_branch
      %4209 = sbr.rel (0) target = $region37
    $region36: #{convnet_forward.3} parent=1 // pred_region
      _
    $region37: #{convnet_forward.3} parent=1 // pred_fallthru
      _
    %4210 = vsyncpa [#allocation3], 1
    %4211 = vsyncpa [#allocation5], 1

// kernel: convnet_forward.5
$region0: #{convnet_forward.5}
  #allocation0 [shape = 'u32[]', space=smem, size = 0x4, offset = 0x4, fixed_abs, tag = 'smem constant byte address 0x4 - core index']
  #allocation1 [shape = 'u32[144,128]{1,0:T(1,128)}', space=vmem, size = 0x12000, scoped, tag = 'internal scratch']
  %s0 = inlined_call_operand.vmem [shape: bf16[2,2048], index: 0, kind: input, shape index: {}]
  %s1 = inlined_call_operand.vmem [shape: bf16[2048,128], index: 1, kind: input, shape index: {}]
  %s2 = inlined_call_operand.vmem [shape: f32[1,128], index: 2, kind: input, shape index: {}]
  %s3 = inlined_call_operand.hbm [shape: f32[2,128], index: 3, kind: output, shape index: {}]
  %s4 = sld [smem:[#allocation0]]
  $region22: #{convnet_forward.5} parent=0
    _
  %s6 = ssub.s32 1, %s4
  %s7 = scalar_select 0, %s6, %s4
  $region1: #{convnet_forward.5} parent=0
    #allocation2 [shape = 'u8[1024]{0}', space=vmem, size = 0x400, scoped, tag = 'output window, operand 0, single buffered']
    #allocation3 [shape = 's32[1]{0}', space=sflag, size = 0x4, scoped, tag = 'scoped memory for convnet_forward.5']
    %8 = vsyncpa [#allocation3], 0
    // Predicated region
    $region2: #{convnet_forward.5} parent=1 // pred_check
      _
    $region3: #{convnet_forward.5} parent=1 // pred_check_branch
      %10 = sbr.rel (0) target = $region5
    $region4: #{convnet_forward.5} parent=1 // pred_region
      _
    $region5: #{convnet_forward.5} parent=1 // pred_fallthru
      _
    // Predicated region
    $region6: #{convnet_forward.5} parent=1 // pred_check
      _
    $region7: #{convnet_forward.5} parent=1 // pred_check_branch
      %12 = sbr.rel (0) target = $region9
    $region8: #{convnet_forward.5} parent=1 // pred_region
      _
    $region9: #{convnet_forward.5} parent=1 // pred_fallthru
      _
    // Predicated region
    $region10: #{convnet_forward.5} parent=1 // pred_check
      _
    $region11: #{convnet_forward.5} parent=1 // pred_check_branch
      %14 = sbr.rel (0) target = $region13
    $region12: #{convnet_forward.5} parent=1 // pred_region
      _
    $region13: #{convnet_forward.5} parent=1 // pred_fallthru
      _
    %v16 = vld [vmem:[%s0] sm:$0xff]
    %v17 = vld [vmem:[%s0 + $0x8] sm:$0xff]
    %v18 = vld [vmem:[%s1] sm:$0xf]
    %v19 = vld [vmem:[%s1 + $0x4] sm:$0xf]
    %v20 = vld [vmem:[%s1 + $0x8] sm:$0xf]
    %v21 = vld [vmem:[%s1 + $0xc] sm:$0xf]
    %v22 = vld [vmem:[%s1 + $0x10] sm:$0xf]
    %v23 = vld [vmem:[%s1 + $0x14] sm:$0xf]
    %v24 = vld [vmem:[%s1 + $0x18] sm:$0xf]
    %v25 = vld [vmem:[%s1 + $0x1c] sm:$0xf]
    %v26 = vld [vmem:[%s1 + $0x20] sm:$0xf]
    %v27 = vld [vmem:[%s1 + $0x24] sm:$0xf]
    %v28 = vld [vmem:[%s1 + $0x28] sm:$0xf]
    %v29 = vld [vmem:[%s1 + $0x2c] sm:$0xf]
    %v30 = vld [vmem:[%s1 + $0x30] sm:$0xf]
    %v31 = vld [vmem:[%s1 + $0x34] sm:$0xf]
    %v32 = vld [vmem:[%s1 + $0x38] sm:$0xf]
    %v33 = vld [vmem:[%s1 + $0x3c] sm:$0xf]
    %v34 = vld [vmem:[%s1 + $0x40] sm:$0xf]
    %v35 = vld [vmem:[%s1 + $0x44] sm:$0xf]
    %v36 = vld [vmem:[%s1 + $0x48] sm:$0xf]
    %v37 = vld [vmem:[%s1 + $0x4c] sm:$0xf]
    %v38 = vld [vmem:[%s1 + $0x50] sm:$0xf]
    %v39 = vld [vmem:[%s1 + $0x54] sm:$0xf]
    %v40 = vld [vmem:[%s1 + $0x58] sm:$0xf]
    %v41 = vld [vmem:[%s1 + $0x5c] sm:$0xf]
    %v42 = vld [vmem:[%s1 + $0x60] sm:$0xf]
    %v43 = vld [vmem:[%s1 + $0x64] sm:$0xf]
    %v44 = vld [vmem:[%s1 + $0x68] sm:$0xf]
    %v45 = vld [vmem:[%s1 + $0x6c] sm:$0xf]
    %v46 = vld [vmem:[%s1 + $0x70] sm:$0xf]
    %v47 = vld [vmem:[%s1 + $0x74] sm:$0xf]
    %v48 = vld [vmem:[%s1 + $0x78] sm:$0xf]
    %v49 = vld [vmem:[%s1 + $0x7c] sm:$0xf]
    %v50 = vld [vmem:[%s1 + $0x80] sm:$0xf]
    %v51 = vld [vmem:[%s1 + $0x84] sm:$0xf]
    %v52 = vld [vmem:[%s1 + $0x88] sm:$0xf]
    %v53 = vld [vmem:[%s1 + $0x8c] sm:$0xf]
    %v54 = vld [vmem:[%s1 + $0x90] sm:$0xf]
    %v55 = vld [vmem:[%s1 + $0x94] sm:$0xf]
    %v56 = vld [vmem:[%s1 + $0x98] sm:$0xf]
    %v57 = vld [vmem:[%s1 + $0x9c] sm:$0xf]
    %v58 = vld [vmem:[%s1 + $0xa0] sm:$0xf]
    %v59 = vld [vmem:[%s1 + $0xa4] sm:$0xf]
    %v60 = vld [vmem:[%s1 + $0xa8] sm:$0xf]
    %v61 = vld [vmem:[%s1 + $0xac] sm:$0xf]
    %v62 = vld [vmem:[%s1 + $0xb0] sm:$0xf]
    %v63 = vld [vmem:[%s1 + $0xb4] sm:$0xf]
    %v64 = vld [vmem:[%s1 + $0xb8] sm:$0xf]
    %v65 = vld [vmem:[%s1 + $0xbc] sm:$0xf]
    %v66 = vld [vmem:[%s1 + $0xc0] sm:$0xf]
    %v67 = vld [vmem:[%s1 + $0xc4] sm:$0xf]
    %v68 = vld [vmem:[%s1 + $0xc8] sm:$0xf]
    %v69 = vld [vmem:[%s1 + $0xcc] sm:$0xf]
    %v70 = vld [vmem:[%s1 + $0xd0] sm:$0xf]
    %v71 = vld [vmem:[%s1 + $0xd4] sm:$0xf]
    %v72 = vld [vmem:[%s1 + $0xd8] sm:$0xf]
    %v73 = vld [vmem:[%s1 + $0xdc] sm:$0xf]
    %v74 = vld [vmem:[%s1 + $0xe0] sm:$0xf]
    %v75 = vld [vmem:[%s1 + $0xe4] sm:$0xf]
    %v76 = vld [vmem:[%s1 + $0xe8] sm:$0xf]
    %v77 = vld [vmem:[%s1 + $0xec] sm:$0xf]
    %v78 = vld [vmem:[%s1 + $0xf0] sm:$0xf]
    %v79 = vld [vmem:[%s1 + $0xf4] sm:$0xf]
    %v80 = vld [vmem:[%s1 + $0xf8] sm:$0xf]
    %v81 = vld [vmem:[%s1 + $0xfc] sm:$0xf]
    %v82 = vld [vmem:[%s1 + $0x100] sm:$0xf]
    %v83 = vld [vmem:[%s1 + $0x104] sm:$0xf]
    %v84 = vld [vmem:[%s1 + $0x108] sm:$0xf]
    %v85 = vld [vmem:[%s1 + $0x10c] sm:$0xf]
    %v86 = vld [vmem:[%s1 + $0x110] sm:$0xf]
    %v87 = vld [vmem:[%s1 + $0x114] sm:$0xf]
    %v88 = vld [vmem:[%s1 + $0x118] sm:$0xf]
    %v89 = vld [vmem:[%s1 + $0x11c] sm:$0xf]
    %v90 = vld [vmem:[%s1 + $0x120] sm:$0xf]
    %v91 = vld [vmem:[%s1 + $0x124] sm:$0xf]
    %v92 = vld [vmem:[%s1 + $0x128] sm:$0xf]
    %v93 = vld [vmem:[%s1 + $0x12c] sm:$0xf]
    %v94 = vld [vmem:[%s1 + $0x130] sm:$0xf]
    %v95 = vld [vmem:[%s1 + $0x134] sm:$0xf]
    %v96 = vld [vmem:[%s1 + $0x138] sm:$0xf]
    %v97 = vld [vmem:[%s1 + $0x13c] sm:$0xf]
    %v98 = vld [vmem:[%s1 + $0x140] sm:$0xf]
    %v99 = vld [vmem:[%s1 + $0x144] sm:$0xf]
    %v100 = vld [vmem:[%s1 + $0x148] sm:$0xf]
    %v101 = vld [vmem:[%s1 + $0x14c] sm:$0xf]
    %v102 = vld [vmem:[%s1 + $0x150] sm:$0xf]
    %v103 = vld [vmem:[%s1 + $0x154] sm:$0xf]
    %v104 = vld [vmem:[%s1 + $0x158] sm:$0xf]
    %v105 = vld [vmem:[%s1 + $0x15c] sm:$0xf]
    %v106 = vld [vmem:[%s1 + $0x160] sm:$0xf]
    %v107 = vld [vmem:[%s1 + $0x164] sm:$0xf]
    %v108 = vld [vmem:[%s1 + $0x168] sm:$0xf]
    %v109 = vld [vmem:[%s1 + $0x16c] sm:$0xf]
    %v110 = vld [vmem:[%s1 + $0x170] sm:$0xf]
    %v111 = vld [vmem:[%s1 + $0x174] sm:$0xf]
    %v112 = vld [vmem:[%s1 + $0x178] sm:$0xf]
    %v113 = vld [vmem:[%s1 + $0x17c] sm:$0xf]
    %v114 = vld [vmem:[%s1 + $0x180] sm:$0xf]
    %v115 = vld [vmem:[%s1 + $0x184] sm:$0xf]
    %v116 = vld [vmem:[%s1 + $0x188] sm:$0xf]
    %v117 = vld [vmem:[%s1 + $0x18c] sm:$0xf]
    %v118 = vld [vmem:[%s1 + $0x190] sm:$0xf]
    %v119 = vld [vmem:[%s1 + $0x194] sm:$0xf]
    %v120 = vld [vmem:[%s1 + $0x198] sm:$0xf]
    %v121 = vld [vmem:[%s1 + $0x19c] sm:$0xf]
    %v122 = vld [vmem:[%s1 + $0x1a0] sm:$0xf]
    %v123 = vld [vmem:[%s1 + $0x1a4] sm:$0xf]
    %v124 = vld [vmem:[%s1 + $0x1a8] sm:$0xf]
    %v125 = vld [vmem:[%s1 + $0x1ac] sm:$0xf]
    %v126 = vld [vmem:[%s1 + $0x1b0] sm:$0xf]
    %v127 = vld [vmem:[%s1 + $0x1b4] sm:$0xf]
    %v128 = vld [vmem:[%s1 + $0x1b8] sm:$0xf]
    %v129 = vld [vmem:[%s1 + $0x1bc] sm:$0xf]
    %v130 = vld [vmem:[%s1 + $0x1c0] sm:$0xf]
    %v131 = vld [vmem:[%s1 + $0x1c4] sm:$0xf]
    %v132 = vld [vmem:[%s1 + $0x1c8] sm:$0xf]
    %v133 = vld [vmem:[%s1 + $0x1cc] sm:$0xf]
    %v134 = vld [vmem:[%s1 + $0x1d0] sm:$0xf]
    %v135 = vld [vmem:[%s1 + $0x1d4] sm:$0xf]
    %v136 = vld [vmem:[%s1 + $0x1d8] sm:$0xf]
    %v137 = vld [vmem:[%s1 + $0x1dc] sm:$0xf]
    %v138 = vld [vmem:[%s1 + $0x1e0] sm:$0xf]
    %v139 = vld [vmem:[%s1 + $0x1e4] sm:$0xf]
    %v140 = vld [vmem:[%s1 + $0x1e8] sm:$0xf]
    %v141 = vld [vmem:[%s1 + $0x1ec] sm:$0xf]
    %v142 = vld [vmem:[%s1 + $0x1f0] sm:$0xf]
    %v143 = vld [vmem:[%s1 + $0x1f4] sm:$0xf]
    %v144 = vld [vmem:[%s1 + $0x1f8] sm:$0xf]
    %v145 = vld [vmem:[%s1 + $0x1fc] sm:$0xf]
    %v146 = vld [vmem:[%s1 + $0x200] sm:$0xf]
    %v147 = vld [vmem:[%s1 + $0x204] sm:$0xf]
    %v148 = vld [vmem:[%s1 + $0x208] sm:$0xf]
    %v149 = vld [vmem:[%s1 + $0x20c] sm:$0xf]
    %v150 = vld [vmem:[%s1 + $0x210] sm:$0xf]
    %v151 = vld [vmem:[%s1 + $0x214] sm:$0xf]
    %v152 = vld [vmem:[%s1 + $0x218] sm:$0xf]
    %v153 = vld [vmem:[%s1 + $0x21c] sm:$0xf]
    %v154 = vld [vmem:[%s1 + $0x220] sm:$0xf]
    %v155 = vld [vmem:[%s1 + $0x224] sm:$0xf]
    %v156 = vld [vmem:[%s1 + $0x228] sm:$0xf]
    %v157 = vld [vmem:[%s1 + $0x22c] sm:$0xf]
    %v158 = vld [vmem:[%s1 + $0x230] sm:$0xf]
    %v159 = vld [vmem:[%s1 + $0x234] sm:$0xf]
    %v160 = vld [vmem:[%s1 + $0x238] sm:$0xf]
    %v161 = vld [vmem:[%s1 + $0x23c] sm:$0xf]
    %v162 = vld [vmem:[%s1 + $0x240] sm:$0xf]
    %v163 = vld [vmem:[%s1 + $0x244] sm:$0xf]
    %v164 = vld [vmem:[%s1 + $0x248] sm:$0xf]
    %v165 = vld [vmem:[%s1 + $0x24c] sm:$0xf]
    %v166 = vld [vmem:[%s1 + $0x250] sm:$0xf]
    %v167 = vld [vmem:[%s1 + $0x254] sm:$0xf]
    %v168 = vld [vmem:[%s1 + $0x258] sm:$0xf]
    %v169 = vld [vmem:[%s1 + $0x25c] sm:$0xf]
    %v170 = vld [vmem:[%s1 + $0x260] sm:$0xf]
    %v171 = vld [vmem:[%s1 + $0x264] sm:$0xf]
    %v172 = vld [vmem:[%s1 + $0x268] sm:$0xf]
    %v173 = vld [vmem:[%s1 + $0x26c] sm:$0xf]
    %v174 = vld [vmem:[%s1 + $0x270] sm:$0xf]
    %v175 = vld [vmem:[%s1 + $0x274] sm:$0xf]
    %v176 = vld [vmem:[%s1 + $0x278] sm:$0xf]
    %v177 = vld [vmem:[%s1 + $0x27c] sm:$0xf]
    %v178 = vld [vmem:[%s1 + $0x280] sm:$0xf]
    %v179 = vld [vmem:[%s1 + $0x284] sm:$0xf]
    %v180 = vld [vmem:[%s1 + $0x288] sm:$0xf]
    %v181 = vld [vmem:[%s1 + $0x28c] sm:$0xf]
    %v182 = vld [vmem:[%s1 + $0x290] sm:$0xf]
    %v183 = vld [vmem:[%s1 + $0x294] sm:$0xf]
    %v184 = vld [vmem:[%s1 + $0x298] sm:$0xf]
    %v185 = vld [vmem:[%s1 + $0x29c] sm:$0xf]
    %v186 = vld [vmem:[%s1 + $0x2a0] sm:$0xf]
    %v187 = vld [vmem:[%s1 + $0x2a4] sm:$0xf]
    %v188 = vld [vmem:[%s1 + $0x2a8] sm:$0xf]
    %v189 = vld [vmem:[%s1 + $0x2ac] sm:$0xf]
    %v190 = vld [vmem:[%s1 + $0x2b0] sm:$0xf]
    %v191 = vld [vmem:[%s1 + $0x2b4] sm:$0xf]
    %v192 = vld [vmem:[%s1 + $0x2b8] sm:$0xf]
    %v193 = vld [vmem:[%s1 + $0x2bc] sm:$0xf]
    %v194 = vld [vmem:[%s1 + $0x2c0] sm:$0xf]
    %v195 = vld [vmem:[%s1 + $0x2c4] sm:$0xf]
    %v196 = vld [vmem:[%s1 + $0x2c8] sm:$0xf]
    %v197 = vld [vmem:[%s1 + $0x2cc] sm:$0xf]
    %v198 = vld [vmem:[%s1 + $0x2d0] sm:$0xf]
    %v199 = vld [vmem:[%s1 + $0x2d4] sm:$0xf]
    %v200 = vld [vmem:[%s1 + $0x2d8] sm:$0xf]
    %v201 = vld [vmem:[%s1 + $0x2dc] sm:$0xf]
    %v202 = vld [vmem:[%s1 + $0x2e0] sm:$0xf]
    %v203 = vld [vmem:[%s1 + $0x2e4] sm:$0xf]
    %v204 = vld [vmem:[%s1 + $0x2e8] sm:$0xf]
    %v205 = vld [vmem:[%s1 + $0x2ec] sm:$0xf]
    %v206 = vld [vmem:[%s1 + $0x2f0] sm:$0xf]
    %v207 = vld [vmem:[%s1 + $0x2f4] sm:$0xf]
    %v208 = vld [vmem:[%s1 + $0x2f8] sm:$0xf]
    %v209 = vld [vmem:[%s1 + $0x2fc] sm:$0xf]
    %v210 = vld [vmem:[%s1 + $0x300] sm:$0xf]
    %v211 = vld [vmem:[%s1 + $0x304] sm:$0xf]
    %v212 = vld [vmem:[%s1 + $0x308] sm:$0xf]
    %v213 = vld [vmem:[%s1 + $0x30c] sm:$0xf]
    %v214 = vld [vmem:[%s1 + $0x310] sm:$0xf]
    %v215 = vld [vmem:[%s1 + $0x314] sm:$0xf]
    %v216 = vld [vmem:[%s1 + $0x318] sm:$0xf]
    %v217 = vld [vmem:[%s1 + $0x31c] sm:$0xf]
    %v218 = vld [vmem:[%s1 + $0x320] sm:$0xf]
    %v219 = vld [vmem:[%s1 + $0x324] sm:$0xf]
    %v220 = vld [vmem:[%s1 + $0x328] sm:$0xf]
    %v221 = vld [vmem:[%s1 + $0x32c] sm:$0xf]
    %v222 = vld [vmem:[%s1 + $0x330] sm:$0xf]
    %v223 = vld [vmem:[%s1 + $0x334] sm:$0xf]
    %v224 = vld [vmem:[%s1 + $0x338] sm:$0xf]
    %v225 = vld [vmem:[%s1 + $0x33c] sm:$0xf]
    %v226 = vld [vmem:[%s1 + $0x340] sm:$0xf]
    %v227 = vld [vmem:[%s1 + $0x344] sm:$0xf]
    %v228 = vld [vmem:[%s1 + $0x348] sm:$0xf]
    %v229 = vld [vmem:[%s1 + $0x34c] sm:$0xf]
    %v230 = vld [vmem:[%s1 + $0x350] sm:$0xf]
    %v231 = vld [vmem:[%s1 + $0x354] sm:$0xf]
    %v232 = vld [vmem:[%s1 + $0x358] sm:$0xf]
    %v233 = vld [vmem:[%s1 + $0x35c] sm:$0xf]
    %v234 = vld [vmem:[%s1 + $0x360] sm:$0xf]
    %v235 = vld [vmem:[%s1 + $0x364] sm:$0xf]
    %v236 = vld [vmem:[%s1 + $0x368] sm:$0xf]
    %v237 = vld [vmem:[%s1 + $0x36c] sm:$0xf]
    %v238 = vld [vmem:[%s1 + $0x370] sm:$0xf]
    %v239 = vld [vmem:[%s1 + $0x374] sm:$0xf]
    %v240 = vld [vmem:[%s1 + $0x378] sm:$0xf]
    %v241 = vld [vmem:[%s1 + $0x37c] sm:$0xf]
    %v242 = vld [vmem:[%s1 + $0x380] sm:$0xf]
    %v243 = vld [vmem:[%s1 + $0x384] sm:$0xf]
    %v244 = vld [vmem:[%s1 + $0x388] sm:$0xf]
    %v245 = vld [vmem:[%s1 + $0x38c] sm:$0xf]
    %v246 = vld [vmem:[%s1 + $0x390] sm:$0xf]
    %v247 = vld [vmem:[%s1 + $0x394] sm:$0xf]
    %v248 = vld [vmem:[%s1 + $0x398] sm:$0xf]
    %v249 = vld [vmem:[%s1 + $0x39c] sm:$0xf]
    %v250 = vld [vmem:[%s1 + $0x3a0] sm:$0xf]
    %v251 = vld [vmem:[%s1 + $0x3a4] sm:$0xf]
    %v252 = vld [vmem:[%s1 + $0x3a8] sm:$0xf]
    %v253 = vld [vmem:[%s1 + $0x3ac] sm:$0xf]
    %v254 = vld [vmem:[%s1 + $0x3b0] sm:$0xf]
    %v255 = vld [vmem:[%s1 + $0x3b4] sm:$0xf]
    %v256 = vld [vmem:[%s1 + $0x3b8] sm:$0xf]
    %v257 = vld [vmem:[%s1 + $0x3bc] sm:$0xf]
    %v258 = vld [vmem:[%s1 + $0x3c0] sm:$0xf]
    %v259 = vld [vmem:[%s1 + $0x3c4] sm:$0xf]
    %v260 = vld [vmem:[%s1 + $0x3c8] sm:$0xf]
    %v261 = vld [vmem:[%s1 + $0x3cc] sm:$0xf]
    %v262 = vld [vmem:[%s1 + $0x3d0] sm:$0xf]
    %v263 = vld [vmem:[%s1 + $0x3d4] sm:$0xf]
    %v264 = vld [vmem:[%s1 + $0x3d8] sm:$0xf]
    %v265 = vld [vmem:[%s1 + $0x3dc] sm:$0xf]
    %v266 = vld [vmem:[%s1 + $0x3e0] sm:$0xf]
    %v267 = vld [vmem:[%s1 + $0x3e4] sm:$0xf]
    %v268 = vld [vmem:[%s1 + $0x3e8] sm:$0xf]
    %v269 = vld [vmem:[%s1 + $0x3ec] sm:$0xf]
    %v270 = vld [vmem:[%s1 + $0x3f0] sm:$0xf]
    %v271 = vld [vmem:[%s1 + $0x3f4] sm:$0xf]
    %v272 = vld [vmem:[%s1 + $0x3f8] sm:$0xf]
    %v273 = vld [vmem:[%s1 + $0x3fc] sm:$0xf]
    %v274 = vld [vmem:[%s2] sm:$0x1]
    %v276 = vlaneseq
    %v277 = vshrl.u32 %v276, 7
    %v278 = vsub.s32 0, %v277
    %v279 = vrot.slane %v274, %v278
    %v283 = vcombine.high %v16, %v16
    %v285 = vunpack.c.l.s4 1966171168
    %v286 = vunpack.c.0.s8 %v285
    %v287 = vlaneseq
    %v288 = vshrl.u32 %v287, 7
    %v289 = vsub.s32 %v286, %v288
    %v290 = vrot.slane %v16, %v289
    %v292 = vunpack.c.l.s4 1966171168
    %v293 = vunpack.c.0.s8 %v292
    %v294 = vlaneseq
    %v295 = vshrl.u32 %v294, 7
    %v296 = vsub.s32 %v293, %v295
    %v297 = vrot.slane %v283, %v296
    %v298 = vcombine.high %v290, %v290
    %v299 = vcombine.high %v297, %v297
    %v301 = vunpack.c.l.s4 1966171168
    %v302 = vunpack.c.0.s8 %v301
    %v303 = vlaneseq
    %v304 = vshrl.u32 %v303, 7
    %v305 = vsub.s32 %v302, %v304
    %v306 = vrot.slane %v290, %v305
    %v308 = vunpack.c.l.s4 1966171168
    %v309 = vunpack.c.0.s8 %v308
    %v310 = vlaneseq
    %v311 = vshrl.u32 %v310, 7
    %v312 = vsub.s32 %v309, %v311
    %v313 = vrot.slane %v297, %v312
    %v315 = vunpack.c.l.s4 1966171168
    %v316 = vunpack.c.0.s8 %v315
    %v317 = vlaneseq
    %v318 = vshrl.u32 %v317, 7
    %v319 = vsub.s32 %v316, %v318
    %v320 = vrot.slane %v298, %v319
    %v322 = vunpack.c.l.s4 1966171168
    %v323 = vunpack.c.0.s8 %v322
    %v324 = vlaneseq
    %v325 = vshrl.u32 %v324, 7
    %v326 = vsub.s32 %v323, %v325
    %v327 = vrot.slane %v299, %v326
    %v328 = vcombine.high %v306, %v306
    %v329 = vcombine.high %v313, %v313
    %v330 = vcombine.high %v320, %v320
    %v331 = vcombine.high %v327, %v327
    %v332 = vcombine.high %v17, %v17
    %v334 = vunpack.c.l.s4 1966171168
    %v335 = vunpack.c.0.s8 %v334
    %v336 = vlaneseq
    %v337 = vshrl.u32 %v336, 7
    %v338 = vsub.s32 %v335, %v337
    %v339 = vrot.slane %v17, %v338
    %v341 = vunpack.c.l.s4 1966171168
    %v342 = vunpack.c.0.s8 %v341
    %v343 = vlaneseq
    %v344 = vshrl.u32 %v343, 7
    %v345 = vsub.s32 %v342, %v344
    %v346 = vrot.slane %v332, %v345
    %v347 = vcombine.high %v339, %v339
    %v348 = vcombine.high %v346, %v346
    %v350 = vunpack.c.l.s4 1966171168
    %v351 = vunpack.c.0.s8 %v350
    %v352 = vlaneseq
    %v353 = vshrl.u32 %v352, 7
    %v354 = vsub.s32 %v351, %v353
    %v355 = vrot.slane %v339, %v354
    %v357 = vunpack.c.l.s4 1966171168
    %v358 = vunpack.c.0.s8 %v357
    %v359 = vlaneseq
    %v360 = vshrl.u32 %v359, 7
    %v361 = vsub.s32 %v358, %v360
    %v362 = vrot.slane %v346, %v361
    %v364 = vunpack.c.l.s4 1966171168
    %v365 = vunpack.c.0.s8 %v364
    %v366 = vlaneseq
    %v367 = vshrl.u32 %v366, 7
    %v368 = vsub.s32 %v365, %v367
    %v369 = vrot.slane %v347, %v368
    %v371 = vunpack.c.l.s4 1966171168
    %v372 = vunpack.c.0.s8 %v371
    %v373 = vlaneseq
    %v374 = vshrl.u32 %v373, 7
    %v375 = vsub.s32 %v372, %v374
    %v376 = vrot.slane %v348, %v375
    %v377 = vcombine.high %v355, %v355
    %v378 = vcombine.high %v362, %v362
    %v379 = vcombine.high %v369, %v369
    %v380 = vcombine.high %v376, %v376
    %v653 = vunpack.c.l.b16 %v18
    %v654 = vunpack.c.l.b16 %v19
    %v655 = vunpack.c.l.b16 %v20
    %v656 = vunpack.c.l.b16 %v21
    %v657 = vunpack.c.l.b16 %v22
    %v658 = vunpack.c.l.b16 %v23
    %v659 = vunpack.c.l.b16 %v24
    %v660 = vunpack.c.l.b16 %v25
    %v661 = vunpack.c.l.b16 %v26
    %v662 = vunpack.c.l.b16 %v27
    %v663 = vunpack.c.l.b16 %v28
    %v664 = vunpack.c.l.b16 %v29
    %v665 = vunpack.c.l.b16 %v30
    %v666 = vunpack.c.l.b16 %v31
    %v667 = vunpack.c.l.b16 %v32
    %v668 = vunpack.c.l.b16 %v33
    %v669 = vunpack.c.l.b16 %v34
    %v670 = vunpack.c.l.b16 %v35
    %v671 = vunpack.c.l.b16 %v36
    %v672 = vunpack.c.l.b16 %v37
    %v673 = vunpack.c.l.b16 %v38
    %v674 = vunpack.c.l.b16 %v39
    %v675 = vunpack.c.l.b16 %v40
    %v676 = vunpack.c.l.b16 %v41
    %v677 = vunpack.c.l.b16 %v42
    %v678 = vunpack.c.l.b16 %v43
    %v679 = vunpack.c.l.b16 %v44
    %v680 = vunpack.c.l.b16 %v45
    %v681 = vunpack.c.l.b16 %v46
    %v682 = vunpack.c.l.b16 %v47
    %v683 = vunpack.c.l.b16 %v48
    %v684 = vunpack.c.l.b16 %v49
    %v685 = vunpack.c.l.b16 %v50
    %v686 = vunpack.c.l.b16 %v51
    %v687 = vunpack.c.l.b16 %v52
    %v688 = vunpack.c.l.b16 %v53
    %v689 = vunpack.c.l.b16 %v54
    %v690 = vunpack.c.l.b16 %v55
    %v691 = vunpack.c.l.b16 %v56
    %v692 = vunpack.c.l.b16 %v57
    %v693 = vunpack.c.l.b16 %v58
    %v694 = vunpack.c.l.b16 %v59
    %v695 = vunpack.c.l.b16 %v60
    %v696 = vunpack.c.l.b16 %v61
    %v697 = vunpack.c.l.b16 %v62
    %v698 = vunpack.c.l.b16 %v63
    %v699 = vunpack.c.l.b16 %v64
    %v700 = vunpack.c.l.b16 %v65
    %v701 = vunpack.c.l.b16 %v66
    %v702 = vunpack.c.l.b16 %v67
    %v703 = vunpack.c.l.b16 %v68
    %v704 = vunpack.c.l.b16 %v69
    %v705 = vunpack.c.l.b16 %v70
    %v706 = vunpack.c.l.b16 %v71
    %v707 = vunpack.c.l.b16 %v72
    %v708 = vunpack.c.l.b16 %v73
    %v709 = vunpack.c.l.b16 %v74
    %v710 = vunpack.c.l.b16 %v75
    %v711 = vunpack.c.l.b16 %v76
    %v712 = vunpack.c.l.b16 %v77
    %v713 = vunpack.c.l.b16 %v78
    %v714 = vunpack.c.l.b16 %v79
    %v715 = vunpack.c.l.b16 %v80
    %v716 = vunpack.c.l.b16 %v81
    %v717 = vunpack.c.l.b16 %v82
    %v718 = vunpack.c.l.b16 %v83
    %v719 = vunpack.c.l.b16 %v84
    %v720 = vunpack.c.l.b16 %v85
    %v721 = vunpack.c.l.b16 %v86
    %v722 = vunpack.c.l.b16 %v87
    %v723 = vunpack.c.l.b16 %v88
    %v724 = vunpack.c.l.b16 %v89
    %v725 = vunpack.c.l.b16 %v90
    %v726 = vunpack.c.l.b16 %v91
    %v727 = vunpack.c.l.b16 %v92
    %v728 = vunpack.c.l.b16 %v93
    %v729 = vunpack.c.l.b16 %v94
    %v730 = vunpack.c.l.b16 %v95
    %v731 = vunpack.c.l.b16 %v96
    %v732 = vunpack.c.l.b16 %v97
    %v733 = vunpack.c.l.b16 %v98
    %v734 = vunpack.c.l.b16 %v99
    %v735 = vunpack.c.l.b16 %v100
    %v736 = vunpack.c.l.b16 %v101
    %v737 = vunpack.c.l.b16 %v102
    %v738 = vunpack.c.l.b16 %v103
    %v739 = vunpack.c.l.b16 %v104
    %v740 = vunpack.c.l.b16 %v105
    %v741 = vunpack.c.l.b16 %v106
    %v742 = vunpack.c.l.b16 %v107
    %v743 = vunpack.c.l.b16 %v108
    %v744 = vunpack.c.l.b16 %v109
    %v745 = vunpack.c.l.b16 %v110
    %v746 = vunpack.c.l.b16 %v111
    %v747 = vunpack.c.l.b16 %v112
    %v748 = vunpack.c.l.b16 %v113
    %v749 = vunpack.c.l.b16 %v114
    %v750 = vunpack.c.l.b16 %v115
    %v751 = vunpack.c.l.b16 %v116
    %v752 = vunpack.c.l.b16 %v117
    %v753 = vunpack.c.l.b16 %v118
    %v754 = vunpack.c.l.b16 %v119
    %v755 = vunpack.c.l.b16 %v120
    %v756 = vunpack.c.l.b16 %v121
    %v757 = vunpack.c.l.b16 %v122
    %v758 = vunpack.c.l.b16 %v123
    %v759 = vunpack.c.l.b16 %v124
    %v760 = vunpack.c.l.b16 %v125
    %v761 = vunpack.c.l.b16 %v126
    %v762 = vunpack.c.l.b16 %v127
    %v763 = vunpack.c.l.b16 %v128
    %v764 = vunpack.c.l.b16 %v129
    %v765 = vunpack.c.l.b16 %v130
    %v766 = vunpack.c.l.b16 %v131
    %v767 = vunpack.c.l.b16 %v132
    %v768 = vunpack.c.l.b16 %v133
    %v769 = vunpack.c.l.b16 %v134
    %v770 = vunpack.c.l.b16 %v135
    %v771 = vunpack.c.l.b16 %v136
    %v772 = vunpack.c.l.b16 %v137
    %v773 = vunpack.c.l.b16 %v138
    %v774 = vunpack.c.l.b16 %v139
    %v775 = vunpack.c.l.b16 %v140
    %v776 = vunpack.c.l.b16 %v141
    %v777 = vunpack.c.l.b16 %v142
    %v778 = vunpack.c.l.b16 %v143
    %v779 = vunpack.c.l.b16 %v144
    %v780 = vunpack.c.l.b16 %v145
    %v781 = vunpack.c.l.b16 %v146
    %v782 = vunpack.c.l.b16 %v147
    %v783 = vunpack.c.l.b16 %v148
    %v784 = vunpack.c.l.b16 %v149
    %v785 = vunpack.c.l.b16 %v150
    %v786 = vunpack.c.l.b16 %v151
    %v787 = vunpack.c.l.b16 %v152
    %v788 = vunpack.c.l.b16 %v153
    %v789 = vunpack.c.l.b16 %v154
    %v790 = vunpack.c.l.b16 %v155
    %v791 = vunpack.c.l.b16 %v156
    %v792 = vunpack.c.l.b16 %v157
    %v793 = vunpack.c.l.b16 %v158
    %v794 = vunpack.c.l.b16 %v159
    %v795 = vunpack.c.l.b16 %v160
    %v796 = vunpack.c.l.b16 %v161
    %v797 = vunpack.c.l.b16 %v162
    %v798 = vunpack.c.l.b16 %v163
    %v799 = vunpack.c.l.b16 %v164
    %v800 = vunpack.c.l.b16 %v165
    %v801 = vunpack.c.l.b16 %v166
    %v802 = vunpack.c.l.b16 %v167
    %v803 = vunpack.c.l.b16 %v168
    %v804 = vunpack.c.l.b16 %v169
    %v805 = vunpack.c.l.b16 %v170
    %v806 = vunpack.c.l.b16 %v171
    %v807 = vunpack.c.l.b16 %v172
    %v808 = vunpack.c.l.b16 %v173
    %v809 = vunpack.c.l.b16 %v174
    %v810 = vunpack.c.l.b16 %v175
    %v811 = vunpack.c.l.b16 %v176
    %v812 = vunpack.c.l.b16 %v177
    %v813 = vunpack.c.l.b16 %v178
    %v814 = vunpack.c.l.b16 %v179
    %v815 = vunpack.c.l.b16 %v180
    %v816 = vunpack.c.l.b16 %v181
    %v817 = vunpack.c.l.b16 %v182
    %v818 = vunpack.c.l.b16 %v183
    %v819 = vunpack.c.l.b16 %v184
    %v820 = vunpack.c.l.b16 %v185
    %v821 = vunpack.c.l.b16 %v186
    %v822 = vunpack.c.l.b16 %v187
    %v823 = vunpack.c.l.b16 %v188
    %v824 = vunpack.c.l.b16 %v189
    %v825 = vunpack.c.l.b16 %v190
    %v826 = vunpack.c.l.b16 %v191
    %v827 = vunpack.c.l.b16 %v192
    %v828 = vunpack.c.l.b16 %v193
    %v829 = vunpack.c.l.b16 %v194
    %v830 = vunpack.c.l.b16 %v195
    %v831 = vunpack.c.l.b16 %v196
    %v832 = vunpack.c.l.b16 %v197
    %v833 = vunpack.c.l.b16 %v198
    %v834 = vunpack.c.l.b16 %v199
    %v835 = vunpack.c.l.b16 %v200
    %v836 = vunpack.c.l.b16 %v201
    %v837 = vunpack.c.l.b16 %v202
    %v838 = vunpack.c.l.b16 %v203
    %v839 = vunpack.c.l.b16 %v204
    %v840 = vunpack.c.l.b16 %v205
    %v841 = vunpack.c.l.b16 %v206
    %v842 = vunpack.c.l.b16 %v207
    %v843 = vunpack.c.l.b16 %v208
    %v844 = vunpack.c.l.b16 %v209
    %v845 = vunpack.c.l.b16 %v210
    %v846 = vunpack.c.l.b16 %v211
    %v847 = vunpack.c.l.b16 %v212
    %v848 = vunpack.c.l.b16 %v213
    %v849 = vunpack.c.l.b16 %v214
    %v850 = vunpack.c.l.b16 %v215
    %v851 = vunpack.c.l.b16 %v216
    %v852 = vunpack.c.l.b16 %v217
    %v853 = vunpack.c.l.b16 %v218
    %v854 = vunpack.c.l.b16 %v219
    %v855 = vunpack.c.l.b16 %v220
    %v856 = vunpack.c.l.b16 %v221
    %v857 = vunpack.c.l.b16 %v222
    %v858 = vunpack.c.l.b16 %v223
    %v859 = vunpack.c.l.b16 %v224
    %v860 = vunpack.c.l.b16 %v225
    %v861 = vunpack.c.l.b16 %v226
    %v862 = vunpack.c.l.b16 %v227
    %v863 = vunpack.c.l.b16 %v228
    %v864 = vunpack.c.l.b16 %v229
    %v865 = vunpack.c.l.b16 %v230
    %v866 = vunpack.c.l.b16 %v231
    %v867 = vunpack.c.l.b16 %v232
    %v868 = vunpack.c.l.b16 %v233
    %v869 = vunpack.c.l.b16 %v234
    %v870 = vunpack.c.l.b16 %v235
    %v871 = vunpack.c.l.b16 %v236
    %v872 = vunpack.c.l.b16 %v237
    %v873 = vunpack.c.l.b16 %v238
    %v874 = vunpack.c.l.b16 %v239
    %v875 = vunpack.c.l.b16 %v240
    %v876 = vunpack.c.l.b16 %v241
    %v877 = vunpack.c.l.b16 %v242
    %v878 = vunpack.c.l.b16 %v243
    %v879 = vunpack.c.l.b16 %v244
    %v880 = vunpack.c.l.b16 %v245
    %v881 = vunpack.c.l.b16 %v246
    %v882 = vunpack.c.l.b16 %v247
    %v883 = vunpack.c.l.b16 %v248
    %v884 = vunpack.c.l.b16 %v249
    %v885 = vunpack.c.l.b16 %v250
    %v886 = vunpack.c.l.b16 %v251
    %v887 = vunpack.c.l.b16 %v252
    %v888 = vunpack.c.l.b16 %v253
    %v889 = vunpack.c.l.b16 %v254
    %v890 = vunpack.c.l.b16 %v255
    %v891 = vunpack.c.l.b16 %v256
    %v892 = vunpack.c.l.b16 %v257
    %v893 = vunpack.c.l.b16 %v258
    %v894 = vunpack.c.l.b16 %v259
    %v895 = vunpack.c.l.b16 %v260
    %v896 = vunpack.c.l.b16 %v261
    %v897 = vunpack.c.l.b16 %v262
    %v898 = vunpack.c.l.b16 %v263
    %v899 = vunpack.c.l.b16 %v264
    %v900 = vunpack.c.l.b16 %v265
    %v901 = vunpack.c.l.b16 %v266
    %v902 = vunpack.c.l.b16 %v267
    %v903 = vunpack.c.l.b16 %v268
    %v904 = vunpack.c.l.b16 %v269
    %v905 = vunpack.c.l.b16 %v270
    %v906 = vunpack.c.l.b16 %v271
    %v907 = vunpack.c.l.b16 %v272
    %v908 = vunpack.c.l.b16 %v273
    %v909 = vpack.c.b16 %v654, %v653
    %v910 = vpack.c.b16 %v656, %v655
    %v911 = vpack.c.b16 %v658, %v657
    %v912 = vpack.c.b16 %v660, %v659
    %v913 = vpack.c.b16 %v662, %v661
    %v914 = vpack.c.b16 %v664, %v663
    %v915 = vpack.c.b16 %v666, %v665
    %v916 = vpack.c.b16 %v668, %v667
    %v917 = vpack.c.b16 %v670, %v669
    %v918 = vpack.c.b16 %v672, %v671
    %v919 = vpack.c.b16 %v674, %v673
    %v920 = vpack.c.b16 %v676, %v675
    %v921 = vpack.c.b16 %v678, %v677
    %v922 = vpack.c.b16 %v680, %v679
    %v923 = vpack.c.b16 %v682, %v681
    %v924 = vpack.c.b16 %v684, %v683
    %v925 = vpack.c.b16 %v686, %v685
    %v926 = vpack.c.b16 %v688, %v687
    %v927 = vpack.c.b16 %v690, %v689
    %v928 = vpack.c.b16 %v692, %v691
    %v929 = vpack.c.b16 %v694, %v693
    %v930 = vpack.c.b16 %v696, %v695
    %v931 = vpack.c.b16 %v698, %v697
    %v932 = vpack.c.b16 %v700, %v699
    %v933 = vpack.c.b16 %v702, %v701
    %v934 = vpack.c.b16 %v704, %v703
    %v935 = vpack.c.b16 %v706, %v705
    %v936 = vpack.c.b16 %v708, %v707
    %v937 = vpack.c.b16 %v710, %v709
    %v938 = vpack.c.b16 %v712, %v711
    %v939 = vpack.c.b16 %v714, %v713
    %v940 = vpack.c.b16 %v716, %v715
    %v941 = vpack.c.b16 %v718, %v717
    %v942 = vpack.c.b16 %v720, %v719
    %v943 = vpack.c.b16 %v722, %v721
    %v944 = vpack.c.b16 %v724, %v723
    %v945 = vpack.c.b16 %v726, %v725
    %v946 = vpack.c.b16 %v728, %v727
    %v947 = vpack.c.b16 %v730, %v729
    %v948 = vpack.c.b16 %v732, %v731
    %v949 = vpack.c.b16 %v734, %v733
    %v950 = vpack.c.b16 %v736, %v735
    %v951 = vpack.c.b16 %v738, %v737
    %v952 = vpack.c.b16 %v740, %v739
    %v953 = vpack.c.b16 %v742, %v741
    %v954 = vpack.c.b16 %v744, %v743
    %v955 = vpack.c.b16 %v746, %v745
    %v956 = vpack.c.b16 %v748, %v747
    %v957 = vpack.c.b16 %v750, %v749
    %v958 = vpack.c.b16 %v752, %v751
    %v959 = vpack.c.b16 %v754, %v753
    %v960 = vpack.c.b16 %v756, %v755
    %v961 = vpack.c.b16 %v758, %v757
    %v962 = vpack.c.b16 %v760, %v759
    %v963 = vpack.c.b16 %v762, %v761
    %v964 = vpack.c.b16 %v764, %v763
    %v965 = vpack.c.b16 %v766, %v765
    %v966 = vpack.c.b16 %v768, %v767
    %v967 = vpack.c.b16 %v770, %v769
    %v968 = vpack.c.b16 %v772, %v771
    %v969 = vpack.c.b16 %v774, %v773
    %v970 = vpack.c.b16 %v776, %v775
    %v971 = vpack.c.b16 %v778, %v777
    %v972 = vpack.c.b16 %v780, %v779
    %v973 = vpack.c.b16 %v782, %v781
    %v974 = vpack.c.b16 %v784, %v783
    %v975 = vpack.c.b16 %v786, %v785
    %v976 = vpack.c.b16 %v788, %v787
    %v977 = vpack.c.b16 %v790, %v789
    %v978 = vpack.c.b16 %v792, %v791
    %v979 = vpack.c.b16 %v794, %v793
    %v980 = vpack.c.b16 %v796, %v795
    %v981 = vpack.c.b16 %v798, %v797
    %v982 = vpack.c.b16 %v800, %v799
    %v983 = vpack.c.b16 %v802, %v801
    %v984 = vpack.c.b16 %v804, %v803
    %v985 = vpack.c.b16 %v806, %v805
    %v986 = vpack.c.b16 %v808, %v807
    %v987 = vpack.c.b16 %v810, %v809
    %v988 = vpack.c.b16 %v812, %v811
    %v989 = vpack.c.b16 %v814, %v813
    %v990 = vpack.c.b16 %v816, %v815
    %v991 = vpack.c.b16 %v818, %v817
    %v992 = vpack.c.b16 %v820, %v819
    %v993 = vpack.c.b16 %v822, %v821
    %v994 = vpack.c.b16 %v824, %v823
    %v995 = vpack.c.b16 %v826, %v825
    %v996 = vpack.c.b16 %v828, %v827
    %v997 = vpack.c.b16 %v830, %v829
    %v998 = vpack.c.b16 %v832, %v831
    %v999 = vpack.c.b16 %v834, %v833
    %v1000 = vpack.c.b16 %v836, %v835
    %v1001 = vpack.c.b16 %v838, %v837
    %v1002 = vpack.c.b16 %v840, %v839
    %v1003 = vpack.c.b16 %v842, %v841
    %v1004 = vpack.c.b16 %v844, %v843
    %v1005 = vpack.c.b16 %v846, %v845
    %v1006 = vpack.c.b16 %v848, %v847
    %v1007 = vpack.c.b16 %v850, %v849
    %v1008 = vpack.c.b16 %v852, %v851
    %v1009 = vpack.c.b16 %v854, %v853
    %v1010 = vpack.c.b16 %v856, %v855
    %v1011 = vpack.c.b16 %v858, %v857
    %v1012 = vpack.c.b16 %v860, %v859
    %v1013 = vpack.c.b16 %v862, %v861
    %v1014 = vpack.c.b16 %v864, %v863
    %v1015 = vpack.c.b16 %v866, %v865
    %v1016 = vpack.c.b16 %v868, %v867
    %v1017 = vpack.c.b16 %v870, %v869
    %v1018 = vpack.c.b16 %v872, %v871
    %v1019 = vpack.c.b16 %v874, %v873
    %v1020 = vpack.c.b16 %v876, %v875
    %v1021 = vpack.c.b16 %v878, %v877
    %v1022 = vpack.c.b16 %v880, %v879
    %v1023 = vpack.c.b16 %v882, %v881
    %v1024 = vpack.c.b16 %v884, %v883
    %v1025 = vpack.c.b16 %v886, %v885
    %v1026 = vpack.c.b16 %v888, %v887
    %v1027 = vpack.c.b16 %v890, %v889
    %v1028 = vpack.c.b16 %v892, %v891
    %v1029 = vpack.c.b16 %v894, %v893
    %v1030 = vpack.c.b16 %v896, %v895
    %v1031 = vpack.c.b16 %v898, %v897
    %v1032 = vpack.c.b16 %v900, %v899
    %v1033 = vpack.c.b16 %v902, %v901
    %v1034 = vpack.c.b16 %v904, %v903
    %v1035 = vpack.c.b16 %v906, %v905
    %v1036 = vpack.c.b16 %v908, %v907
    %1165 = vmatprep.subr.bf16.mxu0 0
    %1166 = vmatpush1.bf16.msra.mxu0 %v909
    %1167 = vmatprep.subr.bf16.mxu0 0
    %1168 = vmatpush1.bf16.msra.mxu0 %v910
    %1169 = vmatprep.subr.bf16.mxu0 0
    %1170 = vmatpush1.bf16.msra.mxu0 %v911
    %1171 = vmatprep.subr.bf16.mxu0 0
    %1172 = vmatpush1.bf16.msra.mxu0 %v912
    %1173 = vmatprep.subr.bf16.mxu0 0
    %1174 = vmatpush1.bf16.msra.mxu0 %v913
    %1175 = vmatprep.subr.bf16.mxu0 0
    %1176 = vmatpush1.bf16.msra.mxu0 %v914
    %1177 = vmatprep.subr.bf16.mxu0 0
    %1178 = vmatpush1.bf16.msra.mxu0 %v915
    %1179 = vmatprep.subr.bf16.mxu0 0
    %1180 = vmatpush1.bf16.msra.mxu0 %v916
    %1181 = vmatprep.subr.bf16.mxu0 0
    %1182 = vmatpush1.bf16.msra.mxu0 %v917
    %1183 = vmatprep.subr.bf16.mxu0 0
    %1184 = vmatpush1.bf16.msra.mxu0 %v918
    %1185 = vmatprep.subr.bf16.mxu0 0
    %1186 = vmatpush1.bf16.msra.mxu0 %v919
    %1187 = vmatprep.subr.bf16.mxu0 0
    %1188 = vmatpush1.bf16.msra.mxu0 %v920
    %1189 = vmatprep.subr.bf16.mxu0 0
    %1190 = vmatpush1.bf16.msra.mxu0 %v921
    %1191 = vmatprep.subr.bf16.mxu0 0
    %1192 = vmatpush1.bf16.msra.mxu0 %v922
    %1193 = vmatprep.subr.bf16.mxu0 0
    %1194 = vmatpush1.bf16.msra.mxu0 %v923
    %1195 = vmatprep.subr.bf16.mxu0 0
    %1196 = vmatpush1.bf16.msra.mxu0 %v924
    %1197 = vmatprep.mubr.bf16.mxu0 %v320
    %1198 = vmatmul.mubr.bf16.gmra.mrb[0].mxu0 %v306
    %v1199 = vpop.f32.mrb[0].mxu0
    %v1200 = vadd.f32 %v279, %v1199
    %v1201 = vpop.f32.mrb[0].mxu0
    %v1202 = vpop.f32.mrb[0].mxu0
    %v1203 = vpop.f32.mrb[0].mxu0
    %1204 = vdwg.mxu0
    %1205 = vmatprep.subr.bf16.mxu0 0
    %1206 = vmatpush1.bf16.msra.mxu0 %v925
    %1207 = vmatprep.subr.bf16.mxu0 0
    %1208 = vmatpush1.bf16.msra.mxu0 %v926
    %1209 = vmatprep.subr.bf16.mxu0 0
    %1210 = vmatpush1.bf16.msra.mxu0 %v927
    %1211 = vmatprep.subr.bf16.mxu0 0
    %1212 = vmatpush1.bf16.msra.mxu0 %v928
    %1213 = vmatprep.subr.bf16.mxu0 0
    %1214 = vmatpush1.bf16.msra.mxu0 %v929
    %1215 = vmatprep.subr.bf16.mxu0 0
    %1216 = vmatpush1.bf16.msra.mxu0 %v930
    %1217 = vmatprep.subr.bf16.mxu0 0
    %1218 = vmatpush1.bf16.msra.mxu0 %v931
    %1219 = vmatprep.subr.bf16.mxu0 0
    %1220 = vmatpush1.bf16.msra.mxu0 %v932
    %1221 = vmatprep.subr.bf16.mxu0 0
    %1222 = vmatpush1.bf16.msra.mxu0 %v933
    %1223 = vmatprep.subr.bf16.mxu0 0
    %1224 = vmatpush1.bf16.msra.mxu0 %v934
    %1225 = vmatprep.subr.bf16.mxu0 0
    %1226 = vmatpush1.bf16.msra.mxu0 %v935
    %1227 = vmatprep.subr.bf16.mxu0 0
    %1228 = vmatpush1.bf16.msra.mxu0 %v936
    %1229 = vmatprep.subr.bf16.mxu0 0
    %1230 = vmatpush1.bf16.msra.mxu0 %v937
    %1231 = vmatprep.subr.bf16.mxu0 0
    %1232 = vmatpush1.bf16.msra.mxu0 %v938
    %1233 = vmatprep.subr.bf16.mxu0 0
    %1234 = vmatpush1.bf16.msra.mxu0 %v939
    %1235 = vmatprep.subr.bf16.mxu0 0
    %1236 = vmatpush1.bf16.msra.mxu0 %v940
    %1237 = vmatprep.mubr.bf16.mxu0 %v330
    %1238 = vmatmul.mubr.bf16.gmra.mrb[0].mxu0 %v328
    %v1239 = vpop.f32.mrb[0].mxu0
    %v1240 = vadd.f32 %v1200, %v1239
    %v1241 = vpop.f32.mrb[0].mxu0
    %v1242 = vpop.f32.mrb[0].mxu0
    %v1243 = vpop.f32.mrb[0].mxu0
    %1244 = vdwg.mxu0
    %1245 = vmatprep.subr.bf16.mxu0 0
    %1246 = vmatpush1.bf16.msra.mxu0 %v941
    %1247 = vmatprep.subr.bf16.mxu0 0
    %1248 = vmatpush1.bf16.msra.mxu0 %v942
    %1249 = vmatprep.subr.bf16.mxu0 0
    %1250 = vmatpush1.bf16.msra.mxu0 %v943
    %1251 = vmatprep.subr.bf16.mxu0 0
    %1252 = vmatpush1.bf16.msra.mxu0 %v944
    %1253 = vmatprep.subr.bf16.mxu0 0
    %1254 = vmatpush1.bf16.msra.mxu0 %v945
    %1255 = vmatprep.subr.bf16.mxu0 0
    %1256 = vmatpush1.bf16.msra.mxu0 %v946
    %1257 = vmatprep.subr.bf16.mxu0 0
    %1258 = vmatpush1.bf16.msra.mxu0 %v947
    %1259 = vmatprep.subr.bf16.mxu0 0
    %1260 = vmatpush1.bf16.msra.mxu0 %v948
    %1261 = vmatprep.subr.bf16.mxu0 0
    %1262 = vmatpush1.bf16.msra.mxu0 %v949
    %1263 = vmatprep.subr.bf16.mxu0 0
    %1264 = vmatpush1.bf16.msra.mxu0 %v950
    %1265 = vmatprep.subr.bf16.mxu0 0
    %1266 = vmatpush1.bf16.msra.mxu0 %v951
    %1267 = vmatprep.subr.bf16.mxu0 0
    %1268 = vmatpush1.bf16.msra.mxu0 %v952
    %1269 = vmatprep.subr.bf16.mxu0 0
    %1270 = vmatpush1.bf16.msra.mxu0 %v953
    %1271 = vmatprep.subr.bf16.mxu0 0
    %1272 = vmatpush1.bf16.msra.mxu0 %v954
    %1273 = vmatprep.subr.bf16.mxu0 0
    %1274 = vmatpush1.bf16.msra.mxu0 %v955
    %1275 = vmatprep.subr.bf16.mxu0 0
    %1276 = vmatpush1.bf16.msra.mxu0 %v956
    %1277 = vmatprep.mubr.bf16.mxu0 %v327
    %1278 = vmatmul.mubr.bf16.gmra.mrb[0].mxu0 %v313
    %v1279 = vpop.f32.mrb[0].mxu0
    %v1280 = vadd.f32 %v1240, %v1279
    %v1281 = vpop.f32.mrb[0].mxu0
    %v1282 = vpop.f32.mrb[0].mxu0
    %v1283 = vpop.f32.mrb[0].mxu0
    %1284 = vdwg.mxu0
    %1285 = vmatprep.subr.bf16.mxu0 0
    %1286 = vmatpush1.bf16.msra.mxu0 %v957
    %1287 = vmatprep.subr.bf16.mxu0 0
    %1288 = vmatpush1.bf16.msra.mxu0 %v958
    %1289 = vmatprep.subr.bf16.mxu0 0
    %1290 = vmatpush1.bf16.msra.mxu0 %v959
    %1291 = vmatprep.subr.bf16.mxu0 0
    %1292 = vmatpush1.bf16.msra.mxu0 %v960
    %1293 = vmatprep.subr.bf16.mxu0 0
    %1294 = vmatpush1.bf16.msra.mxu0 %v961
    %1295 = vmatprep.subr.bf16.mxu0 0
    %1296 = vmatpush1.bf16.msra.mxu0 %v962
    %1297 = vmatprep.subr.bf16.mxu0 0
    %1298 = vmatpush1.bf16.msra.mxu0 %v963
    %1299 = vmatprep.subr.bf16.mxu0 0
    %1300 = vmatpush1.bf16.msra.mxu0 %v964
    %1301 = vmatprep.subr.bf16.mxu0 0
    %1302 = vmatpush1.bf16.msra.mxu0 %v965
    %1303 = vmatprep.subr.bf16.mxu0 0
    %1304 = vmatpush1.bf16.msra.mxu0 %v966
    %1305 = vmatprep.subr.bf16.mxu0 0
    %1306 = vmatpush1.bf16.msra.mxu0 %v967
    %1307 = vmatprep.subr.bf16.mxu0 0
    %1308 = vmatpush1.bf16.msra.mxu0 %v968
    %1309 = vmatprep.subr.bf16.mxu0 0
    %1310 = vmatpush1.bf16.msra.mxu0 %v969
    %1311 = vmatprep.subr.bf16.mxu0 0
    %1312 = vmatpush1.bf16.msra.mxu0 %v970
    %1313 = vmatprep.subr.bf16.mxu0 0
    %1314 = vmatpush1.bf16.msra.mxu0 %v971
    %1315 = vmatprep.subr.bf16.mxu0 0
    %1316 = vmatpush1.bf16.msra.mxu0 %v972
    %1317 = vmatprep.mubr.bf16.mxu0 %v331
    %1318 = vmatmul.mubr.bf16.gmra.mrb[0].mxu0 %v329
    %v1319 = vpop.f32.mrb[0].mxu0
    %v1320 = vadd.f32 %v1280, %v1319
    %v1321 = vpop.f32.mrb[0].mxu0
    %v1322 = vpop.f32.mrb[0].mxu0
    %v1323 = vpop.f32.mrb[0].mxu0
    %1324 = vdwg.mxu0
    %1325 = vmatprep.subr.bf16.mxu0 0
    %1326 = vmatpush1.bf16.msra.mxu0 %v973
    %1327 = vmatprep.subr.bf16.mxu0 0
    %1328 = vmatpush1.bf16.msra.mxu0 %v974
    %1329 = vmatprep.subr.bf16.mxu0 0
    %1330 = vmatpush1.bf16.msra.mxu0 %v975
    %1331 = vmatprep.subr.bf16.mxu0 0
    %1332 = vmatpush1.bf16.msra.mxu0 %v976
    %1333 = vmatprep.subr.bf16.mxu0 0
    %1334 = vmatpush1.bf16.msra.mxu0 %v977
    %1335 = vmatprep.subr.bf16.mxu0 0
    %1336 = vmatpush1.bf16.msra.mxu0 %v978
    %1337 = vmatprep.subr.bf16.mxu0 0
    %1338 = vmatpush1.bf16.msra.mxu0 %v979
    %1339 = vmatprep.subr.bf16.mxu0 0
    %1340 = vmatpush1.bf16.msra.mxu0 %v980
    %1341 = vmatprep.subr.bf16.mxu0 0
    %1342 = vmatpush1.bf16.msra.mxu0 %v981
    %1343 = vmatprep.subr.bf16.mxu0 0
    %1344 = vmatpush1.bf16.msra.mxu0 %v982
    %1345 = vmatprep.subr.bf16.mxu0 0
    %1346 = vmatpush1.bf16.msra.mxu0 %v983
    %1347 = vmatprep.subr.bf16.mxu0 0
    %1348 = vmatpush1.bf16.msra.mxu0 %v984
    %1349 = vmatprep.subr.bf16.mxu0 0
    %1350 = vmatpush1.bf16.msra.mxu0 %v985
    %1351 = vmatprep.subr.bf16.mxu0 0
    %1352 = vmatpush1.bf16.msra.mxu0 %v986
    %1353 = vmatprep.subr.bf16.mxu0 0
    %1354 = vmatpush1.bf16.msra.mxu0 %v987
    %1355 = vmatprep.subr.bf16.mxu0 0
    %1356 = vmatpush1.bf16.msra.mxu0 %v988
    %1357 = vmatprep.mubr.bf16.mxu0 %v369
    %1358 = vmatmul.mubr.bf16.gmra.mrb[0].mxu0 %v355
    %v1359 = vpop.f32.mrb[0].mxu0
    %v1360 = vadd.f32 %v1320, %v1359
    %v1361 = vpop.f32.mrb[0].mxu0
    %v1362 = vpop.f32.mrb[0].mxu0
    %v1363 = vpop.f32.mrb[0].mxu0
    %1364 = vdwg.mxu0
    %1365 = vmatprep.subr.bf16.mxu0 0
    %1366 = vmatpush1.bf16.msra.mxu0 %v989
    %1367 = vmatprep.subr.bf16.mxu0 0
    %1368 = vmatpush1.bf16.msra.mxu0 %v990
    %1369 = vmatprep.subr.bf16.mxu0 0
    %1370 = vmatpush1.bf16.msra.mxu0 %v991
    %1371 = vmatprep.subr.bf16.mxu0 0
    %1372 = vmatpush1.bf16.msra.mxu0 %v992
    %1373 = vmatprep.subr.bf16.mxu0 0
    %1374 = vmatpush1.bf16.msra.mxu0 %v993
    %1375 = vmatprep.subr.bf16.mxu0 0
    %1376 = vmatpush1.bf16.msra.mxu0 %v994
    %1377 = vmatprep.subr.bf16.mxu0 0
    %1378 = vmatpush1.bf16.msra.mxu0 %v995
    %1379 = vmatprep.subr.bf16.mxu0 0
    %1380 = vmatpush1.bf16.msra.mxu0 %v996
    %1381 = vmatprep.subr.bf16.mxu0 0
    %1382 = vmatpush1.bf16.msra.mxu0 %v997
    %1383 = vmatprep.subr.bf16.mxu0 0
    %1384 = vmatpush1.bf16.msra.mxu0 %v998
    %1385 = vmatprep.subr.bf16.mxu0 0
    %1386 = vmatpush1.bf16.msra.mxu0 %v999
    %1387 = vmatprep.subr.bf16.mxu0 0
    %1388 = vmatpush1.bf16.msra.mxu0 %v1000
    %1389 = vmatprep.subr.bf16.mxu0 0
    %1390 = vmatpush1.bf16.msra.mxu0 %v1001
    %1391 = vmatprep.subr.bf16.mxu0 0
    %1392 = vmatpush1.bf16.msra.mxu0 %v1002
    %1393 = vmatprep.subr.bf16.mxu0 0
    %1394 = vmatpush1.bf16.msra.mxu0 %v1003
    %1395 = vmatprep.subr.bf16.mxu0 0
    %1396 = vmatpush1.bf16.msra.mxu0 %v1004
    %1397 = vmatprep.mubr.bf16.mxu0 %v379
    %1398 = vmatmul.mubr.bf16.gmra.mrb[0].mxu0 %v377
    %v1399 = vpop.f32.mrb[0].mxu0
    %v1400 = vadd.f32 %v1360, %v1399
    %v1401 = vpop.f32.mrb[0].mxu0
    %v1402 = vpop.f32.mrb[0].mxu0
    %v1403 = vpop.f32.mrb[0].mxu0
    %1404 = vdwg.mxu0
    %1405 = vmatprep.subr.bf16.mxu0 0
    %1406 = vmatpush1.bf16.msra.mxu0 %v1005
    %1407 = vmatprep.subr.bf16.mxu0 0
    %1408 = vmatpush1.bf16.msra.mxu0 %v1006
    %1409 = vmatprep.subr.bf16.mxu0 0
    %1410 = vmatpush1.bf16.msra.mxu0 %v1007
    %1411 = vmatprep.subr.bf16.mxu0 0
    %1412 = vmatpush1.bf16.msra.mxu0 %v1008
    %1413 = vmatprep.subr.bf16.mxu0 0
    %1414 = vmatpush1.bf16.msra.mxu0 %v1009
    %1415 = vmatprep.subr.bf16.mxu0 0
    %1416 = vmatpush1.bf16.msra.mxu0 %v1010
    %1417 = vmatprep.subr.bf16.mxu0 0
    %1418 = vmatpush1.bf16.msra.mxu0 %v1011
    %1419 = vmatprep.subr.bf16.mxu0 0
    %1420 = vmatpush1.bf16.msra.mxu0 %v1012
    %1421 = vmatprep.subr.bf16.mxu0 0
    %1422 = vmatpush1.bf16.msra.mxu0 %v1013
    %1423 = vmatprep.subr.bf16.mxu0 0
    %1424 = vmatpush1.bf16.msra.mxu0 %v1014
    %1425 = vmatprep.subr.bf16.mxu0 0
    %1426 = vmatpush1.bf16.msra.mxu0 %v1015
    %1427 = vmatprep.subr.bf16.mxu0 0
    %1428 = vmatpush1.bf16.msra.mxu0 %v1016
    %1429 = vmatprep.subr.bf16.mxu0 0
    %1430 = vmatpush1.bf16.msra.mxu0 %v1017
    %1431 = vmatprep.subr.bf16.mxu0 0
    %1432 = vmatpush1.bf16.msra.mxu0 %v1018
    %1433 = vmatprep.subr.bf16.mxu0 0
    %1434 = vmatpush1.bf16.msra.mxu0 %v1019
    %1435 = vmatprep.subr.bf16.mxu0 0
    %1436 = vmatpush1.bf16.msra.mxu0 %v1020
    %1437 = vmatprep.mubr.bf16.mxu0 %v376
    %1438 = vmatmul.mubr.bf16.gmra.mrb[0].mxu0 %v362
    %v1439 = vpop.f32.mrb[0].mxu0
    %v1440 = vadd.f32 %v1400, %v1439
    %v1441 = vpop.f32.mrb[0].mxu0
    %v1442 = vpop.f32.mrb[0].mxu0
    %v1443 = vpop.f32.mrb[0].mxu0
    %1444 = vdwg.mxu0
    %1445 = vmatprep.subr.bf16.mxu0 0
    %1446 = vmatpush1.bf16.msra.mxu0 %v1021
    %1447 = vmatprep.subr.bf16.mxu0 0
    %1448 = vmatpush1.bf16.msra.mxu0 %v1022
    %1449 = vmatprep.subr.bf16.mxu0 0
    %1450 = vmatpush1.bf16.msra.mxu0 %v1023
    %1451 = vmatprep.subr.bf16.mxu0 0
    %1452 = vmatpush1.bf16.msra.mxu0 %v1024
    %1453 = vmatprep.subr.bf16.mxu0 0
    %1454 = vmatpush1.bf16.msra.mxu0 %v1025
    %1455 = vmatprep.subr.bf16.mxu0 0
    %1456 = vmatpush1.bf16.msra.mxu0 %v1026
    %1457 = vmatprep.subr.bf16.mxu0 0
    %1458 = vmatpush1.bf16.msra.mxu0 %v1027
    %1459 = vmatprep.subr.bf16.mxu0 0
    %1460 = vmatpush1.bf16.msra.mxu0 %v1028
    %1461 = vmatprep.subr.bf16.mxu0 0
    %1462 = vmatpush1.bf16.msra.mxu0 %v1029
    %1463 = vmatprep.subr.bf16.mxu0 0
    %1464 = vmatpush1.bf16.msra.mxu0 %v1030
    %1465 = vmatprep.subr.bf16.mxu0 0
    %1466 = vmatpush1.bf16.msra.mxu0 %v1031
    %1467 = vmatprep.subr.bf16.mxu0 0
    %1468 = vmatpush1.bf16.msra.mxu0 %v1032
    %1469 = vmatprep.subr.bf16.mxu0 0
    %1470 = vmatpush1.bf16.msra.mxu0 %v1033
    %1471 = vmatprep.subr.bf16.mxu0 0
    %1472 = vmatpush1.bf16.msra.mxu0 %v1034
    %1473 = vmatprep.subr.bf16.mxu0 0
    %1474 = vmatpush1.bf16.msra.mxu0 %v1035
    %1475 = vmatprep.subr.bf16.mxu0 0
    %1476 = vmatpush1.bf16.msra.mxu0 %v1036
    %1477 = vmatprep.mubr.bf16.mxu0 %v380
    %1478 = vmatmul.mubr.bf16.gmra.mrb[0].mxu0 %v378
    %v1479 = vpop.f32.mrb[0].mxu0
    %v1480 = vadd.f32 %v1440, %v1479
    %v1481 = vpop.f32.mrb[0].mxu0
    %v1482 = vpop.f32.mrb[0].mxu0
    %v1483 = vpop.f32.mrb[0].mxu0
    %1484 = vdwg.mxu0
    %1485 = vst [vmem:[#allocation2] sm:$0x3] %v1480
    // Predicated region
    $region14: #{convnet_forward.5} parent=1 // pred_check
      _
    $region15: #{convnet_forward.5} parent=1 // pred_check_branch
      %1487 = sbr.rel (0) target = $region17
    $region16: #{convnet_forward.5} parent=1 // pred_region
      %s1489 = ssub.s32 32, 32
      %1490 = vsyncadd [#allocation3], %s1489
      %s1492 = sshll.u32 [#allocation2], 4
      %s1493 = int_to_ptr.vmem [resolvable:$true] %s1492
      %1495 = dma.vmem_to_hbm [thread:$0]  %s1493, 32, %s3, [#allocation3]
    $region17: #{convnet_forward.5} parent=1 // pred_fallthru
      _
    // Predicated region
    $region18: #{convnet_forward.5} parent=1 // pred_check
      _
    $region19: #{convnet_forward.5} parent=1 // pred_check_branch
      %1497 = sbr.rel (0) target = $region21
    $region20: #{convnet_forward.5} parent=1 // pred_region
      %1498 = dma.done [#allocation3], 32
    $region21: #{convnet_forward.5} parent=1 // pred_fallthru
      _
    %1499 = vsyncpa [#allocation3], 1

// kernel: convnet_forward.4
$region0: #{convnet_forward.4}
  #allocation0 [shape = 'u32[]', space=smem, size = 0x4, offset = 0x4, fixed_abs, tag = 'smem constant byte address 0x4 - core index']
  #allocation1 [shape = 'u32[144,128]{1,0:T(1,128)}', space=vmem, size = 0x12000, scoped, tag = 'internal scratch']
  %s0 = inlined_call_operand.vmem [shape: bf16[1,6,20,320], index: 0, kind: input, shape index: {}]
  %s1 = inlined_call_operand.vmem [shape: bf16[6,320,1024], index: 1, kind: input, shape index: {}]
  %s2 = inlined_call_operand.vmem [shape: f32[1,1024], index: 2, kind: input, shape index: {}]
  %s3 = inlined_call_operand.vmem [shape: f32[1,1024], index: 3, kind: input, shape index: {}]
  %s4 = inlined_call_operand.vmem [shape: bf16[20,256], index: 4, kind: output, shape index: {}]
  %s5 = sld [smem:[#allocation0]]
  $region26: #{convnet_forward.4} parent=0
    _
  %s7 = ssub.s32 1, %s5
  %s8 = scalar_select 0, %s7, %s5
  // Predicated region
  $region2: #{convnet_forward.4} parent=0 // pred_check
    _
  $region3: #{convnet_forward.4} parent=0 // pred_check_branch
    %10 = sbr.rel (0) target = $region5
  $region4: #{convnet_forward.4} parent=0 // pred_region
    _
  $region5: #{convnet_forward.4} parent=0 // pred_fallthru
    _
  // Predicated region
  $region6: #{convnet_forward.4} parent=0 // pred_check
    _
  $region7: #{convnet_forward.4} parent=0 // pred_check_branch
    %12 = sbr.rel (0) target = $region9
  $region8: #{convnet_forward.4} parent=0 // pred_region
    _
  $region9: #{convnet_forward.4} parent=0 // pred_fallthru
    _
  // Predicated region
  $region10: #{convnet_forward.4} parent=0 // pred_check
    _
  $region11: #{convnet_forward.4} parent=0 // pred_check_branch
    %14 = sbr.rel (0) target = $region13
  $region12: #{convnet_forward.4} parent=0 // pred_region
    _
  $region13: #{convnet_forward.4} parent=0 // pred_fallthru
    _
  // Predicated region
  $region14: #{convnet_forward.4} parent=0 // pred_check
    _
  $region15: #{convnet_forward.4} parent=0 // pred_check_branch
    %16 = sbr.rel (0) target = $region17
  $region16: #{convnet_forward.4} parent=0 // pred_region
    _
  $region17: #{convnet_forward.4} parent=0 // pred_fallthru
    _
  %v18 = vld [vmem:[%s0] sm:$0xff]
  %v19 = vld [vmem:[%s0 + $0x8] sm:$0xf]
  %v20 = vld [vmem:[%s0 + $0xc] sm:$0xff]
  %v21 = vld [vmem:[%s0 + $0x14] sm:$0xf]
  %v22 = vld [vmem:[%s0 + $0x18] sm:$0x33]
  %v23 = vld [vmem:[%s0 + $0x20] sm:$0x3]
  %v24 = vld [vmem:[%s1] sm:$0xff]
  %v25 = vld [vmem:[%s1 + $0x8] sm:$0xff]
  %v26 = vld [vmem:[%s1 + $0x10] sm:$0xff]
  %v27 = vld [vmem:[%s1 + $0x18] sm:$0xff]
  %v28 = vld [vmem:[%s1 + $0x20] sm:$0xff]
  %v29 = vld [vmem:[%s1 + $0x28] sm:$0xff]
  %v30 = vld [vmem:[%s1 + $0x30] sm:$0xff]
  %v31 = vld [vmem:[%s1 + $0x38] sm:$0xff]
  %v32 = vld [vmem:[%s1 + $0x40] sm:$0xff]
  %v33 = vld [vmem:[%s1 + $0x48] sm:$0xff]
  %v34 = vld [vmem:[%s1 + $0x50] sm:$0xff]
  %v35 = vld [vmem:[%s1 + $0x58] sm:$0xff]
  %v36 = vld [vmem:[%s1 + $0x60] sm:$0xff]
  %v37 = vld [vmem:[%s1 + $0x68] sm:$0xff]
  %v38 = vld [vmem:[%s1 + $0x70] sm:$0xff]
  %v39 = vld [vmem:[%s1 + $0x78] sm:$0xff]
  %v40 = vld [vmem:[%s1 + $0x80] sm:$0xff]
  %v41 = vld [vmem:[%s1 + $0x88] sm:$0xff]
  %v42 = vld [vmem:[%s1 + $0x90] sm:$0xff]
  %v43 = vld [vmem:[%s1 + $0x98] sm:$0xff]
  %v44 = vld [vmem:[%s1 + $0xa0] sm:$0xff]
  %v45 = vld [vmem:[%s1 + $0xa8] sm:$0xff]
  %v46 = vld [vmem:[%s1 + $0xb0] sm:$0xff]
  %v47 = vld [vmem:[%s1 + $0xb8] sm:$0xff]
  %v48 = vld [vmem:[%s1 + $0xc0] sm:$0xff]
  %v49 = vld [vmem:[%s1 + $0xc8] sm:$0xff]
  %v50 = vld [vmem:[%s1 + $0xd0] sm:$0xff]
  %v51 = vld [vmem:[%s1 + $0xd8] sm:$0xff]
  %v52 = vld [vmem:[%s1 + $0xe0] sm:$0xff]
  %v53 = vld [vmem:[%s1 + $0xe8] sm:$0xff]
  %v54 = vld [vmem:[%s1 + $0xf0] sm:$0xff]
  %v55 = vld [vmem:[%s1 + $0xf8] sm:$0xff]
  %v56 = vld [vmem:[%s1 + $0x100] sm:$0xff]
  %v57 = vld [vmem:[%s1 + $0x108] sm:$0xff]
  %v58 = vld [vmem:[%s1 + $0x110] sm:$0xff]
  %v59 = vld [vmem:[%s1 + $0x118] sm:$0xff]
  %v60 = vld [vmem:[%s1 + $0x120] sm:$0xff]
  %v61 = vld [vmem:[%s1 + $0x128] sm:$0xff]
  %v62 = vld [vmem:[%s1 + $0x130] sm:$0xff]
  %v63 = vld [vmem:[%s1 + $0x138] sm:$0xff]
  %v64 = vld [vmem:[%s1 + $0x140] sm:$0xff]
  %v65 = vld [vmem:[%s1 + $0x148] sm:$0xff]
  %v66 = vld [vmem:[%s1 + $0x150] sm:$0xff]
  %v67 = vld [vmem:[%s1 + $0x158] sm:$0xff]
  %v68 = vld [vmem:[%s1 + $0x160] sm:$0xff]
  %v69 = vld [vmem:[%s1 + $0x168] sm:$0xff]
  %v70 = vld [vmem:[%s1 + $0x170] sm:$0xff]
  %v71 = vld [vmem:[%s1 + $0x178] sm:$0xff]
  %v72 = vld [vmem:[%s1 + $0x180] sm:$0xff]
  %v73 = vld [vmem:[%s1 + $0x188] sm:$0xff]
  %v74 = vld [vmem:[%s1 + $0x190] sm:$0xff]
  %v75 = vld [vmem:[%s1 + $0x198] sm:$0xff]
  %v76 = vld [vmem:[%s1 + $0x1a0] sm:$0xff]
  %v77 = vld [vmem:[%s1 + $0x1a8] sm:$0xff]
  %v78 = vld [vmem:[%s1 + $0x1b0] sm:$0xff]
  %v79 = vld [vmem:[%s1 + $0x1b8] sm:$0xff]
  %v80 = vld [vmem:[%s1 + $0x1c0] sm:$0xff]
  %v81 = vld [vmem:[%s1 + $0x1c8] sm:$0xff]
  %v82 = vld [vmem:[%s1 + $0x1d0] sm:$0xff]
  %v83 = vld [vmem:[%s1 + $0x1d8] sm:$0xff]
  %v84 = vld [vmem:[%s1 + $0x1e0] sm:$0xff]
  %v85 = vld [vmem:[%s1 + $0x1e8] sm:$0xff]
  %v86 = vld [vmem:[%s1 + $0x1f0] sm:$0xff]
  %v87 = vld [vmem:[%s1 + $0x1f8] sm:$0xff]
  %v88 = vld [vmem:[%s1 + $0x200] sm:$0xff]
  %v89 = vld [vmem:[%s1 + $0x208] sm:$0xff]
  %v90 = vld [vmem:[%s1 + $0x210] sm:$0xff]
  %v91 = vld [vmem:[%s1 + $0x218] sm:$0xff]
  %v92 = vld [vmem:[%s1 + $0x220] sm:$0xff]
  %v93 = vld [vmem:[%s1 + $0x228] sm:$0xff]
  %v94 = vld [vmem:[%s1 + $0x230] sm:$0xff]
  %v95 = vld [vmem:[%s1 + $0x238] sm:$0xff]
  %v96 = vld [vmem:[%s1 + $0x240] sm:$0xff]
  %v97 = vld [vmem:[%s1 + $0x248] sm:$0xff]
  %v98 = vld [vmem:[%s1 + $0x250] sm:$0xff]
  %v99 = vld [vmem:[%s1 + $0x258] sm:$0xff]
  %v100 = vld [vmem:[%s1 + $0x260] sm:$0xff]
  %v101 = vld [vmem:[%s1 + $0x268] sm:$0xff]
  %v102 = vld [vmem:[%s1 + $0x270] sm:$0xff]
  %v103 = vld [vmem:[%s1 + $0x278] sm:$0xff]
  %v104 = vld [vmem:[%s1 + $0x280] sm:$0xff]
  %v105 = vld [vmem:[%s1 + $0x288] sm:$0xff]
  %v106 = vld [vmem:[%s1 + $0x290] sm:$0xff]
  %v107 = vld [vmem:[%s1 + $0x298] sm:$0xff]
  %v108 = vld [vmem:[%s1 + $0x2a0] sm:$0xff]
  %v109 = vld [vmem:[%s1 + $0x2a8] sm:$0xff]
  %v110 = vld [vmem:[%s1 + $0x2b0] sm:$0xff]
  %v111 = vld [vmem:[%s1 + $0x2b8] sm:$0xff]
  %v112 = vld [vmem:[%s1 + $0x2c0] sm:$0xff]
  %v113 = vld [vmem:[%s1 + $0x2c8] sm:$0xff]
  %v114 = vld [vmem:[%s1 + $0x2d0] sm:$0xff]
  %v115 = vld [vmem:[%s1 + $0x2d8] sm:$0xff]
  %v116 = vld [vmem:[%s1 + $0x2e0] sm:$0xff]
  %v117 = vld [vmem:[%s1 + $0x2e8] sm:$0xff]
  %v118 = vld [vmem:[%s1 + $0x2f0] sm:$0xff]
  %v119 = vld [vmem:[%s1 + $0x2f8] sm:$0xff]
  %v120 = vld [vmem:[%s1 + $0x300] sm:$0xff]
  %v121 = vld [vmem:[%s1 + $0x308] sm:$0xff]
  %v122 = vld [vmem:[%s1 + $0x310] sm:$0xff]
  %v123 = vld [vmem:[%s1 + $0x318] sm:$0xff]
  %v124 = vld [vmem:[%s1 + $0x320] sm:$0xff]
  %v125 = vld [vmem:[%s1 + $0x328] sm:$0xff]
  %v126 = vld [vmem:[%s1 + $0x330] sm:$0xff]
  %v127 = vld [vmem:[%s1 + $0x338] sm:$0xff]
  %v128 = vld [vmem:[%s1 + $0x340] sm:$0xff]
  %v129 = vld [vmem:[%s1 + $0x348] sm:$0xff]
  %v130 = vld [vmem:[%s1 + $0x350] sm:$0xff]
  %v131 = vld [vmem:[%s1 + $0x358] sm:$0xff]
  %v132 = vld [vmem:[%s1 + $0x360] sm:$0xff]
  %v133 = vld [vmem:[%s1 + $0x368] sm:$0xff]
  %v134 = vld [vmem:[%s1 + $0x370] sm:$0xff]
  %v135 = vld [vmem:[%s1 + $0x378] sm:$0xff]
  %v136 = vld [vmem:[%s1 + $0x380] sm:$0xff]
  %v137 = vld [vmem:[%s1 + $0x388] sm:$0xff]
  %v138 = vld [vmem:[%s1 + $0x390] sm:$0xff]
  %v139 = vld [vmem:[%s1 + $0x398] sm:$0xff]
  %v140 = vld [vmem:[%s1 + $0x3a0] sm:$0xff]
  %v141 = vld [vmem:[%s1 + $0x3a8] sm:$0xff]
  %v142 = vld [vmem:[%s1 + $0x3b0] sm:$0xff]
  %v143 = vld [vmem:[%s1 + $0x3b8] sm:$0xff]
  %v144 = vld [vmem:[%s1 + $0x3c0] sm:$0xff]
  %v145 = vld [vmem:[%s1 + $0x3c8] sm:$0xff]
  %v146 = vld [vmem:[%s1 + $0x3d0] sm:$0xff]
  %v147 = vld [vmem:[%s1 + $0x3d8] sm:$0xff]
  %v148 = vld [vmem:[%s1 + $0x3e0] sm:$0xff]
  %v149 = vld [vmem:[%s1 + $0x3e8] sm:$0xff]
  %v150 = vld [vmem:[%s1 + $0x3f0] sm:$0xff]
  %v151 = vld [vmem:[%s1 + $0x3f8] sm:$0xff]
  %v152 = vld [vmem:[%s1 + $0x400] sm:$0xff]
  %v153 = vld [vmem:[%s1 + $0x408] sm:$0xff]
  %v154 = vld [vmem:[%s1 + $0x410] sm:$0xff]
  %v155 = vld [vmem:[%s1 + $0x418] sm:$0xff]
  %v156 = vld [vmem:[%s1 + $0x420] sm:$0xff]
  %v157 = vld [vmem:[%s1 + $0x428] sm:$0xff]
  %v158 = vld [vmem:[%s1 + $0x430] sm:$0xff]
  %v159 = vld [vmem:[%s1 + $0x438] sm:$0xff]
  %v160 = vld [vmem:[%s1 + $0x440] sm:$0xff]
  %v161 = vld [vmem:[%s1 + $0x448] sm:$0xff]
  %v162 = vld [vmem:[%s1 + $0x450] sm:$0xff]
  %v163 = vld [vmem:[%s1 + $0x458] sm:$0xff]
  %v164 = vld [vmem:[%s1 + $0x460] sm:$0xff]
  %v165 = vld [vmem:[%s1 + $0x468] sm:$0xff]
  %v166 = vld [vmem:[%s1 + $0x470] sm:$0xff]
  %v167 = vld [vmem:[%s1 + $0x478] sm:$0xff]
  %v168 = vld [vmem:[%s1 + $0x480] sm:$0xff]
  %v169 = vld [vmem:[%s1 + $0x488] sm:$0xff]
  %v170 = vld [vmem:[%s1 + $0x490] sm:$0xff]
  %v171 = vld [vmem:[%s1 + $0x498] sm:$0xff]
  %v172 = vld [vmem:[%s1 + $0x4a0] sm:$0xff]
  %v173 = vld [vmem:[%s1 + $0x4a8] sm:$0xff]
  %v174 = vld [vmem:[%s1 + $0x4b0] sm:$0xff]
  %v175 = vld [vmem:[%s1 + $0x4b8] sm:$0xff]
  %v176 = vld [vmem:[%s1 + $0x4c0] sm:$0xff]
  %v177 = vld [vmem:[%s1 + $0x4c8] sm:$0xff]
  %v178 = vld [vmem:[%s1 + $0x4d0] sm:$0xff]
  %v179 = vld [vmem:[%s1 + $0x4d8] sm:$0xff]
  %v180 = vld [vmem:[%s1 + $0x4e0] sm:$0xff]
  %v181 = vld [vmem:[%s1 + $0x4e8] sm:$0xff]
  %v182 = vld [vmem:[%s1 + $0x4f0] sm:$0xff]
  %v183 = vld [vmem:[%s1 + $0x4f8] sm:$0xff]
  %s184 = scalar_lea.vmem %s0, 36
  %v185 = vld [vmem:[%s184] sm:$0xff]
  %v186 = vld [vmem:[%s184 + $0x8] sm:$0xf]
  %v187 = vld [vmem:[%s184 + $0xc] sm:$0xff]
  %v188 = vld [vmem:[%s184 + $0x14] sm:$0xf]
  %v189 = vld [vmem:[%s184 + $0x18] sm:$0x33]
  %v190 = vld [vmem:[%s184 + $0x20] sm:$0x3]
  %s191 = scalar_lea.vmem %s1, 1280
  %v192 = vld [vmem:[%s191] sm:$0xff]
  %v193 = vld [vmem:[%s191 + $0x8] sm:$0xff]
  %v194 = vld [vmem:[%s191 + $0x10] sm:$0xff]
  %v195 = vld [vmem:[%s191 + $0x18] sm:$0xff]
  %v196 = vld [vmem:[%s191 + $0x20] sm:$0xff]
  %v197 = vld [vmem:[%s191 + $0x28] sm:$0xff]
  %v198 = vld [vmem:[%s191 + $0x30] sm:$0xff]
  %v199 = vld [vmem:[%s191 + $0x38] sm:$0xff]
  %v200 = vld [vmem:[%s191 + $0x40] sm:$0xff]
  %v201 = vld [vmem:[%s191 + $0x48] sm:$0xff]
  %v202 = vld [vmem:[%s191 + $0x50] sm:$0xff]
  %v203 = vld [vmem:[%s191 + $0x58] sm:$0xff]
  %v204 = vld [vmem:[%s191 + $0x60] sm:$0xff]
  %v205 = vld [vmem:[%s191 + $0x68] sm:$0xff]
  %v206 = vld [vmem:[%s191 + $0x70] sm:$0xff]
  %v207 = vld [vmem:[%s191 + $0x78] sm:$0xff]
  %v208 = vld [vmem:[%s191 + $0x80] sm:$0xff]
  %v209 = vld [vmem:[%s191 + $0x88] sm:$0xff]
  %v210 = vld [vmem:[%s191 + $0x90] sm:$0xff]
  %v211 = vld [vmem:[%s191 + $0x98] sm:$0xff]
  %v212 = vld [vmem:[%s191 + $0xa0] sm:$0xff]
  %v213 = vld [vmem:[%s191 + $0xa8] sm:$0xff]
  %v214 = vld [vmem:[%s191 + $0xb0] sm:$0xff]
  %v215 = vld [vmem:[%s191 + $0xb8] sm:$0xff]
  %v216 = vld [vmem:[%s191 + $0xc0] sm:$0xff]
  %v217 = vld [vmem:[%s191 + $0xc8] sm:$0xff]
  %v218 = vld [vmem:[%s191 + $0xd0] sm:$0xff]
  %v219 = vld [vmem:[%s191 + $0xd8] sm:$0xff]
  %v220 = vld [vmem:[%s191 + $0xe0] sm:$0xff]
  %v221 = vld [vmem:[%s191 + $0xe8] sm:$0xff]
  %v222 = vld [vmem:[%s191 + $0xf0] sm:$0xff]
  %v223 = vld [vmem:[%s191 + $0xf8] sm:$0xff]
  %v224 = vld [vmem:[%s191 + $0x100] sm:$0xff]
  %v225 = vld [vmem:[%s191 + $0x108] sm:$0xff]
  %v226 = vld [vmem:[%s191 + $0x110] sm:$0xff]
  %v227 = vld [vmem:[%s191 + $0x118] sm:$0xff]
  %v228 = vld [vmem:[%s191 + $0x120] sm:$0xff]
  %v229 = vld [vmem:[%s191 + $0x128] sm:$0xff]
  %v230 = vld [vmem:[%s191 + $0x130] sm:$0xff]
  %v231 = vld [vmem:[%s191 + $0x138] sm:$0xff]
  %v232 = vld [vmem:[%s191 + $0x140] sm:$0xff]
  %v233 = vld [vmem:[%s191 + $0x148] sm:$0xff]
  %v234 = vld [vmem:[%s191 + $0x150] sm:$0xff]
  %v235 = vld [vmem:[%s191 + $0x158] sm:$0xff]
  %v236 = vld [vmem:[%s191 + $0x160] sm:$0xff]
  %v237 = vld [vmem:[%s191 + $0x168] sm:$0xff]
  %v238 = vld [vmem:[%s191 + $0x170] sm:$0xff]
  %v239 = vld [vmem:[%s191 + $0x178] sm:$0xff]
  %v240 = vld [vmem:[%s191 + $0x180] sm:$0xff]
  %v241 = vld [vmem:[%s191 + $0x188] sm:$0xff]
  %v242 = vld [vmem:[%s191 + $0x190] sm:$0xff]
  %v243 = vld [vmem:[%s191 + $0x198] sm:$0xff]
  %v244 = vld [vmem:[%s191 + $0x1a0] sm:$0xff]
  %v245 = vld [vmem:[%s191 + $0x1a8] sm:$0xff]
  %v246 = vld [vmem:[%s191 + $0x1b0] sm:$0xff]
  %v247 = vld [vmem:[%s191 + $0x1b8] sm:$0xff]
  %v248 = vld [vmem:[%s191 + $0x1c0] sm:$0xff]
  %v249 = vld [vmem:[%s191 + $0x1c8] sm:$0xff]
  %v250 = vld [vmem:[%s191 + $0x1d0] sm:$0xff]
  %v251 = vld [vmem:[%s191 + $0x1d8] sm:$0xff]
  %v252 = vld [vmem:[%s191 + $0x1e0] sm:$0xff]
  %v253 = vld [vmem:[%s191 + $0x1e8] sm:$0xff]
  %v254 = vld [vmem:[%s191 + $0x1f0] sm:$0xff]
  %v255 = vld [vmem:[%s191 + $0x1f8] sm:$0xff]
  %v256 = vld [vmem:[%s191 + $0x200] sm:$0xff]
  %v257 = vld [vmem:[%s191 + $0x208] sm:$0xff]
  %v258 = vld [vmem:[%s191 + $0x210] sm:$0xff]
  %v259 = vld [vmem:[%s191 + $0x218] sm:$0xff]
  %v260 = vld [vmem:[%s191 + $0x220] sm:$0xff]
  %v261 = vld [vmem:[%s191 + $0x228] sm:$0xff]
  %v262 = vld [vmem:[%s191 + $0x230] sm:$0xff]
  %v263 = vld [vmem:[%s191 + $0x238] sm:$0xff]
  %v264 = vld [vmem:[%s191 + $0x240] sm:$0xff]
  %v265 = vld [vmem:[%s191 + $0x248] sm:$0xff]
  %v266 = vld [vmem:[%s191 + $0x250] sm:$0xff]
  %v267 = vld [vmem:[%s191 + $0x258] sm:$0xff]
  %v268 = vld [vmem:[%s191 + $0x260] sm:$0xff]
  %v269 = vld [vmem:[%s191 + $0x268] sm:$0xff]
  %v270 = vld [vmem:[%s191 + $0x270] sm:$0xff]
  %v271 = vld [vmem:[%s191 + $0x278] sm:$0xff]
  %v272 = vld [vmem:[%s191 + $0x280] sm:$0xff]
  %v273 = vld [vmem:[%s191 + $0x288] sm:$0xff]
  %v274 = vld [vmem:[%s191 + $0x290] sm:$0xff]
  %v275 = vld [vmem:[%s191 + $0x298] sm:$0xff]
  %v276 = vld [vmem:[%s191 + $0x2a0] sm:$0xff]
  %v277 = vld [vmem:[%s191 + $0x2a8] sm:$0xff]
  %v278 = vld [vmem:[%s191 + $0x2b0] sm:$0xff]
  %v279 = vld [vmem:[%s191 + $0x2b8] sm:$0xff]
  %v280 = vld [vmem:[%s191 + $0x2c0] sm:$0xff]
  %v281 = vld [vmem:[%s191 + $0x2c8] sm:$0xff]
  %v282 = vld [vmem:[%s191 + $0x2d0] sm:$0xff]
  %v283 = vld [vmem:[%s191 + $0x2d8] sm:$0xff]
  %v284 = vld [vmem:[%s191 + $0x2e0] sm:$0xff]
  %v285 = vld [vmem:[%s191 + $0x2e8] sm:$0xff]
  %v286 = vld [vmem:[%s191 + $0x2f0] sm:$0xff]
  %v287 = vld [vmem:[%s191 + $0x2f8] sm:$0xff]
  %v288 = vld [vmem:[%s191 + $0x300] sm:$0xff]
  %v289 = vld [vmem:[%s191 + $0x308] sm:$0xff]
  %v290 = vld [vmem:[%s191 + $0x310] sm:$0xff]
  %v291 = vld [vmem:[%s191 + $0x318] sm:$0xff]
  %v292 = vld [vmem:[%s191 + $0x320] sm:$0xff]
  %v293 = vld [vmem:[%s191 + $0x328] sm:$0xff]
  %v294 = vld [vmem:[%s191 + $0x330] sm:$0xff]
  %v295 = vld [vmem:[%s191 + $0x338] sm:$0xff]
  %v296 = vld [vmem:[%s191 + $0x340] sm:$0xff]
  %v297 = vld [vmem:[%s191 + $0x348] sm:$0xff]
  %v298 = vld [vmem:[%s191 + $0x350] sm:$0xff]
  %v299 = vld [vmem:[%s191 + $0x358] sm:$0xff]
  %v300 = vld [vmem:[%s191 + $0x360] sm:$0xff]
  %v301 = vld [vmem:[%s191 + $0x368] sm:$0xff]
  %v302 = vld [vmem:[%s191 + $0x370] sm:$0xff]
  %v303 = vld [vmem:[%s191 + $0x378] sm:$0xff]
  %v304 = vld [vmem:[%s191 + $0x380] sm:$0xff]
  %v305 = vld [vmem:[%s191 + $0x388] sm:$0xff]
  %v306 = vld [vmem:[%s191 + $0x390] sm:$0xff]
  %v307 = vld [vmem:[%s191 + $0x398] sm:$0xff]
  %v308 = vld [vmem:[%s191 + $0x3a0] sm:$0xff]
  %v309 = vld [vmem:[%s191 + $0x3a8] sm:$0xff]
  %v310 = vld [vmem:[%s191 + $0x3b0] sm:$0xff]
  %v311 = vld [vmem:[%s191 + $0x3b8] sm:$0xff]
  %v312 = vld [vmem:[%s191 + $0x3c0] sm:$0xff]
  %v313 = vld [vmem:[%s191 + $0x3c8] sm:$0xff]
  %v314 = vld [vmem:[%s191 + $0x3d0] sm:$0xff]
  %v315 = vld [vmem:[%s191 + $0x3d8] sm:$0xff]
  %v316 = vld [vmem:[%s191 + $0x3e0] sm:$0xff]
  %v317 = vld [vmem:[%s191 + $0x3e8] sm:$0xff]
  %v318 = vld [vmem:[%s191 + $0x3f0] sm:$0xff]
  %v319 = vld [vmem:[%s191 + $0x3f8] sm:$0xff]
  %v320 = vld [vmem:[%s191 + $0x400] sm:$0xff]
  %v321 = vld [vmem:[%s191 + $0x408] sm:$0xff]
  %v322 = vld [vmem:[%s191 + $0x410] sm:$0xff]
  %v323 = vld [vmem:[%s191 + $0x418] sm:$0xff]
  %v324 = vld [vmem:[%s191 + $0x420] sm:$0xff]
  %v325 = vld [vmem:[%s191 + $0x428] sm:$0xff]
  %v326 = vld [vmem:[%s191 + $0x430] sm:$0xff]
  %v327 = vld [vmem:[%s191 + $0x438] sm:$0xff]
  %v328 = vld [vmem:[%s191 + $0x440] sm:$0xff]
  %v329 = vld [vmem:[%s191 + $0x448] sm:$0xff]
  %v330 = vld [vmem:[%s191 + $0x450] sm:$0xff]
  %v331 = vld [vmem:[%s191 + $0x458] sm:$0xff]
  %v332 = vld [vmem:[%s191 + $0x460] sm:$0xff]
  %v333 = vld [vmem:[%s191 + $0x468] sm:$0xff]
  %v334 = vld [vmem:[%s191 + $0x470] sm:$0xff]
  %v335 = vld [vmem:[%s191 + $0x478] sm:$0xff]
  %v336 = vld [vmem:[%s191 + $0x480] sm:$0xff]
  %v337 = vld [vmem:[%s191 + $0x488] sm:$0xff]
  %v338 = vld [vmem:[%s191 + $0x490] sm:$0xff]
  %v339 = vld [vmem:[%s191 + $0x498] sm:$0xff]
  %v340 = vld [vmem:[%s191 + $0x4a0] sm:$0xff]
  %v341 = vld [vmem:[%s191 + $0x4a8] sm:$0xff]
  %v342 = vld [vmem:[%s191 + $0x4b0] sm:$0xff]
  %v343 = vld [vmem:[%s191 + $0x4b8] sm:$0xff]
  %v344 = vld [vmem:[%s191 + $0x4c0] sm:$0xff]
  %v345 = vld [vmem:[%s191 + $0x4c8] sm:$0xff]
  %v346 = vld [vmem:[%s191 + $0x4d0] sm:$0xff]
  %v347 = vld [vmem:[%s191 + $0x4d8] sm:$0xff]
  %v348 = vld [vmem:[%s191 + $0x4e0] sm:$0xff]
  %v349 = vld [vmem:[%s191 + $0x4e8] sm:$0xff]
  %v350 = vld [vmem:[%s191 + $0x4f0] sm:$0xff]
  %v351 = vld [vmem:[%s191 + $0x4f8] sm:$0xff]
  %v358 = vunpack.c.l.b16 %v185
  %v359 = vunpack.c.h.b16 %v185
  %v360 = vunpack.c.l.b16 %v186
  %v361 = vunpack.c.l.b16 %v187
  %v362 = vunpack.c.h.b16 %v187
  %v363 = vunpack.c.l.b16 %v188
  %v364 = vunpack.c.l.b16 %v189
  %v365 = vunpack.c.h.b16 %v189
  %v366 = vunpack.c.l.b16 %v190
  %v367 = vpack.c.b16 %v361, %v358
  %v368 = vpack.c.b16 %v362, %v359
  %v369 = vpack.c.b16 %v363, %v360
  %v370 = vpack.c.b16 %v364, %v364
  %v371 = vpack.c.b16 %v365, %v365
  %v372 = vpack.c.b16 %v366, %v366
  %v537 = vunpack.c.l.b16 %v192
  %v538 = vunpack.c.h.b16 %v192
  %v539 = vunpack.c.l.b16 %v193
  %v540 = vunpack.c.h.b16 %v193
  %v541 = vunpack.c.l.b16 %v194
  %v542 = vunpack.c.h.b16 %v194
  %v543 = vunpack.c.l.b16 %v195
  %v544 = vunpack.c.h.b16 %v195
  %v545 = vunpack.c.l.b16 %v196
  %v546 = vunpack.c.h.b16 %v196
  %v547 = vunpack.c.l.b16 %v197
  %v548 = vunpack.c.h.b16 %v197
  %v549 = vunpack.c.l.b16 %v198
  %v550 = vunpack.c.h.b16 %v198
  %v551 = vunpack.c.l.b16 %v199
  %v552 = vunpack.c.h.b16 %v199
  %v553 = vunpack.c.l.b16 %v200
  %v554 = vunpack.c.h.b16 %v200
  %v555 = vunpack.c.l.b16 %v201
  %v556 = vunpack.c.h.b16 %v201
  %v557 = vunpack.c.l.b16 %v202
  %v558 = vunpack.c.h.b16 %v202
  %v559 = vunpack.c.l.b16 %v203
  %v560 = vunpack.c.h.b16 %v203
  %v561 = vunpack.c.l.b16 %v204
  %v562 = vunpack.c.h.b16 %v204
  %v563 = vunpack.c.l.b16 %v205
  %v564 = vunpack.c.h.b16 %v205
  %v565 = vunpack.c.l.b16 %v206
  %v566 = vunpack.c.h.b16 %v206
  %v567 = vunpack.c.l.b16 %v207
  %v568 = vunpack.c.h.b16 %v207
  %v569 = vunpack.c.l.b16 %v208
  %v570 = vunpack.c.h.b16 %v208
  %v571 = vunpack.c.l.b16 %v209
  %v572 = vunpack.c.h.b16 %v209
  %v573 = vunpack.c.l.b16 %v210
  %v574 = vunpack.c.h.b16 %v210
  %v575 = vunpack.c.l.b16 %v211
  %v576 = vunpack.c.h.b16 %v211
  %v577 = vunpack.c.l.b16 %v212
  %v578 = vunpack.c.h.b16 %v212
  %v579 = vunpack.c.l.b16 %v213
  %v580 = vunpack.c.h.b16 %v213
  %v581 = vunpack.c.l.b16 %v214
  %v582 = vunpack.c.h.b16 %v214
  %v583 = vunpack.c.l.b16 %v215
  %v584 = vunpack.c.h.b16 %v215
  %v585 = vunpack.c.l.b16 %v216
  %v586 = vunpack.c.h.b16 %v216
  %v587 = vunpack.c.l.b16 %v217
  %v588 = vunpack.c.h.b16 %v217
  %v589 = vunpack.c.l.b16 %v218
  %v590 = vunpack.c.h.b16 %v218
  %v591 = vunpack.c.l.b16 %v219
  %v592 = vunpack.c.h.b16 %v219
  %v593 = vunpack.c.l.b16 %v220
  %v594 = vunpack.c.h.b16 %v220
  %v595 = vunpack.c.l.b16 %v221
  %v596 = vunpack.c.h.b16 %v221
  %v597 = vunpack.c.l.b16 %v222
  %v598 = vunpack.c.h.b16 %v222
  %v599 = vunpack.c.l.b16 %v223
  %v600 = vunpack.c.h.b16 %v223
  %v601 = vunpack.c.l.b16 %v224
  %v602 = vunpack.c.h.b16 %v224
  %v603 = vunpack.c.l.b16 %v225
  %v604 = vunpack.c.h.b16 %v225
  %v605 = vunpack.c.l.b16 %v226
  %v606 = vunpack.c.h.b16 %v226
  %v607 = vunpack.c.l.b16 %v227
  %v608 = vunpack.c.h.b16 %v227
  %v609 = vunpack.c.l.b16 %v228
  %v610 = vunpack.c.h.b16 %v228
  %v611 = vunpack.c.l.b16 %v229
  %v612 = vunpack.c.h.b16 %v229
  %v613 = vunpack.c.l.b16 %v230
  %v614 = vunpack.c.h.b16 %v230
  %v615 = vunpack.c.l.b16 %v231
  %v616 = vunpack.c.h.b16 %v231
  %v617 = vunpack.c.l.b16 %v232
  %v618 = vunpack.c.h.b16 %v232
  %v619 = vunpack.c.l.b16 %v233
  %v620 = vunpack.c.h.b16 %v233
  %v621 = vunpack.c.l.b16 %v234
  %v622 = vunpack.c.h.b16 %v234
  %v623 = vunpack.c.l.b16 %v235
  %v624 = vunpack.c.h.b16 %v235
  %v625 = vunpack.c.l.b16 %v236
  %v626 = vunpack.c.h.b16 %v236
  %v627 = vunpack.c.l.b16 %v237
  %v628 = vunpack.c.h.b16 %v237
  %v629 = vunpack.c.l.b16 %v238
  %v630 = vunpack.c.h.b16 %v238
  %v631 = vunpack.c.l.b16 %v239
  %v632 = vunpack.c.h.b16 %v239
  %v633 = vunpack.c.l.b16 %v240
  %v634 = vunpack.c.h.b16 %v240
  %v635 = vunpack.c.l.b16 %v241
  %v636 = vunpack.c.h.b16 %v241
  %v637 = vunpack.c.l.b16 %v242
  %v638 = vunpack.c.h.b16 %v242
  %v639 = vunpack.c.l.b16 %v243
  %v640 = vunpack.c.h.b16 %v243
  %v641 = vunpack.c.l.b16 %v244
  %v642 = vunpack.c.h.b16 %v244
  %v643 = vunpack.c.l.b16 %v245
  %v644 = vunpack.c.h.b16 %v245
  %v645 = vunpack.c.l.b16 %v246
  %v646 = vunpack.c.h.b16 %v246
  %v647 = vunpack.c.l.b16 %v247
  %v648 = vunpack.c.h.b16 %v247
  %v649 = vunpack.c.l.b16 %v248
  %v650 = vunpack.c.h.b16 %v248
  %v651 = vunpack.c.l.b16 %v249
  %v652 = vunpack.c.h.b16 %v249
  %v653 = vunpack.c.l.b16 %v250
  %v654 = vunpack.c.h.b16 %v250
  %v655 = vunpack.c.l.b16 %v251
  %v656 = vunpack.c.h.b16 %v251
  %v657 = vunpack.c.l.b16 %v252
  %v658 = vunpack.c.h.b16 %v252
  %v659 = vunpack.c.l.b16 %v253
  %v660 = vunpack.c.h.b16 %v253
  %v661 = vunpack.c.l.b16 %v254
  %v662 = vunpack.c.h.b16 %v254
  %v663 = vunpack.c.l.b16 %v255
  %v664 = vunpack.c.h.b16 %v255
  %v665 = vunpack.c.l.b16 %v256
  %v666 = vunpack.c.h.b16 %v256
  %v667 = vunpack.c.l.b16 %v257
  %v668 = vunpack.c.h.b16 %v257
  %v669 = vunpack.c.l.b16 %v258
  %v670 = vunpack.c.h.b16 %v258
  %v671 = vunpack.c.l.b16 %v259
  %v672 = vunpack.c.h.b16 %v259
  %v673 = vunpack.c.l.b16 %v260
  %v674 = vunpack.c.h.b16 %v260
  %v675 = vunpack.c.l.b16 %v261
  %v676 = vunpack.c.h.b16 %v261
  %v677 = vunpack.c.l.b16 %v262
  %v678 = vunpack.c.h.b16 %v262
  %v679 = vunpack.c.l.b16 %v263
  %v680 = vunpack.c.h.b16 %v263
  %v681 = vunpack.c.l.b16 %v264
  %v682 = vunpack.c.h.b16 %v264
  %v683 = vunpack.c.l.b16 %v265
  %v684 = vunpack.c.h.b16 %v265
  %v685 = vunpack.c.l.b16 %v266
  %v686 = vunpack.c.h.b16 %v266
  %v687 = vunpack.c.l.b16 %v267
  %v688 = vunpack.c.h.b16 %v267
  %v689 = vunpack.c.l.b16 %v268
  %v690 = vunpack.c.h.b16 %v268
  %v691 = vunpack.c.l.b16 %v269
  %v692 = vunpack.c.h.b16 %v269
  %v693 = vunpack.c.l.b16 %v270
  %v694 = vunpack.c.h.b16 %v270
  %v695 = vunpack.c.l.b16 %v271
  %v696 = vunpack.c.h.b16 %v271
  %v697 = vunpack.c.l.b16 %v272
  %v698 = vunpack.c.h.b16 %v272
  %v699 = vunpack.c.l.b16 %v273
  %v700 = vunpack.c.h.b16 %v273
  %v701 = vunpack.c.l.b16 %v274
  %v702 = vunpack.c.h.b16 %v274
  %v703 = vunpack.c.l.b16 %v275
  %v704 = vunpack.c.h.b16 %v275
  %v705 = vunpack.c.l.b16 %v276
  %v706 = vunpack.c.h.b16 %v276
  %v707 = vunpack.c.l.b16 %v277
  %v708 = vunpack.c.h.b16 %v277
  %v709 = vunpack.c.l.b16 %v278
  %v710 = vunpack.c.h.b16 %v278
  %v711 = vunpack.c.l.b16 %v279
  %v712 = vunpack.c.h.b16 %v279
  %v713 = vunpack.c.l.b16 %v280
  %v714 = vunpack.c.h.b16 %v280
  %v715 = vunpack.c.l.b16 %v281
  %v716 = vunpack.c.h.b16 %v281
  %v717 = vunpack.c.l.b16 %v282
  %v718 = vunpack.c.h.b16 %v282
  %v719 = vunpack.c.l.b16 %v283
  %v720 = vunpack.c.h.b16 %v283
  %v721 = vunpack.c.l.b16 %v284
  %v722 = vunpack.c.h.b16 %v284
  %v723 = vunpack.c.l.b16 %v285
  %v724 = vunpack.c.h.b16 %v285
  %v725 = vunpack.c.l.b16 %v286
  %v726 = vunpack.c.h.b16 %v286
  %v727 = vunpack.c.l.b16 %v287
  %v728 = vunpack.c.h.b16 %v287
  %v729 = vunpack.c.l.b16 %v288
  %v730 = vunpack.c.h.b16 %v288
  %v731 = vunpack.c.l.b16 %v289
  %v732 = vunpack.c.h.b16 %v289
  %v733 = vunpack.c.l.b16 %v290
  %v734 = vunpack.c.h.b16 %v290
  %v735 = vunpack.c.l.b16 %v291
  %v736 = vunpack.c.h.b16 %v291
  %v737 = vunpack.c.l.b16 %v292
  %v738 = vunpack.c.h.b16 %v292
  %v739 = vunpack.c.l.b16 %v293
  %v740 = vunpack.c.h.b16 %v293
  %v741 = vunpack.c.l.b16 %v294
  %v742 = vunpack.c.h.b16 %v294
  %v743 = vunpack.c.l.b16 %v295
  %v744 = vunpack.c.h.b16 %v295
  %v745 = vunpack.c.l.b16 %v296
  %v746 = vunpack.c.h.b16 %v296
  %v747 = vunpack.c.l.b16 %v297
  %v748 = vunpack.c.h.b16 %v297
  %v749 = vunpack.c.l.b16 %v298
  %v750 = vunpack.c.h.b16 %v298
  %v751 = vunpack.c.l.b16 %v299
  %v752 = vunpack.c.h.b16 %v299
  %v753 = vunpack.c.l.b16 %v300
  %v754 = vunpack.c.h.b16 %v300
  %v755 = vunpack.c.l.b16 %v301
  %v756 = vunpack.c.h.b16 %v301
  %v757 = vunpack.c.l.b16 %v302
  %v758 = vunpack.c.h.b16 %v302
  %v759 = vunpack.c.l.b16 %v303
  %v760 = vunpack.c.h.b16 %v303
  %v761 = vunpack.c.l.b16 %v304
  %v762 = vunpack.c.h.b16 %v304
  %v763 = vunpack.c.l.b16 %v305
  %v764 = vunpack.c.h.b16 %v305
  %v765 = vunpack.c.l.b16 %v306
  %v766 = vunpack.c.h.b16 %v306
  %v767 = vunpack.c.l.b16 %v307
  %v768 = vunpack.c.h.b16 %v307
  %v769 = vunpack.c.l.b16 %v308
  %v770 = vunpack.c.h.b16 %v308
  %v771 = vunpack.c.l.b16 %v309
  %v772 = vunpack.c.h.b16 %v309
  %v773 = vunpack.c.l.b16 %v310
  %v774 = vunpack.c.h.b16 %v310
  %v775 = vunpack.c.l.b16 %v311
  %v776 = vunpack.c.h.b16 %v311
  %v777 = vunpack.c.l.b16 %v312
  %v778 = vunpack.c.h.b16 %v312
  %v779 = vunpack.c.l.b16 %v313
  %v780 = vunpack.c.h.b16 %v313
  %v781 = vunpack.c.l.b16 %v314
  %v782 = vunpack.c.h.b16 %v314
  %v783 = vunpack.c.l.b16 %v315
  %v784 = vunpack.c.h.b16 %v315
  %v785 = vunpack.c.l.b16 %v316
  %v786 = vunpack.c.h.b16 %v316
  %v787 = vunpack.c.l.b16 %v317
  %v788 = vunpack.c.h.b16 %v317
  %v789 = vunpack.c.l.b16 %v318
  %v790 = vunpack.c.h.b16 %v318
  %v791 = vunpack.c.l.b16 %v319
  %v792 = vunpack.c.h.b16 %v319
  %v793 = vunpack.c.l.b16 %v320
  %v794 = vunpack.c.h.b16 %v320
  %v795 = vunpack.c.l.b16 %v321
  %v796 = vunpack.c.h.b16 %v321
  %v797 = vunpack.c.l.b16 %v322
  %v798 = vunpack.c.h.b16 %v322
  %v799 = vunpack.c.l.b16 %v323
  %v800 = vunpack.c.h.b16 %v323
  %v801 = vunpack.c.l.b16 %v324
  %v802 = vunpack.c.h.b16 %v324
  %v803 = vunpack.c.l.b16 %v325
  %v804 = vunpack.c.h.b16 %v325
  %v805 = vunpack.c.l.b16 %v326
  %v806 = vunpack.c.h.b16 %v326
  %v807 = vunpack.c.l.b16 %v327
  %v808 = vunpack.c.h.b16 %v327
  %v809 = vunpack.c.l.b16 %v328
  %v810 = vunpack.c.h.b16 %v328
  %v811 = vunpack.c.l.b16 %v329
  %v812 = vunpack.c.h.b16 %v329
  %v813 = vunpack.c.l.b16 %v330
  %v814 = vunpack.c.h.b16 %v330
  %v815 = vunpack.c.l.b16 %v331
  %v816 = vunpack.c.h.b16 %v331
  %v817 = vunpack.c.l.b16 %v332
  %v818 = vunpack.c.h.b16 %v332
  %v819 = vunpack.c.l.b16 %v333
  %v820 = vunpack.c.h.b16 %v333
  %v821 = vunpack.c.l.b16 %v334
  %v822 = vunpack.c.h.b16 %v334
  %v823 = vunpack.c.l.b16 %v335
  %v824 = vunpack.c.h.b16 %v335
  %v825 = vunpack.c.l.b16 %v336
  %v826 = vunpack.c.h.b16 %v336
  %v827 = vunpack.c.l.b16 %v337
  %v828 = vunpack.c.h.b16 %v337
  %v829 = vunpack.c.l.b16 %v338
  %v830 = vunpack.c.h.b16 %v338
  %v831 = vunpack.c.l.b16 %v339
  %v832 = vunpack.c.h.b16 %v339
  %v833 = vunpack.c.l.b16 %v340
  %v834 = vunpack.c.h.b16 %v340
  %v835 = vunpack.c.l.b16 %v341
  %v836 = vunpack.c.h.b16 %v341
  %v837 = vunpack.c.l.b16 %v342
  %v838 = vunpack.c.h.b16 %v342
  %v839 = vunpack.c.l.b16 %v343
  %v840 = vunpack.c.h.b16 %v343
  %v841 = vunpack.c.l.b16 %v344
  %v842 = vunpack.c.h.b16 %v344
  %v843 = vunpack.c.l.b16 %v345
  %v844 = vunpack.c.h.b16 %v345
  %v845 = vunpack.c.l.b16 %v346
  %v846 = vunpack.c.h.b16 %v346
  %v847 = vunpack.c.l.b16 %v347
  %v848 = vunpack.c.h.b16 %v347
  %v849 = vunpack.c.l.b16 %v348
  %v850 = vunpack.c.h.b16 %v348
  %v851 = vunpack.c.l.b16 %v349
  %v852 = vunpack.c.h.b16 %v349
  %v853 = vunpack.c.l.b16 %v350
  %v854 = vunpack.c.h.b16 %v350
  %v855 = vunpack.c.l.b16 %v351
  %v856 = vunpack.c.h.b16 %v351
  %v857 = vpack.c.b16 %v545, %v537
  %v858 = vpack.c.b16 %v546, %v538
  %v859 = vpack.c.b16 %v547, %v539
  %v860 = vpack.c.b16 %v548, %v540
  %v861 = vpack.c.b16 %v549, %v541
  %v862 = vpack.c.b16 %v550, %v542
  %v863 = vpack.c.b16 %v551, %v543
  %v864 = vpack.c.b16 %v552, %v544
  %v865 = vpack.c.b16 %v561, %v553
  %v866 = vpack.c.b16 %v562, %v554
  %v867 = vpack.c.b16 %v563, %v555
  %v868 = vpack.c.b16 %v564, %v556
  %v869 = vpack.c.b16 %v565, %v557
  %v870 = vpack.c.b16 %v566, %v558
  %v871 = vpack.c.b16 %v567, %v559
  %v872 = vpack.c.b16 %v568, %v560
  %v873 = vpack.c.b16 %v577, %v569
  %v874 = vpack.c.b16 %v578, %v570
  %v875 = vpack.c.b16 %v579, %v571
  %v876 = vpack.c.b16 %v580, %v572
  %v877 = vpack.c.b16 %v581, %v573
  %v878 = vpack.c.b16 %v582, %v574
  %v879 = vpack.c.b16 %v583, %v575
  %v880 = vpack.c.b16 %v584, %v576
  %v881 = vpack.c.b16 %v593, %v585
  %v882 = vpack.c.b16 %v594, %v586
  %v883 = vpack.c.b16 %v595, %v587
  %v884 = vpack.c.b16 %v596, %v588
  %v885 = vpack.c.b16 %v597, %v589
  %v886 = vpack.c.b16 %v598, %v590
  %v887 = vpack.c.b16 %v599, %v591
  %v888 = vpack.c.b16 %v600, %v592
  %v889 = vpack.c.b16 %v609, %v601
  %v890 = vpack.c.b16 %v610, %v602
  %v891 = vpack.c.b16 %v611, %v603
  %v892 = vpack.c.b16 %v612, %v604
  %v893 = vpack.c.b16 %v613, %v605
  %v894 = vpack.c.b16 %v614, %v606
  %v895 = vpack.c.b16 %v615, %v607
  %v896 = vpack.c.b16 %v616, %v608
  %v897 = vpack.c.b16 %v625, %v617
  %v898 = vpack.c.b16 %v626, %v618
  %v899 = vpack.c.b16 %v627, %v619
  %v900 = vpack.c.b16 %v628, %v620
  %v901 = vpack.c.b16 %v629, %v621
  %v902 = vpack.c.b16 %v630, %v622
  %v903 = vpack.c.b16 %v631, %v623
  %v904 = vpack.c.b16 %v632, %v624
  %v905 = vpack.c.b16 %v641, %v633
  %v906 = vpack.c.b16 %v642, %v634
  %v907 = vpack.c.b16 %v643, %v635
  %v908 = vpack.c.b16 %v644, %v636
  %v909 = vpack.c.b16 %v645, %v637
  %v910 = vpack.c.b16 %v646, %v638
  %v911 = vpack.c.b16 %v647, %v639
  %v912 = vpack.c.b16 %v648, %v640
  %v913 = vpack.c.b16 %v657, %v649
  %v914 = vpack.c.b16 %v658, %v650
  %v915 = vpack.c.b16 %v659, %v651
  %v916 = vpack.c.b16 %v660, %v652
  %v917 = vpack.c.b16 %v661, %v653
  %v918 = vpack.c.b16 %v662, %v654
  %v919 = vpack.c.b16 %v663, %v655
  %v920 = vpack.c.b16 %v664, %v656
  %v921 = vpack.c.b16 %v673, %v665
  %v922 = vpack.c.b16 %v674, %v666
  %v923 = vpack.c.b16 %v675, %v667
  %v924 = vpack.c.b16 %v676, %v668
  %v925 = vpack.c.b16 %v677, %v669
  %v926 = vpack.c.b16 %v678, %v670
  %v927 = vpack.c.b16 %v679, %v671
  %v928 = vpack.c.b16 %v680, %v672
  %v929 = vpack.c.b16 %v689, %v681
  %v930 = vpack.c.b16 %v690, %v682
  %v931 = vpack.c.b16 %v691, %v683
  %v932 = vpack.c.b16 %v692, %v684
  %v933 = vpack.c.b16 %v693, %v685
  %v934 = vpack.c.b16 %v694, %v686
  %v935 = vpack.c.b16 %v695, %v687
  %v936 = vpack.c.b16 %v696, %v688
  %v937 = vpack.c.b16 %v705, %v697
  %v938 = vpack.c.b16 %v706, %v698
  %v939 = vpack.c.b16 %v707, %v699
  %v940 = vpack.c.b16 %v708, %v700
  %v941 = vpack.c.b16 %v709, %v701
  %v942 = vpack.c.b16 %v710, %v702
  %v943 = vpack.c.b16 %v711, %v703
  %v944 = vpack.c.b16 %v712, %v704
  %v945 = vpack.c.b16 %v721, %v713
  %v946 = vpack.c.b16 %v722, %v714
  %v947 = vpack.c.b16 %v723, %v715
  %v948 = vpack.c.b16 %v724, %v716
  %v949 = vpack.c.b16 %v725, %v717
  %v950 = vpack.c.b16 %v726, %v718
  %v951 = vpack.c.b16 %v727, %v719
  %v952 = vpack.c.b16 %v728, %v720
  %v953 = vpack.c.b16 %v737, %v729
  %v954 = vpack.c.b16 %v738, %v730
  %v955 = vpack.c.b16 %v739, %v731
  %v956 = vpack.c.b16 %v740, %v732
  %v957 = vpack.c.b16 %v741, %v733
  %v958 = vpack.c.b16 %v742, %v734
  %v959 = vpack.c.b16 %v743, %v735
  %v960 = vpack.c.b16 %v744, %v736
  %v961 = vpack.c.b16 %v753, %v745
  %v962 = vpack.c.b16 %v754, %v746
  %v963 = vpack.c.b16 %v755, %v747
  %v964 = vpack.c.b16 %v756, %v748
  %v965 = vpack.c.b16 %v757, %v749
  %v966 = vpack.c.b16 %v758, %v750
  %v967 = vpack.c.b16 %v759, %v751
  %v968 = vpack.c.b16 %v760, %v752
  %v969 = vpack.c.b16 %v769, %v761
  %v970 = vpack.c.b16 %v770, %v762
  %v971 = vpack.c.b16 %v771, %v763
  %v972 = vpack.c.b16 %v772, %v764
  %v973 = vpack.c.b16 %v773, %v765
  %v974 = vpack.c.b16 %v774, %v766
  %v975 = vpack.c.b16 %v775, %v767
  %v976 = vpack.c.b16 %v776, %v768
  %v977 = vpack.c.b16 %v785, %v777
  %v978 = vpack.c.b16 %v786, %v778
  %v979 = vpack.c.b16 %v787, %v779
  %v980 = vpack.c.b16 %v788, %v780
  %v981 = vpack.c.b16 %v789, %v781
  %v982 = vpack.c.b16 %v790, %v782
  %v983 = vpack.c.b16 %v791, %v783
  %v984 = vpack.c.b16 %v792, %v784
  %v985 = vpack.c.b16 %v801, %v793
  %v986 = vpack.c.b16 %v802, %v794
  %v987 = vpack.c.b16 %v803, %v795
  %v988 = vpack.c.b16 %v804, %v796
  %v989 = vpack.c.b16 %v805, %v797
  %v990 = vpack.c.b16 %v806, %v798
  %v991 = vpack.c.b16 %v807, %v799
  %v992 = vpack.c.b16 %v808, %v800
  %v993 = vpack.c.b16 %v817, %v809
  %v994 = vpack.c.b16 %v818, %v810
  %v995 = vpack.c.b16 %v819, %v811
  %v996 = vpack.c.b16 %v820, %v812
  %v997 = vpack.c.b16 %v821, %v813
  %v998 = vpack.c.b16 %v822, %v814
  %v999 = vpack.c.b16 %v823, %v815
  %v1000 = vpack.c.b16 %v824, %v816
  %v1001 = vpack.c.b16 %v833, %v825
  %v1002 = vpack.c.b16 %v834, %v826
  %v1003 = vpack.c.b16 %v835, %v827
  %v1004 = vpack.c.b16 %v836, %v828
  %v1005 = vpack.c.b16 %v837, %v829
  %v1006 = vpack.c.b16 %v838, %v830
  %v1007 = vpack.c.b16 %v839, %v831
  %v1008 = vpack.c.b16 %v840, %v832
  %v1009 = vpack.c.b16 %v849, %v841
  %v1010 = vpack.c.b16 %v850, %v842
  %v1011 = vpack.c.b16 %v851, %v843
  %v1012 = vpack.c.b16 %v852, %v844
  %v1013 = vpack.c.b16 %v853, %v845
  %v1014 = vpack.c.b16 %v854, %v846
  %v1015 = vpack.c.b16 %v855, %v847
  %v1016 = vpack.c.b16 %v856, %v848
  %vm1177 = vcmask 523264
  %v1179 = vsel %vm1177, %v369, 0
  %v1182 = vsel %vm1177, %v372, 0
  %1184 = vmatprep.subr.bf16.mxu0 %v858
  %1185 = vmatpush1.bf16.msra.mxu0 %v857
  %1186 = vmatprep.subr.bf16.mxu0 %v866
  %1187 = vmatpush1.bf16.msra.mxu0 %v865
  %1188 = vmatprep.subr.bf16.mxu0 %v874
  %1189 = vmatpush1.bf16.msra.mxu0 %v873
  %1190 = vmatprep.subr.bf16.mxu0 %v882
  %1191 = vmatpush1.bf16.msra.mxu0 %v881
  %1192 = vmatprep.subr.bf16.mxu0 %v890
  %1193 = vmatpush1.bf16.msra.mxu0 %v889
  %1194 = vmatprep.subr.bf16.mxu0 %v898
  %1195 = vmatpush1.bf16.msra.mxu0 %v897
  %1196 = vmatprep.subr.bf16.mxu0 %v906
  %1197 = vmatpush1.bf16.msra.mxu0 %v905
  %1198 = vmatprep.subr.bf16.mxu0 %v914
  %1199 = vmatpush1.bf16.msra.mxu0 %v913
  %1200 = vmatprep.subr.bf16.mxu0 %v922
  %1201 = vmatpush1.bf16.msra.mxu0 %v921
  %1202 = vmatprep.subr.bf16.mxu0 %v930
  %1203 = vmatpush1.bf16.msra.mxu0 %v929
  %1204 = vmatprep.subr.bf16.mxu0 %v938
  %1205 = vmatpush1.bf16.msra.mxu0 %v937
  %1206 = vmatprep.subr.bf16.mxu0 %v946
  %1207 = vmatpush1.bf16.msra.mxu0 %v945
  %1208 = vmatprep.subr.bf16.mxu0 %v954
  %1209 = vmatpush1.bf16.msra.mxu0 %v953
  %1210 = vmatprep.subr.bf16.mxu0 %v962
  %1211 = vmatpush1.bf16.msra.mxu0 %v961
  %1212 = vmatprep.subr.bf16.mxu0 %v970
  %1213 = vmatpush1.bf16.msra.mxu0 %v969
  %1214 = vmatprep.subr.bf16.mxu0 %v978
  %1215 = vmatpush1.bf16.msra.mxu0 %v977
  %1216 = vmatprep.mubr.bf16.mxu0 %v368
  %1217 = vmatmul.mubr.bf16.gmra.mrb[0].mxu0 %v367
  %v1218 = vpop.f32.mrb[0].mxu0
  %v1219 = vadd.f32 0.0, %v1218
  %v1220 = vpop.f32.mrb[0].mxu0
  %v1221 = vadd.f32 0.0, %v1220
  %v1222 = vpop.f32.mrb[0].mxu0
  %v1223 = vadd.f32 0.0, %v1222
  %v1224 = vpop.f32.mrb[0].mxu0
  %v1225 = vadd.f32 0.0, %v1224
  %1226 = vmatprep.mubr.bf16.mxu0 %v371
  %1227 = vmatmul.mubr.bf16.gmra.mrb[0].mxu0 %v370
  %v1228 = vpop.f32.mrb[0].mxu0
  %v1229 = vadd.f32 0.0, %v1228
  %v1230 = vpop.f32.mrb[0].mxu0
  %v1231 = vadd.f32 0.0, %v1230
  %v1232 = vpop.f32.mrb[0].mxu0
  %v1233 = vpop.f32.mrb[0].mxu0
  %1234 = vdwg.mxu0
  %1235 = vmatprep.subr.bf16.mxu0 %v986
  %1236 = vmatpush1.bf16.msra.mxu0 %v985
  %1237 = vmatprep.subr.bf16.mxu0 %v994
  %1238 = vmatpush1.bf16.msra.mxu0 %v993
  %1239 = vmatprep.subr.bf16.mxu0 %v1002
  %1240 = vmatpush1.bf16.msra.mxu0 %v1001
  %1241 = vmatprep.subr.bf16.mxu0 %v1010
  %1242 = vmatpush1.bf16.msra.mxu0 %v1009
  %1243 = vmatprep.subr.bf16.mxu0 0
  %1244 = vmatpush1.bf16.msra.mxu0 0
  %1245 = vmatprep.subr.bf16.mxu0 0
  %1246 = vmatpush1.bf16.msra.mxu0 0
  %1247 = vmatprep.subr.bf16.mxu0 0
  %1248 = vmatpush1.bf16.msra.mxu0 0
  %1249 = vmatprep.subr.bf16.mxu0 0
  %1250 = vmatpush1.bf16.msra.mxu0 0
  %1251 = vmatprep.subr.bf16.mxu0 0
  %1252 = vmatpush1.bf16.msra.mxu0 0
  %1253 = vmatprep.subr.bf16.mxu0 0
  %1254 = vmatpush1.bf16.msra.mxu0 0
  %1255 = vmatprep.subr.bf16.mxu0 0
  %1256 = vmatpush1.bf16.msra.mxu0 0
  %1257 = vmatprep.subr.bf16.mxu0 0
  %1258 = vmatpush1.bf16.msra.mxu0 0
  %1259 = vmatprep.subr.bf16.mxu0 0
  %1260 = vmatpush1.bf16.msra.mxu0 0
  %1261 = vmatprep.subr.bf16.mxu0 0
  %1262 = vmatpush1.bf16.msra.mxu0 0
  %1263 = vmatprep.subr.bf16.mxu0 0
  %1264 = vmatpush1.bf16.msra.mxu0 0
  %1265 = vmatprep.subr.bf16.mxu0 0
  %1266 = vmatpush1.bf16.msra.mxu0 0
  %1267 = vmatprep.mubr.bf16.mxu0 0
  %1268 = vmatmul.mubr.bf16.gmra.mrb[0].mxu0 %v1179
  %v1269 = vpop.f32.mrb[0].mxu0
  %v1270 = vadd.f32 %v1219, %v1269
  %v1271 = vpop.f32.mrb[0].mxu0
  %v1272 = vadd.f32 %v1221, %v1271
  %v1273 = vpop.f32.mrb[0].mxu0
  %v1274 = vadd.f32 %v1223, %v1273
  %v1275 = vpop.f32.mrb[0].mxu0
  %v1276 = vadd.f32 %v1225, %v1275
  %1277 = vmatprep.mubr.bf16.mxu0 0
  %1278 = vmatmul.mubr.bf16.gmra.mrb[0].mxu0 %v1182
  %v1279 = vpop.f32.mrb[0].mxu0
  %v1280 = vadd.f32 %v1229, %v1279
  %v1281 = vpop.f32.mrb[0].mxu0
  %v1282 = vadd.f32 %v1231, %v1281
  %v1283 = vpop.f32.mrb[0].mxu0
  %v1284 = vpop.f32.mrb[0].mxu0
  %1285 = vdwg.mxu0
  %1286 = vmatprep.subr.bf16.mxu0 %v860
  %1287 = vmatpush1.bf16.msra.mxu0 %v859
  %1288 = vmatprep.subr.bf16.mxu0 %v868
  %1289 = vmatpush1.bf16.msra.mxu0 %v867
  %1290 = vmatprep.subr.bf16.mxu0 %v876
  %1291 = vmatpush1.bf16.msra.mxu0 %v875
  %1292 = vmatprep.subr.bf16.mxu0 %v884
  %1293 = vmatpush1.bf16.msra.mxu0 %v883
  %1294 = vmatprep.subr.bf16.mxu0 %v892
  %1295 = vmatpush1.bf16.msra.mxu0 %v891
  %1296 = vmatprep.subr.bf16.mxu0 %v900
  %1297 = vmatpush1.bf16.msra.mxu0 %v899
  %1298 = vmatprep.subr.bf16.mxu0 %v908
  %1299 = vmatpush1.bf16.msra.mxu0 %v907
  %1300 = vmatprep.subr.bf16.mxu0 %v916
  %1301 = vmatpush1.bf16.msra.mxu0 %v915
  %1302 = vmatprep.subr.bf16.mxu0 %v924
  %1303 = vmatpush1.bf16.msra.mxu0 %v923
  %1304 = vmatprep.subr.bf16.mxu0 %v932
  %1305 = vmatpush1.bf16.msra.mxu0 %v931
  %1306 = vmatprep.subr.bf16.mxu0 %v940
  %1307 = vmatpush1.bf16.msra.mxu0 %v939
  %1308 = vmatprep.subr.bf16.mxu0 %v948
  %1309 = vmatpush1.bf16.msra.mxu0 %v947
  %1310 = vmatprep.subr.bf16.mxu0 %v956
  %1311 = vmatpush1.bf16.msra.mxu0 %v955
  %1312 = vmatprep.subr.bf16.mxu0 %v964
  %1313 = vmatpush1.bf16.msra.mxu0 %v963
  %1314 = vmatprep.subr.bf16.mxu0 %v972
  %1315 = vmatpush1.bf16.msra.mxu0 %v971
  %1316 = vmatprep.subr.bf16.mxu0 %v980
  %1317 = vmatpush1.bf16.msra.mxu0 %v979
  %1318 = vmatprep.mubr.bf16.mxu0 %v368
  %1319 = vmatmul.mubr.bf16.gmra.mrb[0].mxu0 %v367
  %v1320 = vpop.f32.mrb[0].mxu0
  %v1321 = vadd.f32 0.0, %v1320
  %v1322 = vpop.f32.mrb[0].mxu0
  %v1323 = vadd.f32 0.0, %v1322
  %v1324 = vpop.f32.mrb[0].mxu0
  %v1325 = vadd.f32 0.0, %v1324
  %v1326 = vpop.f32.mrb[0].mxu0
  %v1327 = vadd.f32 0.0, %v1326
  %1328 = vmatprep.mubr.bf16.mxu0 %v371
  %1329 = vmatmul.mubr.bf16.gmra.mrb[0].mxu0 %v370
  %v1330 = vpop.f32.mrb[0].mxu0
  %v1331 = vadd.f32 0.0, %v1330
  %v1332 = vpop.f32.mrb[0].mxu0
  %v1333 = vadd.f32 0.0, %v1332
  %v1334 = vpop.f32.mrb[0].mxu0
  %v1335 = vpop.f32.mrb[0].mxu0
  %1336 = vdwg.mxu0
  %1337 = vmatprep.subr.bf16.mxu0 %v988
  %1338 = vmatpush1.bf16.msra.mxu0 %v987
  %1339 = vmatprep.subr.bf16.mxu0 %v996
  %1340 = vmatpush1.bf16.msra.mxu0 %v995
  %1341 = vmatprep.subr.bf16.mxu0 %v1004
  %1342 = vmatpush1.bf16.msra.mxu0 %v1003
  %1343 = vmatprep.subr.bf16.mxu0 %v1012
  %1344 = vmatpush1.bf16.msra.mxu0 %v1011
  %1345 = vmatprep.subr.bf16.mxu0 0
  %1346 = vmatpush1.bf16.msra.mxu0 0
  %1347 = vmatprep.subr.bf16.mxu0 0
  %1348 = vmatpush1.bf16.msra.mxu0 0
  %1349 = vmatprep.subr.bf16.mxu0 0
  %1350 = vmatpush1.bf16.msra.mxu0 0
  %1351 = vmatprep.subr.bf16.mxu0 0
  %1352 = vmatpush1.bf16.msra.mxu0 0
  %1353 = vmatprep.subr.bf16.mxu0 0
  %1354 = vmatpush1.bf16.msra.mxu0 0
  %1355 = vmatprep.subr.bf16.mxu0 0
  %1356 = vmatpush1.bf16.msra.mxu0 0
  %1357 = vmatprep.subr.bf16.mxu0 0
  %1358 = vmatpush1.bf16.msra.mxu0 0
  %1359 = vmatprep.subr.bf16.mxu0 0
  %1360 = vmatpush1.bf16.msra.mxu0 0
  %1361 = vmatprep.subr.bf16.mxu0 0
  %1362 = vmatpush1.bf16.msra.mxu0 0
  %1363 = vmatprep.subr.bf16.mxu0 0
  %1364 = vmatpush1.bf16.msra.mxu0 0
  %1365 = vmatprep.subr.bf16.mxu0 0
  %1366 = vmatpush1.bf16.msra.mxu0 0
  %1367 = vmatprep.subr.bf16.mxu0 0
  %1368 = vmatpush1.bf16.msra.mxu0 0
  %1369 = vmatprep.mubr.bf16.mxu0 0
  %1370 = vmatmul.mubr.bf16.gmra.mrb[0].mxu0 %v1179
  %v1371 = vpop.f32.mrb[0].mxu0
  %v1372 = vadd.f32 %v1321, %v1371
  %v1373 = vpop.f32.mrb[0].mxu0
  %v1374 = vadd.f32 %v1323, %v1373
  %v1375 = vpop.f32.mrb[0].mxu0
  %v1376 = vadd.f32 %v1325, %v1375
  %v1377 = vpop.f32.mrb[0].mxu0
  %v1378 = vadd.f32 %v1327, %v1377
  %1379 = vmatprep.mubr.bf16.mxu0 0
  %1380 = vmatmul.mubr.bf16.gmra.mrb[0].mxu0 %v1182
  %v1381 = vpop.f32.mrb[0].mxu0
  %v1382 = vadd.f32 %v1331, %v1381
  %v1383 = vpop.f32.mrb[0].mxu0
  %v1384 = vadd.f32 %v1333, %v1383
  %v1385 = vpop.f32.mrb[0].mxu0
  %v1386 = vpop.f32.mrb[0].mxu0
  %1387 = vdwg.mxu0
  %1388 = vmatprep.subr.bf16.mxu0 %v862
  %1389 = vmatpush1.bf16.msra.mxu0 %v861
  %1390 = vmatprep.subr.bf16.mxu0 %v870
  %1391 = vmatpush1.bf16.msra.mxu0 %v869
  %1392 = vmatprep.subr.bf16.mxu0 %v878
  %1393 = vmatpush1.bf16.msra.mxu0 %v877
  %1394 = vmatprep.subr.bf16.mxu0 %v886
  %1395 = vmatpush1.bf16.msra.mxu0 %v885
  %1396 = vmatprep.subr.bf16.mxu0 %v894
  %1397 = vmatpush1.bf16.msra.mxu0 %v893
  %1398 = vmatprep.subr.bf16.mxu0 %v902
  %1399 = vmatpush1.bf16.msra.mxu0 %v901
  %1400 = vmatprep.subr.bf16.mxu0 %v910
  %1401 = vmatpush1.bf16.msra.mxu0 %v909
  %1402 = vmatprep.subr.bf16.mxu0 %v918
  %1403 = vmatpush1.bf16.msra.mxu0 %v917
  %1404 = vmatprep.subr.bf16.mxu0 %v926
  %1405 = vmatpush1.bf16.msra.mxu0 %v925
  %1406 = vmatprep.subr.bf16.mxu0 %v934
  %1407 = vmatpush1.bf16.msra.mxu0 %v933
  %1408 = vmatprep.subr.bf16.mxu0 %v942
  %1409 = vmatpush1.bf16.msra.mxu0 %v941
  %1410 = vmatprep.subr.bf16.mxu0 %v950
  %1411 = vmatpush1.bf16.msra.mxu0 %v949
  %1412 = vmatprep.subr.bf16.mxu0 %v958
  %1413 = vmatpush1.bf16.msra.mxu0 %v957
  %1414 = vmatprep.subr.bf16.mxu0 %v966
  %1415 = vmatpush1.bf16.msra.mxu0 %v965
  %1416 = vmatprep.subr.bf16.mxu0 %v974
  %1417 = vmatpush1.bf16.msra.mxu0 %v973
  %1418 = vmatprep.subr.bf16.mxu0 %v982
  %1419 = vmatpush1.bf16.msra.mxu0 %v981
  %1420 = vmatprep.mubr.bf16.mxu0 %v368
  %1421 = vmatmul.mubr.bf16.gmra.mrb[0].mxu0 %v367
  %v1422 = vpop.f32.mrb[0].mxu0
  %v1423 = vadd.f32 0.0, %v1422
  %v1424 = vpop.f32.mrb[0].mxu0
  %v1425 = vadd.f32 0.0, %v1424
  %v1426 = vpop.f32.mrb[0].mxu0
  %v1427 = vadd.f32 0.0, %v1426
  %v1428 = vpop.f32.mrb[0].mxu0
  %v1429 = vadd.f32 0.0, %v1428
  %1430 = vmatprep.mubr.bf16.mxu0 %v371
  %1431 = vmatmul.mubr.bf16.gmra.mrb[0].mxu0 %v370
  %v1432 = vpop.f32.mrb[0].mxu0
  %v1433 = vadd.f32 0.0, %v1432
  %v1434 = vpop.f32.mrb[0].mxu0
  %v1435 = vadd.f32 0.0, %v1434
  %v1436 = vpop.f32.mrb[0].mxu0
  %v1437 = vpop.f32.mrb[0].mxu0
  %1438 = vdwg.mxu0
  %1439 = vmatprep.subr.bf16.mxu0 %v990
  %1440 = vmatpush1.bf16.msra.mxu0 %v989
  %1441 = vmatprep.subr.bf16.mxu0 %v998
  %1442 = vmatpush1.bf16.msra.mxu0 %v997
  %1443 = vmatprep.subr.bf16.mxu0 %v1006
  %1444 = vmatpush1.bf16.msra.mxu0 %v1005
  %1445 = vmatprep.subr.bf16.mxu0 %v1014
  %1446 = vmatpush1.bf16.msra.mxu0 %v1013
  %1447 = vmatprep.subr.bf16.mxu0 0
  %1448 = vmatpush1.bf16.msra.mxu0 0
  %1449 = vmatprep.subr.bf16.mxu0 0
  %1450 = vmatpush1.bf16.msra.mxu0 0
  %1451 = vmatprep.subr.bf16.mxu0 0
  %1452 = vmatpush1.bf16.msra.mxu0 0
  %1453 = vmatprep.subr.bf16.mxu0 0
  %1454 = vmatpush1.bf16.msra.mxu0 0
  %1455 = vmatprep.subr.bf16.mxu0 0
  %1456 = vmatpush1.bf16.msra.mxu0 0
  %1457 = vmatprep.subr.bf16.mxu0 0
  %1458 = vmatpush1.bf16.msra.mxu0 0
  %1459 = vmatprep.subr.bf16.mxu0 0
  %1460 = vmatpush1.bf16.msra.mxu0 0
  %1461 = vmatprep.subr.bf16.mxu0 0
  %1462 = vmatpush1.bf16.msra.mxu0 0
  %1463 = vmatprep.subr.bf16.mxu0 0
  %1464 = vmatpush1.bf16.msra.mxu0 0
  %1465 = vmatprep.subr.bf16.mxu0 0
  %1466 = vmatpush1.bf16.msra.mxu0 0
  %1467 = vmatprep.subr.bf16.mxu0 0
  %1468 = vmatpush1.bf16.msra.mxu0 0
  %1469 = vmatprep.subr.bf16.mxu0 0
  %1470 = vmatpush1.bf16.msra.mxu0 0
  %1471 = vmatprep.mubr.bf16.mxu0 0
  %1472 = vmatmul.mubr.bf16.gmra.mrb[0].mxu0 %v1179
  %v1473 = vpop.f32.mrb[0].mxu0
  %v1474 = vadd.f32 %v1423, %v1473
  %v1475 = vpop.f32.mrb[0].mxu0
  %v1476 = vadd.f32 %v1425, %v1475
  %v1477 = vpop.f32.mrb[0].mxu0
  %v1478 = vadd.f32 %v1427, %v1477
  %v1479 = vpop.f32.mrb[0].mxu0
  %v1480 = vadd.f32 %v1429, %v1479
  %1481 = vmatprep.mubr.bf16.mxu0 0
  %1482 = vmatmul.mubr.bf16.gmra.mrb[0].mxu0 %v1182
  %v1483 = vpop.f32.mrb[0].mxu0
  %v1484 = vadd.f32 %v1433, %v1483
  %v1485 = vpop.f32.mrb[0].mxu0
  %v1486 = vadd.f32 %v1435, %v1485
  %v1487 = vpop.f32.mrb[0].mxu0
  %v1488 = vpop.f32.mrb[0].mxu0
  %1489 = vdwg.mxu0
  %1490 = vmatprep.subr.bf16.mxu0 %v864
  %1491 = vmatpush1.bf16.msra.mxu0 %v863
  %1492 = vmatprep.subr.bf16.mxu0 %v872
  %1493 = vmatpush1.bf16.msra.mxu0 %v871
  %1494 = vmatprep.subr.bf16.mxu0 %v880
  %1495 = vmatpush1.bf16.msra.mxu0 %v879
  %1496 = vmatprep.subr.bf16.mxu0 %v888
  %1497 = vmatpush1.bf16.msra.mxu0 %v887
  %1498 = vmatprep.subr.bf16.mxu0 %v896
  %1499 = vmatpush1.bf16.msra.mxu0 %v895
  %1500 = vmatprep.subr.bf16.mxu0 %v904
  %1501 = vmatpush1.bf16.msra.mxu0 %v903
  %1502 = vmatprep.subr.bf16.mxu0 %v912
  %1503 = vmatpush1.bf16.msra.mxu0 %v911
  %1504 = vmatprep.subr.bf16.mxu0 %v920
  %1505 = vmatpush1.bf16.msra.mxu0 %v919
  %1506 = vmatprep.subr.bf16.mxu0 %v928
  %1507 = vmatpush1.bf16.msra.mxu0 %v927
  %1508 = vmatprep.subr.bf16.mxu0 %v936
  %1509 = vmatpush1.bf16.msra.mxu0 %v935
  %1510 = vmatprep.subr.bf16.mxu0 %v944
  %1511 = vmatpush1.bf16.msra.mxu0 %v943
  %1512 = vmatprep.subr.bf16.mxu0 %v952
  %1513 = vmatpush1.bf16.msra.mxu0 %v951
  %1514 = vmatprep.subr.bf16.mxu0 %v960
  %1515 = vmatpush1.bf16.msra.mxu0 %v959
  %1516 = vmatprep.subr.bf16.mxu0 %v968
  %1517 = vmatpush1.bf16.msra.mxu0 %v967
  %1518 = vmatprep.subr.bf16.mxu0 %v976
  %1519 = vmatpush1.bf16.msra.mxu0 %v975
  %1520 = vmatprep.subr.bf16.mxu0 %v984
  %1521 = vmatpush1.bf16.msra.mxu0 %v983
  %1522 = vmatprep.mubr.bf16.mxu0 %v368
  %1523 = vmatmul.mubr.bf16.gmra.mrb[0].mxu0 %v367
  %v1524 = vpop.f32.mrb[0].mxu0
  %v1525 = vadd.f32 0.0, %v1524
  %v1526 = vpop.f32.mrb[0].mxu0
  %v1527 = vadd.f32 0.0, %v1526
  %v1528 = vpop.f32.mrb[0].mxu0
  %v1529 = vadd.f32 0.0, %v1528
  %v1530 = vpop.f32.mrb[0].mxu0
  %v1531 = vadd.f32 0.0, %v1530
  %1532 = vmatprep.mubr.bf16.mxu0 %v371
  %1533 = vmatmul.mubr.bf16.gmra.mrb[0].mxu0 %v370
  %v1534 = vpop.f32.mrb[0].mxu0
  %v1535 = vadd.f32 0.0, %v1534
  %v1536 = vpop.f32.mrb[0].mxu0
  %v1537 = vadd.f32 0.0, %v1536
  %v1538 = vpop.f32.mrb[0].mxu0
  %v1539 = vpop.f32.mrb[0].mxu0
  %1540 = vdwg.mxu0
  %1541 = vmatprep.subr.bf16.mxu0 %v992
  %1542 = vmatpush1.bf16.msra.mxu0 %v991
  %1543 = vmatprep.subr.bf16.mxu0 %v1000
  %1544 = vmatpush1.bf16.msra.mxu0 %v999
  %1545 = vmatprep.subr.bf16.mxu0 %v1008
  %1546 = vmatpush1.bf16.msra.mxu0 %v1007
  %1547 = vmatprep.subr.bf16.mxu0 %v1016
  %1548 = vmatpush1.bf16.msra.mxu0 %v1015
  %1549 = vmatprep.subr.bf16.mxu0 0
  %1550 = vmatpush1.bf16.msra.mxu0 0
  %1551 = vmatprep.subr.bf16.mxu0 0
  %1552 = vmatpush1.bf16.msra.mxu0 0
  %1553 = vmatprep.subr.bf16.mxu0 0
  %1554 = vmatpush1.bf16.msra.mxu0 0
  %1555 = vmatprep.subr.bf16.mxu0 0
  %1556 = vmatpush1.bf16.msra.mxu0 0
  %1557 = vmatprep.subr.bf16.mxu0 0
  %1558 = vmatpush1.bf16.msra.mxu0 0
  %1559 = vmatprep.subr.bf16.mxu0 0
  %1560 = vmatpush1.bf16.msra.mxu0 0
  %1561 = vmatprep.subr.bf16.mxu0 0
  %1562 = vmatpush1.bf16.msra.mxu0 0
  %1563 = vmatprep.subr.bf16.mxu0 0
  %1564 = vmatpush1.bf16.msra.mxu0 0
  %1565 = vmatprep.subr.bf16.mxu0 0
  %1566 = vmatpush1.bf16.msra.mxu0 0
  %1567 = vmatprep.subr.bf16.mxu0 0
  %1568 = vmatpush1.bf16.msra.mxu0 0
  %1569 = vmatprep.subr.bf16.mxu0 0
  %1570 = vmatpush1.bf16.msra.mxu0 0
  %1571 = vmatprep.subr.bf16.mxu0 0
  %1572 = vmatpush1.bf16.msra.mxu0 0
  %1573 = vmatprep.mubr.bf16.mxu0 0
  %1574 = vmatmul.mubr.bf16.gmra.mrb[0].mxu0 %v1179
  %v1575 = vpop.f32.mrb[0].mxu0
  %v1576 = vadd.f32 %v1525, %v1575
  %v1577 = vpop.f32.mrb[0].mxu0
  %v1578 = vadd.f32 %v1527, %v1577
  %v1579 = vpop.f32.mrb[0].mxu0
  %v1580 = vadd.f32 %v1529, %v1579
  %v1581 = vpop.f32.mrb[0].mxu0
  %v1582 = vadd.f32 %v1531, %v1581
  %1583 = vmatprep.mubr.bf16.mxu0 0
  %1584 = vmatmul.mubr.bf16.gmra.mrb[0].mxu0 %v1182
  %v1585 = vpop.f32.mrb[0].mxu0
  %v1586 = vadd.f32 %v1535, %v1585
  %v1587 = vpop.f32.mrb[0].mxu0
  %v1588 = vadd.f32 %v1537, %v1587
  %v1589 = vpop.f32.mrb[0].mxu0
  %v1590 = vpop.f32.mrb[0].mxu0
  %1591 = vdwg.mxu0
  %v1598 = vunpack.c.l.b16 %v18
  %v1599 = vunpack.c.h.b16 %v18
  %v1600 = vunpack.c.l.b16 %v19
  %v1601 = vunpack.c.l.b16 %v20
  %v1602 = vunpack.c.h.b16 %v20
  %v1603 = vunpack.c.l.b16 %v21
  %v1604 = vunpack.c.l.b16 %v22
  %v1605 = vunpack.c.h.b16 %v22
  %v1606 = vunpack.c.l.b16 %v23
  %v1607 = vpack.c.b16 %v1601, %v1598
  %v1608 = vpack.c.b16 %v1602, %v1599
  %v1609 = vpack.c.b16 %v1603, %v1600
  %v1610 = vpack.c.b16 %v1604, %v1604
  %v1611 = vpack.c.b16 %v1605, %v1605
  %v1612 = vpack.c.b16 %v1606, %v1606
  %v1777 = vunpack.c.l.b16 %v24
  %v1778 = vunpack.c.h.b16 %v24
  %v1779 = vunpack.c.l.b16 %v25
  %v1780 = vunpack.c.h.b16 %v25
  %v1781 = vunpack.c.l.b16 %v26
  %v1782 = vunpack.c.h.b16 %v26
  %v1783 = vunpack.c.l.b16 %v27
  %v1784 = vunpack.c.h.b16 %v27
  %v1785 = vunpack.c.l.b16 %v28
  %v1786 = vunpack.c.h.b16 %v28
  %v1787 = vunpack.c.l.b16 %v29
  %v1788 = vunpack.c.h.b16 %v29
  %v1789 = vunpack.c.l.b16 %v30
  %v1790 = vunpack.c.h.b16 %v30
  %v1791 = vunpack.c.l.b16 %v31
  %v1792 = vunpack.c.h.b16 %v31
  %v1793 = vunpack.c.l.b16 %v32
  %v1794 = vunpack.c.h.b16 %v32
  %v1795 = vunpack.c.l.b16 %v33
  %v1796 = vunpack.c.h.b16 %v33
  %v1797 = vunpack.c.l.b16 %v34
  %v1798 = vunpack.c.h.b16 %v34
  %v1799 = vunpack.c.l.b16 %v35
  %v1800 = vunpack.c.h.b16 %v35
  %v1801 = vunpack.c.l.b16 %v36
  %v1802 = vunpack.c.h.b16 %v36
  %v1803 = vunpack.c.l.b16 %v37
  %v1804 = vunpack.c.h.b16 %v37
  %v1805 = vunpack.c.l.b16 %v38
  %v1806 = vunpack.c.h.b16 %v38
  %v1807 = vunpack.c.l.b16 %v39
  %v1808 = vunpack.c.h.b16 %v39
  %v1809 = vunpack.c.l.b16 %v40
  %v1810 = vunpack.c.h.b16 %v40
  %v1811 = vunpack.c.l.b16 %v41
  %v1812 = vunpack.c.h.b16 %v41
  %v1813 = vunpack.c.l.b16 %v42
  %v1814 = vunpack.c.h.b16 %v42
  %v1815 = vunpack.c.l.b16 %v43
  %v1816 = vunpack.c.h.b16 %v43
  %v1817 = vunpack.c.l.b16 %v44
  %v1818 = vunpack.c.h.b16 %v44
  %v1819 = vunpack.c.l.b16 %v45
  %v1820 = vunpack.c.h.b16 %v45
  %v1821 = vunpack.c.l.b16 %v46
  %v1822 = vunpack.c.h.b16 %v46
  %v1823 = vunpack.c.l.b16 %v47
  %v1824 = vunpack.c.h.b16 %v47
  %v1825 = vunpack.c.l.b16 %v48
  %v1826 = vunpack.c.h.b16 %v48
  %v1827 = vunpack.c.l.b16 %v49
  %v1828 = vunpack.c.h.b16 %v49
  %v1829 = vunpack.c.l.b16 %v50
  %v1830 = vunpack.c.h.b16 %v50
  %v1831 = vunpack.c.l.b16 %v51
  %v1832 = vunpack.c.h.b16 %v51
  %v1833 = vunpack.c.l.b16 %v52
  %v1834 = vunpack.c.h.b16 %v52
  %v1835 = vunpack.c.l.b16 %v53
  %v1836 = vunpack.c.h.b16 %v53
  %v1837 = vunpack.c.l.b16 %v54
  %v1838 = vunpack.c.h.b16 %v54
  %v1839 = vunpack.c.l.b16 %v55
  %v1840 = vunpack.c.h.b16 %v55
  %v1841 = vunpack.c.l.b16 %v56
  %v1842 = vunpack.c.h.b16 %v56
  %v1843 = vunpack.c.l.b16 %v57
  %v1844 = vunpack.c.h.b16 %v57
  %v1845 = vunpack.c.l.b16 %v58
  %v1846 = vunpack.c.h.b16 %v58
  %v1847 = vunpack.c.l.b16 %v59
  %v1848 = vunpack.c.h.b16 %v59
  %v1849 = vunpack.c.l.b16 %v60
  %v1850 = vunpack.c.h.b16 %v60
  %v1851 = vunpack.c.l.b16 %v61
  %v1852 = vunpack.c.h.b16 %v61
  %v1853 = vunpack.c.l.b16 %v62
  %v1854 = vunpack.c.h.b16 %v62
  %v1855 = vunpack.c.l.b16 %v63
  %v1856 = vunpack.c.h.b16 %v63
  %v1857 = vunpack.c.l.b16 %v64
  %v1858 = vunpack.c.h.b16 %v64
  %v1859 = vunpack.c.l.b16 %v65
  %v1860 = vunpack.c.h.b16 %v65
  %v1861 = vunpack.c.l.b16 %v66
  %v1862 = vunpack.c.h.b16 %v66
  %v1863 = vunpack.c.l.b16 %v67
  %v1864 = vunpack.c.h.b16 %v67
  %v1865 = vunpack.c.l.b16 %v68
  %v1866 = vunpack.c.h.b16 %v68
  %v1867 = vunpack.c.l.b16 %v69
  %v1868 = vunpack.c.h.b16 %v69
  %v1869 = vunpack.c.l.b16 %v70
  %v1870 = vunpack.c.h.b16 %v70
  %v1871 = vunpack.c.l.b16 %v71
  %v1872 = vunpack.c.h.b16 %v71
  %v1873 = vunpack.c.l.b16 %v72
  %v1874 = vunpack.c.h.b16 %v72
  %v1875 = vunpack.c.l.b16 %v73
  %v1876 = vunpack.c.h.b16 %v73
  %v1877 = vunpack.c.l.b16 %v74
  %v1878 = vunpack.c.h.b16 %v74
  %v1879 = vunpack.c.l.b16 %v75
  %v1880 = vunpack.c.h.b16 %v75
  %v1881 = vunpack.c.l.b16 %v76
  %v1882 = vunpack.c.h.b16 %v76
  %v1883 = vunpack.c.l.b16 %v77
  %v1884 = vunpack.c.h.b16 %v77
  %v1885 = vunpack.c.l.b16 %v78
  %v1886 = vunpack.c.h.b16 %v78
  %v1887 = vunpack.c.l.b16 %v79
  %v1888 = vunpack.c.h.b16 %v79
  %v1889 = vunpack.c.l.b16 %v80
  %v1890 = vunpack.c.h.b16 %v80
  %v1891 = vunpack.c.l.b16 %v81
  %v1892 = vunpack.c.h.b16 %v81
  %v1893 = vunpack.c.l.b16 %v82
  %v1894 = vunpack.c.h.b16 %v82
  %v1895 = vunpack.c.l.b16 %v83
  %v1896 = vunpack.c.h.b16 %v83
  %v1897 = vunpack.c.l.b16 %v84
  %v1898 = vunpack.c.h.b16 %v84
  %v1899 = vunpack.c.l.b16 %v85
  %v1900 = vunpack.c.h.b16 %v85
  %v1901 = vunpack.c.l.b16 %v86
  %v1902 = vunpack.c.h.b16 %v86
  %v1903 = vunpack.c.l.b16 %v87
  %v1904 = vunpack.c.h.b16 %v87
  %v1905 = vunpack.c.l.b16 %v88
  %v1906 = vunpack.c.h.b16 %v88
  %v1907 = vunpack.c.l.b16 %v89
  %v1908 = vunpack.c.h.b16 %v89
  %v1909 = vunpack.c.l.b16 %v90
  %v1910 = vunpack.c.h.b16 %v90
  %v1911 = vunpack.c.l.b16 %v91
  %v1912 = vunpack.c.h.b16 %v91
  %v1913 = vunpack.c.l.b16 %v92
  %v1914 = vunpack.c.h.b16 %v92
  %v1915 = vunpack.c.l.b16 %v93
  %v1916 = vunpack.c.h.b16 %v93
  %v1917 = vunpack.c.l.b16 %v94
  %v1918 = vunpack.c.h.b16 %v94
  %v1919 = vunpack.c.l.b16 %v95
  %v1920 = vunpack.c.h.b16 %v95
  %v1921 = vunpack.c.l.b16 %v96
  %v1922 = vunpack.c.h.b16 %v96
  %v1923 = vunpack.c.l.b16 %v97
  %v1924 = vunpack.c.h.b16 %v97
  %v1925 = vunpack.c.l.b16 %v98
  %v1926 = vunpack.c.h.b16 %v98
  %v1927 = vunpack.c.l.b16 %v99
  %v1928 = vunpack.c.h.b16 %v99
  %v1929 = vunpack.c.l.b16 %v100
  %v1930 = vunpack.c.h.b16 %v100
  %v1931 = vunpack.c.l.b16 %v101
  %v1932 = vunpack.c.h.b16 %v101
  %v1933 = vunpack.c.l.b16 %v102
  %v1934 = vunpack.c.h.b16 %v102
  %v1935 = vunpack.c.l.b16 %v103
  %v1936 = vunpack.c.h.b16 %v103
  %v1937 = vunpack.c.l.b16 %v104
  %v1938 = vunpack.c.h.b16 %v104
  %v1939 = vunpack.c.l.b16 %v105
  %v1940 = vunpack.c.h.b16 %v105
  %v1941 = vunpack.c.l.b16 %v106
  %v1942 = vunpack.c.h.b16 %v106
  %v1943 = vunpack.c.l.b16 %v107
  %v1944 = vunpack.c.h.b16 %v107
  %v1945 = vunpack.c.l.b16 %v108
  %v1946 = vunpack.c.h.b16 %v108
  %v1947 = vunpack.c.l.b16 %v109
  %v1948 = vunpack.c.h.b16 %v109
  %v1949 = vunpack.c.l.b16 %v110
  %v1950 = vunpack.c.h.b16 %v110
  %v1951 = vunpack.c.l.b16 %v111
  %v1952 = vunpack.c.h.b16 %v111
  %v1953 = vunpack.c.l.b16 %v112
  %v1954 = vunpack.c.h.b16 %v112
  %v1955 = vunpack.c.l.b16 %v113
  %v1956 = vunpack.c.h.b16 %v113
  %v1957 = vunpack.c.l.b16 %v114
  %v1958 = vunpack.c.h.b16 %v114
  %v1959 = vunpack.c.l.b16 %v115
  %v1960 = vunpack.c.h.b16 %v115
  %v1961 = vunpack.c.l.b16 %v116
  %v1962 = vunpack.c.h.b16 %v116
  %v1963 = vunpack.c.l.b16 %v117
  %v1964 = vunpack.c.h.b16 %v117
  %v1965 = vunpack.c.l.b16 %v118
  %v1966 = vunpack.c.h.b16 %v118
  %v1967 = vunpack.c.l.b16 %v119
  %v1968 = vunpack.c.h.b16 %v119
  %v1969 = vunpack.c.l.b16 %v120
  %v1970 = vunpack.c.h.b16 %v120
  %v1971 = vunpack.c.l.b16 %v121
  %v1972 = vunpack.c.h.b16 %v121
  %v1973 = vunpack.c.l.b16 %v122
  %v1974 = vunpack.c.h.b16 %v122
  %v1975 = vunpack.c.l.b16 %v123
  %v1976 = vunpack.c.h.b16 %v123
  %v1977 = vunpack.c.l.b16 %v124
  %v1978 = vunpack.c.h.b16 %v124
  %v1979 = vunpack.c.l.b16 %v125
  %v1980 = vunpack.c.h.b16 %v125
  %v1981 = vunpack.c.l.b16 %v126
  %v1982 = vunpack.c.h.b16 %v126
  %v1983 = vunpack.c.l.b16 %v127
  %v1984 = vunpack.c.h.b16 %v127
  %v1985 = vunpack.c.l.b16 %v128
  %v1986 = vunpack.c.h.b16 %v128
  %v1987 = vunpack.c.l.b16 %v129
  %v1988 = vunpack.c.h.b16 %v129
  %v1989 = vunpack.c.l.b16 %v130
  %v1990 = vunpack.c.h.b16 %v130
  %v1991 = vunpack.c.l.b16 %v131
  %v1992 = vunpack.c.h.b16 %v131
  %v1993 = vunpack.c.l.b16 %v132
  %v1994 = vunpack.c.h.b16 %v132
  %v1995 = vunpack.c.l.b16 %v133
  %v1996 = vunpack.c.h.b16 %v133
  %v1997 = vunpack.c.l.b16 %v134
  %v1998 = vunpack.c.h.b16 %v134
  %v1999 = vunpack.c.l.b16 %v135
  %v2000 = vunpack.c.h.b16 %v135
  %v2001 = vunpack.c.l.b16 %v136
  %v2002 = vunpack.c.h.b16 %v136
  %v2003 = vunpack.c.l.b16 %v137
  %v2004 = vunpack.c.h.b16 %v137
  %v2005 = vunpack.c.l.b16 %v138
  %v2006 = vunpack.c.h.b16 %v138
  %v2007 = vunpack.c.l.b16 %v139
  %v2008 = vunpack.c.h.b16 %v139
  %v2009 = vunpack.c.l.b16 %v140
  %v2010 = vunpack.c.h.b16 %v140
  %v2011 = vunpack.c.l.b16 %v141
  %v2012 = vunpack.c.h.b16 %v141
  %v2013 = vunpack.c.l.b16 %v142
  %v2014 = vunpack.c.h.b16 %v142
  %v2015 = vunpack.c.l.b16 %v143
  %v2016 = vunpack.c.h.b16 %v143
  %v2017 = vunpack.c.l.b16 %v144
  %v2018 = vunpack.c.h.b16 %v144
  %v2019 = vunpack.c.l.b16 %v145
  %v2020 = vunpack.c.h.b16 %v145
  %v2021 = vunpack.c.l.b16 %v146
  %v2022 = vunpack.c.h.b16 %v146
  %v2023 = vunpack.c.l.b16 %v147
  %v2024 = vunpack.c.h.b16 %v147
  %v2025 = vunpack.c.l.b16 %v148
  %v2026 = vunpack.c.h.b16 %v148
  %v2027 = vunpack.c.l.b16 %v149
  %v2028 = vunpack.c.h.b16 %v149
  %v2029 = vunpack.c.l.b16 %v150
  %v2030 = vunpack.c.h.b16 %v150
  %v2031 = vunpack.c.l.b16 %v151
  %v2032 = vunpack.c.h.b16 %v151
  %v2033 = vunpack.c.l.b16 %v152
  %v2034 = vunpack.c.h.b16 %v152
  %v2035 = vunpack.c.l.b16 %v153
  %v2036 = vunpack.c.h.b16 %v153
  %v2037 = vunpack.c.l.b16 %v154
  %v2038 = vunpack.c.h.b16 %v154
  %v2039 = vunpack.c.l.b16 %v155
  %v2040 = vunpack.c.h.b16 %v155
  %v2041 = vunpack.c.l.b16 %v156
  %v2042 = vunpack.c.h.b16 %v156
  %v2043 = vunpack.c.l.b16 %v157
  %v2044 = vunpack.c.h.b16 %v157
  %v2045 = vunpack.c.l.b16 %v158
  %v2046 = vunpack.c.h.b16 %v158
  %v2047 = vunpack.c.l.b16 %v159
  %v2048 = vunpack.c.h.b16 %v159
  %v2049 = vunpack.c.l.b16 %v160
  %v2050 = vunpack.c.h.b16 %v160
  %v2051 = vunpack.c.l.b16 %v161
  %v2052 = vunpack.c.h.b16 %v161
  %v2053 = vunpack.c.l.b16 %v162
  %v2054 = vunpack.c.h.b16 %v162
  %v2055 = vunpack.c.l.b16 %v163
  %v2056 = vunpack.c.h.b16 %v163
  %v2057 = vunpack.c.l.b16 %v164
  %v2058 = vunpack.c.h.b16 %v164
  %v2059 = vunpack.c.l.b16 %v165
  %v2060 = vunpack.c.h.b16 %v165
  %v2061 = vunpack.c.l.b16 %v166
  %v2062 = vunpack.c.h.b16 %v166
  %v2063 = vunpack.c.l.b16 %v167
  %v2064 = vunpack.c.h.b16 %v167
  %v2065 = vunpack.c.l.b16 %v168
  %v2066 = vunpack.c.h.b16 %v168
  %v2067 = vunpack.c.l.b16 %v169
  %v2068 = vunpack.c.h.b16 %v169
  %v2069 = vunpack.c.l.b16 %v170
  %v2070 = vunpack.c.h.b16 %v170
  %v2071 = vunpack.c.l.b16 %v171
  %v2072 = vunpack.c.h.b16 %v171
  %v2073 = vunpack.c.l.b16 %v172
  %v2074 = vunpack.c.h.b16 %v172
  %v2075 = vunpack.c.l.b16 %v173
  %v2076 = vunpack.c.h.b16 %v173
  %v2077 = vunpack.c.l.b16 %v174
  %v2078 = vunpack.c.h.b16 %v174
  %v2079 = vunpack.c.l.b16 %v175
  %v2080 = vunpack.c.h.b16 %v175
  %v2081 = vunpack.c.l.b16 %v176
  %v2082 = vunpack.c.h.b16 %v176
  %v2083 = vunpack.c.l.b16 %v177
  %v2084 = vunpack.c.h.b16 %v177
  %v2085 = vunpack.c.l.b16 %v178
  %v2086 = vunpack.c.h.b16 %v178
  %v2087 = vunpack.c.l.b16 %v179
  %v2088 = vunpack.c.h.b16 %v179
  %v2089 = vunpack.c.l.b16 %v180
  %v2090 = vunpack.c.h.b16 %v180
  %v2091 = vunpack.c.l.b16 %v181
  %v2092 = vunpack.c.h.b16 %v181
  %v2093 = vunpack.c.l.b16 %v182
  %v2094 = vunpack.c.h.b16 %v182
  %v2095 = vunpack.c.l.b16 %v183
  %v2096 = vunpack.c.h.b16 %v183
  %v2097 = vpack.c.b16 %v1785, %v1777
  %v2098 = vpack.c.b16 %v1786, %v1778
  %v2099 = vpack.c.b16 %v1787, %v1779
  %v2100 = vpack.c.b16 %v1788, %v1780
  %v2101 = vpack.c.b16 %v1789, %v1781
  %v2102 = vpack.c.b16 %v1790, %v1782
  %v2103 = vpack.c.b16 %v1791, %v1783
  %v2104 = vpack.c.b16 %v1792, %v1784
  %v2105 = vpack.c.b16 %v1801, %v1793
  %v2106 = vpack.c.b16 %v1802, %v1794
  %v2107 = vpack.c.b16 %v1803, %v1795
  %v2108 = vpack.c.b16 %v1804, %v1796
  %v2109 = vpack.c.b16 %v1805, %v1797
  %v2110 = vpack.c.b16 %v1806, %v1798
  %v2111 = vpack.c.b16 %v1807, %v1799
  %v2112 = vpack.c.b16 %v1808, %v1800
  %v2113 = vpack.c.b16 %v1817, %v1809
  %v2114 = vpack.c.b16 %v1818, %v1810
  %v2115 = vpack.c.b16 %v1819, %v1811
  %v2116 = vpack.c.b16 %v1820, %v1812
  %v2117 = vpack.c.b16 %v1821, %v1813
  %v2118 = vpack.c.b16 %v1822, %v1814
  %v2119 = vpack.c.b16 %v1823, %v1815
  %v2120 = vpack.c.b16 %v1824, %v1816
  %v2121 = vpack.c.b16 %v1833, %v1825
  %v2122 = vpack.c.b16 %v1834, %v1826
  %v2123 = vpack.c.b16 %v1835, %v1827
  %v2124 = vpack.c.b16 %v1836, %v1828
  %v2125 = vpack.c.b16 %v1837, %v1829
  %v2126 = vpack.c.b16 %v1838, %v1830
  %v2127 = vpack.c.b16 %v1839, %v1831
  %v2128 = vpack.c.b16 %v1840, %v1832
  %v2129 = vpack.c.b16 %v1849, %v1841
  %v2130 = vpack.c.b16 %v1850, %v1842
  %v2131 = vpack.c.b16 %v1851, %v1843
  %v2132 = vpack.c.b16 %v1852, %v1844
  %v2133 = vpack.c.b16 %v1853, %v1845
  %v2134 = vpack.c.b16 %v1854, %v1846
  %v2135 = vpack.c.b16 %v1855, %v1847
  %v2136 = vpack.c.b16 %v1856, %v1848
  %v2137 = vpack.c.b16 %v1865, %v1857
  %v2138 = vpack.c.b16 %v1866, %v1858
  %v2139 = vpack.c.b16 %v1867, %v1859
  %v2140 = vpack.c.b16 %v1868, %v1860
  %v2141 = vpack.c.b16 %v1869, %v1861
  %v2142 = vpack.c.b16 %v1870, %v1862
  %v2143 = vpack.c.b16 %v1871, %v1863
  %v2144 = vpack.c.b16 %v1872, %v1864
  %v2145 = vpack.c.b16 %v1881, %v1873
  %v2146 = vpack.c.b16 %v1882, %v1874
  %v2147 = vpack.c.b16 %v1883, %v1875
  %v2148 = vpack.c.b16 %v1884, %v1876
  %v2149 = vpack.c.b16 %v1885, %v1877
  %v2150 = vpack.c.b16 %v1886, %v1878
  %v2151 = vpack.c.b16 %v1887, %v1879
  %v2152 = vpack.c.b16 %v1888, %v1880
  %v2153 = vpack.c.b16 %v1897, %v1889
  %v2154 = vpack.c.b16 %v1898, %v1890
  %v2155 = vpack.c.b16 %v1899, %v1891
  %v2156 = vpack.c.b16 %v1900, %v1892
  %v2157 = vpack.c.b16 %v1901, %v1893
  %v2158 = vpack.c.b16 %v1902, %v1894
  %v2159 = vpack.c.b16 %v1903, %v1895
  %v2160 = vpack.c.b16 %v1904, %v1896
  %v2161 = vpack.c.b16 %v1913, %v1905
  %v2162 = vpack.c.b16 %v1914, %v1906
  %v2163 = vpack.c.b16 %v1915, %v1907
  %v2164 = vpack.c.b16 %v1916, %v1908
  %v2165 = vpack.c.b16 %v1917, %v1909
  %v2166 = vpack.c.b16 %v1918, %v1910
  %v2167 = vpack.c.b16 %v1919, %v1911
  %v2168 = vpack.c.b16 %v1920, %v1912
  %v2169 = vpack.c.b16 %v1929, %v1921
  %v2170 = vpack.c.b16 %v1930, %v1922
  %v2171 = vpack.c.b16 %v1931, %v1923
  %v2172 = vpack.c.b16 %v1932, %v1924
  %v2173 = vpack.c.b16 %v1933, %v1925
  %v2174 = vpack.c.b16 %v1934, %v1926
  %v2175 = vpack.c.b16 %v1935, %v1927
  %v2176 = vpack.c.b16 %v1936, %v1928
  %v2177 = vpack.c.b16 %v1945, %v1937
  %v2178 = vpack.c.b16 %v1946, %v1938
  %v2179 = vpack.c.b16 %v1947, %v1939
  %v2180 = vpack.c.b16 %v1948, %v1940
  %v2181 = vpack.c.b16 %v1949, %v1941
  %v2182 = vpack.c.b16 %v1950, %v1942
  %v2183 = vpack.c.b16 %v1951, %v1943
  %v2184 = vpack.c.b16 %v1952, %v1944
  %v2185 = vpack.c.b16 %v1961, %v1953
  %v2186 = vpack.c.b16 %v1962, %v1954
  %v2187 = vpack.c.b16 %v1963, %v1955
  %v2188 = vpack.c.b16 %v1964, %v1956
  %v2189 = vpack.c.b16 %v1965, %v1957
  %v2190 = vpack.c.b16 %v1966, %v1958
  %v2191 = vpack.c.b16 %v1967, %v1959
  %v2192 = vpack.c.b16 %v1968, %v1960
  %v2193 = vpack.c.b16 %v1977, %v1969
  %v2194 = vpack.c.b16 %v1978, %v1970
  %v2195 = vpack.c.b16 %v1979, %v1971
  %v2196 = vpack.c.b16 %v1980, %v1972
  %v2197 = vpack.c.b16 %v1981, %v1973
  %v2198 = vpack.c.b16 %v1982, %v1974
  %v2199 = vpack.c.b16 %v1983, %v1975
  %v2200 = vpack.c.b16 %v1984, %v1976
  %v2201 = vpack.c.b16 %v1993, %v1985
  %v2202 = vpack.c.b16 %v1994, %v1986
  %v2203 = vpack.c.b16 %v1995, %v1987
  %v2204 = vpack.c.b16 %v1996, %v1988
  %v2205 = vpack.c.b16 %v1997, %v1989
  %v2206 = vpack.c.b16 %v1998, %v1990
  %v2207 = vpack.c.b16 %v1999, %v1991
  %v2208 = vpack.c.b16 %v2000, %v1992
  %v2209 = vpack.c.b16 %v2009, %v2001
  %v2210 = vpack.c.b16 %v2010, %v2002
  %v2211 = vpack.c.b16 %v2011, %v2003
  %v2212 = vpack.c.b16 %v2012, %v2004
  %v2213 = vpack.c.b16 %v2013, %v2005
  %v2214 = vpack.c.b16 %v2014, %v2006
  %v2215 = vpack.c.b16 %v2015, %v2007
  %v2216 = vpack.c.b16 %v2016, %v2008
  %v2217 = vpack.c.b16 %v2025, %v2017
  %v2218 = vpack.c.b16 %v2026, %v2018
  %v2219 = vpack.c.b16 %v2027, %v2019
  %v2220 = vpack.c.b16 %v2028, %v2020
  %v2221 = vpack.c.b16 %v2029, %v2021
  %v2222 = vpack.c.b16 %v2030, %v2022
  %v2223 = vpack.c.b16 %v2031, %v2023
  %v2224 = vpack.c.b16 %v2032, %v2024
  %v2225 = vpack.c.b16 %v2041, %v2033
  %v2226 = vpack.c.b16 %v2042, %v2034
  %v2227 = vpack.c.b16 %v2043, %v2035
  %v2228 = vpack.c.b16 %v2044, %v2036
  %v2229 = vpack.c.b16 %v2045, %v2037
  %v2230 = vpack.c.b16 %v2046, %v2038
  %v2231 = vpack.c.b16 %v2047, %v2039
  %v2232 = vpack.c.b16 %v2048, %v2040
  %v2233 = vpack.c.b16 %v2057, %v2049
  %v2234 = vpack.c.b16 %v2058, %v2050
  %v2235 = vpack.c.b16 %v2059, %v2051
  %v2236 = vpack.c.b16 %v2060, %v2052
  %v2237 = vpack.c.b16 %v2061, %v2053
  %v2238 = vpack.c.b16 %v2062, %v2054
  %v2239 = vpack.c.b16 %v2063, %v2055
  %v2240 = vpack.c.b16 %v2064, %v2056
  %v2241 = vpack.c.b16 %v2073, %v2065
  %v2242 = vpack.c.b16 %v2074, %v2066
  %v2243 = vpack.c.b16 %v2075, %v2067
  %v2244 = vpack.c.b16 %v2076, %v2068
  %v2245 = vpack.c.b16 %v2077, %v2069
  %v2246 = vpack.c.b16 %v2078, %v2070
  %v2247 = vpack.c.b16 %v2079, %v2071
  %v2248 = vpack.c.b16 %v2080, %v2072
  %v2249 = vpack.c.b16 %v2089, %v2081
  %v2250 = vpack.c.b16 %v2090, %v2082
  %v2251 = vpack.c.b16 %v2091, %v2083
  %v2252 = vpack.c.b16 %v2092, %v2084
  %v2253 = vpack.c.b16 %v2093, %v2085
  %v2254 = vpack.c.b16 %v2094, %v2086
  %v2255 = vpack.c.b16 %v2095, %v2087
  %v2256 = vpack.c.b16 %v2096, %v2088
  %v2418 = vsel %vm1177, %v1609, 0
  %v2421 = vsel %vm1177, %v1612, 0
  %2423 = vmatprep.subr.bf16.mxu0 %v2098
  %2424 = vmatpush1.bf16.msra.mxu0 %v2097
  %2425 = vmatprep.subr.bf16.mxu0 %v2106
  %2426 = vmatpush1.bf16.msra.mxu0 %v2105
  %2427 = vmatprep.subr.bf16.mxu0 %v2114
  %2428 = vmatpush1.bf16.msra.mxu0 %v2113
  %2429 = vmatprep.subr.bf16.mxu0 %v2122
  %2430 = vmatpush1.bf16.msra.mxu0 %v2121
  %2431 = vmatprep.subr.bf16.mxu0 %v2130
  %2432 = vmatpush1.bf16.msra.mxu0 %v2129
  %2433 = vmatprep.subr.bf16.mxu0 %v2138
  %2434 = vmatpush1.bf16.msra.mxu0 %v2137
  %2435 = vmatprep.subr.bf16.mxu0 %v2146
  %2436 = vmatpush1.bf16.msra.mxu0 %v2145
  %2437 = vmatprep.subr.bf16.mxu0 %v2154
  %2438 = vmatpush1.bf16.msra.mxu0 %v2153
  %2439 = vmatprep.subr.bf16.mxu0 %v2162
  %2440 = vmatpush1.bf16.msra.mxu0 %v2161
  %2441 = vmatprep.subr.bf16.mxu0 %v2170
  %2442 = vmatpush1.bf16.msra.mxu0 %v2169
  %2443 = vmatprep.subr.bf16.mxu0 %v2178
  %2444 = vmatpush1.bf16.msra.mxu0 %v2177
  %2445 = vmatprep.subr.bf16.mxu0 %v2186
  %2446 = vmatpush1.bf16.msra.mxu0 %v2185
  %2447 = vmatprep.subr.bf16.mxu0 %v2194
  %2448 = vmatpush1.bf16.msra.mxu0 %v2193
  %2449 = vmatprep.subr.bf16.mxu0 %v2202
  %2450 = vmatpush1.bf16.msra.mxu0 %v2201
  %2451 = vmatprep.subr.bf16.mxu0 %v2210
  %2452 = vmatpush1.bf16.msra.mxu0 %v2209
  %2453 = vmatprep.subr.bf16.mxu0 %v2218
  %2454 = vmatpush1.bf16.msra.mxu0 %v2217
  %2455 = vmatprep.mubr.bf16.mxu0 %v1608
  %2456 = vmatmul.mubr.bf16.gmra.mrb[0].mxu0 %v1607
  %v2457 = vpop.f32.mrb[0].mxu0
  %v2458 = vadd.f32 %v1270, %v2457
  %v2459 = vpop.f32.mrb[0].mxu0
  %v2460 = vadd.f32 %v1272, %v2459
  %v2461 = vpop.f32.mrb[0].mxu0
  %v2462 = vadd.f32 %v1274, %v2461
  %v2463 = vpop.f32.mrb[0].mxu0
  %v2464 = vadd.f32 %v1276, %v2463
  %2465 = vmatprep.mubr.bf16.mxu0 %v1611
  %2466 = vmatmul.mubr.bf16.gmra.mrb[0].mxu0 %v1610
  %v2467 = vpop.f32.mrb[0].mxu0
  %v2468 = vadd.f32 %v1280, %v2467
  %v2469 = vpop.f32.mrb[0].mxu0
  %v2470 = vadd.f32 %v1282, %v2469
  %v2471 = vpop.f32.mrb[0].mxu0
  %v2472 = vpop.f32.mrb[0].mxu0
  %2473 = vdwg.mxu0
  %2474 = vmatprep.subr.bf16.mxu0 %v2226
  %2475 = vmatpush1.bf16.msra.mxu0 %v2225
  %2476 = vmatprep.subr.bf16.mxu0 %v2234
  %2477 = vmatpush1.bf16.msra.mxu0 %v2233
  %2478 = vmatprep.subr.bf16.mxu0 %v2242
  %2479 = vmatpush1.bf16.msra.mxu0 %v2241
  %2480 = vmatprep.subr.bf16.mxu0 %v2250
  %2481 = vmatpush1.bf16.msra.mxu0 %v2249
  %2482 = vmatprep.subr.bf16.mxu0 0
  %2483 = vmatpush1.bf16.msra.mxu0 0
  %2484 = vmatprep.subr.bf16.mxu0 0
  %2485 = vmatpush1.bf16.msra.mxu0 0
  %2486 = vmatprep.subr.bf16.mxu0 0
  %2487 = vmatpush1.bf16.msra.mxu0 0
  %2488 = vmatprep.subr.bf16.mxu0 0
  %2489 = vmatpush1.bf16.msra.mxu0 0
  %2490 = vmatprep.subr.bf16.mxu0 0
  %2491 = vmatpush1.bf16.msra.mxu0 0
  %2492 = vmatprep.subr.bf16.mxu0 0
  %2493 = vmatpush1.bf16.msra.mxu0 0
  %2494 = vmatprep.subr.bf16.mxu0 0
  %2495 = vmatpush1.bf16.msra.mxu0 0
  %2496 = vmatprep.subr.bf16.mxu0 0
  %2497 = vmatpush1.bf16.msra.mxu0 0
  %2498 = vmatprep.subr.bf16.mxu0 0
  %2499 = vmatpush1.bf16.msra.mxu0 0
  %2500 = vmatprep.subr.bf16.mxu0 0
  %2501 = vmatpush1.bf16.msra.mxu0 0
  %2502 = vmatprep.subr.bf16.mxu0 0
  %2503 = vmatpush1.bf16.msra.mxu0 0
  %2504 = vmatprep.subr.bf16.mxu0 0
  %2505 = vmatpush1.bf16.msra.mxu0 0
  %2506 = vmatprep.mubr.bf16.mxu0 0
  %2507 = vmatmul.mubr.bf16.gmra.mrb[0].mxu0 %v2418
  %v2508 = vpop.f32.mrb[0].mxu0
  %v2509 = vadd.f32 %v2458, %v2508
  %v2510 = vpop.f32.mrb[0].mxu0
  %v2511 = vadd.f32 %v2460, %v2510
  %v2512 = vpop.f32.mrb[0].mxu0
  %v2513 = vadd.f32 %v2462, %v2512
  %v2514 = vpop.f32.mrb[0].mxu0
  %v2515 = vadd.f32 %v2464, %v2514
  %2516 = vmatprep.mubr.bf16.mxu0 0
  %2517 = vmatmul.mubr.bf16.gmra.mrb[0].mxu0 %v2421
  %v2518 = vpop.f32.mrb[0].mxu0
  %v2519 = vadd.f32 %v2468, %v2518
  %v2520 = vpop.f32.mrb[0].mxu0
  %v2521 = vadd.f32 %v2470, %v2520
  %v2522 = vpop.f32.mrb[0].mxu0
  %v2523 = vpop.f32.mrb[0].mxu0
  %2524 = vdwg.mxu0
  %2525 = vmatprep.subr.bf16.mxu0 %v2100
  %2526 = vmatpush1.bf16.msra.mxu0 %v2099
  %2527 = vmatprep.subr.bf16.mxu0 %v2108
  %2528 = vmatpush1.bf16.msra.mxu0 %v2107
  %2529 = vmatprep.subr.bf16.mxu0 %v2116
  %2530 = vmatpush1.bf16.msra.mxu0 %v2115
  %2531 = vmatprep.subr.bf16.mxu0 %v2124
  %2532 = vmatpush1.bf16.msra.mxu0 %v2123
  %2533 = vmatprep.subr.bf16.mxu0 %v2132
  %2534 = vmatpush1.bf16.msra.mxu0 %v2131
  %2535 = vmatprep.subr.bf16.mxu0 %v2140
  %2536 = vmatpush1.bf16.msra.mxu0 %v2139
  %2537 = vmatprep.subr.bf16.mxu0 %v2148
  %2538 = vmatpush1.bf16.msra.mxu0 %v2147
  %2539 = vmatprep.subr.bf16.mxu0 %v2156
  %2540 = vmatpush1.bf16.msra.mxu0 %v2155
  %2541 = vmatprep.subr.bf16.mxu0 %v2164
  %2542 = vmatpush1.bf16.msra.mxu0 %v2163
  %2543 = vmatprep.subr.bf16.mxu0 %v2172
  %2544 = vmatpush1.bf16.msra.mxu0 %v2171
  %2545 = vmatprep.subr.bf16.mxu0 %v2180
  %2546 = vmatpush1.bf16.msra.mxu0 %v2179
  %2547 = vmatprep.subr.bf16.mxu0 %v2188
  %2548 = vmatpush1.bf16.msra.mxu0 %v2187
  %2549 = vmatprep.subr.bf16.mxu0 %v2196
  %2550 = vmatpush1.bf16.msra.mxu0 %v2195
  %2551 = vmatprep.subr.bf16.mxu0 %v2204
  %2552 = vmatpush1.bf16.msra.mxu0 %v2203
  %2553 = vmatprep.subr.bf16.mxu0 %v2212
  %2554 = vmatpush1.bf16.msra.mxu0 %v2211
  %2555 = vmatprep.subr.bf16.mxu0 %v2220
  %2556 = vmatpush1.bf16.msra.mxu0 %v2219
  %2557 = vmatprep.mubr.bf16.mxu0 %v1608
  %2558 = vmatmul.mubr.bf16.gmra.mrb[0].mxu0 %v1607
  %v2559 = vpop.f32.mrb[0].mxu0
  %v2560 = vadd.f32 %v1372, %v2559
  %v2561 = vpop.f32.mrb[0].mxu0
  %v2562 = vadd.f32 %v1374, %v2561
  %v2563 = vpop.f32.mrb[0].mxu0
  %v2564 = vadd.f32 %v1376, %v2563
  %v2565 = vpop.f32.mrb[0].mxu0
  %v2566 = vadd.f32 %v1378, %v2565
  %2567 = vmatprep.mubr.bf16.mxu0 %v1611
  %2568 = vmatmul.mubr.bf16.gmra.mrb[0].mxu0 %v1610
  %v2569 = vpop.f32.mrb[0].mxu0
  %v2570 = vadd.f32 %v1382, %v2569
  %v2571 = vpop.f32.mrb[0].mxu0
  %v2572 = vadd.f32 %v1384, %v2571
  %v2573 = vpop.f32.mrb[0].mxu0
  %v2574 = vpop.f32.mrb[0].mxu0
  %2575 = vdwg.mxu0
  %2576 = vmatprep.subr.bf16.mxu0 %v2228
  %2577 = vmatpush1.bf16.msra.mxu0 %v2227
  %2578 = vmatprep.subr.bf16.mxu0 %v2236
  %2579 = vmatpush1.bf16.msra.mxu0 %v2235
  %2580 = vmatprep.subr.bf16.mxu0 %v2244
  %2581 = vmatpush1.bf16.msra.mxu0 %v2243
  %2582 = vmatprep.subr.bf16.mxu0 %v2252
  %2583 = vmatpush1.bf16.msra.mxu0 %v2251
  %2584 = vmatprep.subr.bf16.mxu0 0
  %2585 = vmatpush1.bf16.msra.mxu0 0
  %2586 = vmatprep.subr.bf16.mxu0 0
  %2587 = vmatpush1.bf16.msra.mxu0 0
  %2588 = vmatprep.subr.bf16.mxu0 0
  %2589 = vmatpush1.bf16.msra.mxu0 0
  %2590 = vmatprep.subr.bf16.mxu0 0
  %2591 = vmatpush1.bf16.msra.mxu0 0
  %2592 = vmatprep.subr.bf16.mxu0 0
  %2593 = vmatpush1.bf16.msra.mxu0 0
  %2594 = vmatprep.subr.bf16.mxu0 0
  %2595 = vmatpush1.bf16.msra.mxu0 0
  %2596 = vmatprep.subr.bf16.mxu0 0
  %2597 = vmatpush1.bf16.msra.mxu0 0
  %2598 = vmatprep.subr.bf16.mxu0 0
  %2599 = vmatpush1.bf16.msra.mxu0 0
  %2600 = vmatprep.subr.bf16.mxu0 0
  %2601 = vmatpush1.bf16.msra.mxu0 0
  %2602 = vmatprep.subr.bf16.mxu0 0
  %2603 = vmatpush1.bf16.msra.mxu0 0
  %2604 = vmatprep.subr.bf16.mxu0 0
  %2605 = vmatpush1.bf16.msra.mxu0 0
  %2606 = vmatprep.subr.bf16.mxu0 0
  %2607 = vmatpush1.bf16.msra.mxu0 0
  %2608 = vmatprep.mubr.bf16.mxu0 0
  %2609 = vmatmul.mubr.bf16.gmra.mrb[0].mxu0 %v2418
  %v2610 = vpop.f32.mrb[0].mxu0
  %v2611 = vadd.f32 %v2560, %v2610
  %v2612 = vpop.f32.mrb[0].mxu0
  %v2613 = vadd.f32 %v2562, %v2612
  %v2614 = vpop.f32.mrb[0].mxu0
  %v2615 = vadd.f32 %v2564, %v2614
  %v2616 = vpop.f32.mrb[0].mxu0
  %v2617 = vadd.f32 %v2566, %v2616
  %2618 = vmatprep.mubr.bf16.mxu0 0
  %2619 = vmatmul.mubr.bf16.gmra.mrb[0].mxu0 %v2421
  %v2620 = vpop.f32.mrb[0].mxu0
  %v2621 = vadd.f32 %v2570, %v2620
  %v2622 = vpop.f32.mrb[0].mxu0
  %v2623 = vadd.f32 %v2572, %v2622
  %v2624 = vpop.f32.mrb[0].mxu0
  %v2625 = vpop.f32.mrb[0].mxu0
  %2626 = vdwg.mxu0
  %2627 = vmatprep.subr.bf16.mxu0 %v2102
  %2628 = vmatpush1.bf16.msra.mxu0 %v2101
  %2629 = vmatprep.subr.bf16.mxu0 %v2110
  %2630 = vmatpush1.bf16.msra.mxu0 %v2109
  %2631 = vmatprep.subr.bf16.mxu0 %v2118
  %2632 = vmatpush1.bf16.msra.mxu0 %v2117
  %2633 = vmatprep.subr.bf16.mxu0 %v2126
  %2634 = vmatpush1.bf16.msra.mxu0 %v2125
  %2635 = vmatprep.subr.bf16.mxu0 %v2134
  %2636 = vmatpush1.bf16.msra.mxu0 %v2133
  %2637 = vmatprep.subr.bf16.mxu0 %v2142
  %2638 = vmatpush1.bf16.msra.mxu0 %v2141
  %2639 = vmatprep.subr.bf16.mxu0 %v2150
  %2640 = vmatpush1.bf16.msra.mxu0 %v2149
  %2641 = vmatprep.subr.bf16.mxu0 %v2158
  %2642 = vmatpush1.bf16.msra.mxu0 %v2157
  %2643 = vmatprep.subr.bf16.mxu0 %v2166
  %2644 = vmatpush1.bf16.msra.mxu0 %v2165
  %2645 = vmatprep.subr.bf16.mxu0 %v2174
  %2646 = vmatpush1.bf16.msra.mxu0 %v2173
  %2647 = vmatprep.subr.bf16.mxu0 %v2182
  %2648 = vmatpush1.bf16.msra.mxu0 %v2181
  %2649 = vmatprep.subr.bf16.mxu0 %v2190
  %2650 = vmatpush1.bf16.msra.mxu0 %v2189
  %2651 = vmatprep.subr.bf16.mxu0 %v2198
  %2652 = vmatpush1.bf16.msra.mxu0 %v2197
  %2653 = vmatprep.subr.bf16.mxu0 %v2206
  %2654 = vmatpush1.bf16.msra.mxu0 %v2205
  %2655 = vmatprep.subr.bf16.mxu0 %v2214
  %2656 = vmatpush1.bf16.msra.mxu0 %v2213
  %2657 = vmatprep.subr.bf16.mxu0 %v2222
  %2658 = vmatpush1.bf16.msra.mxu0 %v2221
  %2659 = vmatprep.mubr.bf16.mxu0 %v1608
  %2660 = vmatmul.mubr.bf16.gmra.mrb[0].mxu0 %v1607
  %v2661 = vpop.f32.mrb[0].mxu0
  %v2662 = vadd.f32 %v1474, %v2661
  %v2663 = vpop.f32.mrb[0].mxu0
  %v2664 = vadd.f32 %v1476, %v2663
  %v2665 = vpop.f32.mrb[0].mxu0
  %v2666 = vadd.f32 %v1478, %v2665
  %v2667 = vpop.f32.mrb[0].mxu0
  %v2668 = vadd.f32 %v1480, %v2667
  %2669 = vmatprep.mubr.bf16.mxu0 %v1611
  %2670 = vmatmul.mubr.bf16.gmra.mrb[0].mxu0 %v1610
  %v2671 = vpop.f32.mrb[0].mxu0
  %v2672 = vadd.f32 %v1484, %v2671
  %v2673 = vpop.f32.mrb[0].mxu0
  %v2674 = vadd.f32 %v1486, %v2673
  %v2675 = vpop.f32.mrb[0].mxu0
  %v2676 = vpop.f32.mrb[0].mxu0
  %2677 = vdwg.mxu0
  %2678 = vmatprep.subr.bf16.mxu0 %v2230
  %2679 = vmatpush1.bf16.msra.mxu0 %v2229
  %2680 = vmatprep.subr.bf16.mxu0 %v2238
  %2681 = vmatpush1.bf16.msra.mxu0 %v2237
  %2682 = vmatprep.subr.bf16.mxu0 %v2246
  %2683 = vmatpush1.bf16.msra.mxu0 %v2245
  %2684 = vmatprep.subr.bf16.mxu0 %v2254
  %2685 = vmatpush1.bf16.msra.mxu0 %v2253
  %2686 = vmatprep.subr.bf16.mxu0 0
  %2687 = vmatpush1.bf16.msra.mxu0 0
  %2688 = vmatprep.subr.bf16.mxu0 0
  %2689 = vmatpush1.bf16.msra.mxu0 0
  %2690 = vmatprep.subr.bf16.mxu0 0
  %2691 = vmatpush1.bf16.msra.mxu0 0
  %2692 = vmatprep.subr.bf16.mxu0 0
  %2693 = vmatpush1.bf16.msra.mxu0 0
  %2694 = vmatprep.subr.bf16.mxu0 0
  %2695 = vmatpush1.bf16.msra.mxu0 0
  %2696 = vmatprep.subr.bf16.mxu0 0
  %2697 = vmatpush1.bf16.msra.mxu0 0
  %2698 = vmatprep.subr.bf16.mxu0 0
  %2699 = vmatpush1.bf16.msra.mxu0 0
  %2700 = vmatprep.subr.bf16.mxu0 0
  %2701 = vmatpush1.bf16.msra.mxu0 0
  %2702 = vmatprep.subr.bf16.mxu0 0
  %2703 = vmatpush1.bf16.msra.mxu0 0
  %2704 = vmatprep.subr.bf16.mxu0 0
  %2705 = vmatpush1.bf16.msra.mxu0 0
  %2706 = vmatprep.subr.bf16.mxu0 0
  %2707 = vmatpush1.bf16.msra.mxu0 0
  %2708 = vmatprep.subr.bf16.mxu0 0
  %2709 = vmatpush1.bf16.msra.mxu0 0
  %2710 = vmatprep.mubr.bf16.mxu0 0
  %2711 = vmatmul.mubr.bf16.gmra.mrb[0].mxu0 %v2418
  %v2712 = vpop.f32.mrb[0].mxu0
  %v2713 = vadd.f32 %v2662, %v2712
  %v2714 = vpop.f32.mrb[0].mxu0
  %v2715 = vadd.f32 %v2664, %v2714
  %v2716 = vpop.f32.mrb[0].mxu0
  %v2717 = vadd.f32 %v2666, %v2716
  %v2718 = vpop.f32.mrb[0].mxu0
  %v2719 = vadd.f32 %v2668, %v2718
  %2720 = vmatprep.mubr.bf16.mxu0 0
  %2721 = vmatmul.mubr.bf16.gmra.mrb[0].mxu0 %v2421
  %v2722 = vpop.f32.mrb[0].mxu0
  %v2723 = vadd.f32 %v2672, %v2722
  %v2724 = vpop.f32.mrb[0].mxu0
  %v2725 = vadd.f32 %v2674, %v2724
  %v2726 = vpop.f32.mrb[0].mxu0
  %v2727 = vpop.f32.mrb[0].mxu0
  %2728 = vdwg.mxu0
  %2729 = vmatprep.subr.bf16.mxu0 %v2104
  %2730 = vmatpush1.bf16.msra.mxu0 %v2103
  %2731 = vmatprep.subr.bf16.mxu0 %v2112
  %2732 = vmatpush1.bf16.msra.mxu0 %v2111
  %2733 = vmatprep.subr.bf16.mxu0 %v2120
  %2734 = vmatpush1.bf16.msra.mxu0 %v2119
  %2735 = vmatprep.subr.bf16.mxu0 %v2128
  %2736 = vmatpush1.bf16.msra.mxu0 %v2127
  %2737 = vmatprep.subr.bf16.mxu0 %v2136
  %2738 = vmatpush1.bf16.msra.mxu0 %v2135
  %2739 = vmatprep.subr.bf16.mxu0 %v2144
  %2740 = vmatpush1.bf16.msra.mxu0 %v2143
  %2741 = vmatprep.subr.bf16.mxu0 %v2152
  %2742 = vmatpush1.bf16.msra.mxu0 %v2151
  %2743 = vmatprep.subr.bf16.mxu0 %v2160
  %2744 = vmatpush1.bf16.msra.mxu0 %v2159
  %2745 = vmatprep.subr.bf16.mxu0 %v2168
  %2746 = vmatpush1.bf16.msra.mxu0 %v2167
  %2747 = vmatprep.subr.bf16.mxu0 %v2176
  %2748 = vmatpush1.bf16.msra.mxu0 %v2175
  %2749 = vmatprep.subr.bf16.mxu0 %v2184
  %2750 = vmatpush1.bf16.msra.mxu0 %v2183
  %2751 = vmatprep.subr.bf16.mxu0 %v2192
  %2752 = vmatpush1.bf16.msra.mxu0 %v2191
  %2753 = vmatprep.subr.bf16.mxu0 %v2200
  %2754 = vmatpush1.bf16.msra.mxu0 %v2199
  %2755 = vmatprep.subr.bf16.mxu0 %v2208
  %2756 = vmatpush1.bf16.msra.mxu0 %v2207
  %2757 = vmatprep.subr.bf16.mxu0 %v2216
  %2758 = vmatpush1.bf16.msra.mxu0 %v2215
  %2759 = vmatprep.subr.bf16.mxu0 %v2224
  %2760 = vmatpush1.bf16.msra.mxu0 %v2223
  %2761 = vmatprep.mubr.bf16.mxu0 %v1608
  %2762 = vmatmul.mubr.bf16.gmra.mrb[0].mxu0 %v1607
  %v2763 = vpop.f32.mrb[0].mxu0
  %v2764 = vadd.f32 %v1576, %v2763
  %v2765 = vpop.f32.mrb[0].mxu0
  %v2766 = vadd.f32 %v1578, %v2765
  %v2767 = vpop.f32.mrb[0].mxu0
  %v2768 = vadd.f32 %v1580, %v2767
  %v2769 = vpop.f32.mrb[0].mxu0
  %v2770 = vadd.f32 %v1582, %v2769
  %2771 = vmatprep.mubr.bf16.mxu0 %v1611
  %2772 = vmatmul.mubr.bf16.gmra.mrb[0].mxu0 %v1610
  %v2773 = vpop.f32.mrb[0].mxu0
  %v2774 = vadd.f32 %v1586, %v2773
  %v2775 = vpop.f32.mrb[0].mxu0
  %v2776 = vadd.f32 %v1588, %v2775
  %v2777 = vpop.f32.mrb[0].mxu0
  %v2778 = vpop.f32.mrb[0].mxu0
  %2779 = vdwg.mxu0
  %2780 = vmatprep.subr.bf16.mxu0 %v2232
  %2781 = vmatpush1.bf16.msra.mxu0 %v2231
  %2782 = vmatprep.subr.bf16.mxu0 %v2240
  %2783 = vmatpush1.bf16.msra.mxu0 %v2239
  %2784 = vmatprep.subr.bf16.mxu0 %v2248
  %2785 = vmatpush1.bf16.msra.mxu0 %v2247
  %2786 = vmatprep.subr.bf16.mxu0 %v2256
  %2787 = vmatpush1.bf16.msra.mxu0 %v2255
  %2788 = vmatprep.subr.bf16.mxu0 0
  %2789 = vmatpush1.bf16.msra.mxu0 0
  %2790 = vmatprep.subr.bf16.mxu0 0
  %2791 = vmatpush1.bf16.msra.mxu0 0
  %2792 = vmatprep.subr.bf16.mxu0 0
  %2793 = vmatpush1.bf16.msra.mxu0 0
  %2794 = vmatprep.subr.bf16.mxu0 0
  %2795 = vmatpush1.bf16.msra.mxu0 0
  %2796 = vmatprep.subr.bf16.mxu0 0
  %2797 = vmatpush1.bf16.msra.mxu0 0
  %2798 = vmatprep.subr.bf16.mxu0 0
  %2799 = vmatpush1.bf16.msra.mxu0 0
  %2800 = vmatprep.subr.bf16.mxu0 0
  %2801 = vmatpush1.bf16.msra.mxu0 0
  %2802 = vmatprep.subr.bf16.mxu0 0
  %2803 = vmatpush1.bf16.msra.mxu0 0
  %2804 = vmatprep.subr.bf16.mxu0 0
  %2805 = vmatpush1.bf16.msra.mxu0 0
  %2806 = vmatprep.subr.bf16.mxu0 0
  %2807 = vmatpush1.bf16.msra.mxu0 0
  %2808 = vmatprep.subr.bf16.mxu0 0
  %2809 = vmatpush1.bf16.msra.mxu0 0
  %2810 = vmatprep.subr.bf16.mxu0 0
  %2811 = vmatpush1.bf16.msra.mxu0 0
  %2812 = vmatprep.mubr.bf16.mxu0 0
  %2813 = vmatmul.mubr.bf16.gmra.mrb[0].mxu0 %v2418
  %v2814 = vpop.f32.mrb[0].mxu0
  %v2815 = vadd.f32 %v2764, %v2814
  %v2816 = vpop.f32.mrb[0].mxu0
  %v2817 = vadd.f32 %v2766, %v2816
  %v2818 = vpop.f32.mrb[0].mxu0
  %v2819 = vadd.f32 %v2768, %v2818
  %v2820 = vpop.f32.mrb[0].mxu0
  %v2821 = vadd.f32 %v2770, %v2820
  %2822 = vmatprep.mubr.bf16.mxu0 0
  %2823 = vmatmul.mubr.bf16.gmra.mrb[0].mxu0 %v2421
  %v2824 = vpop.f32.mrb[0].mxu0
  %v2825 = vadd.f32 %v2774, %v2824
  %v2826 = vpop.f32.mrb[0].mxu0
  %v2827 = vadd.f32 %v2776, %v2826
  %v2828 = vpop.f32.mrb[0].mxu0
  %v2829 = vpop.f32.mrb[0].mxu0
  %2830 = vdwg.mxu0
  %s2831 = scalar_lea.vmem %s0, 72
  %v2832 = vld [vmem:[%s2831] sm:$0xff]
  %v2833 = vld [vmem:[%s2831 + $0x8] sm:$0xf]
  %v2834 = vld [vmem:[%s2831 + $0xc] sm:$0xff]
  %v2835 = vld [vmem:[%s2831 + $0x14] sm:$0xf]
  %v2836 = vld [vmem:[%s2831 + $0x18] sm:$0x33]
  %v2837 = vld [vmem:[%s2831 + $0x20] sm:$0x3]
  %s2838 = scalar_lea.vmem %s1, 2560
  %v2839 = vld [vmem:[%s2838] sm:$0xff]
  %v2840 = vld [vmem:[%s2838 + $0x8] sm:$0xff]
  %v2841 = vld [vmem:[%s2838 + $0x10] sm:$0xff]
  %v2842 = vld [vmem:[%s2838 + $0x18] sm:$0xff]
  %v2843 = vld [vmem:[%s2838 + $0x20] sm:$0xff]
  %v2844 = vld [vmem:[%s2838 + $0x28] sm:$0xff]
  %v2845 = vld [vmem:[%s2838 + $0x30] sm:$0xff]
  %v2846 = vld [vmem:[%s2838 + $0x38] sm:$0xff]
  %v2847 = vld [vmem:[%s2838 + $0x40] sm:$0xff]
  %v2848 = vld [vmem:[%s2838 + $0x48] sm:$0xff]
  %v2849 = vld [vmem:[%s2838 + $0x50] sm:$0xff]
  %v2850 = vld [vmem:[%s2838 + $0x58] sm:$0xff]
  %v2851 = vld [vmem:[%s2838 + $0x60] sm:$0xff]
  %v2852 = vld [vmem:[%s2838 + $0x68] sm:$0xff]
  %v2853 = vld [vmem:[%s2838 + $0x70] sm:$0xff]
  %v2854 = vld [vmem:[%s2838 + $0x78] sm:$0xff]
  %v2855 = vld [vmem:[%s2838 + $0x80] sm:$0xff]
  %v2856 = vld [vmem:[%s2838 + $0x88] sm:$0xff]
  %v2857 = vld [vmem:[%s2838 + $0x90] sm:$0xff]
  %v2858 = vld [vmem:[%s2838 + $0x98] sm:$0xff]
  %v2859 = vld [vmem:[%s2838 + $0xa0] sm:$0xff]
  %v2860 = vld [vmem:[%s2838 + $0xa8] sm:$0xff]
  %v2861 = vld [vmem:[%s2838 + $0xb0] sm:$0xff]
  %v2862 = vld [vmem:[%s2838 + $0xb8] sm:$0xff]
  %v2863 = vld [vmem:[%s2838 + $0xc0] sm:$0xff]
  %v2864 = vld [vmem:[%s2838 + $0xc8] sm:$0xff]
  %v2865 = vld [vmem:[%s2838 + $0xd0] sm:$0xff]
  %v2866 = vld [vmem:[%s2838 + $0xd8] sm:$0xff]
  %v2867 = vld [vmem:[%s2838 + $0xe0] sm:$0xff]
  %v2868 = vld [vmem:[%s2838 + $0xe8] sm:$0xff]
  %v2869 = vld [vmem:[%s2838 + $0xf0] sm:$0xff]
  %v2870 = vld [vmem:[%s2838 + $0xf8] sm:$0xff]
  %v2871 = vld [vmem:[%s2838 + $0x100] sm:$0xff]
  %v2872 = vld [vmem:[%s2838 + $0x108] sm:$0xff]
  %v2873 = vld [vmem:[%s2838 + $0x110] sm:$0xff]
  %v2874 = vld [vmem:[%s2838 + $0x118] sm:$0xff]
  %v2875 = vld [vmem:[%s2838 + $0x120] sm:$0xff]
  %v2876 = vld [vmem:[%s2838 + $0x128] sm:$0xff]
  %v2877 = vld [vmem:[%s2838 + $0x130] sm:$0xff]
  %v2878 = vld [vmem:[%s2838 + $0x138] sm:$0xff]
  %v2879 = vld [vmem:[%s2838 + $0x140] sm:$0xff]
  %v2880 = vld [vmem:[%s2838 + $0x148] sm:$0xff]
  %v2881 = vld [vmem:[%s2838 + $0x150] sm:$0xff]
  %v2882 = vld [vmem:[%s2838 + $0x158] sm:$0xff]
  %v2883 = vld [vmem:[%s2838 + $0x160] sm:$0xff]
  %v2884 = vld [vmem:[%s2838 + $0x168] sm:$0xff]
  %v2885 = vld [vmem:[%s2838 + $0x170] sm:$0xff]
  %v2886 = vld [vmem:[%s2838 + $0x178] sm:$0xff]
  %v2887 = vld [vmem:[%s2838 + $0x180] sm:$0xff]
  %v2888 = vld [vmem:[%s2838 + $0x188] sm:$0xff]
  %v2889 = vld [vmem:[%s2838 + $0x190] sm:$0xff]
  %v2890 = vld [vmem:[%s2838 + $0x198] sm:$0xff]
  %v2891 = vld [vmem:[%s2838 + $0x1a0] sm:$0xff]
  %v2892 = vld [vmem:[%s2838 + $0x1a8] sm:$0xff]
  %v2893 = vld [vmem:[%s2838 + $0x1b0] sm:$0xff]
  %v2894 = vld [vmem:[%s2838 + $0x1b8] sm:$0xff]
  %v2895 = vld [vmem:[%s2838 + $0x1c0] sm:$0xff]
  %v2896 = vld [vmem:[%s2838 + $0x1c8] sm:$0xff]
  %v2897 = vld [vmem:[%s2838 + $0x1d0] sm:$0xff]
  %v2898 = vld [vmem:[%s2838 + $0x1d8] sm:$0xff]
  %v2899 = vld [vmem:[%s2838 + $0x1e0] sm:$0xff]
  %v2900 = vld [vmem:[%s2838 + $0x1e8] sm:$0xff]
  %v2901 = vld [vmem:[%s2838 + $0x1f0] sm:$0xff]
  %v2902 = vld [vmem:[%s2838 + $0x1f8] sm:$0xff]
  %v2903 = vld [vmem:[%s2838 + $0x200] sm:$0xff]
  %v2904 = vld [vmem:[%s2838 + $0x208] sm:$0xff]
  %v2905 = vld [vmem:[%s2838 + $0x210] sm:$0xff]
  %v2906 = vld [vmem:[%s2838 + $0x218] sm:$0xff]
  %v2907 = vld [vmem:[%s2838 + $0x220] sm:$0xff]
  %v2908 = vld [vmem:[%s2838 + $0x228] sm:$0xff]
  %v2909 = vld [vmem:[%s2838 + $0x230] sm:$0xff]
  %v2910 = vld [vmem:[%s2838 + $0x238] sm:$0xff]
  %v2911 = vld [vmem:[%s2838 + $0x240] sm:$0xff]
  %v2912 = vld [vmem:[%s2838 + $0x248] sm:$0xff]
  %v2913 = vld [vmem:[%s2838 + $0x250] sm:$0xff]
  %v2914 = vld [vmem:[%s2838 + $0x258] sm:$0xff]
  %v2915 = vld [vmem:[%s2838 + $0x260] sm:$0xff]
  %v2916 = vld [vmem:[%s2838 + $0x268] sm:$0xff]
  %v2917 = vld [vmem:[%s2838 + $0x270] sm:$0xff]
  %v2918 = vld [vmem:[%s2838 + $0x278] sm:$0xff]
  %v2919 = vld [vmem:[%s2838 + $0x280] sm:$0xff]
  %v2920 = vld [vmem:[%s2838 + $0x288] sm:$0xff]
  %v2921 = vld [vmem:[%s2838 + $0x290] sm:$0xff]
  %v2922 = vld [vmem:[%s2838 + $0x298] sm:$0xff]
  %v2923 = vld [vmem:[%s2838 + $0x2a0] sm:$0xff]
  %v2924 = vld [vmem:[%s2838 + $0x2a8] sm:$0xff]
  %v2925 = vld [vmem:[%s2838 + $0x2b0] sm:$0xff]
  %v2926 = vld [vmem:[%s2838 + $0x2b8] sm:$0xff]
  %v2927 = vld [vmem:[%s2838 + $0x2c0] sm:$0xff]
  %v2928 = vld [vmem:[%s2838 + $0x2c8] sm:$0xff]
  %v2929 = vld [vmem:[%s2838 + $0x2d0] sm:$0xff]
  %v2930 = vld [vmem:[%s2838 + $0x2d8] sm:$0xff]
  %v2931 = vld [vmem:[%s2838 + $0x2e0] sm:$0xff]
  %v2932 = vld [vmem:[%s2838 + $0x2e8] sm:$0xff]
  %v2933 = vld [vmem:[%s2838 + $0x2f0] sm:$0xff]
  %v2934 = vld [vmem:[%s2838 + $0x2f8] sm:$0xff]
  %v2935 = vld [vmem:[%s2838 + $0x300] sm:$0xff]
  %v2936 = vld [vmem:[%s2838 + $0x308] sm:$0xff]
  %v2937 = vld [vmem:[%s2838 + $0x310] sm:$0xff]
  %v2938 = vld [vmem:[%s2838 + $0x318] sm:$0xff]
  %v2939 = vld [vmem:[%s2838 + $0x320] sm:$0xff]
  %v2940 = vld [vmem:[%s2838 + $0x328] sm:$0xff]
  %v2941 = vld [vmem:[%s2838 + $0x330] sm:$0xff]
  %v2942 = vld [vmem:[%s2838 + $0x338] sm:$0xff]
  %v2943 = vld [vmem:[%s2838 + $0x340] sm:$0xff]
  %v2944 = vld [vmem:[%s2838 + $0x348] sm:$0xff]
  %v2945 = vld [vmem:[%s2838 + $0x350] sm:$0xff]
  %v2946 = vld [vmem:[%s2838 + $0x358] sm:$0xff]
  %v2947 = vld [vmem:[%s2838 + $0x360] sm:$0xff]
  %v2948 = vld [vmem:[%s2838 + $0x368] sm:$0xff]
  %v2949 = vld [vmem:[%s2838 + $0x370] sm:$0xff]
  %v2950 = vld [vmem:[%s2838 + $0x378] sm:$0xff]
  %v2951 = vld [vmem:[%s2838 + $0x380] sm:$0xff]
  %v2952 = vld [vmem:[%s2838 + $0x388] sm:$0xff]
  %v2953 = vld [vmem:[%s2838 + $0x390] sm:$0xff]
  %v2954 = vld [vmem:[%s2838 + $0x398] sm:$0xff]
  %v2955 = vld [vmem:[%s2838 + $0x3a0] sm:$0xff]
  %v2956 = vld [vmem:[%s2838 + $0x3a8] sm:$0xff]
  %v2957 = vld [vmem:[%s2838 + $0x3b0] sm:$0xff]
  %v2958 = vld [vmem:[%s2838 + $0x3b8] sm:$0xff]
  %v2959 = vld [vmem:[%s2838 + $0x3c0] sm:$0xff]
  %v2960 = vld [vmem:[%s2838 + $0x3c8] sm:$0xff]
  %v2961 = vld [vmem:[%s2838 + $0x3d0] sm:$0xff]
  %v2962 = vld [vmem:[%s2838 + $0x3d8] sm:$0xff]
  %v2963 = vld [vmem:[%s2838 + $0x3e0] sm:$0xff]
  %v2964 = vld [vmem:[%s2838 + $0x3e8] sm:$0xff]
  %v2965 = vld [vmem:[%s2838 + $0x3f0] sm:$0xff]
  %v2966 = vld [vmem:[%s2838 + $0x3f8] sm:$0xff]
  %v2967 = vld [vmem:[%s2838 + $0x400] sm:$0xff]
  %v2968 = vld [vmem:[%s2838 + $0x408] sm:$0xff]
  %v2969 = vld [vmem:[%s2838 + $0x410] sm:$0xff]
  %v2970 = vld [vmem:[%s2838 + $0x418] sm:$0xff]
  %v2971 = vld [vmem:[%s2838 + $0x420] sm:$0xff]
  %v2972 = vld [vmem:[%s2838 + $0x428] sm:$0xff]
  %v2973 = vld [vmem:[%s2838 + $0x430] sm:$0xff]
  %v2974 = vld [vmem:[%s2838 + $0x438] sm:$0xff]
  %v2975 = vld [vmem:[%s2838 + $0x440] sm:$0xff]
  %v2976 = vld [vmem:[%s2838 + $0x448] sm:$0xff]
  %v2977 = vld [vmem:[%s2838 + $0x450] sm:$0xff]
  %v2978 = vld [vmem:[%s2838 + $0x458] sm:$0xff]
  %v2979 = vld [vmem:[%s2838 + $0x460] sm:$0xff]
  %v2980 = vld [vmem:[%s2838 + $0x468] sm:$0xff]
  %v2981 = vld [vmem:[%s2838 + $0x470] sm:$0xff]
  %v2982 = vld [vmem:[%s2838 + $0x478] sm:$0xff]
  %v2983 = vld [vmem:[%s2838 + $0x480] sm:$0xff]
  %v2984 = vld [vmem:[%s2838 + $0x488] sm:$0xff]
  %v2985 = vld [vmem:[%s2838 + $0x490] sm:$0xff]
  %v2986 = vld [vmem:[%s2838 + $0x498] sm:$0xff]
  %v2987 = vld [vmem:[%s2838 + $0x4a0] sm:$0xff]
  %v2988 = vld [vmem:[%s2838 + $0x4a8] sm:$0xff]
  %v2989 = vld [vmem:[%s2838 + $0x4b0] sm:$0xff]
  %v2990 = vld [vmem:[%s2838 + $0x4b8] sm:$0xff]
  %v2991 = vld [vmem:[%s2838 + $0x4c0] sm:$0xff]
  %v2992 = vld [vmem:[%s2838 + $0x4c8] sm:$0xff]
  %v2993 = vld [vmem:[%s2838 + $0x4d0] sm:$0xff]
  %v2994 = vld [vmem:[%s2838 + $0x4d8] sm:$0xff]
  %v2995 = vld [vmem:[%s2838 + $0x4e0] sm:$0xff]
  %v2996 = vld [vmem:[%s2838 + $0x4e8] sm:$0xff]
  %v2997 = vld [vmem:[%s2838 + $0x4f0] sm:$0xff]
  %v2998 = vld [vmem:[%s2838 + $0x4f8] sm:$0xff]
  %v3005 = vunpack.c.l.b16 %v2832
  %v3006 = vunpack.c.h.b16 %v2832
  %v3007 = vunpack.c.l.b16 %v2833
  %v3008 = vunpack.c.l.b16 %v2834
  %v3009 = vunpack.c.h.b16 %v2834
  %v3010 = vunpack.c.l.b16 %v2835
  %v3011 = vunpack.c.l.b16 %v2836
  %v3012 = vunpack.c.h.b16 %v2836
  %v3013 = vunpack.c.l.b16 %v2837
  %v3014 = vpack.c.b16 %v3008, %v3005
  %v3015 = vpack.c.b16 %v3009, %v3006
  %v3016 = vpack.c.b16 %v3010, %v3007
  %v3017 = vpack.c.b16 %v3011, %v3011
  %v3018 = vpack.c.b16 %v3012, %v3012
  %v3019 = vpack.c.b16 %v3013, %v3013
  %v3184 = vunpack.c.l.b16 %v2839
  %v3185 = vunpack.c.h.b16 %v2839
  %v3186 = vunpack.c.l.b16 %v2840
  %v3187 = vunpack.c.h.b16 %v2840
  %v3188 = vunpack.c.l.b16 %v2841
  %v3189 = vunpack.c.h.b16 %v2841
  %v3190 = vunpack.c.l.b16 %v2842
  %v3191 = vunpack.c.h.b16 %v2842
  %v3192 = vunpack.c.l.b16 %v2843
  %v3193 = vunpack.c.h.b16 %v2843
  %v3194 = vunpack.c.l.b16 %v2844
  %v3195 = vunpack.c.h.b16 %v2844
  %v3196 = vunpack.c.l.b16 %v2845
  %v3197 = vunpack.c.h.b16 %v2845
  %v3198 = vunpack.c.l.b16 %v2846
  %v3199 = vunpack.c.h.b16 %v2846
  %v3200 = vunpack.c.l.b16 %v2847
  %v3201 = vunpack.c.h.b16 %v2847
  %v3202 = vunpack.c.l.b16 %v2848
  %v3203 = vunpack.c.h.b16 %v2848
  %v3204 = vunpack.c.l.b16 %v2849
  %v3205 = vunpack.c.h.b16 %v2849
  %v3206 = vunpack.c.l.b16 %v2850
  %v3207 = vunpack.c.h.b16 %v2850
  %v3208 = vunpack.c.l.b16 %v2851
  %v3209 = vunpack.c.h.b16 %v2851
  %v3210 = vunpack.c.l.b16 %v2852
  %v3211 = vunpack.c.h.b16 %v2852
  %v3212 = vunpack.c.l.b16 %v2853
  %v3213 = vunpack.c.h.b16 %v2853
  %v3214 = vunpack.c.l.b16 %v2854
  %v3215 = vunpack.c.h.b16 %v2854
  %v3216 = vunpack.c.l.b16 %v2855
  %v3217 = vunpack.c.h.b16 %v2855
  %v3218 = vunpack.c.l.b16 %v2856
  %v3219 = vunpack.c.h.b16 %v2856
  %v3220 = vunpack.c.l.b16 %v2857
  %v3221 = vunpack.c.h.b16 %v2857
  %v3222 = vunpack.c.l.b16 %v2858
  %v3223 = vunpack.c.h.b16 %v2858
  %v3224 = vunpack.c.l.b16 %v2859
  %v3225 = vunpack.c.h.b16 %v2859
  %v3226 = vunpack.c.l.b16 %v2860
  %v3227 = vunpack.c.h.b16 %v2860
  %v3228 = vunpack.c.l.b16 %v2861
  %v3229 = vunpack.c.h.b16 %v2861
  %v3230 = vunpack.c.l.b16 %v2862
  %v3231 = vunpack.c.h.b16 %v2862
  %v3232 = vunpack.c.l.b16 %v2863
  %v3233 = vunpack.c.h.b16 %v2863
  %v3234 = vunpack.c.l.b16 %v2864
  %v3235 = vunpack.c.h.b16 %v2864
  %v3236 = vunpack.c.l.b16 %v2865
  %v3237 = vunpack.c.h.b16 %v2865
  %v3238 = vunpack.c.l.b16 %v2866
  %v3239 = vunpack.c.h.b16 %v2866
  %v3240 = vunpack.c.l.b16 %v2867
  %v3241 = vunpack.c.h.b16 %v2867
  %v3242 = vunpack.c.l.b16 %v2868
  %v3243 = vunpack.c.h.b16 %v2868
  %v3244 = vunpack.c.l.b16 %v2869
  %v3245 = vunpack.c.h.b16 %v2869
  %v3246 = vunpack.c.l.b16 %v2870
  %v3247 = vunpack.c.h.b16 %v2870
  %v3248 = vunpack.c.l.b16 %v2871
  %v3249 = vunpack.c.h.b16 %v2871
  %v3250 = vunpack.c.l.b16 %v2872
  %v3251 = vunpack.c.h.b16 %v2872
  %v3252 = vunpack.c.l.b16 %v2873
  %v3253 = vunpack.c.h.b16 %v2873
  %v3254 = vunpack.c.l.b16 %v2874
  %v3255 = vunpack.c.h.b16 %v2874
  %v3256 = vunpack.c.l.b16 %v2875
  %v3257 = vunpack.c.h.b16 %v2875
  %v3258 = vunpack.c.l.b16 %v2876
  %v3259 = vunpack.c.h.b16 %v2876
  %v3260 = vunpack.c.l.b16 %v2877
  %v3261 = vunpack.c.h.b16 %v2877
  %v3262 = vunpack.c.l.b16 %v2878
  %v3263 = vunpack.c.h.b16 %v2878
  %v3264 = vunpack.c.l.b16 %v2879
  %v3265 = vunpack.c.h.b16 %v2879
  %v3266 = vunpack.c.l.b16 %v2880
  %v3267 = vunpack.c.h.b16 %v2880
  %v3268 = vunpack.c.l.b16 %v2881
  %v3269 = vunpack.c.h.b16 %v2881
  %v3270 = vunpack.c.l.b16 %v2882
  %v3271 = vunpack.c.h.b16 %v2882
  %v3272 = vunpack.c.l.b16 %v2883
  %v3273 = vunpack.c.h.b16 %v2883
  %v3274 = vunpack.c.l.b16 %v2884
  %v3275 = vunpack.c.h.b16 %v2884
  %v3276 = vunpack.c.l.b16 %v2885
  %v3277 = vunpack.c.h.b16 %v2885
  %v3278 = vunpack.c.l.b16 %v2886
  %v3279 = vunpack.c.h.b16 %v2886
  %v3280 = vunpack.c.l.b16 %v2887
  %v3281 = vunpack.c.h.b16 %v2887
  %v3282 = vunpack.c.l.b16 %v2888
  %v3283 = vunpack.c.h.b16 %v2888
  %v3284 = vunpack.c.l.b16 %v2889
  %v3285 = vunpack.c.h.b16 %v2889
  %v3286 = vunpack.c.l.b16 %v2890
  %v3287 = vunpack.c.h.b16 %v2890
  %v3288 = vunpack.c.l.b16 %v2891
  %v3289 = vunpack.c.h.b16 %v2891
  %v3290 = vunpack.c.l.b16 %v2892
  %v3291 = vunpack.c.h.b16 %v2892
  %v3292 = vunpack.c.l.b16 %v2893
  %v3293 = vunpack.c.h.b16 %v2893
  %v3294 = vunpack.c.l.b16 %v2894
  %v3295 = vunpack.c.h.b16 %v2894
  %v3296 = vunpack.c.l.b16 %v2895
  %v3297 = vunpack.c.h.b16 %v2895
  %v3298 = vunpack.c.l.b16 %v2896
  %v3299 = vunpack.c.h.b16 %v2896
  %v3300 = vunpack.c.l.b16 %v2897
  %v3301 = vunpack.c.h.b16 %v2897
  %v3302 = vunpack.c.l.b16 %v2898
  %v3303 = vunpack.c.h.b16 %v2898
  %v3304 = vunpack.c.l.b16 %v2899
  %v3305 = vunpack.c.h.b16 %v2899
  %v3306 = vunpack.c.l.b16 %v2900
  %v3307 = vunpack.c.h.b16 %v2900
  %v3308 = vunpack.c.l.b16 %v2901
  %v3309 = vunpack.c.h.b16 %v2901
  %v3310 = vunpack.c.l.b16 %v2902
  %v3311 = vunpack.c.h.b16 %v2902
  %v3312 = vunpack.c.l.b16 %v2903
  %v3313 = vunpack.c.h.b16 %v2903
  %v3314 = vunpack.c.l.b16 %v2904
  %v3315 = vunpack.c.h.b16 %v2904
  %v3316 = vunpack.c.l.b16 %v2905
  %v3317 = vunpack.c.h.b16 %v2905
  %v3318 = vunpack.c.l.b16 %v2906
  %v3319 = vunpack.c.h.b16 %v2906
  %v3320 = vunpack.c.l.b16 %v2907
  %v3321 = vunpack.c.h.b16 %v2907
  %v3322 = vunpack.c.l.b16 %v2908
  %v3323 = vunpack.c.h.b16 %v2908
  %v3324 = vunpack.c.l.b16 %v2909
  %v3325 = vunpack.c.h.b16 %v2909
  %v3326 = vunpack.c.l.b16 %v2910
  %v3327 = vunpack.c.h.b16 %v2910
  %v3328 = vunpack.c.l.b16 %v2911
  %v3329 = vunpack.c.h.b16 %v2911
  %v3330 = vunpack.c.l.b16 %v2912
  %v3331 = vunpack.c.h.b16 %v2912
  %v3332 = vunpack.c.l.b16 %v2913
  %v3333 = vunpack.c.h.b16 %v2913
  %v3334 = vunpack.c.l.b16 %v2914
  %v3335 = vunpack.c.h.b16 %v2914
  %v3336 = vunpack.c.l.b16 %v2915
  %v3337 = vunpack.c.h.b16 %v2915
  %v3338 = vunpack.c.l.b16 %v2916
  %v3339 = vunpack.c.h.b16 %v2916
  %v3340 = vunpack.c.l.b16 %v2917
  %v3341 = vunpack.c.h.b16 %v2917
  %v3342 = vunpack.c.l.b16 %v2918
  %v3343 = vunpack.c.h.b16 %v2918
  %v3344 = vunpack.c.l.b16 %v2919
  %v3345 = vunpack.c.h.b16 %v2919
  %v3346 = vunpack.c.l.b16 %v2920
  %v3347 = vunpack.c.h.b16 %v2920
  %v3348 = vunpack.c.l.b16 %v2921
  %v3349 = vunpack.c.h.b16 %v2921
  %v3350 = vunpack.c.l.b16 %v2922
  %v3351 = vunpack.c.h.b16 %v2922
  %v3352 = vunpack.c.l.b16 %v2923
  %v3353 = vunpack.c.h.b16 %v2923
  %v3354 = vunpack.c.l.b16 %v2924
  %v3355 = vunpack.c.h.b16 %v2924
  %v3356 = vunpack.c.l.b16 %v2925
  %v3357 = vunpack.c.h.b16 %v2925
  %v3358 = vunpack.c.l.b16 %v2926
  %v3359 = vunpack.c.h.b16 %v2926
  %v3360 = vunpack.c.l.b16 %v2927
  %v3361 = vunpack.c.h.b16 %v2927
  %v3362 = vunpack.c.l.b16 %v2928
  %v3363 = vunpack.c.h.b16 %v2928
  %v3364 = vunpack.c.l.b16 %v2929
  %v3365 = vunpack.c.h.b16 %v2929
  %v3366 = vunpack.c.l.b16 %v2930
  %v3367 = vunpack.c.h.b16 %v2930
  %v3368 = vunpack.c.l.b16 %v2931
  %v3369 = vunpack.c.h.b16 %v2931
  %v3370 = vunpack.c.l.b16 %v2932
  %v3371 = vunpack.c.h.b16 %v2932
  %v3372 = vunpack.c.l.b16 %v2933
  %v3373 = vunpack.c.h.b16 %v2933
  %v3374 = vunpack.c.l.b16 %v2934
  %v3375 = vunpack.c.h.b16 %v2934
  %v3376 = vunpack.c.l.b16 %v2935
  %v3377 = vunpack.c.h.b16 %v2935
  %v3378 = vunpack.c.l.b16 %v2936
  %v3379 = vunpack.c.h.b16 %v2936
  %v3380 = vunpack.c.l.b16 %v2937
  %v3381 = vunpack.c.h.b16 %v2937
  %v3382 = vunpack.c.l.b16 %v2938
  %v3383 = vunpack.c.h.b16 %v2938
  %v3384 = vunpack.c.l.b16 %v2939
  %v3385 = vunpack.c.h.b16 %v2939
  %v3386 = vunpack.c.l.b16 %v2940
  %v3387 = vunpack.c.h.b16 %v2940
  %v3388 = vunpack.c.l.b16 %v2941
  %v3389 = vunpack.c.h.b16 %v2941
  %v3390 = vunpack.c.l.b16 %v2942
  %v3391 = vunpack.c.h.b16 %v2942
  %v3392 = vunpack.c.l.b16 %v2943
  %v3393 = vunpack.c.h.b16 %v2943
  %v3394 = vunpack.c.l.b16 %v2944
  %v3395 = vunpack.c.h.b16 %v2944
  %v3396 = vunpack.c.l.b16 %v2945
  %v3397 = vunpack.c.h.b16 %v2945
  %v3398 = vunpack.c.l.b16 %v2946
  %v3399 = vunpack.c.h.b16 %v2946
  %v3400 = vunpack.c.l.b16 %v2947
  %v3401 = vunpack.c.h.b16 %v2947
  %v3402 = vunpack.c.l.b16 %v2948
  %v3403 = vunpack.c.h.b16 %v2948
  %v3404 = vunpack.c.l.b16 %v2949
  %v3405 = vunpack.c.h.b16 %v2949
  %v3406 = vunpack.c.l.b16 %v2950
  %v3407 = vunpack.c.h.b16 %v2950
  %v3408 = vunpack.c.l.b16 %v2951
  %v3409 = vunpack.c.h.b16 %v2951
  %v3410 = vunpack.c.l.b16 %v2952
  %v3411 = vunpack.c.h.b16 %v2952
  %v3412 = vunpack.c.l.b16 %v2953
  %v3413 = vunpack.c.h.b16 %v2953
  %v3414 = vunpack.c.l.b16 %v2954
  %v3415 = vunpack.c.h.b16 %v2954
  %v3416 = vunpack.c.l.b16 %v2955
  %v3417 = vunpack.c.h.b16 %v2955
  %v3418 = vunpack.c.l.b16 %v2956
  %v3419 = vunpack.c.h.b16 %v2956
  %v3420 = vunpack.c.l.b16 %v2957
  %v3421 = vunpack.c.h.b16 %v2957
  %v3422 = vunpack.c.l.b16 %v2958
  %v3423 = vunpack.c.h.b16 %v2958
  %v3424 = vunpack.c.l.b16 %v2959
  %v3425 = vunpack.c.h.b16 %v2959
  %v3426 = vunpack.c.l.b16 %v2960
  %v3427 = vunpack.c.h.b16 %v2960
  %v3428 = vunpack.c.l.b16 %v2961
  %v3429 = vunpack.c.h.b16 %v2961
  %v3430 = vunpack.c.l.b16 %v2962
  %v3431 = vunpack.c.h.b16 %v2962
  %v3432 = vunpack.c.l.b16 %v2963
  %v3433 = vunpack.c.h.b16 %v2963
  %v3434 = vunpack.c.l.b16 %v2964
  %v3435 = vunpack.c.h.b16 %v2964
  %v3436 = vunpack.c.l.b16 %v2965
  %v3437 = vunpack.c.h.b16 %v2965
  %v3438 = vunpack.c.l.b16 %v2966
  %v3439 = vunpack.c.h.b16 %v2966
  %v3440 = vunpack.c.l.b16 %v2967
  %v3441 = vunpack.c.h.b16 %v2967
  %v3442 = vunpack.c.l.b16 %v2968
  %v3443 = vunpack.c.h.b16 %v2968
  %v3444 = vunpack.c.l.b16 %v2969
  %v3445 = vunpack.c.h.b16 %v2969
  %v3446 = vunpack.c.l.b16 %v2970
  %v3447 = vunpack.c.h.b16 %v2970
  %v3448 = vunpack.c.l.b16 %v2971
  %v3449 = vunpack.c.h.b16 %v2971
  %v3450 = vunpack.c.l.b16 %v2972
  %v3451 = vunpack.c.h.b16 %v2972
  %v3452 = vunpack.c.l.b16 %v2973
  %v3453 = vunpack.c.h.b16 %v2973
  %v3454 = vunpack.c.l.b16 %v2974
  %v3455 = vunpack.c.h.b16 %v2974
  %v3456 = vunpack.c.l.b16 %v2975
  %v3457 = vunpack.c.h.b16 %v2975
  %v3458 = vunpack.c.l.b16 %v2976
  %v3459 = vunpack.c.h.b16 %v2976
  %v3460 = vunpack.c.l.b16 %v2977
  %v3461 = vunpack.c.h.b16 %v2977
  %v3462 = vunpack.c.l.b16 %v2978
  %v3463 = vunpack.c.h.b16 %v2978
  %v3464 = vunpack.c.l.b16 %v2979
  %v3465 = vunpack.c.h.b16 %v2979
  %v3466 = vunpack.c.l.b16 %v2980
  %v3467 = vunpack.c.h.b16 %v2980
  %v3468 = vunpack.c.l.b16 %v2981
  %v3469 = vunpack.c.h.b16 %v2981
  %v3470 = vunpack.c.l.b16 %v2982
  %v3471 = vunpack.c.h.b16 %v2982
  %v3472 = vunpack.c.l.b16 %v2983
  %v3473 = vunpack.c.h.b16 %v2983
  %v3474 = vunpack.c.l.b16 %v2984
  %v3475 = vunpack.c.h.b16 %v2984
  %v3476 = vunpack.c.l.b16 %v2985
  %v3477 = vunpack.c.h.b16 %v2985
  %v3478 = vunpack.c.l.b16 %v2986
  %v3479 = vunpack.c.h.b16 %v2986
  %v3480 = vunpack.c.l.b16 %v2987
  %v3481 = vunpack.c.h.b16 %v2987
  %v3482 = vunpack.c.l.b16 %v2988
  %v3483 = vunpack.c.h.b16 %v2988
  %v3484 = vunpack.c.l.b16 %v2989
  %v3485 = vunpack.c.h.b16 %v2989
  %v3486 = vunpack.c.l.b16 %v2990
  %v3487 = vunpack.c.h.b16 %v2990
  %v3488 = vunpack.c.l.b16 %v2991
  %v3489 = vunpack.c.h.b16 %v2991
  %v3490 = vunpack.c.l.b16 %v2992
  %v3491 = vunpack.c.h.b16 %v2992
  %v3492 = vunpack.c.l.b16 %v2993
  %v3493 = vunpack.c.h.b16 %v2993
  %v3494 = vunpack.c.l.b16 %v2994
  %v3495 = vunpack.c.h.b16 %v2994
  %v3496 = vunpack.c.l.b16 %v2995
  %v3497 = vunpack.c.h.b16 %v2995
  %v3498 = vunpack.c.l.b16 %v2996
  %v3499 = vunpack.c.h.b16 %v2996
  %v3500 = vunpack.c.l.b16 %v2997
  %v3501 = vunpack.c.h.b16 %v2997
  %v3502 = vunpack.c.l.b16 %v2998
  %v3503 = vunpack.c.h.b16 %v2998
  %v3504 = vpack.c.b16 %v3192, %v3184
  %v3505 = vpack.c.b16 %v3193, %v3185
  %v3506 = vpack.c.b16 %v3194, %v3186
  %v3507 = vpack.c.b16 %v3195, %v3187
  %v3508 = vpack.c.b16 %v3196, %v3188
  %v3509 = vpack.c.b16 %v3197, %v3189
  %v3510 = vpack.c.b16 %v3198, %v3190
  %v3511 = vpack.c.b16 %v3199, %v3191
  %v3512 = vpack.c.b16 %v3208, %v3200
  %v3513 = vpack.c.b16 %v3209, %v3201
  %v3514 = vpack.c.b16 %v3210, %v3202
  %v3515 = vpack.c.b16 %v3211, %v3203
  %v3516 = vpack.c.b16 %v3212, %v3204
  %v3517 = vpack.c.b16 %v3213, %v3205
  %v3518 = vpack.c.b16 %v3214, %v3206
  %v3519 = vpack.c.b16 %v3215, %v3207
  %v3520 = vpack.c.b16 %v3224, %v3216
  %v3521 = vpack.c.b16 %v3225, %v3217
  %v3522 = vpack.c.b16 %v3226, %v3218
  %v3523 = vpack.c.b16 %v3227, %v3219
  %v3524 = vpack.c.b16 %v3228, %v3220
  %v3525 = vpack.c.b16 %v3229, %v3221
  %v3526 = vpack.c.b16 %v3230, %v3222
  %v3527 = vpack.c.b16 %v3231, %v3223
  %v3528 = vpack.c.b16 %v3240, %v3232
  %v3529 = vpack.c.b16 %v3241, %v3233
  %v3530 = vpack.c.b16 %v3242, %v3234
  %v3531 = vpack.c.b16 %v3243, %v3235
  %v3532 = vpack.c.b16 %v3244, %v3236
  %v3533 = vpack.c.b16 %v3245, %v3237
  %v3534 = vpack.c.b16 %v3246, %v3238
  %v3535 = vpack.c.b16 %v3247, %v3239
  %v3536 = vpack.c.b16 %v3256, %v3248
  %v3537 = vpack.c.b16 %v3257, %v3249
  %v3538 = vpack.c.b16 %v3258, %v3250
  %v3539 = vpack.c.b16 %v3259, %v3251
  %v3540 = vpack.c.b16 %v3260, %v3252
  %v3541 = vpack.c.b16 %v3261, %v3253
  %v3542 = vpack.c.b16 %v3262, %v3254
  %v3543 = vpack.c.b16 %v3263, %v3255
  %v3544 = vpack.c.b16 %v3272, %v3264
  %v3545 = vpack.c.b16 %v3273, %v3265
  %v3546 = vpack.c.b16 %v3274, %v3266
  %v3547 = vpack.c.b16 %v3275, %v3267
  %v3548 = vpack.c.b16 %v3276, %v3268
  %v3549 = vpack.c.b16 %v3277, %v3269
  %v3550 = vpack.c.b16 %v3278, %v3270
  %v3551 = vpack.c.b16 %v3279, %v3271
  %v3552 = vpack.c.b16 %v3288, %v3280
  %v3553 = vpack.c.b16 %v3289, %v3281
  %v3554 = vpack.c.b16 %v3290, %v3282
  %v3555 = vpack.c.b16 %v3291, %v3283
  %v3556 = vpack.c.b16 %v3292, %v3284
  %v3557 = vpack.c.b16 %v3293, %v3285
  %v3558 = vpack.c.b16 %v3294, %v3286
  %v3559 = vpack.c.b16 %v3295, %v3287
  %v3560 = vpack.c.b16 %v3304, %v3296
  %v3561 = vpack.c.b16 %v3305, %v3297
  %v3562 = vpack.c.b16 %v3306, %v3298
  %v3563 = vpack.c.b16 %v3307, %v3299
  %v3564 = vpack.c.b16 %v3308, %v3300
  %v3565 = vpack.c.b16 %v3309, %v3301
  %v3566 = vpack.c.b16 %v3310, %v3302
  %v3567 = vpack.c.b16 %v3311, %v3303
  %v3568 = vpack.c.b16 %v3320, %v3312
  %v3569 = vpack.c.b16 %v3321, %v3313
  %v3570 = vpack.c.b16 %v3322, %v3314
  %v3571 = vpack.c.b16 %v3323, %v3315
  %v3572 = vpack.c.b16 %v3324, %v3316
  %v3573 = vpack.c.b16 %v3325, %v3317
  %v3574 = vpack.c.b16 %v3326, %v3318
  %v3575 = vpack.c.b16 %v3327, %v3319
  %v3576 = vpack.c.b16 %v3336, %v3328
  %v3577 = vpack.c.b16 %v3337, %v3329
  %v3578 = vpack.c.b16 %v3338, %v3330
  %v3579 = vpack.c.b16 %v3339, %v3331
  %v3580 = vpack.c.b16 %v3340, %v3332
  %v3581 = vpack.c.b16 %v3341, %v3333
  %v3582 = vpack.c.b16 %v3342, %v3334
  %v3583 = vpack.c.b16 %v3343, %v3335
  %v3584 = vpack.c.b16 %v3352, %v3344
  %v3585 = vpack.c.b16 %v3353, %v3345
  %v3586 = vpack.c.b16 %v3354, %v3346
  %v3587 = vpack.c.b16 %v3355, %v3347
  %v3588 = vpack.c.b16 %v3356, %v3348
  %v3589 = vpack.c.b16 %v3357, %v3349
  %v3590 = vpack.c.b16 %v3358, %v3350
  %v3591 = vpack.c.b16 %v3359, %v3351
  %v3592 = vpack.c.b16 %v3368, %v3360
  %v3593 = vpack.c.b16 %v3369, %v3361
  %v3594 = vpack.c.b16 %v3370, %v3362
  %v3595 = vpack.c.b16 %v3371, %v3363
  %v3596 = vpack.c.b16 %v3372, %v3364
  %v3597 = vpack.c.b16 %v3373, %v3365
  %v3598 = vpack.c.b16 %v3374, %v3366
  %v3599 = vpack.c.b16 %v3375, %v3367
  %v3600 = vpack.c.b16 %v3384, %v3376
  %v3601 = vpack.c.b16 %v3385, %v3377
  %v3602 = vpack.c.b16 %v3386, %v3378
  %v3603 = vpack.c.b16 %v3387, %v3379
  %v3604 = vpack.c.b16 %v3388, %v3380
  %v3605 = vpack.c.b16 %v3389, %v3381
  %v3606 = vpack.c.b16 %v3390, %v3382
  %v3607 = vpack.c.b16 %v3391, %v3383
  %v3608 = vpack.c.b16 %v3400, %v3392
  %v3609 = vpack.c.b16 %v3401, %v3393
  %v3610 = vpack.c.b16 %v3402, %v3394
  %v3611 = vpack.c.b16 %v3403, %v3395
  %v3612 = vpack.c.b16 %v3404, %v3396
  %v3613 = vpack.c.b16 %v3405, %v3397
  %v3614 = vpack.c.b16 %v3406, %v3398
  %v3615 = vpack.c.b16 %v3407, %v3399
  %v3616 = vpack.c.b16 %v3416, %v3408
  %v3617 = vpack.c.b16 %v3417, %v3409
  %v3618 = vpack.c.b16 %v3418, %v3410
  %v3619 = vpack.c.b16 %v3419, %v3411
  %v3620 = vpack.c.b16 %v3420, %v3412
  %v3621 = vpack.c.b16 %v3421, %v3413
  %v3622 = vpack.c.b16 %v3422, %v3414
  %v3623 = vpack.c.b16 %v3423, %v3415
  %v3624 = vpack.c.b16 %v3432, %v3424
  %v3625 = vpack.c.b16 %v3433, %v3425
  %v3626 = vpack.c.b16 %v3434, %v3426
  %v3627 = vpack.c.b16 %v3435, %v3427
  %v3628 = vpack.c.b16 %v3436, %v3428
  %v3629 = vpack.c.b16 %v3437, %v3429
  %v3630 = vpack.c.b16 %v3438, %v3430
  %v3631 = vpack.c.b16 %v3439, %v3431
  %v3632 = vpack.c.b16 %v3448, %v3440
  %v3633 = vpack.c.b16 %v3449, %v3441
  %v3634 = vpack.c.b16 %v3450, %v3442
  %v3635 = vpack.c.b16 %v3451, %v3443
  %v3636 = vpack.c.b16 %v3452, %v3444
  %v3637 = vpack.c.b16 %v3453, %v3445
  %v3638 = vpack.c.b16 %v3454, %v3446
  %v3639 = vpack.c.b16 %v3455, %v3447
  %v3640 = vpack.c.b16 %v3464, %v3456
  %v3641 = vpack.c.b16 %v3465, %v3457
  %v3642 = vpack.c.b16 %v3466, %v3458
  %v3643 = vpack.c.b16 %v3467, %v3459
  %v3644 = vpack.c.b16 %v3468, %v3460
  %v3645 = vpack.c.b16 %v3469, %v3461
  %v3646 = vpack.c.b16 %v3470, %v3462
  %v3647 = vpack.c.b16 %v3471, %v3463
  %v3648 = vpack.c.b16 %v3480, %v3472
  %v3649 = vpack.c.b16 %v3481, %v3473
  %v3650 = vpack.c.b16 %v3482, %v3474
  %v3651 = vpack.c.b16 %v3483, %v3475
  %v3652 = vpack.c.b16 %v3484, %v3476
  %v3653 = vpack.c.b16 %v3485, %v3477
  %v3654 = vpack.c.b16 %v3486, %v3478
  %v3655 = vpack.c.b16 %v3487, %v3479
  %v3656 = vpack.c.b16 %v3496, %v3488
  %v3657 = vpack.c.b16 %v3497, %v3489
  %v3658 = vpack.c.b16 %v3498, %v3490
  %v3659 = vpack.c.b16 %v3499, %v3491
  %v3660 = vpack.c.b16 %v3500, %v3492
  %v3661 = vpack.c.b16 %v3501, %v3493
  %v3662 = vpack.c.b16 %v3502, %v3494
  %v3663 = vpack.c.b16 %v3503, %v3495
  %v3825 = vsel %vm1177, %v3016, 0
  %v3828 = vsel %vm1177, %v3019, 0
  %3830 = vmatprep.subr.bf16.mxu0 %v3505
  %3831 = vmatpush1.bf16.msra.mxu0 %v3504
  %3832 = vmatprep.subr.bf16.mxu0 %v3513
  %3833 = vmatpush1.bf16.msra.mxu0 %v3512
  %3834 = vmatprep.subr.bf16.mxu0 %v3521
  %3835 = vmatpush1.bf16.msra.mxu0 %v3520
  %3836 = vmatprep.subr.bf16.mxu0 %v3529
  %3837 = vmatpush1.bf16.msra.mxu0 %v3528
  %3838 = vmatprep.subr.bf16.mxu0 %v3537
  %3839 = vmatpush1.bf16.msra.mxu0 %v3536
  %3840 = vmatprep.subr.bf16.mxu0 %v3545
  %3841 = vmatpush1.bf16.msra.mxu0 %v3544
  %3842 = vmatprep.subr.bf16.mxu0 %v3553
  %3843 = vmatpush1.bf16.msra.mxu0 %v3552
  %3844 = vmatprep.subr.bf16.mxu0 %v3561
  %3845 = vmatpush1.bf16.msra.mxu0 %v3560
  %3846 = vmatprep.subr.bf16.mxu0 %v3569
  %3847 = vmatpush1.bf16.msra.mxu0 %v3568
  %3848 = vmatprep.subr.bf16.mxu0 %v3577
  %3849 = vmatpush1.bf16.msra.mxu0 %v3576
  %3850 = vmatprep.subr.bf16.mxu0 %v3585
  %3851 = vmatpush1.bf16.msra.mxu0 %v3584
  %3852 = vmatprep.subr.bf16.mxu0 %v3593
  %3853 = vmatpush1.bf16.msra.mxu0 %v3592
  %3854 = vmatprep.subr.bf16.mxu0 %v3601
  %3855 = vmatpush1.bf16.msra.mxu0 %v3600
  %3856 = vmatprep.subr.bf16.mxu0 %v3609
  %3857 = vmatpush1.bf16.msra.mxu0 %v3608
  %3858 = vmatprep.subr.bf16.mxu0 %v3617
  %3859 = vmatpush1.bf16.msra.mxu0 %v3616
  %3860 = vmatprep.subr.bf16.mxu0 %v3625
  %3861 = vmatpush1.bf16.msra.mxu0 %v3624
  %3862 = vmatprep.mubr.bf16.mxu0 %v3015
  %3863 = vmatmul.mubr.bf16.gmra.mrb[0].mxu0 %v3014
  %v3864 = vpop.f32.mrb[0].mxu0
  %v3865 = vadd.f32 0.0, %v3864
  %v3866 = vpop.f32.mrb[0].mxu0
  %v3867 = vadd.f32 0.0, %v3866
  %v3868 = vpop.f32.mrb[0].mxu0
  %v3869 = vadd.f32 0.0, %v3868
  %v3870 = vpop.f32.mrb[0].mxu0
  %v3871 = vadd.f32 0.0, %v3870
  %3872 = vmatprep.mubr.bf16.mxu0 %v3018
  %3873 = vmatmul.mubr.bf16.gmra.mrb[0].mxu0 %v3017
  %v3874 = vpop.f32.mrb[0].mxu0
  %v3875 = vadd.f32 0.0, %v3874
  %v3876 = vpop.f32.mrb[0].mxu0
  %v3877 = vadd.f32 0.0, %v3876
  %v3878 = vpop.f32.mrb[0].mxu0
  %v3879 = vpop.f32.mrb[0].mxu0
  %3880 = vdwg.mxu0
  %3881 = vmatprep.subr.bf16.mxu0 %v3633
  %3882 = vmatpush1.bf16.msra.mxu0 %v3632
  %3883 = vmatprep.subr.bf16.mxu0 %v3641
  %3884 = vmatpush1.bf16.msra.mxu0 %v3640
  %3885 = vmatprep.subr.bf16.mxu0 %v3649
  %3886 = vmatpush1.bf16.msra.mxu0 %v3648
  %3887 = vmatprep.subr.bf16.mxu0 %v3657
  %3888 = vmatpush1.bf16.msra.mxu0 %v3656
  %3889 = vmatprep.subr.bf16.mxu0 0
  %3890 = vmatpush1.bf16.msra.mxu0 0
  %3891 = vmatprep.subr.bf16.mxu0 0
  %3892 = vmatpush1.bf16.msra.mxu0 0
  %3893 = vmatprep.subr.bf16.mxu0 0
  %3894 = vmatpush1.bf16.msra.mxu0 0
  %3895 = vmatprep.subr.bf16.mxu0 0
  %3896 = vmatpush1.bf16.msra.mxu0 0
  %3897 = vmatprep.subr.bf16.mxu0 0
  %3898 = vmatpush1.bf16.msra.mxu0 0
  %3899 = vmatprep.subr.bf16.mxu0 0
  %3900 = vmatpush1.bf16.msra.mxu0 0
  %3901 = vmatprep.subr.bf16.mxu0 0
  %3902 = vmatpush1.bf16.msra.mxu0 0
  %3903 = vmatprep.subr.bf16.mxu0 0
  %3904 = vmatpush1.bf16.msra.mxu0 0
  %3905 = vmatprep.subr.bf16.mxu0 0
  %3906 = vmatpush1.bf16.msra.mxu0 0
  %3907 = vmatprep.subr.bf16.mxu0 0
  %3908 = vmatpush1.bf16.msra.mxu0 0
  %3909 = vmatprep.subr.bf16.mxu0 0
  %3910 = vmatpush1.bf16.msra.mxu0 0
  %3911 = vmatprep.subr.bf16.mxu0 0
  %3912 = vmatpush1.bf16.msra.mxu0 0
  %3913 = vmatprep.mubr.bf16.mxu0 0
  %3914 = vmatmul.mubr.bf16.gmra.mrb[0].mxu0 %v3825
  %v3915 = vpop.f32.mrb[0].mxu0
  %v3916 = vadd.f32 %v3865, %v3915
  %v3917 = vpop.f32.mrb[0].mxu0
  %v3918 = vadd.f32 %v3867, %v3917
  %v3919 = vpop.f32.mrb[0].mxu0
  %v3920 = vadd.f32 %v3869, %v3919
  %v3921 = vpop.f32.mrb[0].mxu0
  %v3922 = vadd.f32 %v3871, %v3921
  %3923 = vmatprep.mubr.bf16.mxu0 0
  %3924 = vmatmul.mubr.bf16.gmra.mrb[0].mxu0 %v3828
  %v3925 = vpop.f32.mrb[0].mxu0
  %v3926 = vadd.f32 %v3875, %v3925
  %v3927 = vpop.f32.mrb[0].mxu0
  %v3928 = vadd.f32 %v3877, %v3927
  %v3929 = vpop.f32.mrb[0].mxu0
  %v3930 = vpop.f32.mrb[0].mxu0
  %3931 = vdwg.mxu0
  %3932 = vmatprep.subr.bf16.mxu0 %v3507
  %3933 = vmatpush1.bf16.msra.mxu0 %v3506
  %3934 = vmatprep.subr.bf16.mxu0 %v3515
  %3935 = vmatpush1.bf16.msra.mxu0 %v3514
  %3936 = vmatprep.subr.bf16.mxu0 %v3523
  %3937 = vmatpush1.bf16.msra.mxu0 %v3522
  %3938 = vmatprep.subr.bf16.mxu0 %v3531
  %3939 = vmatpush1.bf16.msra.mxu0 %v3530
  %3940 = vmatprep.subr.bf16.mxu0 %v3539
  %3941 = vmatpush1.bf16.msra.mxu0 %v3538
  %3942 = vmatprep.subr.bf16.mxu0 %v3547
  %3943 = vmatpush1.bf16.msra.mxu0 %v3546
  %3944 = vmatprep.subr.bf16.mxu0 %v3555
  %3945 = vmatpush1.bf16.msra.mxu0 %v3554
  %3946 = vmatprep.subr.bf16.mxu0 %v3563
  %3947 = vmatpush1.bf16.msra.mxu0 %v3562
  %3948 = vmatprep.subr.bf16.mxu0 %v3571
  %3949 = vmatpush1.bf16.msra.mxu0 %v3570
  %3950 = vmatprep.subr.bf16.mxu0 %v3579
  %3951 = vmatpush1.bf16.msra.mxu0 %v3578
  %3952 = vmatprep.subr.bf16.mxu0 %v3587
  %3953 = vmatpush1.bf16.msra.mxu0 %v3586
  %3954 = vmatprep.subr.bf16.mxu0 %v3595
  %3955 = vmatpush1.bf16.msra.mxu0 %v3594
  %3956 = vmatprep.subr.bf16.mxu0 %v3603
  %3957 = vmatpush1.bf16.msra.mxu0 %v3602
  %3958 = vmatprep.subr.bf16.mxu0 %v3611
  %3959 = vmatpush1.bf16.msra.mxu0 %v3610
  %3960 = vmatprep.subr.bf16.mxu0 %v3619
  %3961 = vmatpush1.bf16.msra.mxu0 %v3618
  %3962 = vmatprep.subr.bf16.mxu0 %v3627
  %3963 = vmatpush1.bf16.msra.mxu0 %v3626
  %3964 = vmatprep.mubr.bf16.mxu0 %v3015
  %3965 = vmatmul.mubr.bf16.gmra.mrb[0].mxu0 %v3014
  %v3966 = vpop.f32.mrb[0].mxu0
  %v3967 = vadd.f32 0.0, %v3966
  %v3968 = vpop.f32.mrb[0].mxu0
  %v3969 = vadd.f32 0.0, %v3968
  %v3970 = vpop.f32.mrb[0].mxu0
  %v3971 = vadd.f32 0.0, %v3970
  %v3972 = vpop.f32.mrb[0].mxu0
  %v3973 = vadd.f32 0.0, %v3972
  %3974 = vmatprep.mubr.bf16.mxu0 %v3018
  %3975 = vmatmul.mubr.bf16.gmra.mrb[0].mxu0 %v3017
  %v3976 = vpop.f32.mrb[0].mxu0
  %v3977 = vadd.f32 0.0, %v3976
  %v3978 = vpop.f32.mrb[0].mxu0
  %v3979 = vadd.f32 0.0, %v3978
  %v3980 = vpop.f32.mrb[0].mxu0
  %v3981 = vpop.f32.mrb[0].mxu0
  %3982 = vdwg.mxu0
  %3983 = vmatprep.subr.bf16.mxu0 %v3635
  %3984 = vmatpush1.bf16.msra.mxu0 %v3634
  %3985 = vmatprep.subr.bf16.mxu0 %v3643
  %3986 = vmatpush1.bf16.msra.mxu0 %v3642
  %3987 = vmatprep.subr.bf16.mxu0 %v3651
  %3988 = vmatpush1.bf16.msra.mxu0 %v3650
  %3989 = vmatprep.subr.bf16.mxu0 %v3659
  %3990 = vmatpush1.bf16.msra.mxu0 %v3658
  %3991 = vmatprep.subr.bf16.mxu0 0
  %3992 = vmatpush1.bf16.msra.mxu0 0
  %3993 = vmatprep.subr.bf16.mxu0 0
  %3994 = vmatpush1.bf16.msra.mxu0 0
  %3995 = vmatprep.subr.bf16.mxu0 0
  %3996 = vmatpush1.bf16.msra.mxu0 0
  %3997 = vmatprep.subr.bf16.mxu0 0
  %3998 = vmatpush1.bf16.msra.mxu0 0
  %3999 = vmatprep.subr.bf16.mxu0 0
  %4000 = vmatpush1.bf16.msra.mxu0 0
  %4001 = vmatprep.subr.bf16.mxu0 0
  %4002 = vmatpush1.bf16.msra.mxu0 0
  %4003 = vmatprep.subr.bf16.mxu0 0
  %4004 = vmatpush1.bf16.msra.mxu0 0
  %4005 = vmatprep.subr.bf16.mxu0 0
  %4006 = vmatpush1.bf16.msra.mxu0 0
  %4007 = vmatprep.subr.bf16.mxu0 0
  %4008 = vmatpush1.bf16.msra.mxu0 0
  %4009 = vmatprep.subr.bf16.mxu0 0
  %4010 = vmatpush1.bf16.msra.mxu0 0
  %4011 = vmatprep.subr.bf16.mxu0 0
  %4012 = vmatpush1.bf16.msra.mxu0 0
  %4013 = vmatprep.subr.bf16.mxu0 0
  %4014 = vmatpush1.bf16.msra.mxu0 0
  %4015 = vmatprep.mubr.bf16.mxu0 0
  %4016 = vmatmul.mubr.bf16.gmra.mrb[0].mxu0 %v3825
  %v4017 = vpop.f32.mrb[0].mxu0
  %v4018 = vadd.f32 %v3967, %v4017
  %v4019 = vpop.f32.mrb[0].mxu0
  %v4020 = vadd.f32 %v3969, %v4019
  %v4021 = vpop.f32.mrb[0].mxu0
  %v4022 = vadd.f32 %v3971, %v4021
  %v4023 = vpop.f32.mrb[0].mxu0
  %v4024 = vadd.f32 %v3973, %v4023
  %4025 = vmatprep.mubr.bf16.mxu0 0
  %4026 = vmatmul.mubr.bf16.gmra.mrb[0].mxu0 %v3828
  %v4027 = vpop.f32.mrb[0].mxu0
  %v4028 = vadd.f32 %v3977, %v4027
  %v4029 = vpop.f32.mrb[0].mxu0
  %v4030 = vadd.f32 %v3979, %v4029
  %v4031 = vpop.f32.mrb[0].mxu0
  %v4032 = vpop.f32.mrb[0].mxu0
  %4033 = vdwg.mxu0
  %4034 = vmatprep.subr.bf16.mxu0 %v3509
  %4035 = vmatpush1.bf16.msra.mxu0 %v3508
  %4036 = vmatprep.subr.bf16.mxu0 %v3517
  %4037 = vmatpush1.bf16.msra.mxu0 %v3516
  %4038 = vmatprep.subr.bf16.mxu0 %v3525
  %4039 = vmatpush1.bf16.msra.mxu0 %v3524
  %4040 = vmatprep.subr.bf16.mxu0 %v3533
  %4041 = vmatpush1.bf16.msra.mxu0 %v3532
  %4042 = vmatprep.subr.bf16.mxu0 %v3541
  %4043 = vmatpush1.bf16.msra.mxu0 %v3540
  %4044 = vmatprep.subr.bf16.mxu0 %v3549
  %4045 = vmatpush1.bf16.msra.mxu0 %v3548
  %4046 = vmatprep.subr.bf16.mxu0 %v3557
  %4047 = vmatpush1.bf16.msra.mxu0 %v3556
  %4048 = vmatprep.subr.bf16.mxu0 %v3565
  %4049 = vmatpush1.bf16.msra.mxu0 %v3564
  %4050 = vmatprep.subr.bf16.mxu0 %v3573
  %4051 = vmatpush1.bf16.msra.mxu0 %v3572
  %4052 = vmatprep.subr.bf16.mxu0 %v3581
  %4053 = vmatpush1.bf16.msra.mxu0 %v3580
  %4054 = vmatprep.subr.bf16.mxu0 %v3589
  %4055 = vmatpush1.bf16.msra.mxu0 %v3588
  %4056 = vmatprep.subr.bf16.mxu0 %v3597
  %4057 = vmatpush1.bf16.msra.mxu0 %v3596
  %4058 = vmatprep.subr.bf16.mxu0 %v3605
  %4059 = vmatpush1.bf16.msra.mxu0 %v3604
  %4060 = vmatprep.subr.bf16.mxu0 %v3613
  %4061 = vmatpush1.bf16.msra.mxu0 %v3612
  %4062 = vmatprep.subr.bf16.mxu0 %v3621
  %4063 = vmatpush1.bf16.msra.mxu0 %v3620
  %4064 = vmatprep.subr.bf16.mxu0 %v3629
  %4065 = vmatpush1.bf16.msra.mxu0 %v3628
  %4066 = vmatprep.mubr.bf16.mxu0 %v3015
  %4067 = vmatmul.mubr.bf16.gmra.mrb[0].mxu0 %v3014
  %v4068 = vpop.f32.mrb[0].mxu0
  %v4069 = vadd.f32 0.0, %v4068
  %v4070 = vpop.f32.mrb[0].mxu0
  %v4071 = vadd.f32 0.0, %v4070
  %v4072 = vpop.f32.mrb[0].mxu0
  %v4073 = vadd.f32 0.0, %v4072
  %v4074 = vpop.f32.mrb[0].mxu0
  %v4075 = vadd.f32 0.0, %v4074
  %4076 = vmatprep.mubr.bf16.mxu0 %v3018
  %4077 = vmatmul.mubr.bf16.gmra.mrb[0].mxu0 %v3017
  %v4078 = vpop.f32.mrb[0].mxu0
  %v4079 = vadd.f32 0.0, %v4078
  %v4080 = vpop.f32.mrb[0].mxu0
  %v4081 = vadd.f32 0.0, %v4080
  %v4082 = vpop.f32.mrb[0].mxu0
  %v4083 = vpop.f32.mrb[0].mxu0
  %4084 = vdwg.mxu0
  %4085 = vmatprep.subr.bf16.mxu0 %v3637
  %4086 = vmatpush1.bf16.msra.mxu0 %v3636
  %4087 = vmatprep.subr.bf16.mxu0 %v3645
  %4088 = vmatpush1.bf16.msra.mxu0 %v3644
  %4089 = vmatprep.subr.bf16.mxu0 %v3653
  %4090 = vmatpush1.bf16.msra.mxu0 %v3652
  %4091 = vmatprep.subr.bf16.mxu0 %v3661
  %4092 = vmatpush1.bf16.msra.mxu0 %v3660
  %4093 = vmatprep.subr.bf16.mxu0 0
  %4094 = vmatpush1.bf16.msra.mxu0 0
  %4095 = vmatprep.subr.bf16.mxu0 0
  %4096 = vmatpush1.bf16.msra.mxu0 0
  %4097 = vmatprep.subr.bf16.mxu0 0
  %4098 = vmatpush1.bf16.msra.mxu0 0
  %4099 = vmatprep.subr.bf16.mxu0 0
  %4100 = vmatpush1.bf16.msra.mxu0 0
  %4101 = vmatprep.subr.bf16.mxu0 0
  %4102 = vmatpush1.bf16.msra.mxu0 0
  %4103 = vmatprep.subr.bf16.mxu0 0
  %4104 = vmatpush1.bf16.msra.mxu0 0
  %4105 = vmatprep.subr.bf16.mxu0 0
  %4106 = vmatpush1.bf16.msra.mxu0 0
  %4107 = vmatprep.subr.bf16.mxu0 0
  %4108 = vmatpush1.bf16.msra.mxu0 0
  %4109 = vmatprep.subr.bf16.mxu0 0
  %4110 = vmatpush1.bf16.msra.mxu0 0
  %4111 = vmatprep.subr.bf16.mxu0 0
  %4112 = vmatpush1.bf16.msra.mxu0 0
  %4113 = vmatprep.subr.bf16.mxu0 0
  %4114 = vmatpush1.bf16.msra.mxu0 0
  %4115 = vmatprep.subr.bf16.mxu0 0
  %4116 = vmatpush1.bf16.msra.mxu0 0
  %4117 = vmatprep.mubr.bf16.mxu0 0
  %4118 = vmatmul.mubr.bf16.gmra.mrb[0].mxu0 %v3825
  %v4119 = vpop.f32.mrb[0].mxu0
  %v4120 = vadd.f32 %v4069, %v4119
  %v4121 = vpop.f32.mrb[0].mxu0
  %v4122 = vadd.f32 %v4071, %v4121
  %v4123 = vpop.f32.mrb[0].mxu0
  %v4124 = vadd.f32 %v4073, %v4123
  %v4125 = vpop.f32.mrb[0].mxu0
  %v4126 = vadd.f32 %v4075, %v4125
  %4127 = vmatprep.mubr.bf16.mxu0 0
  %4128 = vmatmul.mubr.bf16.gmra.mrb[0].mxu0 %v3828
  %v4129 = vpop.f32.mrb[0].mxu0
  %v4130 = vadd.f32 %v4079, %v4129
  %v4131 = vpop.f32.mrb[0].mxu0
  %v4132 = vadd.f32 %v4081, %v4131
  %v4133 = vpop.f32.mrb[0].mxu0
  %v4134 = vpop.f32.mrb[0].mxu0
  %4135 = vdwg.mxu0
  %4136 = vmatprep.subr.bf16.mxu0 %v3511
  %4137 = vmatpush1.bf16.msra.mxu0 %v3510
  %4138 = vmatprep.subr.bf16.mxu0 %v3519
  %4139 = vmatpush1.bf16.msra.mxu0 %v3518
  %4140 = vmatprep.subr.bf16.mxu0 %v3527
  %4141 = vmatpush1.bf16.msra.mxu0 %v3526
  %4142 = vmatprep.subr.bf16.mxu0 %v3535
  %4143 = vmatpush1.bf16.msra.mxu0 %v3534
  %4144 = vmatprep.subr.bf16.mxu0 %v3543
  %4145 = vmatpush1.bf16.msra.mxu0 %v3542
  %4146 = vmatprep.subr.bf16.mxu0 %v3551
  %4147 = vmatpush1.bf16.msra.mxu0 %v3550
  %4148 = vmatprep.subr.bf16.mxu0 %v3559
  %4149 = vmatpush1.bf16.msra.mxu0 %v3558
  %4150 = vmatprep.subr.bf16.mxu0 %v3567
  %4151 = vmatpush1.bf16.msra.mxu0 %v3566
  %4152 = vmatprep.subr.bf16.mxu0 %v3575
  %4153 = vmatpush1.bf16.msra.mxu0 %v3574
  %4154 = vmatprep.subr.bf16.mxu0 %v3583
  %4155 = vmatpush1.bf16.msra.mxu0 %v3582
  %4156 = vmatprep.subr.bf16.mxu0 %v3591
  %4157 = vmatpush1.bf16.msra.mxu0 %v3590
  %4158 = vmatprep.subr.bf16.mxu0 %v3599
  %4159 = vmatpush1.bf16.msra.mxu0 %v3598
  %4160 = vmatprep.subr.bf16.mxu0 %v3607
  %4161 = vmatpush1.bf16.msra.mxu0 %v3606
  %4162 = vmatprep.subr.bf16.mxu0 %v3615
  %4163 = vmatpush1.bf16.msra.mxu0 %v3614
  %4164 = vmatprep.subr.bf16.mxu0 %v3623
  %4165 = vmatpush1.bf16.msra.mxu0 %v3622
  %4166 = vmatprep.subr.bf16.mxu0 %v3631
  %4167 = vmatpush1.bf16.msra.mxu0 %v3630
  %4168 = vmatprep.mubr.bf16.mxu0 %v3015
  %4169 = vmatmul.mubr.bf16.gmra.mrb[0].mxu0 %v3014
  %v4170 = vpop.f32.mrb[0].mxu0
  %v4171 = vadd.f32 0.0, %v4170
  %v4172 = vpop.f32.mrb[0].mxu0
  %v4173 = vadd.f32 0.0, %v4172
  %v4174 = vpop.f32.mrb[0].mxu0
  %v4175 = vadd.f32 0.0, %v4174
  %v4176 = vpop.f32.mrb[0].mxu0
  %v4177 = vadd.f32 0.0, %v4176
  %4178 = vmatprep.mubr.bf16.mxu0 %v3018
  %4179 = vmatmul.mubr.bf16.gmra.mrb[0].mxu0 %v3017
  %v4180 = vpop.f32.mrb[0].mxu0
  %v4181 = vadd.f32 0.0, %v4180
  %v4182 = vpop.f32.mrb[0].mxu0
  %v4183 = vadd.f32 0.0, %v4182
  %v4184 = vpop.f32.mrb[0].mxu0
  %v4185 = vpop.f32.mrb[0].mxu0
  %4186 = vdwg.mxu0
  %4187 = vmatprep.subr.bf16.mxu0 %v3639
  %4188 = vmatpush1.bf16.msra.mxu0 %v3638
  %4189 = vmatprep.subr.bf16.mxu0 %v3647
  %4190 = vmatpush1.bf16.msra.mxu0 %v3646
  %4191 = vmatprep.subr.bf16.mxu0 %v3655
  %4192 = vmatpush1.bf16.msra.mxu0 %v3654
  %4193 = vmatprep.subr.bf16.mxu0 %v3663
  %4194 = vmatpush1.bf16.msra.mxu0 %v3662
  %4195 = vmatprep.subr.bf16.mxu0 0
  %4196 = vmatpush1.bf16.msra.mxu0 0
  %4197 = vmatprep.subr.bf16.mxu0 0
  %4198 = vmatpush1.bf16.msra.mxu0 0
  %4199 = vmatprep.subr.bf16.mxu0 0
  %4200 = vmatpush1.bf16.msra.mxu0 0
  %4201 = vmatprep.subr.bf16.mxu0 0
  %4202 = vmatpush1.bf16.msra.mxu0 0
  %4203 = vmatprep.subr.bf16.mxu0 0
  %4204 = vmatpush1.bf16.msra.mxu0 0
  %4205 = vmatprep.subr.bf16.mxu0 0
  %4206 = vmatpush1.bf16.msra.mxu0 0
  %4207 = vmatprep.subr.bf16.mxu0 0
  %4208 = vmatpush1.bf16.msra.mxu0 0
  %4209 = vmatprep.subr.bf16.mxu0 0
  %4210 = vmatpush1.bf16.msra.mxu0 0
  %4211 = vmatprep.subr.bf16.mxu0 0
  %4212 = vmatpush1.bf16.msra.mxu0 0
  %4213 = vmatprep.subr.bf16.mxu0 0
  %4214 = vmatpush1.bf16.msra.mxu0 0
  %4215 = vmatprep.subr.bf16.mxu0 0
  %4216 = vmatpush1.bf16.msra.mxu0 0
  %4217 = vmatprep.subr.bf16.mxu0 0
  %4218 = vmatpush1.bf16.msra.mxu0 0
  %4219 = vmatprep.mubr.bf16.mxu0 0
  %4220 = vmatmul.mubr.bf16.gmra.mrb[0].mxu0 %v3825
  %v4221 = vpop.f32.mrb[0].mxu0
  %v4222 = vadd.f32 %v4171, %v4221
  %v4223 = vpop.f32.mrb[0].mxu0
  %v4224 = vadd.f32 %v4173, %v4223
  %v4225 = vpop.f32.mrb[0].mxu0
  %v4226 = vadd.f32 %v4175, %v4225
  %v4227 = vpop.f32.mrb[0].mxu0
  %v4228 = vadd.f32 %v4177, %v4227
  %4229 = vmatprep.mubr.bf16.mxu0 0
  %4230 = vmatmul.mubr.bf16.gmra.mrb[0].mxu0 %v3828
  %v4231 = vpop.f32.mrb[0].mxu0
  %v4232 = vadd.f32 %v4181, %v4231
  %v4233 = vpop.f32.mrb[0].mxu0
  %v4234 = vadd.f32 %v4183, %v4233
  %v4235 = vpop.f32.mrb[0].mxu0
  %v4236 = vpop.f32.mrb[0].mxu0
  %4237 = vdwg.mxu0
  %v4238 = vadd.f32 %v2509, %v3916
  %v4239 = vadd.f32 %v2511, %v3918
  %v4240 = vadd.f32 %v2611, %v4018
  %v4241 = vadd.f32 %v2613, %v4020
  %v4242 = vadd.f32 %v2713, %v4120
  %v4243 = vadd.f32 %v2715, %v4122
  %v4244 = vadd.f32 %v2815, %v4222
  %v4245 = vadd.f32 %v2817, %v4224
  %v4246 = vadd.f32 %v2513, %v3920
  %v4247 = vadd.f32 %v2515, %v3922
  %v4248 = vadd.f32 %v2615, %v4022
  %v4249 = vadd.f32 %v2617, %v4024
  %v4250 = vadd.f32 %v2717, %v4124
  %v4251 = vadd.f32 %v2719, %v4126
  %v4252 = vadd.f32 %v2819, %v4226
  %v4253 = vadd.f32 %v2821, %v4228
  %v4254 = vadd.f32 %v2519, %v3926
  %v4255 = vadd.f32 %v2521, %v3928
  %v4256 = vadd.f32 %v2621, %v4028
  %v4257 = vadd.f32 %v2623, %v4030
  %v4258 = vadd.f32 %v2723, %v4130
  %v4259 = vadd.f32 %v2725, %v4132
  %v4260 = vadd.f32 %v2825, %v4232
  %v4261 = vadd.f32 %v2827, %v4234
  %s4262 = scalar_lea.vmem %s0, 108
  %v4263 = vld [vmem:[%s4262] sm:$0xff]
  %v4264 = vld [vmem:[%s4262 + $0x8] sm:$0xf]
  %v4265 = vld [vmem:[%s4262 + $0xc] sm:$0xff]
  %v4266 = vld [vmem:[%s4262 + $0x14] sm:$0xf]
  %v4267 = vld [vmem:[%s4262 + $0x18] sm:$0x33]
  %v4268 = vld [vmem:[%s4262 + $0x20] sm:$0x3]
  %s4269 = scalar_lea.vmem %s1, 3840
  %v4270 = vld [vmem:[%s4269] sm:$0xff]
  %v4271 = vld [vmem:[%s4269 + $0x8] sm:$0xff]
  %v4272 = vld [vmem:[%s4269 + $0x10] sm:$0xff]
  %v4273 = vld [vmem:[%s4269 + $0x18] sm:$0xff]
  %v4274 = vld [vmem:[%s4269 + $0x20] sm:$0xff]
  %v4275 = vld [vmem:[%s4269 + $0x28] sm:$0xff]
  %v4276 = vld [vmem:[%s4269 + $0x30] sm:$0xff]
  %v4277 = vld [vmem:[%s4269 + $0x38] sm:$0xff]
  %v4278 = vld [vmem:[%s4269 + $0x40] sm:$0xff]
  %v4279 = vld [vmem:[%s4269 + $0x48] sm:$0xff]
  %v4280 = vld [vmem:[%s4269 + $0x50] sm:$0xff]
  %v4281 = vld [vmem:[%s4269 + $0x58] sm:$0xff]
  %v4282 = vld [vmem:[%s4269 + $0x60] sm:$0xff]
  %v4283 = vld [vmem:[%s4269 + $0x68] sm:$0xff]
  %v4284 = vld [vmem:[%s4269 + $0x70] sm:$0xff]
  %v4285 = vld [vmem:[%s4269 + $0x78] sm:$0xff]
  %v4286 = vld [vmem:[%s4269 + $0x80] sm:$0xff]
  %v4287 = vld [vmem:[%s4269 + $0x88] sm:$0xff]
  %v4288 = vld [vmem:[%s4269 + $0x90] sm:$0xff]
  %v4289 = vld [vmem:[%s4269 + $0x98] sm:$0xff]
  %v4290 = vld [vmem:[%s4269 + $0xa0] sm:$0xff]
  %v4291 = vld [vmem:[%s4269 + $0xa8] sm:$0xff]
  %v4292 = vld [vmem:[%s4269 + $0xb0] sm:$0xff]
  %v4293 = vld [vmem:[%s4269 + $0xb8] sm:$0xff]
  %v4294 = vld [vmem:[%s4269 + $0xc0] sm:$0xff]
  %v4295 = vld [vmem:[%s4269 + $0xc8] sm:$0xff]
  %v4296 = vld [vmem:[%s4269 + $0xd0] sm:$0xff]
  %v4297 = vld [vmem:[%s4269 + $0xd8] sm:$0xff]
  %v4298 = vld [vmem:[%s4269 + $0xe0] sm:$0xff]
  %v4299 = vld [vmem:[%s4269 + $0xe8] sm:$0xff]
  %v4300 = vld [vmem:[%s4269 + $0xf0] sm:$0xff]
  %v4301 = vld [vmem:[%s4269 + $0xf8] sm:$0xff]
  %v4302 = vld [vmem:[%s4269 + $0x100] sm:$0xff]
  %v4303 = vld [vmem:[%s4269 + $0x108] sm:$0xff]
  %v4304 = vld [vmem:[%s4269 + $0x110] sm:$0xff]
  %v4305 = vld [vmem:[%s4269 + $0x118] sm:$0xff]
  %v4306 = vld [vmem:[%s4269 + $0x120] sm:$0xff]
  %v4307 = vld [vmem:[%s4269 + $0x128] sm:$0xff]
  %v4308 = vld [vmem:[%s4269 + $0x130] sm:$0xff]
  %v4309 = vld [vmem:[%s4269 + $0x138] sm:$0xff]
  %v4310 = vld [vmem:[%s4269 + $0x140] sm:$0xff]
  %v4311 = vld [vmem:[%s4269 + $0x148] sm:$0xff]
  %v4312 = vld [vmem:[%s4269 + $0x150] sm:$0xff]
  %v4313 = vld [vmem:[%s4269 + $0x158] sm:$0xff]
  %v4314 = vld [vmem:[%s4269 + $0x160] sm:$0xff]
  %v4315 = vld [vmem:[%s4269 + $0x168] sm:$0xff]
  %v4316 = vld [vmem:[%s4269 + $0x170] sm:$0xff]
  %v4317 = vld [vmem:[%s4269 + $0x178] sm:$0xff]
  %v4318 = vld [vmem:[%s4269 + $0x180] sm:$0xff]
  %v4319 = vld [vmem:[%s4269 + $0x188] sm:$0xff]
  %v4320 = vld [vmem:[%s4269 + $0x190] sm:$0xff]
  %v4321 = vld [vmem:[%s4269 + $0x198] sm:$0xff]
  %v4322 = vld [vmem:[%s4269 + $0x1a0] sm:$0xff]
  %v4323 = vld [vmem:[%s4269 + $0x1a8] sm:$0xff]
  %v4324 = vld [vmem:[%s4269 + $0x1b0] sm:$0xff]
  %v4325 = vld [vmem:[%s4269 + $0x1b8] sm:$0xff]
  %v4326 = vld [vmem:[%s4269 + $0x1c0] sm:$0xff]
  %v4327 = vld [vmem:[%s4269 + $0x1c8] sm:$0xff]
  %v4328 = vld [vmem:[%s4269 + $0x1d0] sm:$0xff]
  %v4329 = vld [vmem:[%s4269 + $0x1d8] sm:$0xff]
  %v4330 = vld [vmem:[%s4269 + $0x1e0] sm:$0xff]
  %v4331 = vld [vmem:[%s4269 + $0x1e8] sm:$0xff]
  %v4332 = vld [vmem:[%s4269 + $0x1f0] sm:$0xff]
  %v4333 = vld [vmem:[%s4269 + $0x1f8] sm:$0xff]
  %v4334 = vld [vmem:[%s4269 + $0x200] sm:$0xff]
  %v4335 = vld [vmem:[%s4269 + $0x208] sm:$0xff]
  %v4336 = vld [vmem:[%s4269 + $0x210] sm:$0xff]
  %v4337 = vld [vmem:[%s4269 + $0x218] sm:$0xff]
  %v4338 = vld [vmem:[%s4269 + $0x220] sm:$0xff]
  %v4339 = vld [vmem:[%s4269 + $0x228] sm:$0xff]
  %v4340 = vld [vmem:[%s4269 + $0x230] sm:$0xff]
  %v4341 = vld [vmem:[%s4269 + $0x238] sm:$0xff]
  %v4342 = vld [vmem:[%s4269 + $0x240] sm:$0xff]
  %v4343 = vld [vmem:[%s4269 + $0x248] sm:$0xff]
  %v4344 = vld [vmem:[%s4269 + $0x250] sm:$0xff]
  %v4345 = vld [vmem:[%s4269 + $0x258] sm:$0xff]
  %v4346 = vld [vmem:[%s4269 + $0x260] sm:$0xff]
  %v4347 = vld [vmem:[%s4269 + $0x268] sm:$0xff]
  %v4348 = vld [vmem:[%s4269 + $0x270] sm:$0xff]
  %v4349 = vld [vmem:[%s4269 + $0x278] sm:$0xff]
  %v4350 = vld [vmem:[%s4269 + $0x280] sm:$0xff]
  %v4351 = vld [vmem:[%s4269 + $0x288] sm:$0xff]
  %v4352 = vld [vmem:[%s4269 + $0x290] sm:$0xff]
  %v4353 = vld [vmem:[%s4269 + $0x298] sm:$0xff]
  %v4354 = vld [vmem:[%s4269 + $0x2a0] sm:$0xff]
  %v4355 = vld [vmem:[%s4269 + $0x2a8] sm:$0xff]
  %v4356 = vld [vmem:[%s4269 + $0x2b0] sm:$0xff]
  %v4357 = vld [vmem:[%s4269 + $0x2b8] sm:$0xff]
  %v4358 = vld [vmem:[%s4269 + $0x2c0] sm:$0xff]
  %v4359 = vld [vmem:[%s4269 + $0x2c8] sm:$0xff]
  %v4360 = vld [vmem:[%s4269 + $0x2d0] sm:$0xff]
  %v4361 = vld [vmem:[%s4269 + $0x2d8] sm:$0xff]
  %v4362 = vld [vmem:[%s4269 + $0x2e0] sm:$0xff]
  %v4363 = vld [vmem:[%s4269 + $0x2e8] sm:$0xff]
  %v4364 = vld [vmem:[%s4269 + $0x2f0] sm:$0xff]
  %v4365 = vld [vmem:[%s4269 + $0x2f8] sm:$0xff]
  %v4366 = vld [vmem:[%s4269 + $0x300] sm:$0xff]
  %v4367 = vld [vmem:[%s4269 + $0x308] sm:$0xff]
  %v4368 = vld [vmem:[%s4269 + $0x310] sm:$0xff]
  %v4369 = vld [vmem:[%s4269 + $0x318] sm:$0xff]
  %v4370 = vld [vmem:[%s4269 + $0x320] sm:$0xff]
  %v4371 = vld [vmem:[%s4269 + $0x328] sm:$0xff]
  %v4372 = vld [vmem:[%s4269 + $0x330] sm:$0xff]
  %v4373 = vld [vmem:[%s4269 + $0x338] sm:$0xff]
  %v4374 = vld [vmem:[%s4269 + $0x340] sm:$0xff]
  %v4375 = vld [vmem:[%s4269 + $0x348] sm:$0xff]
  %v4376 = vld [vmem:[%s4269 + $0x350] sm:$0xff]
  %v4377 = vld [vmem:[%s4269 + $0x358] sm:$0xff]
  %v4378 = vld [vmem:[%s4269 + $0x360] sm:$0xff]
  %v4379 = vld [vmem:[%s4269 + $0x368] sm:$0xff]
  %v4380 = vld [vmem:[%s4269 + $0x370] sm:$0xff]
  %v4381 = vld [vmem:[%s4269 + $0x378] sm:$0xff]
  %v4382 = vld [vmem:[%s4269 + $0x380] sm:$0xff]
  %v4383 = vld [vmem:[%s4269 + $0x388] sm:$0xff]
  %v4384 = vld [vmem:[%s4269 + $0x390] sm:$0xff]
  %v4385 = vld [vmem:[%s4269 + $0x398] sm:$0xff]
  %v4386 = vld [vmem:[%s4269 + $0x3a0] sm:$0xff]
  %v4387 = vld [vmem:[%s4269 + $0x3a8] sm:$0xff]
  %v4388 = vld [vmem:[%s4269 + $0x3b0] sm:$0xff]
  %v4389 = vld [vmem:[%s4269 + $0x3b8] sm:$0xff]
  %v4390 = vld [vmem:[%s4269 + $0x3c0] sm:$0xff]
  %v4391 = vld [vmem:[%s4269 + $0x3c8] sm:$0xff]
  %v4392 = vld [vmem:[%s4269 + $0x3d0] sm:$0xff]
  %v4393 = vld [vmem:[%s4269 + $0x3d8] sm:$0xff]
  %v4394 = vld [vmem:[%s4269 + $0x3e0] sm:$0xff]
  %v4395 = vld [vmem:[%s4269 + $0x3e8] sm:$0xff]
  %v4396 = vld [vmem:[%s4269 + $0x3f0] sm:$0xff]
  %v4397 = vld [vmem:[%s4269 + $0x3f8] sm:$0xff]
  %v4398 = vld [vmem:[%s4269 + $0x400] sm:$0xff]
  %v4399 = vld [vmem:[%s4269 + $0x408] sm:$0xff]
  %v4400 = vld [vmem:[%s4269 + $0x410] sm:$0xff]
  %v4401 = vld [vmem:[%s4269 + $0x418] sm:$0xff]
  %v4402 = vld [vmem:[%s4269 + $0x420] sm:$0xff]
  %v4403 = vld [vmem:[%s4269 + $0x428] sm:$0xff]
  %v4404 = vld [vmem:[%s4269 + $0x430] sm:$0xff]
  %v4405 = vld [vmem:[%s4269 + $0x438] sm:$0xff]
  %v4406 = vld [vmem:[%s4269 + $0x440] sm:$0xff]
  %v4407 = vld [vmem:[%s4269 + $0x448] sm:$0xff]
  %v4408 = vld [vmem:[%s4269 + $0x450] sm:$0xff]
  %v4409 = vld [vmem:[%s4269 + $0x458] sm:$0xff]
  %v4410 = vld [vmem:[%s4269 + $0x460] sm:$0xff]
  %v4411 = vld [vmem:[%s4269 + $0x468] sm:$0xff]
  %v4412 = vld [vmem:[%s4269 + $0x470] sm:$0xff]
  %v4413 = vld [vmem:[%s4269 + $0x478] sm:$0xff]
  %v4414 = vld [vmem:[%s4269 + $0x480] sm:$0xff]
  %v4415 = vld [vmem:[%s4269 + $0x488] sm:$0xff]
  %v4416 = vld [vmem:[%s4269 + $0x490] sm:$0xff]
  %v4417 = vld [vmem:[%s4269 + $0x498] sm:$0xff]
  %v4418 = vld [vmem:[%s4269 + $0x4a0] sm:$0xff]
  %v4419 = vld [vmem:[%s4269 + $0x4a8] sm:$0xff]
  %v4420 = vld [vmem:[%s4269 + $0x4b0] sm:$0xff]
  %v4421 = vld [vmem:[%s4269 + $0x4b8] sm:$0xff]
  %v4422 = vld [vmem:[%s4269 + $0x4c0] sm:$0xff]
  %v4423 = vld [vmem:[%s4269 + $0x4c8] sm:$0xff]
  %v4424 = vld [vmem:[%s4269 + $0x4d0] sm:$0xff]
  %v4425 = vld [vmem:[%s4269 + $0x4d8] sm:$0xff]
  %v4426 = vld [vmem:[%s4269 + $0x4e0] sm:$0xff]
  %v4427 = vld [vmem:[%s4269 + $0x4e8] sm:$0xff]
  %v4428 = vld [vmem:[%s4269 + $0x4f0] sm:$0xff]
  %v4429 = vld [vmem:[%s4269 + $0x4f8] sm:$0xff]
  %v4436 = vunpack.c.l.b16 %v4263
  %v4437 = vunpack.c.h.b16 %v4263
  %v4438 = vunpack.c.l.b16 %v4264
  %v4439 = vunpack.c.l.b16 %v4265
  %v4440 = vunpack.c.h.b16 %v4265
  %v4441 = vunpack.c.l.b16 %v4266
  %v4442 = vunpack.c.l.b16 %v4267
  %v4443 = vunpack.c.h.b16 %v4267
  %v4444 = vunpack.c.l.b16 %v4268
  %v4445 = vpack.c.b16 %v4439, %v4436
  %v4446 = vpack.c.b16 %v4440, %v4437
  %v4447 = vpack.c.b16 %v4441, %v4438
  %v4448 = vpack.c.b16 %v4442, %v4442
  %v4449 = vpack.c.b16 %v4443, %v4443
  %v4450 = vpack.c.b16 %v4444, %v4444
  %v4615 = vunpack.c.l.b16 %v4270
  %v4616 = vunpack.c.h.b16 %v4270
  %v4617 = vunpack.c.l.b16 %v4271
  %v4618 = vunpack.c.h.b16 %v4271
  %v4619 = vunpack.c.l.b16 %v4272
  %v4620 = vunpack.c.h.b16 %v4272
  %v4621 = vunpack.c.l.b16 %v4273
  %v4622 = vunpack.c.h.b16 %v4273
  %v4623 = vunpack.c.l.b16 %v4274
  %v4624 = vunpack.c.h.b16 %v4274
  %v4625 = vunpack.c.l.b16 %v4275
  %v4626 = vunpack.c.h.b16 %v4275
  %v4627 = vunpack.c.l.b16 %v4276
  %v4628 = vunpack.c.h.b16 %v4276
  %v4629 = vunpack.c.l.b16 %v4277
  %v4630 = vunpack.c.h.b16 %v4277
  %v4631 = vunpack.c.l.b16 %v4278
  %v4632 = vunpack.c.h.b16 %v4278
  %v4633 = vunpack.c.l.b16 %v4279
  %v4634 = vunpack.c.h.b16 %v4279
  %v4635 = vunpack.c.l.b16 %v4280
  %v4636 = vunpack.c.h.b16 %v4280
  %v4637 = vunpack.c.l.b16 %v4281
  %v4638 = vunpack.c.h.b16 %v4281
  %v4639 = vunpack.c.l.b16 %v4282
  %v4640 = vunpack.c.h.b16 %v4282
  %v4641 = vunpack.c.l.b16 %v4283
  %v4642 = vunpack.c.h.b16 %v4283
  %v4643 = vunpack.c.l.b16 %v4284
  %v4644 = vunpack.c.h.b16 %v4284
  %v4645 = vunpack.c.l.b16 %v4285
  %v4646 = vunpack.c.h.b16 %v4285
  %v4647 = vunpack.c.l.b16 %v4286
  %v4648 = vunpack.c.h.b16 %v4286
  %v4649 = vunpack.c.l.b16 %v4287
  %v4650 = vunpack.c.h.b16 %v4287
  %v4651 = vunpack.c.l.b16 %v4288
  %v4652 = vunpack.c.h.b16 %v4288
  %v4653 = vunpack.c.l.b16 %v4289
  %v4654 = vunpack.c.h.b16 %v4289
  %v4655 = vunpack.c.l.b16 %v4290
  %v4656 = vunpack.c.h.b16 %v4290
  %v4657 = vunpack.c.l.b16 %v4291
  %v4658 = vunpack.c.h.b16 %v4291
  %v4659 = vunpack.c.l.b16 %v4292
  %v4660 = vunpack.c.h.b16 %v4292
  %v4661 = vunpack.c.l.b16 %v4293
  %v4662 = vunpack.c.h.b16 %v4293
  %v4663 = vunpack.c.l.b16 %v4294
  %v4664 = vunpack.c.h.b16 %v4294
  %v4665 = vunpack.c.l.b16 %v4295
  %v4666 = vunpack.c.h.b16 %v4295
  %v4667 = vunpack.c.l.b16 %v4296
  %v4668 = vunpack.c.h.b16 %v4296
  %v4669 = vunpack.c.l.b16 %v4297
  %v4670 = vunpack.c.h.b16 %v4297
  %v4671 = vunpack.c.l.b16 %v4298
  %v4672 = vunpack.c.h.b16 %v4298
  %v4673 = vunpack.c.l.b16 %v4299
  %v4674 = vunpack.c.h.b16 %v4299
  %v4675 = vunpack.c.l.b16 %v4300
  %v4676 = vunpack.c.h.b16 %v4300
  %v4677 = vunpack.c.l.b16 %v4301
  %v4678 = vunpack.c.h.b16 %v4301
  %v4679 = vunpack.c.l.b16 %v4302
  %v4680 = vunpack.c.h.b16 %v4302
  %v4681 = vunpack.c.l.b16 %v4303
  %v4682 = vunpack.c.h.b16 %v4303
  %v4683 = vunpack.c.l.b16 %v4304
  %v4684 = vunpack.c.h.b16 %v4304
  %v4685 = vunpack.c.l.b16 %v4305
  %v4686 = vunpack.c.h.b16 %v4305
  %v4687 = vunpack.c.l.b16 %v4306
  %v4688 = vunpack.c.h.b16 %v4306
  %v4689 = vunpack.c.l.b16 %v4307
  %v4690 = vunpack.c.h.b16 %v4307
  %v4691 = vunpack.c.l.b16 %v4308
  %v4692 = vunpack.c.h.b16 %v4308
  %v4693 = vunpack.c.l.b16 %v4309
  %v4694 = vunpack.c.h.b16 %v4309
  %v4695 = vunpack.c.l.b16 %v4310
  %v4696 = vunpack.c.h.b16 %v4310
  %v4697 = vunpack.c.l.b16 %v4311
  %v4698 = vunpack.c.h.b16 %v4311
  %v4699 = vunpack.c.l.b16 %v4312
  %v4700 = vunpack.c.h.b16 %v4312
  %v4701 = vunpack.c.l.b16 %v4313
  %v4702 = vunpack.c.h.b16 %v4313
  %v4703 = vunpack.c.l.b16 %v4314
  %v4704 = vunpack.c.h.b16 %v4314
  %v4705 = vunpack.c.l.b16 %v4315
  %v4706 = vunpack.c.h.b16 %v4315
  %v4707 = vunpack.c.l.b16 %v4316
  %v4708 = vunpack.c.h.b16 %v4316
  %v4709 = vunpack.c.l.b16 %v4317
  %v4710 = vunpack.c.h.b16 %v4317
  %v4711 = vunpack.c.l.b16 %v4318
  %v4712 = vunpack.c.h.b16 %v4318
  %v4713 = vunpack.c.l.b16 %v4319
  %v4714 = vunpack.c.h.b16 %v4319
  %v4715 = vunpack.c.l.b16 %v4320
  %v4716 = vunpack.c.h.b16 %v4320
  %v4717 = vunpack.c.l.b16 %v4321
  %v4718 = vunpack.c.h.b16 %v4321
  %v4719 = vunpack.c.l.b16 %v4322
  %v4720 = vunpack.c.h.b16 %v4322
  %v4721 = vunpack.c.l.b16 %v4323
  %v4722 = vunpack.c.h.b16 %v4323
  %v4723 = vunpack.c.l.b16 %v4324
  %v4724 = vunpack.c.h.b16 %v4324
  %v4725 = vunpack.c.l.b16 %v4325
  %v4726 = vunpack.c.h.b16 %v4325
  %v4727 = vunpack.c.l.b16 %v4326
  %v4728 = vunpack.c.h.b16 %v4326
  %v4729 = vunpack.c.l.b16 %v4327
  %v4730 = vunpack.c.h.b16 %v4327
  %v4731 = vunpack.c.l.b16 %v4328
  %v4732 = vunpack.c.h.b16 %v4328
  %v4733 = vunpack.c.l.b16 %v4329
  %v4734 = vunpack.c.h.b16 %v4329
  %v4735 = vunpack.c.l.b16 %v4330
  %v4736 = vunpack.c.h.b16 %v4330
  %v4737 = vunpack.c.l.b16 %v4331
  %v4738 = vunpack.c.h.b16 %v4331
  %v4739 = vunpack.c.l.b16 %v4332
  %v4740 = vunpack.c.h.b16 %v4332
  %v4741 = vunpack.c.l.b16 %v4333
  %v4742 = vunpack.c.h.b16 %v4333
  %v4743 = vunpack.c.l.b16 %v4334
  %v4744 = vunpack.c.h.b16 %v4334
  %v4745 = vunpack.c.l.b16 %v4335
  %v4746 = vunpack.c.h.b16 %v4335
  %v4747 = vunpack.c.l.b16 %v4336
  %v4748 = vunpack.c.h.b16 %v4336
  %v4749 = vunpack.c.l.b16 %v4337
  %v4750 = vunpack.c.h.b16 %v4337
  %v4751 = vunpack.c.l.b16 %v4338
  %v4752 = vunpack.c.h.b16 %v4338
  %v4753 = vunpack.c.l.b16 %v4339
  %v4754 = vunpack.c.h.b16 %v4339
  %v4755 = vunpack.c.l.b16 %v4340
  %v4756 = vunpack.c.h.b16 %v4340
  %v4757 = vunpack.c.l.b16 %v4341
  %v4758 = vunpack.c.h.b16 %v4341
  %v4759 = vunpack.c.l.b16 %v4342
  %v4760 = vunpack.c.h.b16 %v4342
  %v4761 = vunpack.c.l.b16 %v4343
  %v4762 = vunpack.c.h.b16 %v4343
  %v4763 = vunpack.c.l.b16 %v4344
  %v4764 = vunpack.c.h.b16 %v4344
  %v4765 = vunpack.c.l.b16 %v4345
  %v4766 = vunpack.c.h.b16 %v4345
  %v4767 = vunpack.c.l.b16 %v4346
  %v4768 = vunpack.c.h.b16 %v4346
  %v4769 = vunpack.c.l.b16 %v4347
  %v4770 = vunpack.c.h.b16 %v4347
  %v4771 = vunpack.c.l.b16 %v4348
  %v4772 = vunpack.c.h.b16 %v4348
  %v4773 = vunpack.c.l.b16 %v4349
  %v4774 = vunpack.c.h.b16 %v4349
  %v4775 = vunpack.c.l.b16 %v4350
  %v4776 = vunpack.c.h.b16 %v4350
  %v4777 = vunpack.c.l.b16 %v4351
  %v4778 = vunpack.c.h.b16 %v4351
  %v4779 = vunpack.c.l.b16 %v4352
  %v4780 = vunpack.c.h.b16 %v4352
  %v4781 = vunpack.c.l.b16 %v4353
  %v4782 = vunpack.c.h.b16 %v4353
  %v4783 = vunpack.c.l.b16 %v4354
  %v4784 = vunpack.c.h.b16 %v4354
  %v4785 = vunpack.c.l.b16 %v4355
  %v4786 = vunpack.c.h.b16 %v4355
  %v4787 = vunpack.c.l.b16 %v4356
  %v4788 = vunpack.c.h.b16 %v4356
  %v4789 = vunpack.c.l.b16 %v4357
  %v4790 = vunpack.c.h.b16 %v4357
  %v4791 = vunpack.c.l.b16 %v4358
  %v4792 = vunpack.c.h.b16 %v4358
  %v4793 = vunpack.c.l.b16 %v4359
  %v4794 = vunpack.c.h.b16 %v4359
  %v4795 = vunpack.c.l.b16 %v4360
  %v4796 = vunpack.c.h.b16 %v4360
  %v4797 = vunpack.c.l.b16 %v4361
  %v4798 = vunpack.c.h.b16 %v4361
  %v4799 = vunpack.c.l.b16 %v4362
  %v4800 = vunpack.c.h.b16 %v4362
  %v4801 = vunpack.c.l.b16 %v4363
  %v4802 = vunpack.c.h.b16 %v4363
  %v4803 = vunpack.c.l.b16 %v4364
  %v4804 = vunpack.c.h.b16 %v4364
  %v4805 = vunpack.c.l.b16 %v4365
  %v4806 = vunpack.c.h.b16 %v4365
  %v4807 = vunpack.c.l.b16 %v4366
  %v4808 = vunpack.c.h.b16 %v4366
  %v4809 = vunpack.c.l.b16 %v4367
  %v4810 = vunpack.c.h.b16 %v4367
  %v4811 = vunpack.c.l.b16 %v4368
  %v4812 = vunpack.c.h.b16 %v4368
  %v4813 = vunpack.c.l.b16 %v4369
  %v4814 = vunpack.c.h.b16 %v4369
  %v4815 = vunpack.c.l.b16 %v4370
  %v4816 = vunpack.c.h.b16 %v4370
  %v4817 = vunpack.c.l.b16 %v4371
  %v4818 = vunpack.c.h.b16 %v4371
  %v4819 = vunpack.c.l.b16 %v4372
  %v4820 = vunpack.c.h.b16 %v4372
  %v4821 = vunpack.c.l.b16 %v4373
  %v4822 = vunpack.c.h.b16 %v4373
  %v4823 = vunpack.c.l.b16 %v4374
  %v4824 = vunpack.c.h.b16 %v4374
  %v4825 = vunpack.c.l.b16 %v4375
  %v4826 = vunpack.c.h.b16 %v4375
  %v4827 = vunpack.c.l.b16 %v4376
  %v4828 = vunpack.c.h.b16 %v4376
  %v4829 = vunpack.c.l.b16 %v4377
  %v4830 = vunpack.c.h.b16 %v4377
  %v4831 = vunpack.c.l.b16 %v4378
  %v4832 = vunpack.c.h.b16 %v4378
  %v4833 = vunpack.c.l.b16 %v4379
  %v4834 = vunpack.c.h.b16 %v4379
  %v4835 = vunpack.c.l.b16 %v4380
  %v4836 = vunpack.c.h.b16 %v4380
  %v4837 = vunpack.c.l.b16 %v4381
  %v4838 = vunpack.c.h.b16 %v4381
  %v4839 = vunpack.c.l.b16 %v4382
  %v4840 = vunpack.c.h.b16 %v4382
  %v4841 = vunpack.c.l.b16 %v4383
  %v4842 = vunpack.c.h.b16 %v4383
  %v4843 = vunpack.c.l.b16 %v4384
  %v4844 = vunpack.c.h.b16 %v4384
  %v4845 = vunpack.c.l.b16 %v4385
  %v4846 = vunpack.c.h.b16 %v4385
  %v4847 = vunpack.c.l.b16 %v4386
  %v4848 = vunpack.c.h.b16 %v4386
  %v4849 = vunpack.c.l.b16 %v4387
  %v4850 = vunpack.c.h.b16 %v4387
  %v4851 = vunpack.c.l.b16 %v4388
  %v4852 = vunpack.c.h.b16 %v4388
  %v4853 = vunpack.c.l.b16 %v4389
  %v4854 = vunpack.c.h.b16 %v4389
  %v4855 = vunpack.c.l.b16 %v4390
  %v4856 = vunpack.c.h.b16 %v4390
  %v4857 = vunpack.c.l.b16 %v4391
  %v4858 = vunpack.c.h.b16 %v4391
  %v4859 = vunpack.c.l.b16 %v4392
  %v4860 = vunpack.c.h.b16 %v4392
  %v4861 = vunpack.c.l.b16 %v4393
  %v4862 = vunpack.c.h.b16 %v4393
  %v4863 = vunpack.c.l.b16 %v4394
  %v4864 = vunpack.c.h.b16 %v4394
  %v4865 = vunpack.c.l.b16 %v4395
  %v4866 = vunpack.c.h.b16 %v4395
  %v4867 = vunpack.c.l.b16 %v4396
  %v4868 = vunpack.c.h.b16 %v4396
  %v4869 = vunpack.c.l.b16 %v4397
  %v4870 = vunpack.c.h.b16 %v4397
  %v4871 = vunpack.c.l.b16 %v4398
  %v4872 = vunpack.c.h.b16 %v4398
  %v4873 = vunpack.c.l.b16 %v4399
  %v4874 = vunpack.c.h.b16 %v4399
  %v4875 = vunpack.c.l.b16 %v4400
  %v4876 = vunpack.c.h.b16 %v4400
  %v4877 = vunpack.c.l.b16 %v4401
  %v4878 = vunpack.c.h.b16 %v4401
  %v4879 = vunpack.c.l.b16 %v4402
  %v4880 = vunpack.c.h.b16 %v4402
  %v4881 = vunpack.c.l.b16 %v4403
  %v4882 = vunpack.c.h.b16 %v4403
  %v4883 = vunpack.c.l.b16 %v4404
  %v4884 = vunpack.c.h.b16 %v4404
  %v4885 = vunpack.c.l.b16 %v4405
  %v4886 = vunpack.c.h.b16 %v4405
  %v4887 = vunpack.c.l.b16 %v4406
  %v4888 = vunpack.c.h.b16 %v4406
  %v4889 = vunpack.c.l.b16 %v4407
  %v4890 = vunpack.c.h.b16 %v4407
  %v4891 = vunpack.c.l.b16 %v4408
  %v4892 = vunpack.c.h.b16 %v4408
  %v4893 = vunpack.c.l.b16 %v4409
  %v4894 = vunpack.c.h.b16 %v4409
  %v4895 = vunpack.c.l.b16 %v4410
  %v4896 = vunpack.c.h.b16 %v4410
  %v4897 = vunpack.c.l.b16 %v4411
  %v4898 = vunpack.c.h.b16 %v4411
  %v4899 = vunpack.c.l.b16 %v4412
  %v4900 = vunpack.c.h.b16 %v4412
  %v4901 = vunpack.c.l.b16 %v4413
  %v4902 = vunpack.c.h.b16 %v4413
  %v4903 = vunpack.c.l.b16 %v4414
  %v4904 = vunpack.c.h.b16 %v4414
  %v4905 = vunpack.c.l.b16 %v4415
  %v4906 = vunpack.c.h.b16 %v4415
  %v4907 = vunpack.c.l.b16 %v4416
  %v4908 = vunpack.c.h.b16 %v4416
  %v4909 = vunpack.c.l.b16 %v4417
  %v4910 = vunpack.c.h.b16 %v4417
  %v4911 = vunpack.c.l.b16 %v4418
  %v4912 = vunpack.c.h.b16 %v4418
  %v4913 = vunpack.c.l.b16 %v4419
  %v4914 = vunpack.c.h.b16 %v4419
  %v4915 = vunpack.c.l.b16 %v4420
  %v4916 = vunpack.c.h.b16 %v4420
  %v4917 = vunpack.c.l.b16 %v4421
  %v4918 = vunpack.c.h.b16 %v4421
  %v4919 = vunpack.c.l.b16 %v4422
  %v4920 = vunpack.c.h.b16 %v4422
  %v4921 = vunpack.c.l.b16 %v4423
  %v4922 = vunpack.c.h.b16 %v4423
  %v4923 = vunpack.c.l.b16 %v4424
  %v4924 = vunpack.c.h.b16 %v4424
  %v4925 = vunpack.c.l.b16 %v4425
  %v4926 = vunpack.c.h.b16 %v4425
  %v4927 = vunpack.c.l.b16 %v4426
  %v4928 = vunpack.c.h.b16 %v4426
  %v4929 = vunpack.c.l.b16 %v4427
  %v4930 = vunpack.c.h.b16 %v4427
  %v4931 = vunpack.c.l.b16 %v4428
  %v4932 = vunpack.c.h.b16 %v4428
  %v4933 = vunpack.c.l.b16 %v4429
  %v4934 = vunpack.c.h.b16 %v4429
  %v4935 = vpack.c.b16 %v4623, %v4615
  %v4936 = vpack.c.b16 %v4624, %v4616
  %v4937 = vpack.c.b16 %v4625, %v4617
  %v4938 = vpack.c.b16 %v4626, %v4618
  %v4939 = vpack.c.b16 %v4627, %v4619
  %v4940 = vpack.c.b16 %v4628, %v4620
  %v4941 = vpack.c.b16 %v4629, %v4621
  %v4942 = vpack.c.b16 %v4630, %v4622
  %v4943 = vpack.c.b16 %v4639, %v4631
  %v4944 = vpack.c.b16 %v4640, %v4632
  %v4945 = vpack.c.b16 %v4641, %v4633
  %v4946 = vpack.c.b16 %v4642, %v4634
  %v4947 = vpack.c.b16 %v4643, %v4635
  %v4948 = vpack.c.b16 %v4644, %v4636
  %v4949 = vpack.c.b16 %v4645, %v4637
  %v4950 = vpack.c.b16 %v4646, %v4638
  %v4951 = vpack.c.b16 %v4655, %v4647
  %v4952 = vpack.c.b16 %v4656, %v4648
  %v4953 = vpack.c.b16 %v4657, %v4649
  %v4954 = vpack.c.b16 %v4658, %v4650
  %v4955 = vpack.c.b16 %v4659, %v4651
  %v4956 = vpack.c.b16 %v4660, %v4652
  %v4957 = vpack.c.b16 %v4661, %v4653
  %v4958 = vpack.c.b16 %v4662, %v4654
  %v4959 = vpack.c.b16 %v4671, %v4663
  %v4960 = vpack.c.b16 %v4672, %v4664
  %v4961 = vpack.c.b16 %v4673, %v4665
  %v4962 = vpack.c.b16 %v4674, %v4666
  %v4963 = vpack.c.b16 %v4675, %v4667
  %v4964 = vpack.c.b16 %v4676, %v4668
  %v4965 = vpack.c.b16 %v4677, %v4669
  %v4966 = vpack.c.b16 %v4678, %v4670
  %v4967 = vpack.c.b16 %v4687, %v4679
  %v4968 = vpack.c.b16 %v4688, %v4680
  %v4969 = vpack.c.b16 %v4689, %v4681
  %v4970 = vpack.c.b16 %v4690, %v4682
  %v4971 = vpack.c.b16 %v4691, %v4683
  %v4972 = vpack.c.b16 %v4692, %v4684
  %v4973 = vpack.c.b16 %v4693, %v4685
  %v4974 = vpack.c.b16 %v4694, %v4686
  %v4975 = vpack.c.b16 %v4703, %v4695
  %v4976 = vpack.c.b16 %v4704, %v4696
  %v4977 = vpack.c.b16 %v4705, %v4697
  %v4978 = vpack.c.b16 %v4706, %v4698
  %v4979 = vpack.c.b16 %v4707, %v4699
  %v4980 = vpack.c.b16 %v4708, %v4700
  %v4981 = vpack.c.b16 %v4709, %v4701
  %v4982 = vpack.c.b16 %v4710, %v4702
  %v4983 = vpack.c.b16 %v4719, %v4711
  %v4984 = vpack.c.b16 %v4720, %v4712
  %v4985 = vpack.c.b16 %v4721, %v4713
  %v4986 = vpack.c.b16 %v4722, %v4714
  %v4987 = vpack.c.b16 %v4723, %v4715
  %v4988 = vpack.c.b16 %v4724, %v4716
  %v4989 = vpack.c.b16 %v4725, %v4717
  %v4990 = vpack.c.b16 %v4726, %v4718
  %v4991 = vpack.c.b16 %v4735, %v4727
  %v4992 = vpack.c.b16 %v4736, %v4728
  %v4993 = vpack.c.b16 %v4737, %v4729
  %v4994 = vpack.c.b16 %v4738, %v4730
  %v4995 = vpack.c.b16 %v4739, %v4731
  %v4996 = vpack.c.b16 %v4740, %v4732
  %v4997 = vpack.c.b16 %v4741, %v4733
  %v4998 = vpack.c.b16 %v4742, %v4734
  %v4999 = vpack.c.b16 %v4751, %v4743
  %v5000 = vpack.c.b16 %v4752, %v4744
  %v5001 = vpack.c.b16 %v4753, %v4745
  %v5002 = vpack.c.b16 %v4754, %v4746
  %v5003 = vpack.c.b16 %v4755, %v4747
  %v5004 = vpack.c.b16 %v4756, %v4748
  %v5005 = vpack.c.b16 %v4757, %v4749
  %v5006 = vpack.c.b16 %v4758, %v4750
  %v5007 = vpack.c.b16 %v4767, %v4759
  %v5008 = vpack.c.b16 %v4768, %v4760
  %v5009 = vpack.c.b16 %v4769, %v4761
  %v5010 = vpack.c.b16 %v4770, %v4762
  %v5011 = vpack.c.b16 %v4771, %v4763
  %v5012 = vpack.c.b16 %v4772, %v4764
  %v5013 = vpack.c.b16 %v4773, %v4765
  %v5014 = vpack.c.b16 %v4774, %v4766
  %v5015 = vpack.c.b16 %v4783, %v4775
  %v5016 = vpack.c.b16 %v4784, %v4776
  %v5017 = vpack.c.b16 %v4785, %v4777
  %v5018 = vpack.c.b16 %v4786, %v4778
  %v5019 = vpack.c.b16 %v4787, %v4779
  %v5020 = vpack.c.b16 %v4788, %v4780
  %v5021 = vpack.c.b16 %v4789, %v4781
  %v5022 = vpack.c.b16 %v4790, %v4782
  %v5023 = vpack.c.b16 %v4799, %v4791
  %v5024 = vpack.c.b16 %v4800, %v4792
  %v5025 = vpack.c.b16 %v4801, %v4793
  %v5026 = vpack.c.b16 %v4802, %v4794
  %v5027 = vpack.c.b16 %v4803, %v4795
  %v5028 = vpack.c.b16 %v4804, %v4796
  %v5029 = vpack.c.b16 %v4805, %v4797
  %v5030 = vpack.c.b16 %v4806, %v4798
  %v5031 = vpack.c.b16 %v4815, %v4807
  %v5032 = vpack.c.b16 %v4816, %v4808
  %v5033 = vpack.c.b16 %v4817, %v4809
  %v5034 = vpack.c.b16 %v4818, %v4810
  %v5035 = vpack.c.b16 %v4819, %v4811
  %v5036 = vpack.c.b16 %v4820, %v4812
  %v5037 = vpack.c.b16 %v4821, %v4813
  %v5038 = vpack.c.b16 %v4822, %v4814
  %v5039 = vpack.c.b16 %v4831, %v4823
  %v5040 = vpack.c.b16 %v4832, %v4824
  %v5041 = vpack.c.b16 %v4833, %v4825
  %v5042 = vpack.c.b16 %v4834, %v4826
  %v5043 = vpack.c.b16 %v4835, %v4827
  %v5044 = vpack.c.b16 %v4836, %v4828
  %v5045 = vpack.c.b16 %v4837, %v4829
  %v5046 = vpack.c.b16 %v4838, %v4830
  %v5047 = vpack.c.b16 %v4847, %v4839
  %v5048 = vpack.c.b16 %v4848, %v4840
  %v5049 = vpack.c.b16 %v4849, %v4841
  %v5050 = vpack.c.b16 %v4850, %v4842
  %v5051 = vpack.c.b16 %v4851, %v4843
  %v5052 = vpack.c.b16 %v4852, %v4844
  %v5053 = vpack.c.b16 %v4853, %v4845
  %v5054 = vpack.c.b16 %v4854, %v4846
  %v5055 = vpack.c.b16 %v4863, %v4855
  %v5056 = vpack.c.b16 %v4864, %v4856
  %v5057 = vpack.c.b16 %v4865, %v4857
  %v5058 = vpack.c.b16 %v4866, %v4858
  %v5059 = vpack.c.b16 %v4867, %v4859
  %v5060 = vpack.c.b16 %v4868, %v4860
  %v5061 = vpack.c.b16 %v4869, %v4861
  %v5062 = vpack.c.b16 %v4870, %v4862
  %v5063 = vpack.c.b16 %v4879, %v4871
  %v5064 = vpack.c.b16 %v4880, %v4872
  %v5065 = vpack.c.b16 %v4881, %v4873
  %v5066 = vpack.c.b16 %v4882, %v4874
  %v5067 = vpack.c.b16 %v4883, %v4875
  %v5068 = vpack.c.b16 %v4884, %v4876
  %v5069 = vpack.c.b16 %v4885, %v4877
  %v5070 = vpack.c.b16 %v4886, %v4878
  %v5071 = vpack.c.b16 %v4895, %v4887
  %v5072 = vpack.c.b16 %v4896, %v4888
  %v5073 = vpack.c.b16 %v4897, %v4889
  %v5074 = vpack.c.b16 %v4898, %v4890
  %v5075 = vpack.c.b16 %v4899, %v4891
  %v5076 = vpack.c.b16 %v4900, %v4892
  %v5077 = vpack.c.b16 %v4901, %v4893
  %v5078 = vpack.c.b16 %v4902, %v4894
  %v5079 = vpack.c.b16 %v4911, %v4903
  %v5080 = vpack.c.b16 %v4912, %v4904
  %v5081 = vpack.c.b16 %v4913, %v4905
  %v5082 = vpack.c.b16 %v4914, %v4906
  %v5083 = vpack.c.b16 %v4915, %v4907
  %v5084 = vpack.c.b16 %v4916, %v4908
  %v5085 = vpack.c.b16 %v4917, %v4909
  %v5086 = vpack.c.b16 %v4918, %v4910
  %v5087 = vpack.c.b16 %v4927, %v4919
  %v5088 = vpack.c.b16 %v4928, %v4920
  %v5089 = vpack.c.b16 %v4929, %v4921
  %v5090 = vpack.c.b16 %v4930, %v4922
  %v5091 = vpack.c.b16 %v4931, %v4923
  %v5092 = vpack.c.b16 %v4932, %v4924
  %v5093 = vpack.c.b16 %v4933, %v4925
  %v5094 = vpack.c.b16 %v4934, %v4926
  %v5256 = vsel %vm1177, %v4447, 0
  %v5259 = vsel %vm1177, %v4450, 0
  %5261 = vmatprep.subr.bf16.mxu0 %v4936
  %5262 = vmatpush1.bf16.msra.mxu0 %v4935
  %5263 = vmatprep.subr.bf16.mxu0 %v4944
  %5264 = vmatpush1.bf16.msra.mxu0 %v4943
  %5265 = vmatprep.subr.bf16.mxu0 %v4952
  %5266 = vmatpush1.bf16.msra.mxu0 %v4951
  %5267 = vmatprep.subr.bf16.mxu0 %v4960
  %5268 = vmatpush1.bf16.msra.mxu0 %v4959
  %5269 = vmatprep.subr.bf16.mxu0 %v4968
  %5270 = vmatpush1.bf16.msra.mxu0 %v4967
  %5271 = vmatprep.subr.bf16.mxu0 %v4976
  %5272 = vmatpush1.bf16.msra.mxu0 %v4975
  %5273 = vmatprep.subr.bf16.mxu0 %v4984
  %5274 = vmatpush1.bf16.msra.mxu0 %v4983
  %5275 = vmatprep.subr.bf16.mxu0 %v4992
  %5276 = vmatpush1.bf16.msra.mxu0 %v4991
  %5277 = vmatprep.subr.bf16.mxu0 %v5000
  %5278 = vmatpush1.bf16.msra.mxu0 %v4999
  %5279 = vmatprep.subr.bf16.mxu0 %v5008
  %5280 = vmatpush1.bf16.msra.mxu0 %v5007
  %5281 = vmatprep.subr.bf16.mxu0 %v5016
  %5282 = vmatpush1.bf16.msra.mxu0 %v5015
  %5283 = vmatprep.subr.bf16.mxu0 %v5024
  %5284 = vmatpush1.bf16.msra.mxu0 %v5023
  %5285 = vmatprep.subr.bf16.mxu0 %v5032
  %5286 = vmatpush1.bf16.msra.mxu0 %v5031
  %5287 = vmatprep.subr.bf16.mxu0 %v5040
  %5288 = vmatpush1.bf16.msra.mxu0 %v5039
  %5289 = vmatprep.subr.bf16.mxu0 %v5048
  %5290 = vmatpush1.bf16.msra.mxu0 %v5047
  %5291 = vmatprep.subr.bf16.mxu0 %v5056
  %5292 = vmatpush1.bf16.msra.mxu0 %v5055
  %5293 = vmatprep.mubr.bf16.mxu0 %v4446
  %5294 = vmatmul.mubr.bf16.gmra.mrb[0].mxu0 %v4445
  %v5295 = vpop.f32.mrb[0].mxu0
  %v5296 = vadd.f32 0.0, %v5295
  %v5297 = vpop.f32.mrb[0].mxu0
  %v5298 = vadd.f32 0.0, %v5297
  %v5299 = vpop.f32.mrb[0].mxu0
  %v5300 = vadd.f32 0.0, %v5299
  %v5301 = vpop.f32.mrb[0].mxu0
  %v5302 = vadd.f32 0.0, %v5301
  %5303 = vmatprep.mubr.bf16.mxu0 %v4449
  %5304 = vmatmul.mubr.bf16.gmra.mrb[0].mxu0 %v4448
  %v5305 = vpop.f32.mrb[0].mxu0
  %v5306 = vadd.f32 0.0, %v5305
  %v5307 = vpop.f32.mrb[0].mxu0
  %v5308 = vadd.f32 0.0, %v5307
  %v5309 = vpop.f32.mrb[0].mxu0
  %v5310 = vpop.f32.mrb[0].mxu0
  %5311 = vdwg.mxu0
  %5312 = vmatprep.subr.bf16.mxu0 %v5064
  %5313 = vmatpush1.bf16.msra.mxu0 %v5063
  %5314 = vmatprep.subr.bf16.mxu0 %v5072
  %5315 = vmatpush1.bf16.msra.mxu0 %v5071
  %5316 = vmatprep.subr.bf16.mxu0 %v5080
  %5317 = vmatpush1.bf16.msra.mxu0 %v5079
  %5318 = vmatprep.subr.bf16.mxu0 %v5088
  %5319 = vmatpush1.bf16.msra.mxu0 %v5087
  %5320 = vmatprep.subr.bf16.mxu0 0
  %5321 = vmatpush1.bf16.msra.mxu0 0
  %5322 = vmatprep.subr.bf16.mxu0 0
  %5323 = vmatpush1.bf16.msra.mxu0 0
  %5324 = vmatprep.subr.bf16.mxu0 0
  %5325 = vmatpush1.bf16.msra.mxu0 0
  %5326 = vmatprep.subr.bf16.mxu0 0
  %5327 = vmatpush1.bf16.msra.mxu0 0
  %5328 = vmatprep.subr.bf16.mxu0 0
  %5329 = vmatpush1.bf16.msra.mxu0 0
  %5330 = vmatprep.subr.bf16.mxu0 0
  %5331 = vmatpush1.bf16.msra.mxu0 0
  %5332 = vmatprep.subr.bf16.mxu0 0
  %5333 = vmatpush1.bf16.msra.mxu0 0
  %5334 = vmatprep.subr.bf16.mxu0 0
  %5335 = vmatpush1.bf16.msra.mxu0 0
  %5336 = vmatprep.subr.bf16.mxu0 0
  %5337 = vmatpush1.bf16.msra.mxu0 0
  %5338 = vmatprep.subr.bf16.mxu0 0
  %5339 = vmatpush1.bf16.msra.mxu0 0
  %5340 = vmatprep.subr.bf16.mxu0 0
  %5341 = vmatpush1.bf16.msra.mxu0 0
  %5342 = vmatprep.subr.bf16.mxu0 0
  %5343 = vmatpush1.bf16.msra.mxu0 0
  %5344 = vmatprep.mubr.bf16.mxu0 0
  %5345 = vmatmul.mubr.bf16.gmra.mrb[0].mxu0 %v5256
  %v5346 = vpop.f32.mrb[0].mxu0
  %v5347 = vadd.f32 %v5296, %v5346
  %v5348 = vpop.f32.mrb[0].mxu0
  %v5349 = vadd.f32 %v5298, %v5348
  %v5350 = vpop.f32.mrb[0].mxu0
  %v5351 = vadd.f32 %v5300, %v5350
  %v5352 = vpop.f32.mrb[0].mxu0
  %v5353 = vadd.f32 %v5302, %v5352
  %5354 = vmatprep.mubr.bf16.mxu0 0
  %5355 = vmatmul.mubr.bf16.gmra.mrb[0].mxu0 %v5259
  %v5356 = vpop.f32.mrb[0].mxu0
  %v5357 = vadd.f32 %v5306, %v5356
  %v5358 = vpop.f32.mrb[0].mxu0
  %v5359 = vadd.f32 %v5308, %v5358
  %v5360 = vpop.f32.mrb[0].mxu0
  %v5361 = vpop.f32.mrb[0].mxu0
  %5362 = vdwg.mxu0
  %5363 = vmatprep.subr.bf16.mxu0 %v4938
  %5364 = vmatpush1.bf16.msra.mxu0 %v4937
  %5365 = vmatprep.subr.bf16.mxu0 %v4946
  %5366 = vmatpush1.bf16.msra.mxu0 %v4945
  %5367 = vmatprep.subr.bf16.mxu0 %v4954
  %5368 = vmatpush1.bf16.msra.mxu0 %v4953
  %5369 = vmatprep.subr.bf16.mxu0 %v4962
  %5370 = vmatpush1.bf16.msra.mxu0 %v4961
  %5371 = vmatprep.subr.bf16.mxu0 %v4970
  %5372 = vmatpush1.bf16.msra.mxu0 %v4969
  %5373 = vmatprep.subr.bf16.mxu0 %v4978
  %5374 = vmatpush1.bf16.msra.mxu0 %v4977
  %5375 = vmatprep.subr.bf16.mxu0 %v4986
  %5376 = vmatpush1.bf16.msra.mxu0 %v4985
  %5377 = vmatprep.subr.bf16.mxu0 %v4994
  %5378 = vmatpush1.bf16.msra.mxu0 %v4993
  %5379 = vmatprep.subr.bf16.mxu0 %v5002
  %5380 = vmatpush1.bf16.msra.mxu0 %v5001
  %5381 = vmatprep.subr.bf16.mxu0 %v5010
  %5382 = vmatpush1.bf16.msra.mxu0 %v5009
  %5383 = vmatprep.subr.bf16.mxu0 %v5018
  %5384 = vmatpush1.bf16.msra.mxu0 %v5017
  %5385 = vmatprep.subr.bf16.mxu0 %v5026
  %5386 = vmatpush1.bf16.msra.mxu0 %v5025
  %5387 = vmatprep.subr.bf16.mxu0 %v5034
  %5388 = vmatpush1.bf16.msra.mxu0 %v5033
  %5389 = vmatprep.subr.bf16.mxu0 %v5042
  %5390 = vmatpush1.bf16.msra.mxu0 %v5041
  %5391 = vmatprep.subr.bf16.mxu0 %v5050
  %5392 = vmatpush1.bf16.msra.mxu0 %v5049
  %5393 = vmatprep.subr.bf16.mxu0 %v5058
  %5394 = vmatpush1.bf16.msra.mxu0 %v5057
  %5395 = vmatprep.mubr.bf16.mxu0 %v4446
  %5396 = vmatmul.mubr.bf16.gmra.mrb[0].mxu0 %v4445
  %v5397 = vpop.f32.mrb[0].mxu0
  %v5398 = vadd.f32 0.0, %v5397
  %v5399 = vpop.f32.mrb[0].mxu0
  %v5400 = vadd.f32 0.0, %v5399
  %v5401 = vpop.f32.mrb[0].mxu0
  %v5402 = vadd.f32 0.0, %v5401
  %v5403 = vpop.f32.mrb[0].mxu0
  %v5404 = vadd.f32 0.0, %v5403
  %5405 = vmatprep.mubr.bf16.mxu0 %v4449
  %5406 = vmatmul.mubr.bf16.gmra.mrb[0].mxu0 %v4448
  %v5407 = vpop.f32.mrb[0].mxu0
  %v5408 = vadd.f32 0.0, %v5407
  %v5409 = vpop.f32.mrb[0].mxu0
  %v5410 = vadd.f32 0.0, %v5409
  %v5411 = vpop.f32.mrb[0].mxu0
  %v5412 = vpop.f32.mrb[0].mxu0
  %5413 = vdwg.mxu0
  %5414 = vmatprep.subr.bf16.mxu0 %v5066
  %5415 = vmatpush1.bf16.msra.mxu0 %v5065
  %5416 = vmatprep.subr.bf16.mxu0 %v5074
  %5417 = vmatpush1.bf16.msra.mxu0 %v5073
  %5418 = vmatprep.subr.bf16.mxu0 %v5082
  %5419 = vmatpush1.bf16.msra.mxu0 %v5081
  %5420 = vmatprep.subr.bf16.mxu0 %v5090
  %5421 = vmatpush1.bf16.msra.mxu0 %v5089
  %5422 = vmatprep.subr.bf16.mxu0 0
  %5423 = vmatpush1.bf16.msra.mxu0 0
  %5424 = vmatprep.subr.bf16.mxu0 0
  %5425 = vmatpush1.bf16.msra.mxu0 0
  %5426 = vmatprep.subr.bf16.mxu0 0
  %5427 = vmatpush1.bf16.msra.mxu0 0
  %5428 = vmatprep.subr.bf16.mxu0 0
  %5429 = vmatpush1.bf16.msra.mxu0 0
  %5430 = vmatprep.subr.bf16.mxu0 0
  %5431 = vmatpush1.bf16.msra.mxu0 0
  %5432 = vmatprep.subr.bf16.mxu0 0
  %5433 = vmatpush1.bf16.msra.mxu0 0
  %5434 = vmatprep.subr.bf16.mxu0 0
  %5435 = vmatpush1.bf16.msra.mxu0 0
  %5436 = vmatprep.subr.bf16.mxu0 0
  %5437 = vmatpush1.bf16.msra.mxu0 0
  %5438 = vmatprep.subr.bf16.mxu0 0
  %5439 = vmatpush1.bf16.msra.mxu0 0
  %5440 = vmatprep.subr.bf16.mxu0 0
  %5441 = vmatpush1.bf16.msra.mxu0 0
  %5442 = vmatprep.subr.bf16.mxu0 0
  %5443 = vmatpush1.bf16.msra.mxu0 0
  %5444 = vmatprep.subr.bf16.mxu0 0
  %5445 = vmatpush1.bf16.msra.mxu0 0
  %5446 = vmatprep.mubr.bf16.mxu0 0
  %5447 = vmatmul.mubr.bf16.gmra.mrb[0].mxu0 %v5256
  %v5448 = vpop.f32.mrb[0].mxu0
  %v5449 = vadd.f32 %v5398, %v5448
  %v5450 = vpop.f32.mrb[0].mxu0
  %v5451 = vadd.f32 %v5400, %v5450
  %v5452 = vpop.f32.mrb[0].mxu0
  %v5453 = vadd.f32 %v5402, %v5452
  %v5454 = vpop.f32.mrb[0].mxu0
  %v5455 = vadd.f32 %v5404, %v5454
  %5456 = vmatprep.mubr.bf16.mxu0 0
  %5457 = vmatmul.mubr.bf16.gmra.mrb[0].mxu0 %v5259
  %v5458 = vpop.f32.mrb[0].mxu0
  %v5459 = vadd.f32 %v5408, %v5458
  %v5460 = vpop.f32.mrb[0].mxu0
  %v5461 = vadd.f32 %v5410, %v5460
  %v5462 = vpop.f32.mrb[0].mxu0
  %v5463 = vpop.f32.mrb[0].mxu0
  %5464 = vdwg.mxu0
  %5465 = vmatprep.subr.bf16.mxu0 %v4940
  %5466 = vmatpush1.bf16.msra.mxu0 %v4939
  %5467 = vmatprep.subr.bf16.mxu0 %v4948
  %5468 = vmatpush1.bf16.msra.mxu0 %v4947
  %5469 = vmatprep.subr.bf16.mxu0 %v4956
  %5470 = vmatpush1.bf16.msra.mxu0 %v4955
  %5471 = vmatprep.subr.bf16.mxu0 %v4964
  %5472 = vmatpush1.bf16.msra.mxu0 %v4963
  %5473 = vmatprep.subr.bf16.mxu0 %v4972
  %5474 = vmatpush1.bf16.msra.mxu0 %v4971
  %5475 = vmatprep.subr.bf16.mxu0 %v4980
  %5476 = vmatpush1.bf16.msra.mxu0 %v4979
  %5477 = vmatprep.subr.bf16.mxu0 %v4988
  %5478 = vmatpush1.bf16.msra.mxu0 %v4987
  %5479 = vmatprep.subr.bf16.mxu0 %v4996
  %5480 = vmatpush1.bf16.msra.mxu0 %v4995
  %5481 = vmatprep.subr.bf16.mxu0 %v5004
  %5482 = vmatpush1.bf16.msra.mxu0 %v5003
  %5483 = vmatprep.subr.bf16.mxu0 %v5012
  %5484 = vmatpush1.bf16.msra.mxu0 %v5011
  %5485 = vmatprep.subr.bf16.mxu0 %v5020
  %5486 = vmatpush1.bf16.msra.mxu0 %v5019
  %5487 = vmatprep.subr.bf16.mxu0 %v5028
  %5488 = vmatpush1.bf16.msra.mxu0 %v5027
  %5489 = vmatprep.subr.bf16.mxu0 %v5036
  %5490 = vmatpush1.bf16.msra.mxu0 %v5035
  %5491 = vmatprep.subr.bf16.mxu0 %v5044
  %5492 = vmatpush1.bf16.msra.mxu0 %v5043
  %5493 = vmatprep.subr.bf16.mxu0 %v5052
  %5494 = vmatpush1.bf16.msra.mxu0 %v5051
  %5495 = vmatprep.subr.bf16.mxu0 %v5060
  %5496 = vmatpush1.bf16.msra.mxu0 %v5059
  %5497 = vmatprep.mubr.bf16.mxu0 %v4446
  %5498 = vmatmul.mubr.bf16.gmra.mrb[0].mxu0 %v4445
  %v5499 = vpop.f32.mrb[0].mxu0
  %v5500 = vadd.f32 0.0, %v5499
  %v5501 = vpop.f32.mrb[0].mxu0
  %v5502 = vadd.f32 0.0, %v5501
  %v5503 = vpop.f32.mrb[0].mxu0
  %v5504 = vadd.f32 0.0, %v5503
  %v5505 = vpop.f32.mrb[0].mxu0
  %v5506 = vadd.f32 0.0, %v5505
  %5507 = vmatprep.mubr.bf16.mxu0 %v4449
  %5508 = vmatmul.mubr.bf16.gmra.mrb[0].mxu0 %v4448
  %v5509 = vpop.f32.mrb[0].mxu0
  %v5510 = vadd.f32 0.0, %v5509
  %v5511 = vpop.f32.mrb[0].mxu0
  %v5512 = vadd.f32 0.0, %v5511
  %v5513 = vpop.f32.mrb[0].mxu0
  %v5514 = vpop.f32.mrb[0].mxu0
  %5515 = vdwg.mxu0
  %5516 = vmatprep.subr.bf16.mxu0 %v5068
  %5517 = vmatpush1.bf16.msra.mxu0 %v5067
  %5518 = vmatprep.subr.bf16.mxu0 %v5076
  %5519 = vmatpush1.bf16.msra.mxu0 %v5075
  %5520 = vmatprep.subr.bf16.mxu0 %v5084
  %5521 = vmatpush1.bf16.msra.mxu0 %v5083
  %5522 = vmatprep.subr.bf16.mxu0 %v5092
  %5523 = vmatpush1.bf16.msra.mxu0 %v5091
  %5524 = vmatprep.subr.bf16.mxu0 0
  %5525 = vmatpush1.bf16.msra.mxu0 0
  %5526 = vmatprep.subr.bf16.mxu0 0
  %5527 = vmatpush1.bf16.msra.mxu0 0
  %5528 = vmatprep.subr.bf16.mxu0 0
  %5529 = vmatpush1.bf16.msra.mxu0 0
  %5530 = vmatprep.subr.bf16.mxu0 0
  %5531 = vmatpush1.bf16.msra.mxu0 0
  %5532 = vmatprep.subr.bf16.mxu0 0
  %5533 = vmatpush1.bf16.msra.mxu0 0
  %5534 = vmatprep.subr.bf16.mxu0 0
  %5535 = vmatpush1.bf16.msra.mxu0 0
  %5536 = vmatprep.subr.bf16.mxu0 0
  %5537 = vmatpush1.bf16.msra.mxu0 0
  %5538 = vmatprep.subr.bf16.mxu0 0
  %5539 = vmatpush1.bf16.msra.mxu0 0
  %5540 = vmatprep.subr.bf16.mxu0 0
  %5541 = vmatpush1.bf16.msra.mxu0 0
  %5542 = vmatprep.subr.bf16.mxu0 0
  %5543 = vmatpush1.bf16.msra.mxu0 0
  %5544 = vmatprep.subr.bf16.mxu0 0
  %5545 = vmatpush1.bf16.msra.mxu0 0
  %5546 = vmatprep.subr.bf16.mxu0 0
  %5547 = vmatpush1.bf16.msra.mxu0 0
  %5548 = vmatprep.mubr.bf16.mxu0 0
  %5549 = vmatmul.mubr.bf16.gmra.mrb[0].mxu0 %v5256
  %v5550 = vpop.f32.mrb[0].mxu0
  %v5551 = vadd.f32 %v5500, %v5550
  %v5552 = vpop.f32.mrb[0].mxu0
  %v5553 = vadd.f32 %v5502, %v5552
  %v5554 = vpop.f32.mrb[0].mxu0
  %v5555 = vadd.f32 %v5504, %v5554
  %v5556 = vpop.f32.mrb[0].mxu0
  %v5557 = vadd.f32 %v5506, %v5556
  %5558 = vmatprep.mubr.bf16.mxu0 0
  %5559 = vmatmul.mubr.bf16.gmra.mrb[0].mxu0 %v5259
  %v5560 = vpop.f32.mrb[0].mxu0
  %v5561 = vadd.f32 %v5510, %v5560
  %v5562 = vpop.f32.mrb[0].mxu0
  %v5563 = vadd.f32 %v5512, %v5562
  %v5564 = vpop.f32.mrb[0].mxu0
  %v5565 = vpop.f32.mrb[0].mxu0
  %5566 = vdwg.mxu0
  %5567 = vmatprep.subr.bf16.mxu0 %v4942
  %5568 = vmatpush1.bf16.msra.mxu0 %v4941
  %5569 = vmatprep.subr.bf16.mxu0 %v4950
  %5570 = vmatpush1.bf16.msra.mxu0 %v4949
  %5571 = vmatprep.subr.bf16.mxu0 %v4958
  %5572 = vmatpush1.bf16.msra.mxu0 %v4957
  %5573 = vmatprep.subr.bf16.mxu0 %v4966
  %5574 = vmatpush1.bf16.msra.mxu0 %v4965
  %5575 = vmatprep.subr.bf16.mxu0 %v4974
  %5576 = vmatpush1.bf16.msra.mxu0 %v4973
  %5577 = vmatprep.subr.bf16.mxu0 %v4982
  %5578 = vmatpush1.bf16.msra.mxu0 %v4981
  %5579 = vmatprep.subr.bf16.mxu0 %v4990
  %5580 = vmatpush1.bf16.msra.mxu0 %v4989
  %5581 = vmatprep.subr.bf16.mxu0 %v4998
  %5582 = vmatpush1.bf16.msra.mxu0 %v4997
  %5583 = vmatprep.subr.bf16.mxu0 %v5006
  %5584 = vmatpush1.bf16.msra.mxu0 %v5005
  %5585 = vmatprep.subr.bf16.mxu0 %v5014
  %5586 = vmatpush1.bf16.msra.mxu0 %v5013
  %5587 = vmatprep.subr.bf16.mxu0 %v5022
  %5588 = vmatpush1.bf16.msra.mxu0 %v5021
  %5589 = vmatprep.subr.bf16.mxu0 %v5030
  %5590 = vmatpush1.bf16.msra.mxu0 %v5029
  %5591 = vmatprep.subr.bf16.mxu0 %v5038
  %5592 = vmatpush1.bf16.msra.mxu0 %v5037
  %5593 = vmatprep.subr.bf16.mxu0 %v5046
  %5594 = vmatpush1.bf16.msra.mxu0 %v5045
  %5595 = vmatprep.subr.bf16.mxu0 %v5054
  %5596 = vmatpush1.bf16.msra.mxu0 %v5053
  %5597 = vmatprep.subr.bf16.mxu0 %v5062
  %5598 = vmatpush1.bf16.msra.mxu0 %v5061
  %5599 = vmatprep.mubr.bf16.mxu0 %v4446
  %5600 = vmatmul.mubr.bf16.gmra.mrb[0].mxu0 %v4445
  %v5601 = vpop.f32.mrb[0].mxu0
  %v5602 = vadd.f32 0.0, %v5601
  %v5603 = vpop.f32.mrb[0].mxu0
  %v5604 = vadd.f32 0.0, %v5603
  %v5605 = vpop.f32.mrb[0].mxu0
  %v5606 = vadd.f32 0.0, %v5605
  %v5607 = vpop.f32.mrb[0].mxu0
  %v5608 = vadd.f32 0.0, %v5607
  %5609 = vmatprep.mubr.bf16.mxu0 %v4449
  %5610 = vmatmul.mubr.bf16.gmra.mrb[0].mxu0 %v4448
  %v5611 = vpop.f32.mrb[0].mxu0
  %v5612 = vadd.f32 0.0, %v5611
  %v5613 = vpop.f32.mrb[0].mxu0
  %v5614 = vadd.f32 0.0, %v5613
  %v5615 = vpop.f32.mrb[0].mxu0
  %v5616 = vpop.f32.mrb[0].mxu0
  %5617 = vdwg.mxu0
  %5618 = vmatprep.subr.bf16.mxu0 %v5070
  %5619 = vmatpush1.bf16.msra.mxu0 %v5069
  %5620 = vmatprep.subr.bf16.mxu0 %v5078
  %5621 = vmatpush1.bf16.msra.mxu0 %v5077
  %5622 = vmatprep.subr.bf16.mxu0 %v5086
  %5623 = vmatpush1.bf16.msra.mxu0 %v5085
  %5624 = vmatprep.subr.bf16.mxu0 %v5094
  %5625 = vmatpush1.bf16.msra.mxu0 %v5093
  %5626 = vmatprep.subr.bf16.mxu0 0
  %5627 = vmatpush1.bf16.msra.mxu0 0
  %5628 = vmatprep.subr.bf16.mxu0 0
  %5629 = vmatpush1.bf16.msra.mxu0 0
  %5630 = vmatprep.subr.bf16.mxu0 0
  %5631 = vmatpush1.bf16.msra.mxu0 0
  %5632 = vmatprep.subr.bf16.mxu0 0
  %5633 = vmatpush1.bf16.msra.mxu0 0
  %5634 = vmatprep.subr.bf16.mxu0 0
  %5635 = vmatpush1.bf16.msra.mxu0 0
  %5636 = vmatprep.subr.bf16.mxu0 0
  %5637 = vmatpush1.bf16.msra.mxu0 0
  %5638 = vmatprep.subr.bf16.mxu0 0
  %5639 = vmatpush1.bf16.msra.mxu0 0
  %5640 = vmatprep.subr.bf16.mxu0 0
  %5641 = vmatpush1.bf16.msra.mxu0 0
  %5642 = vmatprep.subr.bf16.mxu0 0
  %5643 = vmatpush1.bf16.msra.mxu0 0
  %5644 = vmatprep.subr.bf16.mxu0 0
  %5645 = vmatpush1.bf16.msra.mxu0 0
  %5646 = vmatprep.subr.bf16.mxu0 0
  %5647 = vmatpush1.bf16.msra.mxu0 0
  %5648 = vmatprep.subr.bf16.mxu0 0
  %5649 = vmatpush1.bf16.msra.mxu0 0
  %5650 = vmatprep.mubr.bf16.mxu0 0
  %5651 = vmatmul.mubr.bf16.gmra.mrb[0].mxu0 %v5256
  %v5652 = vpop.f32.mrb[0].mxu0
  %v5653 = vadd.f32 %v5602, %v5652
  %v5654 = vpop.f32.mrb[0].mxu0
  %v5655 = vadd.f32 %v5604, %v5654
  %v5656 = vpop.f32.mrb[0].mxu0
  %v5657 = vadd.f32 %v5606, %v5656
  %v5658 = vpop.f32.mrb[0].mxu0
  %v5659 = vadd.f32 %v5608, %v5658
  %5660 = vmatprep.mubr.bf16.mxu0 0
  %5661 = vmatmul.mubr.bf16.gmra.mrb[0].mxu0 %v5259
  %v5662 = vpop.f32.mrb[0].mxu0
  %v5663 = vadd.f32 %v5612, %v5662
  %v5664 = vpop.f32.mrb[0].mxu0
  %v5665 = vadd.f32 %v5614, %v5664
  %v5666 = vpop.f32.mrb[0].mxu0
  %v5667 = vpop.f32.mrb[0].mxu0
  %5668 = vdwg.mxu0
  %v5669 = vadd.f32 %v4238, %v5347
  %v5670 = vadd.f32 %v4239, %v5349
  %v5671 = vadd.f32 %v4240, %v5449
  %v5672 = vadd.f32 %v4241, %v5451
  %v5673 = vadd.f32 %v4242, %v5551
  %v5674 = vadd.f32 %v4243, %v5553
  %v5675 = vadd.f32 %v4244, %v5653
  %v5676 = vadd.f32 %v4245, %v5655
  %v5677 = vadd.f32 %v4246, %v5351
  %v5678 = vadd.f32 %v4247, %v5353
  %v5679 = vadd.f32 %v4248, %v5453
  %v5680 = vadd.f32 %v4249, %v5455
  %v5681 = vadd.f32 %v4250, %v5555
  %v5682 = vadd.f32 %v4251, %v5557
  %v5683 = vadd.f32 %v4252, %v5657
  %v5684 = vadd.f32 %v4253, %v5659
  %v5685 = vadd.f32 %v4254, %v5357
  %v5686 = vadd.f32 %v4255, %v5359
  %v5687 = vadd.f32 %v4256, %v5459
  %v5688 = vadd.f32 %v4257, %v5461
  %v5689 = vadd.f32 %v4258, %v5561
  %v5690 = vadd.f32 %v4259, %v5563
  %v5691 = vadd.f32 %v4260, %v5663
  %v5692 = vadd.f32 %v4261, %v5665
  %s5693 = scalar_lea.vmem %s0, 144
  %v5694 = vld [vmem:[%s5693] sm:$0xff]
  %v5695 = vld [vmem:[%s5693 + $0x8] sm:$0xf]
  %v5696 = vld [vmem:[%s5693 + $0xc] sm:$0xff]
  %v5697 = vld [vmem:[%s5693 + $0x14] sm:$0xf]
  %v5698 = vld [vmem:[%s5693 + $0x18] sm:$0x33]
  %v5699 = vld [vmem:[%s5693 + $0x20] sm:$0x3]
  %s5700 = scalar_lea.vmem %s1, 5120
  %v5701 = vld [vmem:[%s5700] sm:$0xff]
  %v5702 = vld [vmem:[%s5700 + $0x8] sm:$0xff]
  %v5703 = vld [vmem:[%s5700 + $0x10] sm:$0xff]
  %v5704 = vld [vmem:[%s5700 + $0x18] sm:$0xff]
  %v5705 = vld [vmem:[%s5700 + $0x20] sm:$0xff]
  %v5706 = vld [vmem:[%s5700 + $0x28] sm:$0xff]
  %v5707 = vld [vmem:[%s5700 + $0x30] sm:$0xff]
  %v5708 = vld [vmem:[%s5700 + $0x38] sm:$0xff]
  %v5709 = vld [vmem:[%s5700 + $0x40] sm:$0xff]
  %v5710 = vld [vmem:[%s5700 + $0x48] sm:$0xff]
  %v5711 = vld [vmem:[%s5700 + $0x50] sm:$0xff]
  %v5712 = vld [vmem:[%s5700 + $0x58] sm:$0xff]
  %v5713 = vld [vmem:[%s5700 + $0x60] sm:$0xff]
  %v5714 = vld [vmem:[%s5700 + $0x68] sm:$0xff]
  %v5715 = vld [vmem:[%s5700 + $0x70] sm:$0xff]
  %v5716 = vld [vmem:[%s5700 + $0x78] sm:$0xff]
  %v5717 = vld [vmem:[%s5700 + $0x80] sm:$0xff]
  %v5718 = vld [vmem:[%s5700 + $0x88] sm:$0xff]
  %v5719 = vld [vmem:[%s5700 + $0x90] sm:$0xff]
  %v5720 = vld [vmem:[%s5700 + $0x98] sm:$0xff]
  %v5721 = vld [vmem:[%s5700 + $0xa0] sm:$0xff]
  %v5722 = vld [vmem:[%s5700 + $0xa8] sm:$0xff]
  %v5723 = vld [vmem:[%s5700 + $0xb0] sm:$0xff]
  %v5724 = vld [vmem:[%s5700 + $0xb8] sm:$0xff]
  %v5725 = vld [vmem:[%s5700 + $0xc0] sm:$0xff]
  %v5726 = vld [vmem:[%s5700 + $0xc8] sm:$0xff]
  %v5727 = vld [vmem:[%s5700 + $0xd0] sm:$0xff]
  %v5728 = vld [vmem:[%s5700 + $0xd8] sm:$0xff]
  %v5729 = vld [vmem:[%s5700 + $0xe0] sm:$0xff]
  %v5730 = vld [vmem:[%s5700 + $0xe8] sm:$0xff]
  %v5731 = vld [vmem:[%s5700 + $0xf0] sm:$0xff]
  %v5732 = vld [vmem:[%s5700 + $0xf8] sm:$0xff]
  %v5733 = vld [vmem:[%s5700 + $0x100] sm:$0xff]
  %v5734 = vld [vmem:[%s5700 + $0x108] sm:$0xff]
  %v5735 = vld [vmem:[%s5700 + $0x110] sm:$0xff]
  %v5736 = vld [vmem:[%s5700 + $0x118] sm:$0xff]
  %v5737 = vld [vmem:[%s5700 + $0x120] sm:$0xff]
  %v5738 = vld [vmem:[%s5700 + $0x128] sm:$0xff]
  %v5739 = vld [vmem:[%s5700 + $0x130] sm:$0xff]
  %v5740 = vld [vmem:[%s5700 + $0x138] sm:$0xff]
  %v5741 = vld [vmem:[%s5700 + $0x140] sm:$0xff]
  %v5742 = vld [vmem:[%s5700 + $0x148] sm:$0xff]
  %v5743 = vld [vmem:[%s5700 + $0x150] sm:$0xff]
  %v5744 = vld [vmem:[%s5700 + $0x158] sm:$0xff]
  %v5745 = vld [vmem:[%s5700 + $0x160] sm:$0xff]
  %v5746 = vld [vmem:[%s5700 + $0x168] sm:$0xff]
  %v5747 = vld [vmem:[%s5700 + $0x170] sm:$0xff]
  %v5748 = vld [vmem:[%s5700 + $0x178] sm:$0xff]
  %v5749 = vld [vmem:[%s5700 + $0x180] sm:$0xff]
  %v5750 = vld [vmem:[%s5700 + $0x188] sm:$0xff]
  %v5751 = vld [vmem:[%s5700 + $0x190] sm:$0xff]
  %v5752 = vld [vmem:[%s5700 + $0x198] sm:$0xff]
  %v5753 = vld [vmem:[%s5700 + $0x1a0] sm:$0xff]
  %v5754 = vld [vmem:[%s5700 + $0x1a8] sm:$0xff]
  %v5755 = vld [vmem:[%s5700 + $0x1b0] sm:$0xff]
  %v5756 = vld [vmem:[%s5700 + $0x1b8] sm:$0xff]
  %v5757 = vld [vmem:[%s5700 + $0x1c0] sm:$0xff]
  %v5758 = vld [vmem:[%s5700 + $0x1c8] sm:$0xff]
  %v5759 = vld [vmem:[%s5700 + $0x1d0] sm:$0xff]
  %v5760 = vld [vmem:[%s5700 + $0x1d8] sm:$0xff]
  %v5761 = vld [vmem:[%s5700 + $0x1e0] sm:$0xff]
  %v5762 = vld [vmem:[%s5700 + $0x1e8] sm:$0xff]
  %v5763 = vld [vmem:[%s5700 + $0x1f0] sm:$0xff]
  %v5764 = vld [vmem:[%s5700 + $0x1f8] sm:$0xff]
  %v5765 = vld [vmem:[%s5700 + $0x200] sm:$0xff]
  %v5766 = vld [vmem:[%s5700 + $0x208] sm:$0xff]
  %v5767 = vld [vmem:[%s5700 + $0x210] sm:$0xff]
  %v5768 = vld [vmem:[%s5700 + $0x218] sm:$0xff]
  %v5769 = vld [vmem:[%s5700 + $0x220] sm:$0xff]
  %v5770 = vld [vmem:[%s5700 + $0x228] sm:$0xff]
  %v5771 = vld [vmem:[%s5700 + $0x230] sm:$0xff]
  %v5772 = vld [vmem:[%s5700 + $0x238] sm:$0xff]
  %v5773 = vld [vmem:[%s5700 + $0x240] sm:$0xff]
  %v5774 = vld [vmem:[%s5700 + $0x248] sm:$0xff]
  %v5775 = vld [vmem:[%s5700 + $0x250] sm:$0xff]
  %v5776 = vld [vmem:[%s5700 + $0x258] sm:$0xff]
  %v5777 = vld [vmem:[%s5700 + $0x260] sm:$0xff]
  %v5778 = vld [vmem:[%s5700 + $0x268] sm:$0xff]
  %v5779 = vld [vmem:[%s5700 + $0x270] sm:$0xff]
  %v5780 = vld [vmem:[%s5700 + $0x278] sm:$0xff]
  %v5781 = vld [vmem:[%s5700 + $0x280] sm:$0xff]
  %v5782 = vld [vmem:[%s5700 + $0x288] sm:$0xff]
  %v5783 = vld [vmem:[%s5700 + $0x290] sm:$0xff]
  %v5784 = vld [vmem:[%s5700 + $0x298] sm:$0xff]
  %v5785 = vld [vmem:[%s5700 + $0x2a0] sm:$0xff]
  %v5786 = vld [vmem:[%s5700 + $0x2a8] sm:$0xff]
  %v5787 = vld [vmem:[%s5700 + $0x2b0] sm:$0xff]
  %v5788 = vld [vmem:[%s5700 + $0x2b8] sm:$0xff]
  %v5789 = vld [vmem:[%s5700 + $0x2c0] sm:$0xff]
  %v5790 = vld [vmem:[%s5700 + $0x2c8] sm:$0xff]
  %v5791 = vld [vmem:[%s5700 + $0x2d0] sm:$0xff]
  %v5792 = vld [vmem:[%s5700 + $0x2d8] sm:$0xff]
  %v5793 = vld [vmem:[%s5700 + $0x2e0] sm:$0xff]
  %v5794 = vld [vmem:[%s5700 + $0x2e8] sm:$0xff]
  %v5795 = vld [vmem:[%s5700 + $0x2f0] sm:$0xff]
  %v5796 = vld [vmem:[%s5700 + $0x2f8] sm:$0xff]
  %v5797 = vld [vmem:[%s5700 + $0x300] sm:$0xff]
  %v5798 = vld [vmem:[%s5700 + $0x308] sm:$0xff]
  %v5799 = vld [vmem:[%s5700 + $0x310] sm:$0xff]
  %v5800 = vld [vmem:[%s5700 + $0x318] sm:$0xff]
  %v5801 = vld [vmem:[%s5700 + $0x320] sm:$0xff]
  %v5802 = vld [vmem:[%s5700 + $0x328] sm:$0xff]
  %v5803 = vld [vmem:[%s5700 + $0x330] sm:$0xff]
  %v5804 = vld [vmem:[%s5700 + $0x338] sm:$0xff]
  %v5805 = vld [vmem:[%s5700 + $0x340] sm:$0xff]
  %v5806 = vld [vmem:[%s5700 + $0x348] sm:$0xff]
  %v5807 = vld [vmem:[%s5700 + $0x350] sm:$0xff]
  %v5808 = vld [vmem:[%s5700 + $0x358] sm:$0xff]
  %v5809 = vld [vmem:[%s5700 + $0x360] sm:$0xff]
  %v5810 = vld [vmem:[%s5700 + $0x368] sm:$0xff]
  %v5811 = vld [vmem:[%s5700 + $0x370] sm:$0xff]
  %v5812 = vld [vmem:[%s5700 + $0x378] sm:$0xff]
  %v5813 = vld [vmem:[%s5700 + $0x380] sm:$0xff]
  %v5814 = vld [vmem:[%s5700 + $0x388] sm:$0xff]
  %v5815 = vld [vmem:[%s5700 + $0x390] sm:$0xff]
  %v5816 = vld [vmem:[%s5700 + $0x398] sm:$0xff]
  %v5817 = vld [vmem:[%s5700 + $0x3a0] sm:$0xff]
  %v5818 = vld [vmem:[%s5700 + $0x3a8] sm:$0xff]
  %v5819 = vld [vmem:[%s5700 + $0x3b0] sm:$0xff]
  %v5820 = vld [vmem:[%s5700 + $0x3b8] sm:$0xff]
  %v5821 = vld [vmem:[%s5700 + $0x3c0] sm:$0xff]
  %v5822 = vld [vmem:[%s5700 + $0x3c8] sm:$0xff]
  %v5823 = vld [vmem:[%s5700 + $0x3d0] sm:$0xff]
  %v5824 = vld [vmem:[%s5700 + $0x3d8] sm:$0xff]
  %v5825 = vld [vmem:[%s5700 + $0x3e0] sm:$0xff]
  %v5826 = vld [vmem:[%s5700 + $0x3e8] sm:$0xff]
  %v5827 = vld [vmem:[%s5700 + $0x3f0] sm:$0xff]
  %v5828 = vld [vmem:[%s5700 + $0x3f8] sm:$0xff]
  %v5829 = vld [vmem:[%s5700 + $0x400] sm:$0xff]
  %v5830 = vld [vmem:[%s5700 + $0x408] sm:$0xff]
  %v5831 = vld [vmem:[%s5700 + $0x410] sm:$0xff]
  %v5832 = vld [vmem:[%s5700 + $0x418] sm:$0xff]
  %v5833 = vld [vmem:[%s5700 + $0x420] sm:$0xff]
  %v5834 = vld [vmem:[%s5700 + $0x428] sm:$0xff]
  %v5835 = vld [vmem:[%s5700 + $0x430] sm:$0xff]
  %v5836 = vld [vmem:[%s5700 + $0x438] sm:$0xff]
  %v5837 = vld [vmem:[%s5700 + $0x440] sm:$0xff]
  %v5838 = vld [vmem:[%s5700 + $0x448] sm:$0xff]
  %v5839 = vld [vmem:[%s5700 + $0x450] sm:$0xff]
  %v5840 = vld [vmem:[%s5700 + $0x458] sm:$0xff]
  %v5841 = vld [vmem:[%s5700 + $0x460] sm:$0xff]
  %v5842 = vld [vmem:[%s5700 + $0x468] sm:$0xff]
  %v5843 = vld [vmem:[%s5700 + $0x470] sm:$0xff]
  %v5844 = vld [vmem:[%s5700 + $0x478] sm:$0xff]
  %v5845 = vld [vmem:[%s5700 + $0x480] sm:$0xff]
  %v5846 = vld [vmem:[%s5700 + $0x488] sm:$0xff]
  %v5847 = vld [vmem:[%s5700 + $0x490] sm:$0xff]
  %v5848 = vld [vmem:[%s5700 + $0x498] sm:$0xff]
  %v5849 = vld [vmem:[%s5700 + $0x4a0] sm:$0xff]
  %v5850 = vld [vmem:[%s5700 + $0x4a8] sm:$0xff]
  %v5851 = vld [vmem:[%s5700 + $0x4b0] sm:$0xff]
  %v5852 = vld [vmem:[%s5700 + $0x4b8] sm:$0xff]
  %v5853 = vld [vmem:[%s5700 + $0x4c0] sm:$0xff]
  %v5854 = vld [vmem:[%s5700 + $0x4c8] sm:$0xff]
  %v5855 = vld [vmem:[%s5700 + $0x4d0] sm:$0xff]
  %v5856 = vld [vmem:[%s5700 + $0x4d8] sm:$0xff]
  %v5857 = vld [vmem:[%s5700 + $0x4e0] sm:$0xff]
  %v5858 = vld [vmem:[%s5700 + $0x4e8] sm:$0xff]
  %v5859 = vld [vmem:[%s5700 + $0x4f0] sm:$0xff]
  %v5860 = vld [vmem:[%s5700 + $0x4f8] sm:$0xff]
  %v5867 = vunpack.c.l.b16 %v5694
  %v5868 = vunpack.c.h.b16 %v5694
  %v5869 = vunpack.c.l.b16 %v5695
  %v5870 = vunpack.c.l.b16 %v5696
  %v5871 = vunpack.c.h.b16 %v5696
  %v5872 = vunpack.c.l.b16 %v5697
  %v5873 = vunpack.c.l.b16 %v5698
  %v5874 = vunpack.c.h.b16 %v5698
  %v5875 = vunpack.c.l.b16 %v5699
  %v5876 = vpack.c.b16 %v5870, %v5867
  %v5877 = vpack.c.b16 %v5871, %v5868
  %v5878 = vpack.c.b16 %v5872, %v5869
  %v5879 = vpack.c.b16 %v5873, %v5873
  %v5880 = vpack.c.b16 %v5874, %v5874
  %v5881 = vpack.c.b16 %v5875, %v5875
  %v6046 = vunpack.c.l.b16 %v5701
  %v6047 = vunpack.c.h.b16 %v5701
  %v6048 = vunpack.c.l.b16 %v5702
  %v6049 = vunpack.c.h.b16 %v5702
  %v6050 = vunpack.c.l.b16 %v5703
  %v6051 = vunpack.c.h.b16 %v5703
  %v6052 = vunpack.c.l.b16 %v5704
  %v6053 = vunpack.c.h.b16 %v5704
  %v6054 = vunpack.c.l.b16 %v5705
  %v6055 = vunpack.c.h.b16 %v5705
  %v6056 = vunpack.c.l.b16 %v5706
  %v6057 = vunpack.c.h.b16 %v5706
  %v6058 = vunpack.c.l.b16 %v5707
  %v6059 = vunpack.c.h.b16 %v5707
  %v6060 = vunpack.c.l.b16 %v5708
  %v6061 = vunpack.c.h.b16 %v5708
  %v6062 = vunpack.c.l.b16 %v5709
  %v6063 = vunpack.c.h.b16 %v5709
  %v6064 = vunpack.c.l.b16 %v5710
  %v6065 = vunpack.c.h.b16 %v5710
  %v6066 = vunpack.c.l.b16 %v5711
  %v6067 = vunpack.c.h.b16 %v5711
  %v6068 = vunpack.c.l.b16 %v5712
  %v6069 = vunpack.c.h.b16 %v5712
  %v6070 = vunpack.c.l.b16 %v5713
  %v6071 = vunpack.c.h.b16 %v5713
  %v6072 = vunpack.c.l.b16 %v5714
  %v6073 = vunpack.c.h.b16 %v5714
  %v6074 = vunpack.c.l.b16 %v5715
  %v6075 = vunpack.c.h.b16 %v5715
  %v6076 = vunpack.c.l.b16 %v5716
  %v6077 = vunpack.c.h.b16 %v5716
  %v6078 = vunpack.c.l.b16 %v5717
  %v6079 = vunpack.c.h.b16 %v5717
  %v6080 = vunpack.c.l.b16 %v5718
  %v6081 = vunpack.c.h.b16 %v5718
  %v6082 = vunpack.c.l.b16 %v5719
  %v6083 = vunpack.c.h.b16 %v5719
  %v6084 = vunpack.c.l.b16 %v5720
  %v6085 = vunpack.c.h.b16 %v5720
  %v6086 = vunpack.c.l.b16 %v5721
  %v6087 = vunpack.c.h.b16 %v5721
  %v6088 = vunpack.c.l.b16 %v5722
  %v6089 = vunpack.c.h.b16 %v5722
  %v6090 = vunpack.c.l.b16 %v5723
  %v6091 = vunpack.c.h.b16 %v5723
  %v6092 = vunpack.c.l.b16 %v5724
  %v6093 = vunpack.c.h.b16 %v5724
  %v6094 = vunpack.c.l.b16 %v5725
  %v6095 = vunpack.c.h.b16 %v5725
  %v6096 = vunpack.c.l.b16 %v5726
  %v6097 = vunpack.c.h.b16 %v5726
  %v6098 = vunpack.c.l.b16 %v5727
  %v6099 = vunpack.c.h.b16 %v5727
  %v6100 = vunpack.c.l.b16 %v5728
  %v6101 = vunpack.c.h.b16 %v5728
  %v6102 = vunpack.c.l.b16 %v5729
  %v6103 = vunpack.c.h.b16 %v5729
  %v6104 = vunpack.c.l.b16 %v5730
  %v6105 = vunpack.c.h.b16 %v5730
  %v6106 = vunpack.c.l.b16 %v5731
  %v6107 = vunpack.c.h.b16 %v5731
  %v6108 = vunpack.c.l.b16 %v5732
  %v6109 = vunpack.c.h.b16 %v5732
  %v6110 = vunpack.c.l.b16 %v5733
  %v6111 = vunpack.c.h.b16 %v5733
  %v6112 = vunpack.c.l.b16 %v5734
  %v6113 = vunpack.c.h.b16 %v5734
  %v6114 = vunpack.c.l.b16 %v5735
  %v6115 = vunpack.c.h.b16 %v5735
  %v6116 = vunpack.c.l.b16 %v5736
  %v6117 = vunpack.c.h.b16 %v5736
  %v6118 = vunpack.c.l.b16 %v5737
  %v6119 = vunpack.c.h.b16 %v5737
  %v6120 = vunpack.c.l.b16 %v5738
  %v6121 = vunpack.c.h.b16 %v5738
  %v6122 = vunpack.c.l.b16 %v5739
  %v6123 = vunpack.c.h.b16 %v5739
  %v6124 = vunpack.c.l.b16 %v5740
  %v6125 = vunpack.c.h.b16 %v5740
  %v6126 = vunpack.c.l.b16 %v5741
  %v6127 = vunpack.c.h.b16 %v5741
  %v6128 = vunpack.c.l.b16 %v5742
  %v6129 = vunpack.c.h.b16 %v5742
  %v6130 = vunpack.c.l.b16 %v5743
  %v6131 = vunpack.c.h.b16 %v5743
  %v6132 = vunpack.c.l.b16 %v5744
  %v6133 = vunpack.c.h.b16 %v5744
  %v6134 = vunpack.c.l.b16 %v5745
  %v6135 = vunpack.c.h.b16 %v5745
  %v6136 = vunpack.c.l.b16 %v5746
  %v6137 = vunpack.c.h.b16 %v5746
  %v6138 = vunpack.c.l.b16 %v5747
  %v6139 = vunpack.c.h.b16 %v5747
  %v6140 = vunpack.c.l.b16 %v5748
  %v6141 = vunpack.c.h.b16 %v5748
  %v6142 = vunpack.c.l.b16 %v5749
  %v6143 = vunpack.c.h.b16 %v5749
  %v6144 = vunpack.c.l.b16 %v5750
  %v6145 = vunpack.c.h.b16 %v5750
  %v6146 = vunpack.c.l.b16 %v5751
  %v6147 = vunpack.c.h.b16 %v5751
  %v6148 = vunpack.c.l.b16 %v5752
  %v6149 = vunpack.c.h.b16 %v5752
  %v6150 = vunpack.c.l.b16 %v5753
  %v6151 = vunpack.c.h.b16 %v5753
  %v6152 = vunpack.c.l.b16 %v5754
  %v6153 = vunpack.c.h.b16 %v5754
  %v6154 = vunpack.c.l.b16 %v5755
  %v6155 = vunpack.c.h.b16 %v5755
  %v6156 = vunpack.c.l.b16 %v5756
  %v6157 = vunpack.c.h.b16 %v5756
  %v6158 = vunpack.c.l.b16 %v5757
  %v6159 = vunpack.c.h.b16 %v5757
  %v6160 = vunpack.c.l.b16 %v5758
  %v6161 = vunpack.c.h.b16 %v5758
  %v6162 = vunpack.c.l.b16 %v5759
  %v6163 = vunpack.c.h.b16 %v5759
  %v6164 = vunpack.c.l.b16 %v5760
  %v6165 = vunpack.c.h.b16 %v5760
  %v6166 = vunpack.c.l.b16 %v5761
  %v6167 = vunpack.c.h.b16 %v5761
  %v6168 = vunpack.c.l.b16 %v5762
  %v6169 = vunpack.c.h.b16 %v5762
  %v6170 = vunpack.c.l.b16 %v5763
  %v6171 = vunpack.c.h.b16 %v5763
  %v6172 = vunpack.c.l.b16 %v5764
  %v6173 = vunpack.c.h.b16 %v5764
  %v6174 = vunpack.c.l.b16 %v5765
  %v6175 = vunpack.c.h.b16 %v5765
  %v6176 = vunpack.c.l.b16 %v5766
  %v6177 = vunpack.c.h.b16 %v5766
  %v6178 = vunpack.c.l.b16 %v5767
  %v6179 = vunpack.c.h.b16 %v5767
  %v6180 = vunpack.c.l.b16 %v5768
  %v6181 = vunpack.c.h.b16 %v5768
  %v6182 = vunpack.c.l.b16 %v5769
  %v6183 = vunpack.c.h.b16 %v5769
  %v6184 = vunpack.c.l.b16 %v5770
  %v6185 = vunpack.c.h.b16 %v5770
  %v6186 = vunpack.c.l.b16 %v5771
  %v6187 = vunpack.c.h.b16 %v5771
  %v6188 = vunpack.c.l.b16 %v5772
  %v6189 = vunpack.c.h.b16 %v5772
  %v6190 = vunpack.c.l.b16 %v5773
  %v6191 = vunpack.c.h.b16 %v5773
  %v6192 = vunpack.c.l.b16 %v5774
  %v6193 = vunpack.c.h.b16 %v5774
  %v6194 = vunpack.c.l.b16 %v5775
  %v6195 = vunpack.c.h.b16 %v5775
  %v6196 = vunpack.c.l.b16 %v5776
  %v6197 = vunpack.c.h.b16 %v5776
  %v6198 = vunpack.c.l.b16 %v5777
  %v6199 = vunpack.c.h.b16 %v5777
  %v6200 = vunpack.c.l.b16 %v5778
  %v6201 = vunpack.c.h.b16 %v5778
  %v6202 = vunpack.c.l.b16 %v5779
  %v6203 = vunpack.c.h.b16 %v5779
  %v6204 = vunpack.c.l.b16 %v5780
  %v6205 = vunpack.c.h.b16 %v5780
  %v6206 = vunpack.c.l.b16 %v5781
  %v6207 = vunpack.c.h.b16 %v5781
  %v6208 = vunpack.c.l.b16 %v5782
  %v6209 = vunpack.c.h.b16 %v5782
  %v6210 = vunpack.c.l.b16 %v5783
  %v6211 = vunpack.c.h.b16 %v5783
  %v6212 = vunpack.c.l.b16 %v5784
  %v6213 = vunpack.c.h.b16 %v5784
  %v6214 = vunpack.c.l.b16 %v5785
  %v6215 = vunpack.c.h.b16 %v5785
  %v6216 = vunpack.c.l.b16 %v5786
  %v6217 = vunpack.c.h.b16 %v5786
  %v6218 = vunpack.c.l.b16 %v5787
  %v6219 = vunpack.c.h.b16 %v5787
  %v6220 = vunpack.c.l.b16 %v5788
  %v6221 = vunpack.c.h.b16 %v5788
  %v6222 = vunpack.c.l.b16 %v5789
  %v6223 = vunpack.c.h.b16 %v5789
  %v6224 = vunpack.c.l.b16 %v5790
  %v6225 = vunpack.c.h.b16 %v5790
  %v6226 = vunpack.c.l.b16 %v5791
  %v6227 = vunpack.c.h.b16 %v5791
  %v6228 = vunpack.c.l.b16 %v5792
  %v6229 = vunpack.c.h.b16 %v5792
  %v6230 = vunpack.c.l.b16 %v5793
  %v6231 = vunpack.c.h.b16 %v5793
  %v6232 = vunpack.c.l.b16 %v5794
  %v6233 = vunpack.c.h.b16 %v5794
  %v6234 = vunpack.c.l.b16 %v5795
  %v6235 = vunpack.c.h.b16 %v5795
  %v6236 = vunpack.c.l.b16 %v5796
  %v6237 = vunpack.c.h.b16 %v5796
  %v6238 = vunpack.c.l.b16 %v5797
  %v6239 = vunpack.c.h.b16 %v5797
  %v6240 = vunpack.c.l.b16 %v5798
  %v6241 = vunpack.c.h.b16 %v5798
  %v6242 = vunpack.c.l.b16 %v5799
  %v6243 = vunpack.c.h.b16 %v5799
  %v6244 = vunpack.c.l.b16 %v5800
  %v6245 = vunpack.c.h.b16 %v5800
  %v6246 = vunpack.c.l.b16 %v5801
  %v6247 = vunpack.c.h.b16 %v5801
  %v6248 = vunpack.c.l.b16 %v5802
  %v6249 = vunpack.c.h.b16 %v5802
  %v6250 = vunpack.c.l.b16 %v5803
  %v6251 = vunpack.c.h.b16 %v5803
  %v6252 = vunpack.c.l.b16 %v5804
  %v6253 = vunpack.c.h.b16 %v5804
  %v6254 = vunpack.c.l.b16 %v5805
  %v6255 = vunpack.c.h.b16 %v5805
  %v6256 = vunpack.c.l.b16 %v5806
  %v6257 = vunpack.c.h.b16 %v5806
  %v6258 = vunpack.c.l.b16 %v5807
  %v6259 = vunpack.c.h.b16 %v5807
  %v6260 = vunpack.c.l.b16 %v5808
  %v6261 = vunpack.c.h.b16 %v5808
  %v6262 = vunpack.c.l.b16 %v5809
  %v6263 = vunpack.c.h.b16 %v5809
  %v6264 = vunpack.c.l.b16 %v5810
  %v6265 = vunpack.c.h.b16 %v5810
  %v6266 = vunpack.c.l.b16 %v5811
  %v6267 = vunpack.c.h.b16 %v5811
  %v6268 = vunpack.c.l.b16 %v5812
  %v6269 = vunpack.c.h.b16 %v5812
  %v6270 = vunpack.c.l.b16 %v5813
  %v6271 = vunpack.c.h.b16 %v5813
  %v6272 = vunpack.c.l.b16 %v5814
  %v6273 = vunpack.c.h.b16 %v5814
  %v6274 = vunpack.c.l.b16 %v5815
  %v6275 = vunpack.c.h.b16 %v5815
  %v6276 = vunpack.c.l.b16 %v5816
  %v6277 = vunpack.c.h.b16 %v5816
  %v6278 = vunpack.c.l.b16 %v5817
  %v6279 = vunpack.c.h.b16 %v5817
  %v6280 = vunpack.c.l.b16 %v5818
  %v6281 = vunpack.c.h.b16 %v5818
  %v6282 = vunpack.c.l.b16 %v5819
  %v6283 = vunpack.c.h.b16 %v5819
  %v6284 = vunpack.c.l.b16 %v5820
  %v6285 = vunpack.c.h.b16 %v5820
  %v6286 = vunpack.c.l.b16 %v5821
  %v6287 = vunpack.c.h.b16 %v5821
  %v6288 = vunpack.c.l.b16 %v5822
  %v6289 = vunpack.c.h.b16 %v5822
  %v6290 = vunpack.c.l.b16 %v5823
  %v6291 = vunpack.c.h.b16 %v5823
  %v6292 = vunpack.c.l.b16 %v5824
  %v6293 = vunpack.c.h.b16 %v5824
  %v6294 = vunpack.c.l.b16 %v5825
  %v6295 = vunpack.c.h.b16 %v5825
  %v6296 = vunpack.c.l.b16 %v5826
  %v6297 = vunpack.c.h.b16 %v5826
  %v6298 = vunpack.c.l.b16 %v5827
  %v6299 = vunpack.c.h.b16 %v5827
  %v6300 = vunpack.c.l.b16 %v5828
  %v6301 = vunpack.c.h.b16 %v5828
  %v6302 = vunpack.c.l.b16 %v5829
  %v6303 = vunpack.c.h.b16 %v5829
  %v6304 = vunpack.c.l.b16 %v5830
  %v6305 = vunpack.c.h.b16 %v5830
  %v6306 = vunpack.c.l.b16 %v5831
  %v6307 = vunpack.c.h.b16 %v5831
  %v6308 = vunpack.c.l.b16 %v5832
  %v6309 = vunpack.c.h.b16 %v5832
  %v6310 = vunpack.c.l.b16 %v5833
  %v6311 = vunpack.c.h.b16 %v5833
  %v6312 = vunpack.c.l.b16 %v5834
  %v6313 = vunpack.c.h.b16 %v5834
  %v6314 = vunpack.c.l.b16 %v5835
  %v6315 = vunpack.c.h.b16 %v5835
  %v6316 = vunpack.c.l.b16 %v5836
  %v6317 = vunpack.c.h.b16 %v5836
  %v6318 = vunpack.c.l.b16 %v5837
  %v6319 = vunpack.c.h.b16 %v5837
  %v6320 = vunpack.c.l.b16 %v5838
  %v6321 = vunpack.c.h.b16 %v5838
  %v6322 = vunpack.c.l.b16 %v5839
  %v6323 = vunpack.c.h.b16 %v5839
  %v6324 = vunpack.c.l.b16 %v5840
  %v6325 = vunpack.c.h.b16 %v5840
  %v6326 = vunpack.c.l.b16 %v5841
  %v6327 = vunpack.c.h.b16 %v5841
  %v6328 = vunpack.c.l.b16 %v5842
  %v6329 = vunpack.c.h.b16 %v5842
  %v6330 = vunpack.c.l.b16 %v5843
  %v6331 = vunpack.c.h.b16 %v5843
  %v6332 = vunpack.c.l.b16 %v5844
  %v6333 = vunpack.c.h.b16 %v5844
  %v6334 = vunpack.c.l.b16 %v5845
  %v6335 = vunpack.c.h.b16 %v5845
  %v6336 = vunpack.c.l.b16 %v5846
  %v6337 = vunpack.c.h.b16 %v5846
  %v6338 = vunpack.c.l.b16 %v5847
  %v6339 = vunpack.c.h.b16 %v5847
  %v6340 = vunpack.c.l.b16 %v5848
  %v6341 = vunpack.c.h.b16 %v5848
  %v6342 = vunpack.c.l.b16 %v5849
  %v6343 = vunpack.c.h.b16 %v5849
  %v6344 = vunpack.c.l.b16 %v5850
  %v6345 = vunpack.c.h.b16 %v5850
  %v6346 = vunpack.c.l.b16 %v5851
  %v6347 = vunpack.c.h.b16 %v5851
  %v6348 = vunpack.c.l.b16 %v5852
  %v6349 = vunpack.c.h.b16 %v5852
  %v6350 = vunpack.c.l.b16 %v5853
  %v6351 = vunpack.c.h.b16 %v5853
  %v6352 = vunpack.c.l.b16 %v5854
  %v6353 = vunpack.c.h.b16 %v5854
  %v6354 = vunpack.c.l.b16 %v5855
  %v6355 = vunpack.c.h.b16 %v5855
  %v6356 = vunpack.c.l.b16 %v5856
  %v6357 = vunpack.c.h.b16 %v5856
  %v6358 = vunpack.c.l.b16 %v5857
  %v6359 = vunpack.c.h.b16 %v5857
  %v6360 = vunpack.c.l.b16 %v5858
  %v6361 = vunpack.c.h.b16 %v5858
  %v6362 = vunpack.c.l.b16 %v5859
  %v6363 = vunpack.c.h.b16 %v5859
  %v6364 = vunpack.c.l.b16 %v5860
  %v6365 = vunpack.c.h.b16 %v5860
  %v6366 = vpack.c.b16 %v6054, %v6046
  %v6367 = vpack.c.b16 %v6055, %v6047
  %v6368 = vpack.c.b16 %v6056, %v6048
  %v6369 = vpack.c.b16 %v6057, %v6049
  %v6370 = vpack.c.b16 %v6058, %v6050
  %v6371 = vpack.c.b16 %v6059, %v6051
  %v6372 = vpack.c.b16 %v6060, %v6052
  %v6373 = vpack.c.b16 %v6061, %v6053
  %v6374 = vpack.c.b16 %v6070, %v6062
  %v6375 = vpack.c.b16 %v6071, %v6063
  %v6376 = vpack.c.b16 %v6072, %v6064
  %v6377 = vpack.c.b16 %v6073, %v6065
  %v6378 = vpack.c.b16 %v6074, %v6066
  %v6379 = vpack.c.b16 %v6075, %v6067
  %v6380 = vpack.c.b16 %v6076, %v6068
  %v6381 = vpack.c.b16 %v6077, %v6069
  %v6382 = vpack.c.b16 %v6086, %v6078
  %v6383 = vpack.c.b16 %v6087, %v6079
  %v6384 = vpack.c.b16 %v6088, %v6080
  %v6385 = vpack.c.b16 %v6089, %v6081
  %v6386 = vpack.c.b16 %v6090, %v6082
  %v6387 = vpack.c.b16 %v6091, %v6083
  %v6388 = vpack.c.b16 %v6092, %v6084
  %v6389 = vpack.c.b16 %v6093, %v6085
  %v6390 = vpack.c.b16 %v6102, %v6094
  %v6391 = vpack.c.b16 %v6103, %v6095
  %v6392 = vpack.c.b16 %v6104, %v6096
  %v6393 = vpack.c.b16 %v6105, %v6097
  %v6394 = vpack.c.b16 %v6106, %v6098
  %v6395 = vpack.c.b16 %v6107, %v6099
  %v6396 = vpack.c.b16 %v6108, %v6100
  %v6397 = vpack.c.b16 %v6109, %v6101
  %v6398 = vpack.c.b16 %v6118, %v6110
  %v6399 = vpack.c.b16 %v6119, %v6111
  %v6400 = vpack.c.b16 %v6120, %v6112
  %v6401 = vpack.c.b16 %v6121, %v6113
  %v6402 = vpack.c.b16 %v6122, %v6114
  %v6403 = vpack.c.b16 %v6123, %v6115
  %v6404 = vpack.c.b16 %v6124, %v6116
  %v6405 = vpack.c.b16 %v6125, %v6117
  %v6406 = vpack.c.b16 %v6134, %v6126
  %v6407 = vpack.c.b16 %v6135, %v6127
  %v6408 = vpack.c.b16 %v6136, %v6128
  %v6409 = vpack.c.b16 %v6137, %v6129
  %v6410 = vpack.c.b16 %v6138, %v6130
  %v6411 = vpack.c.b16 %v6139, %v6131
  %v6412 = vpack.c.b16 %v6140, %v6132
  %v6413 = vpack.c.b16 %v6141, %v6133
  %v6414 = vpack.c.b16 %v6150, %v6142
  %v6415 = vpack.c.b16 %v6151, %v6143
  %v6416 = vpack.c.b16 %v6152, %v6144
  %v6417 = vpack.c.b16 %v6153, %v6145
  %v6418 = vpack.c.b16 %v6154, %v6146
  %v6419 = vpack.c.b16 %v6155, %v6147
  %v6420 = vpack.c.b16 %v6156, %v6148
  %v6421 = vpack.c.b16 %v6157, %v6149
  %v6422 = vpack.c.b16 %v6166, %v6158
  %v6423 = vpack.c.b16 %v6167, %v6159
  %v6424 = vpack.c.b16 %v6168, %v6160
  %v6425 = vpack.c.b16 %v6169, %v6161
  %v6426 = vpack.c.b16 %v6170, %v6162
  %v6427 = vpack.c.b16 %v6171, %v6163
  %v6428 = vpack.c.b16 %v6172, %v6164
  %v6429 = vpack.c.b16 %v6173, %v6165
  %v6430 = vpack.c.b16 %v6182, %v6174
  %v6431 = vpack.c.b16 %v6183, %v6175
  %v6432 = vpack.c.b16 %v6184, %v6176
  %v6433 = vpack.c.b16 %v6185, %v6177
  %v6434 = vpack.c.b16 %v6186, %v6178
  %v6435 = vpack.c.b16 %v6187, %v6179
  %v6436 = vpack.c.b16 %v6188, %v6180
  %v6437 = vpack.c.b16 %v6189, %v6181
  %v6438 = vpack.c.b16 %v6198, %v6190
  %v6439 = vpack.c.b16 %v6199, %v6191
  %v6440 = vpack.c.b16 %v6200, %v6192
  %v6441 = vpack.c.b16 %v6201, %v6193
  %v6442 = vpack.c.b16 %v6202, %v6194
  %v6443 = vpack.c.b16 %v6203, %v6195
  %v6444 = vpack.c.b16 %v6204, %v6196
  %v6445 = vpack.c.b16 %v6205, %v6197
  %v6446 = vpack.c.b16 %v6214, %v6206
  %v6447 = vpack.c.b16 %v6215, %v6207
  %v6448 = vpack.c.b16 %v6216, %v6208
  %v6449 = vpack.c.b16 %v6217, %v6209
  %v6450 = vpack.c.b16 %v6218, %v6210
  %v6451 = vpack.c.b16 %v6219, %v6211
  %v6452 = vpack.c.b16 %v6220, %v6212
  %v6453 = vpack.c.b16 %v6221, %v6213
  %v6454 = vpack.c.b16 %v6230, %v6222
  %v6455 = vpack.c.b16 %v6231, %v6223
  %v6456 = vpack.c.b16 %v6232, %v6224
  %v6457 = vpack.c.b16 %v6233, %v6225
  %v6458 = vpack.c.b16 %v6234, %v6226
  %v6459 = vpack.c.b16 %v6235, %v6227
  %v6460 = vpack.c.b16 %v6236, %v6228
  %v6461 = vpack.c.b16 %v6237, %v6229
  %v6462 = vpack.c.b16 %v6246, %v6238
  %v6463 = vpack.c.b16 %v6247, %v6239
  %v6464 = vpack.c.b16 %v6248, %v6240
  %v6465 = vpack.c.b16 %v6249, %v6241
  %v6466 = vpack.c.b16 %v6250, %v6242
  %v6467 = vpack.c.b16 %v6251, %v6243
  %v6468 = vpack.c.b16 %v6252, %v6244
  %v6469 = vpack.c.b16 %v6253, %v6245
  %v6470 = vpack.c.b16 %v6262, %v6254
  %v6471 = vpack.c.b16 %v6263, %v6255
  %v6472 = vpack.c.b16 %v6264, %v6256
  %v6473 = vpack.c.b16 %v6265, %v6257
  %v6474 = vpack.c.b16 %v6266, %v6258
  %v6475 = vpack.c.b16 %v6267, %v6259
  %v6476 = vpack.c.b16 %v6268, %v6260
  %v6477 = vpack.c.b16 %v6269, %v6261
  %v6478 = vpack.c.b16 %v6278, %v6270
  %v6479 = vpack.c.b16 %v6279, %v6271
  %v6480 = vpack.c.b16 %v6280, %v6272
  %v6481 = vpack.c.b16 %v6281, %v6273
  %v6482 = vpack.c.b16 %v6282, %v6274
  %v6483 = vpack.c.b16 %v6283, %v6275
  %v6484 = vpack.c.b16 %v6284, %v6276
  %v6485 = vpack.c.b16 %v6285, %v6277
  %v6486 = vpack.c.b16 %v6294, %v6286
  %v6487 = vpack.c.b16 %v6295, %v6287
  %v6488 = vpack.c.b16 %v6296, %v6288
  %v6489 = vpack.c.b16 %v6297, %v6289
  %v6490 = vpack.c.b16 %v6298, %v6290
  %v6491 = vpack.c.b16 %v6299, %v6291
  %v6492 = vpack.c.b16 %v6300, %v6292
  %v6493 = vpack.c.b16 %v6301, %v6293
  %v6494 = vpack.c.b16 %v6310, %v6302
  %v6495 = vpack.c.b16 %v6311, %v6303
  %v6496 = vpack.c.b16 %v6312, %v6304
  %v6497 = vpack.c.b16 %v6313, %v6305
  %v6498 = vpack.c.b16 %v6314, %v6306
  %v6499 = vpack.c.b16 %v6315, %v6307
  %v6500 = vpack.c.b16 %v6316, %v6308
  %v6501 = vpack.c.b16 %v6317, %v6309
  %v6502 = vpack.c.b16 %v6326, %v6318
  %v6503 = vpack.c.b16 %v6327, %v6319
  %v6504 = vpack.c.b16 %v6328, %v6320
  %v6505 = vpack.c.b16 %v6329, %v6321
  %v6506 = vpack.c.b16 %v6330, %v6322
  %v6507 = vpack.c.b16 %v6331, %v6323
  %v6508 = vpack.c.b16 %v6332, %v6324
  %v6509 = vpack.c.b16 %v6333, %v6325
  %v6510 = vpack.c.b16 %v6342, %v6334
  %v6511 = vpack.c.b16 %v6343, %v6335
  %v6512 = vpack.c.b16 %v6344, %v6336
  %v6513 = vpack.c.b16 %v6345, %v6337
  %v6514 = vpack.c.b16 %v6346, %v6338
  %v6515 = vpack.c.b16 %v6347, %v6339
  %v6516 = vpack.c.b16 %v6348, %v6340
  %v6517 = vpack.c.b16 %v6349, %v6341
  %v6518 = vpack.c.b16 %v6358, %v6350
  %v6519 = vpack.c.b16 %v6359, %v6351
  %v6520 = vpack.c.b16 %v6360, %v6352
  %v6521 = vpack.c.b16 %v6361, %v6353
  %v6522 = vpack.c.b16 %v6362, %v6354
  %v6523 = vpack.c.b16 %v6363, %v6355
  %v6524 = vpack.c.b16 %v6364, %v6356
  %v6525 = vpack.c.b16 %v6365, %v6357
  %v6687 = vsel %vm1177, %v5878, 0
  %v6690 = vsel %vm1177, %v5881, 0
  %6692 = vmatprep.subr.bf16.mxu0 %v6367
  %6693 = vmatpush1.bf16.msra.mxu0 %v6366
  %6694 = vmatprep.subr.bf16.mxu0 %v6375
  %6695 = vmatpush1.bf16.msra.mxu0 %v6374
  %6696 = vmatprep.subr.bf16.mxu0 %v6383
  %6697 = vmatpush1.bf16.msra.mxu0 %v6382
  %6698 = vmatprep.subr.bf16.mxu0 %v6391
  %6699 = vmatpush1.bf16.msra.mxu0 %v6390
  %6700 = vmatprep.subr.bf16.mxu0 %v6399
  %6701 = vmatpush1.bf16.msra.mxu0 %v6398
  %6702 = vmatprep.subr.bf16.mxu0 %v6407
  %6703 = vmatpush1.bf16.msra.mxu0 %v6406
  %6704 = vmatprep.subr.bf16.mxu0 %v6415
  %6705 = vmatpush1.bf16.msra.mxu0 %v6414
  %6706 = vmatprep.subr.bf16.mxu0 %v6423
  %6707 = vmatpush1.bf16.msra.mxu0 %v6422
  %6708 = vmatprep.subr.bf16.mxu0 %v6431
  %6709 = vmatpush1.bf16.msra.mxu0 %v6430
  %6710 = vmatprep.subr.bf16.mxu0 %v6439
  %6711 = vmatpush1.bf16.msra.mxu0 %v6438
  %6712 = vmatprep.subr.bf16.mxu0 %v6447
  %6713 = vmatpush1.bf16.msra.mxu0 %v6446
  %6714 = vmatprep.subr.bf16.mxu0 %v6455
  %6715 = vmatpush1.bf16.msra.mxu0 %v6454
  %6716 = vmatprep.subr.bf16.mxu0 %v6463
  %6717 = vmatpush1.bf16.msra.mxu0 %v6462
  %6718 = vmatprep.subr.bf16.mxu0 %v6471
  %6719 = vmatpush1.bf16.msra.mxu0 %v6470
  %6720 = vmatprep.subr.bf16.mxu0 %v6479
  %6721 = vmatpush1.bf16.msra.mxu0 %v6478
  %6722 = vmatprep.subr.bf16.mxu0 %v6487
  %6723 = vmatpush1.bf16.msra.mxu0 %v6486
  %6724 = vmatprep.mubr.bf16.mxu0 %v5877
  %6725 = vmatmul.mubr.bf16.gmra.mrb[0].mxu0 %v5876
  %v6726 = vpop.f32.mrb[0].mxu0
  %v6727 = vadd.f32 0.0, %v6726
  %v6728 = vpop.f32.mrb[0].mxu0
  %v6729 = vadd.f32 0.0, %v6728
  %v6730 = vpop.f32.mrb[0].mxu0
  %v6731 = vadd.f32 0.0, %v6730
  %v6732 = vpop.f32.mrb[0].mxu0
  %v6733 = vadd.f32 0.0, %v6732
  %6734 = vmatprep.mubr.bf16.mxu0 %v5880
  %6735 = vmatmul.mubr.bf16.gmra.mrb[0].mxu0 %v5879
  %v6736 = vpop.f32.mrb[0].mxu0
  %v6737 = vadd.f32 0.0, %v6736
  %v6738 = vpop.f32.mrb[0].mxu0
  %v6739 = vadd.f32 0.0, %v6738
  %v6740 = vpop.f32.mrb[0].mxu0
  %v6741 = vpop.f32.mrb[0].mxu0
  %6742 = vdwg.mxu0
  %6743 = vmatprep.subr.bf16.mxu0 %v6495
  %6744 = vmatpush1.bf16.msra.mxu0 %v6494
  %6745 = vmatprep.subr.bf16.mxu0 %v6503
  %6746 = vmatpush1.bf16.msra.mxu0 %v6502
  %6747 = vmatprep.subr.bf16.mxu0 %v6511
  %6748 = vmatpush1.bf16.msra.mxu0 %v6510
  %6749 = vmatprep.subr.bf16.mxu0 %v6519
  %6750 = vmatpush1.bf16.msra.mxu0 %v6518
  %6751 = vmatprep.subr.bf16.mxu0 0
  %6752 = vmatpush1.bf16.msra.mxu0 0
  %6753 = vmatprep.subr.bf16.mxu0 0
  %6754 = vmatpush1.bf16.msra.mxu0 0
  %6755 = vmatprep.subr.bf16.mxu0 0
  %6756 = vmatpush1.bf16.msra.mxu0 0
  %6757 = vmatprep.subr.bf16.mxu0 0
  %6758 = vmatpush1.bf16.msra.mxu0 0
  %6759 = vmatprep.subr.bf16.mxu0 0
  %6760 = vmatpush1.bf16.msra.mxu0 0
  %6761 = vmatprep.subr.bf16.mxu0 0
  %6762 = vmatpush1.bf16.msra.mxu0 0
  %6763 = vmatprep.subr.bf16.mxu0 0
  %6764 = vmatpush1.bf16.msra.mxu0 0
  %6765 = vmatprep.subr.bf16.mxu0 0
  %6766 = vmatpush1.bf16.msra.mxu0 0
  %6767 = vmatprep.subr.bf16.mxu0 0
  %6768 = vmatpush1.bf16.msra.mxu0 0
  %6769 = vmatprep.subr.bf16.mxu0 0
  %6770 = vmatpush1.bf16.msra.mxu0 0
  %6771 = vmatprep.subr.bf16.mxu0 0
  %6772 = vmatpush1.bf16.msra.mxu0 0
  %6773 = vmatprep.subr.bf16.mxu0 0
  %6774 = vmatpush1.bf16.msra.mxu0 0
  %6775 = vmatprep.mubr.bf16.mxu0 0
  %6776 = vmatmul.mubr.bf16.gmra.mrb[0].mxu0 %v6687
  %v6777 = vpop.f32.mrb[0].mxu0
  %v6778 = vadd.f32 %v6727, %v6777
  %v6779 = vpop.f32.mrb[0].mxu0
  %v6780 = vadd.f32 %v6729, %v6779
  %v6781 = vpop.f32.mrb[0].mxu0
  %v6782 = vadd.f32 %v6731, %v6781
  %v6783 = vpop.f32.mrb[0].mxu0
  %v6784 = vadd.f32 %v6733, %v6783
  %6785 = vmatprep.mubr.bf16.mxu0 0
  %6786 = vmatmul.mubr.bf16.gmra.mrb[0].mxu0 %v6690
  %v6787 = vpop.f32.mrb[0].mxu0
  %v6788 = vadd.f32 %v6737, %v6787
  %v6789 = vpop.f32.mrb[0].mxu0
  %v6790 = vadd.f32 %v6739, %v6789
  %v6791 = vpop.f32.mrb[0].mxu0
  %v6792 = vpop.f32.mrb[0].mxu0
  %6793 = vdwg.mxu0
  %6794 = vmatprep.subr.bf16.mxu0 %v6369
  %6795 = vmatpush1.bf16.msra.mxu0 %v6368
  %6796 = vmatprep.subr.bf16.mxu0 %v6377
  %6797 = vmatpush1.bf16.msra.mxu0 %v6376
  %6798 = vmatprep.subr.bf16.mxu0 %v6385
  %6799 = vmatpush1.bf16.msra.mxu0 %v6384
  %6800 = vmatprep.subr.bf16.mxu0 %v6393
  %6801 = vmatpush1.bf16.msra.mxu0 %v6392
  %6802 = vmatprep.subr.bf16.mxu0 %v6401
  %6803 = vmatpush1.bf16.msra.mxu0 %v6400
  %6804 = vmatprep.subr.bf16.mxu0 %v6409
  %6805 = vmatpush1.bf16.msra.mxu0 %v6408
  %6806 = vmatprep.subr.bf16.mxu0 %v6417
  %6807 = vmatpush1.bf16.msra.mxu0 %v6416
  %6808 = vmatprep.subr.bf16.mxu0 %v6425
  %6809 = vmatpush1.bf16.msra.mxu0 %v6424
  %6810 = vmatprep.subr.bf16.mxu0 %v6433
  %6811 = vmatpush1.bf16.msra.mxu0 %v6432
  %6812 = vmatprep.subr.bf16.mxu0 %v6441
  %6813 = vmatpush1.bf16.msra.mxu0 %v6440
  %6814 = vmatprep.subr.bf16.mxu0 %v6449
  %6815 = vmatpush1.bf16.msra.mxu0 %v6448
  %6816 = vmatprep.subr.bf16.mxu0 %v6457
  %6817 = vmatpush1.bf16.msra.mxu0 %v6456
  %6818 = vmatprep.subr.bf16.mxu0 %v6465
  %6819 = vmatpush1.bf16.msra.mxu0 %v6464
  %6820 = vmatprep.subr.bf16.mxu0 %v6473
  %6821 = vmatpush1.bf16.msra.mxu0 %v6472
  %6822 = vmatprep.subr.bf16.mxu0 %v6481
  %6823 = vmatpush1.bf16.msra.mxu0 %v6480
  %6824 = vmatprep.subr.bf16.mxu0 %v6489
  %6825 = vmatpush1.bf16.msra.mxu0 %v6488
  %6826 = vmatprep.mubr.bf16.mxu0 %v5877
  %6827 = vmatmul.mubr.bf16.gmra.mrb[0].mxu0 %v5876
  %v6828 = vpop.f32.mrb[0].mxu0
  %v6829 = vadd.f32 0.0, %v6828
  %v6830 = vpop.f32.mrb[0].mxu0
  %v6831 = vadd.f32 0.0, %v6830
  %v6832 = vpop.f32.mrb[0].mxu0
  %v6833 = vadd.f32 0.0, %v6832
  %v6834 = vpop.f32.mrb[0].mxu0
  %v6835 = vadd.f32 0.0, %v6834
  %6836 = vmatprep.mubr.bf16.mxu0 %v5880
  %6837 = vmatmul.mubr.bf16.gmra.mrb[0].mxu0 %v5879
  %v6838 = vpop.f32.mrb[0].mxu0
  %v6839 = vadd.f32 0.0, %v6838
  %v6840 = vpop.f32.mrb[0].mxu0
  %v6841 = vadd.f32 0.0, %v6840
  %v6842 = vpop.f32.mrb[0].mxu0
  %v6843 = vpop.f32.mrb[0].mxu0
  %6844 = vdwg.mxu0
  %6845 = vmatprep.subr.bf16.mxu0 %v6497
  %6846 = vmatpush1.bf16.msra.mxu0 %v6496
  %6847 = vmatprep.subr.bf16.mxu0 %v6505
  %6848 = vmatpush1.bf16.msra.mxu0 %v6504
  %6849 = vmatprep.subr.bf16.mxu0 %v6513
  %6850 = vmatpush1.bf16.msra.mxu0 %v6512
  %6851 = vmatprep.subr.bf16.mxu0 %v6521
  %6852 = vmatpush1.bf16.msra.mxu0 %v6520
  %6853 = vmatprep.subr.bf16.mxu0 0
  %6854 = vmatpush1.bf16.msra.mxu0 0
  %6855 = vmatprep.subr.bf16.mxu0 0
  %6856 = vmatpush1.bf16.msra.mxu0 0
  %6857 = vmatprep.subr.bf16.mxu0 0
  %6858 = vmatpush1.bf16.msra.mxu0 0
  %6859 = vmatprep.subr.bf16.mxu0 0
  %6860 = vmatpush1.bf16.msra.mxu0 0
  %6861 = vmatprep.subr.bf16.mxu0 0
  %6862 = vmatpush1.bf16.msra.mxu0 0
  %6863 = vmatprep.subr.bf16.mxu0 0
  %6864 = vmatpush1.bf16.msra.mxu0 0
  %6865 = vmatprep.subr.bf16.mxu0 0
  %6866 = vmatpush1.bf16.msra.mxu0 0
  %6867 = vmatprep.subr.bf16.mxu0 0
  %6868 = vmatpush1.bf16.msra.mxu0 0
  %6869 = vmatprep.subr.bf16.mxu0 0
  %6870 = vmatpush1.bf16.msra.mxu0 0
  %6871 = vmatprep.subr.bf16.mxu0 0
  %6872 = vmatpush1.bf16.msra.mxu0 0
  %6873 = vmatprep.subr.bf16.mxu0 0
  %6874 = vmatpush1.bf16.msra.mxu0 0
  %6875 = vmatprep.subr.bf16.mxu0 0
  %6876 = vmatpush1.bf16.msra.mxu0 0
  %6877 = vmatprep.mubr.bf16.mxu0 0
  %6878 = vmatmul.mubr.bf16.gmra.mrb[0].mxu0 %v6687
  %v6879 = vpop.f32.mrb[0].mxu0
  %v6880 = vadd.f32 %v6829, %v6879
  %v6881 = vpop.f32.mrb[0].mxu0
  %v6882 = vadd.f32 %v6831, %v6881
  %v6883 = vpop.f32.mrb[0].mxu0
  %v6884 = vadd.f32 %v6833, %v6883
  %v6885 = vpop.f32.mrb[0].mxu0
  %v6886 = vadd.f32 %v6835, %v6885
  %6887 = vmatprep.mubr.bf16.mxu0 0
  %6888 = vmatmul.mubr.bf16.gmra.mrb[0].mxu0 %v6690
  %v6889 = vpop.f32.mrb[0].mxu0
  %v6890 = vadd.f32 %v6839, %v6889
  %v6891 = vpop.f32.mrb[0].mxu0
  %v6892 = vadd.f32 %v6841, %v6891
  %v6893 = vpop.f32.mrb[0].mxu0
  %v6894 = vpop.f32.mrb[0].mxu0
  %6895 = vdwg.mxu0
  %6896 = vmatprep.subr.bf16.mxu0 %v6371
  %6897 = vmatpush1.bf16.msra.mxu0 %v6370
  %6898 = vmatprep.subr.bf16.mxu0 %v6379
  %6899 = vmatpush1.bf16.msra.mxu0 %v6378
  %6900 = vmatprep.subr.bf16.mxu0 %v6387
  %6901 = vmatpush1.bf16.msra.mxu0 %v6386
  %6902 = vmatprep.subr.bf16.mxu0 %v6395
  %6903 = vmatpush1.bf16.msra.mxu0 %v6394
  %6904 = vmatprep.subr.bf16.mxu0 %v6403
  %6905 = vmatpush1.bf16.msra.mxu0 %v6402
  %6906 = vmatprep.subr.bf16.mxu0 %v6411
  %6907 = vmatpush1.bf16.msra.mxu0 %v6410
  %6908 = vmatprep.subr.bf16.mxu0 %v6419
  %6909 = vmatpush1.bf16.msra.mxu0 %v6418
  %6910 = vmatprep.subr.bf16.mxu0 %v6427
  %6911 = vmatpush1.bf16.msra.mxu0 %v6426
  %6912 = vmatprep.subr.bf16.mxu0 %v6435
  %6913 = vmatpush1.bf16.msra.mxu0 %v6434
  %6914 = vmatprep.subr.bf16.mxu0 %v6443
  %6915 = vmatpush1.bf16.msra.mxu0 %v6442
  %6916 = vmatprep.subr.bf16.mxu0 %v6451
  %6917 = vmatpush1.bf16.msra.mxu0 %v6450
  %6918 = vmatprep.subr.bf16.mxu0 %v6459
  %6919 = vmatpush1.bf16.msra.mxu0 %v6458
  %6920 = vmatprep.subr.bf16.mxu0 %v6467
  %6921 = vmatpush1.bf16.msra.mxu0 %v6466
  %6922 = vmatprep.subr.bf16.mxu0 %v6475
  %6923 = vmatpush1.bf16.msra.mxu0 %v6474
  %6924 = vmatprep.subr.bf16.mxu0 %v6483
  %6925 = vmatpush1.bf16.msra.mxu0 %v6482
  %6926 = vmatprep.subr.bf16.mxu0 %v6491
  %6927 = vmatpush1.bf16.msra.mxu0 %v6490
  %6928 = vmatprep.mubr.bf16.mxu0 %v5877
  %6929 = vmatmul.mubr.bf16.gmra.mrb[0].mxu0 %v5876
  %v6930 = vpop.f32.mrb[0].mxu0
  %v6931 = vadd.f32 0.0, %v6930
  %v6932 = vpop.f32.mrb[0].mxu0
  %v6933 = vadd.f32 0.0, %v6932
  %v6934 = vpop.f32.mrb[0].mxu0
  %v6935 = vadd.f32 0.0, %v6934
  %v6936 = vpop.f32.mrb[0].mxu0
  %v6937 = vadd.f32 0.0, %v6936
  %6938 = vmatprep.mubr.bf16.mxu0 %v5880
  %6939 = vmatmul.mubr.bf16.gmra.mrb[0].mxu0 %v5879
  %v6940 = vpop.f32.mrb[0].mxu0
  %v6941 = vadd.f32 0.0, %v6940
  %v6942 = vpop.f32.mrb[0].mxu0
  %v6943 = vadd.f32 0.0, %v6942
  %v6944 = vpop.f32.mrb[0].mxu0
  %v6945 = vpop.f32.mrb[0].mxu0
  %6946 = vdwg.mxu0
  %6947 = vmatprep.subr.bf16.mxu0 %v6499
  %6948 = vmatpush1.bf16.msra.mxu0 %v6498
  %6949 = vmatprep.subr.bf16.mxu0 %v6507
  %6950 = vmatpush1.bf16.msra.mxu0 %v6506
  %6951 = vmatprep.subr.bf16.mxu0 %v6515
  %6952 = vmatpush1.bf16.msra.mxu0 %v6514
  %6953 = vmatprep.subr.bf16.mxu0 %v6523
  %6954 = vmatpush1.bf16.msra.mxu0 %v6522
  %6955 = vmatprep.subr.bf16.mxu0 0
  %6956 = vmatpush1.bf16.msra.mxu0 0
  %6957 = vmatprep.subr.bf16.mxu0 0
  %6958 = vmatpush1.bf16.msra.mxu0 0
  %6959 = vmatprep.subr.bf16.mxu0 0
  %6960 = vmatpush1.bf16.msra.mxu0 0
  %6961 = vmatprep.subr.bf16.mxu0 0
  %6962 = vmatpush1.bf16.msra.mxu0 0
  %6963 = vmatprep.subr.bf16.mxu0 0
  %6964 = vmatpush1.bf16.msra.mxu0 0
  %6965 = vmatprep.subr.bf16.mxu0 0
  %6966 = vmatpush1.bf16.msra.mxu0 0
  %6967 = vmatprep.subr.bf16.mxu0 0
  %6968 = vmatpush1.bf16.msra.mxu0 0
  %6969 = vmatprep.subr.bf16.mxu0 0
  %6970 = vmatpush1.bf16.msra.mxu0 0
  %6971 = vmatprep.subr.bf16.mxu0 0
  %6972 = vmatpush1.bf16.msra.mxu0 0
  %6973 = vmatprep.subr.bf16.mxu0 0
  %6974 = vmatpush1.bf16.msra.mxu0 0
  %6975 = vmatprep.subr.bf16.mxu0 0
  %6976 = vmatpush1.bf16.msra.mxu0 0
  %6977 = vmatprep.subr.bf16.mxu0 0
  %6978 = vmatpush1.bf16.msra.mxu0 0
  %6979 = vmatprep.mubr.bf16.mxu0 0
  %6980 = vmatmul.mubr.bf16.gmra.mrb[0].mxu0 %v6687
  %v6981 = vpop.f32.mrb[0].mxu0
  %v6982 = vadd.f32 %v6931, %v6981
  %v6983 = vpop.f32.mrb[0].mxu0
  %v6984 = vadd.f32 %v6933, %v6983
  %v6985 = vpop.f32.mrb[0].mxu0
  %v6986 = vadd.f32 %v6935, %v6985
  %v6987 = vpop.f32.mrb[0].mxu0
  %v6988 = vadd.f32 %v6937, %v6987
  %6989 = vmatprep.mubr.bf16.mxu0 0
  %6990 = vmatmul.mubr.bf16.gmra.mrb[0].mxu0 %v6690
  %v6991 = vpop.f32.mrb[0].mxu0
  %v6992 = vadd.f32 %v6941, %v6991
  %v6993 = vpop.f32.mrb[0].mxu0
  %v6994 = vadd.f32 %v6943, %v6993
  %v6995 = vpop.f32.mrb[0].mxu0
  %v6996 = vpop.f32.mrb[0].mxu0
  %6997 = vdwg.mxu0
  %6998 = vmatprep.subr.bf16.mxu0 %v6373
  %6999 = vmatpush1.bf16.msra.mxu0 %v6372
  %7000 = vmatprep.subr.bf16.mxu0 %v6381
  %7001 = vmatpush1.bf16.msra.mxu0 %v6380
  %7002 = vmatprep.subr.bf16.mxu0 %v6389
  %7003 = vmatpush1.bf16.msra.mxu0 %v6388
  %7004 = vmatprep.subr.bf16.mxu0 %v6397
  %7005 = vmatpush1.bf16.msra.mxu0 %v6396
  %7006 = vmatprep.subr.bf16.mxu0 %v6405
  %7007 = vmatpush1.bf16.msra.mxu0 %v6404
  %7008 = vmatprep.subr.bf16.mxu0 %v6413
  %7009 = vmatpush1.bf16.msra.mxu0 %v6412
  %7010 = vmatprep.subr.bf16.mxu0 %v6421
  %7011 = vmatpush1.bf16.msra.mxu0 %v6420
  %7012 = vmatprep.subr.bf16.mxu0 %v6429
  %7013 = vmatpush1.bf16.msra.mxu0 %v6428
  %7014 = vmatprep.subr.bf16.mxu0 %v6437
  %7015 = vmatpush1.bf16.msra.mxu0 %v6436
  %7016 = vmatprep.subr.bf16.mxu0 %v6445
  %7017 = vmatpush1.bf16.msra.mxu0 %v6444
  %7018 = vmatprep.subr.bf16.mxu0 %v6453
  %7019 = vmatpush1.bf16.msra.mxu0 %v6452
  %7020 = vmatprep.subr.bf16.mxu0 %v6461
  %7021 = vmatpush1.bf16.msra.mxu0 %v6460
  %7022 = vmatprep.subr.bf16.mxu0 %v6469
  %7023 = vmatpush1.bf16.msra.mxu0 %v6468
  %7024 = vmatprep.subr.bf16.mxu0 %v6477
  %7025 = vmatpush1.bf16.msra.mxu0 %v6476
  %7026 = vmatprep.subr.bf16.mxu0 %v6485
  %7027 = vmatpush1.bf16.msra.mxu0 %v6484
  %7028 = vmatprep.subr.bf16.mxu0 %v6493
  %7029 = vmatpush1.bf16.msra.mxu0 %v6492
  %7030 = vmatprep.mubr.bf16.mxu0 %v5877
  %7031 = vmatmul.mubr.bf16.gmra.mrb[0].mxu0 %v5876
  %v7032 = vpop.f32.mrb[0].mxu0
  %v7033 = vadd.f32 0.0, %v7032
  %v7034 = vpop.f32.mrb[0].mxu0
  %v7035 = vadd.f32 0.0, %v7034
  %v7036 = vpop.f32.mrb[0].mxu0
  %v7037 = vadd.f32 0.0, %v7036
  %v7038 = vpop.f32.mrb[0].mxu0
  %v7039 = vadd.f32 0.0, %v7038
  %7040 = vmatprep.mubr.bf16.mxu0 %v5880
  %7041 = vmatmul.mubr.bf16.gmra.mrb[0].mxu0 %v5879
  %v7042 = vpop.f32.mrb[0].mxu0
  %v7043 = vadd.f32 0.0, %v7042
  %v7044 = vpop.f32.mrb[0].mxu0
  %v7045 = vadd.f32 0.0, %v7044
  %v7046 = vpop.f32.mrb[0].mxu0
  %v7047 = vpop.f32.mrb[0].mxu0
  %7048 = vdwg.mxu0
  %7049 = vmatprep.subr.bf16.mxu0 %v6501
  %7050 = vmatpush1.bf16.msra.mxu0 %v6500
  %7051 = vmatprep.subr.bf16.mxu0 %v6509
  %7052 = vmatpush1.bf16.msra.mxu0 %v6508
  %7053 = vmatprep.subr.bf16.mxu0 %v6517
  %7054 = vmatpush1.bf16.msra.mxu0 %v6516
  %7055 = vmatprep.subr.bf16.mxu0 %v6525
  %7056 = vmatpush1.bf16.msra.mxu0 %v6524
  %7057 = vmatprep.subr.bf16.mxu0 0
  %7058 = vmatpush1.bf16.msra.mxu0 0
  %7059 = vmatprep.subr.bf16.mxu0 0
  %7060 = vmatpush1.bf16.msra.mxu0 0
  %7061 = vmatprep.subr.bf16.mxu0 0
  %7062 = vmatpush1.bf16.msra.mxu0 0
  %7063 = vmatprep.subr.bf16.mxu0 0
  %7064 = vmatpush1.bf16.msra.mxu0 0
  %7065 = vmatprep.subr.bf16.mxu0 0
  %7066 = vmatpush1.bf16.msra.mxu0 0
  %7067 = vmatprep.subr.bf16.mxu0 0
  %7068 = vmatpush1.bf16.msra.mxu0 0
  %7069 = vmatprep.subr.bf16.mxu0 0
  %7070 = vmatpush1.bf16.msra.mxu0 0
  %7071 = vmatprep.subr.bf16.mxu0 0
  %7072 = vmatpush1.bf16.msra.mxu0 0
  %7073 = vmatprep.subr.bf16.mxu0 0
  %7074 = vmatpush1.bf16.msra.mxu0 0
  %7075 = vmatprep.subr.bf16.mxu0 0
  %7076 = vmatpush1.bf16.msra.mxu0 0
  %7077 = vmatprep.subr.bf16.mxu0 0
  %7078 = vmatpush1.bf16.msra.mxu0 0
  %7079 = vmatprep.subr.bf16.mxu0 0
  %7080 = vmatpush1.bf16.msra.mxu0 0
  %7081 = vmatprep.mubr.bf16.mxu0 0
  %7082 = vmatmul.mubr.bf16.gmra.mrb[0].mxu0 %v6687
  %v7083 = vpop.f32.mrb[0].mxu0
  %v7084 = vadd.f32 %v7033, %v7083
  %v7085 = vpop.f32.mrb[0].mxu0
  %v7086 = vadd.f32 %v7035, %v7085
  %v7087 = vpop.f32.mrb[0].mxu0
  %v7088 = vadd.f32 %v7037, %v7087
  %v7089 = vpop.f32.mrb[0].mxu0
  %v7090 = vadd.f32 %v7039, %v7089
  %7091 = vmatprep.mubr.bf16.mxu0 0
  %7092 = vmatmul.mubr.bf16.gmra.mrb[0].mxu0 %v6690
  %v7093 = vpop.f32.mrb[0].mxu0
  %v7094 = vadd.f32 %v7043, %v7093
  %v7095 = vpop.f32.mrb[0].mxu0
  %v7096 = vadd.f32 %v7045, %v7095
  %v7097 = vpop.f32.mrb[0].mxu0
  %v7098 = vpop.f32.mrb[0].mxu0
  %7099 = vdwg.mxu0
  %v7100 = vadd.f32 %v5669, %v6778
  %v7101 = vadd.f32 %v5670, %v6780
  %v7102 = vadd.f32 %v5671, %v6880
  %v7103 = vadd.f32 %v5672, %v6882
  %v7104 = vadd.f32 %v5673, %v6982
  %v7105 = vadd.f32 %v5674, %v6984
  %v7106 = vadd.f32 %v5675, %v7084
  %v7107 = vadd.f32 %v5676, %v7086
  %v7108 = vadd.f32 %v5677, %v6782
  %v7109 = vadd.f32 %v5678, %v6784
  %v7110 = vadd.f32 %v5679, %v6884
  %v7111 = vadd.f32 %v5680, %v6886
  %v7112 = vadd.f32 %v5681, %v6986
  %v7113 = vadd.f32 %v5682, %v6988
  %v7114 = vadd.f32 %v5683, %v7088
  %v7115 = vadd.f32 %v5684, %v7090
  %v7116 = vadd.f32 %v5685, %v6788
  %v7117 = vadd.f32 %v5686, %v6790
  %v7118 = vadd.f32 %v5687, %v6890
  %v7119 = vadd.f32 %v5688, %v6892
  %v7120 = vadd.f32 %v5689, %v6992
  %v7121 = vadd.f32 %v5690, %v6994
  %v7122 = vadd.f32 %v5691, %v7094
  %v7123 = vadd.f32 %v5692, %v7096
  %s7124 = scalar_lea.vmem %s0, 180
  %v7125 = vld [vmem:[%s7124] sm:$0xff]
  %v7126 = vld [vmem:[%s7124 + $0x8] sm:$0xf]
  %v7127 = vld [vmem:[%s7124 + $0xc] sm:$0xff]
  %v7128 = vld [vmem:[%s7124 + $0x14] sm:$0xf]
  %v7129 = vld [vmem:[%s7124 + $0x18] sm:$0x33]
  %v7130 = vld [vmem:[%s7124 + $0x20] sm:$0x3]
  %s7131 = scalar_lea.vmem %s1, 6400
  %v7132 = vld [vmem:[%s7131] sm:$0xff]
  %v7133 = vld [vmem:[%s7131 + $0x8] sm:$0xff]
  %v7134 = vld [vmem:[%s7131 + $0x10] sm:$0xff]
  %v7135 = vld [vmem:[%s7131 + $0x18] sm:$0xff]
  %v7136 = vld [vmem:[%s7131 + $0x20] sm:$0xff]
  %v7137 = vld [vmem:[%s7131 + $0x28] sm:$0xff]
  %v7138 = vld [vmem:[%s7131 + $0x30] sm:$0xff]
  %v7139 = vld [vmem:[%s7131 + $0x38] sm:$0xff]
  %v7140 = vld [vmem:[%s7131 + $0x40] sm:$0xff]
  %v7141 = vld [vmem:[%s7131 + $0x48] sm:$0xff]
  %v7142 = vld [vmem:[%s7131 + $0x50] sm:$0xff]
  %v7143 = vld [vmem:[%s7131 + $0x58] sm:$0xff]
  %v7144 = vld [vmem:[%s7131 + $0x60] sm:$0xff]
  %v7145 = vld [vmem:[%s7131 + $0x68] sm:$0xff]
  %v7146 = vld [vmem:[%s7131 + $0x70] sm:$0xff]
  %v7147 = vld [vmem:[%s7131 + $0x78] sm:$0xff]
  %v7148 = vld [vmem:[%s7131 + $0x80] sm:$0xff]
  %v7149 = vld [vmem:[%s7131 + $0x88] sm:$0xff]
  %v7150 = vld [vmem:[%s7131 + $0x90] sm:$0xff]
  %v7151 = vld [vmem:[%s7131 + $0x98] sm:$0xff]
  %v7152 = vld [vmem:[%s7131 + $0xa0] sm:$0xff]
  %v7153 = vld [vmem:[%s7131 + $0xa8] sm:$0xff]
  %v7154 = vld [vmem:[%s7131 + $0xb0] sm:$0xff]
  %v7155 = vld [vmem:[%s7131 + $0xb8] sm:$0xff]
  %v7156 = vld [vmem:[%s7131 + $0xc0] sm:$0xff]
  %v7157 = vld [vmem:[%s7131 + $0xc8] sm:$0xff]
  %v7158 = vld [vmem:[%s7131 + $0xd0] sm:$0xff]
  %v7159 = vld [vmem:[%s7131 + $0xd8] sm:$0xff]
  %v7160 = vld [vmem:[%s7131 + $0xe0] sm:$0xff]
  %v7161 = vld [vmem:[%s7131 + $0xe8] sm:$0xff]
  %v7162 = vld [vmem:[%s7131 + $0xf0] sm:$0xff]
  %v7163 = vld [vmem:[%s7131 + $0xf8] sm:$0xff]
  %v7164 = vld [vmem:[%s7131 + $0x100] sm:$0xff]
  %v7165 = vld [vmem:[%s7131 + $0x108] sm:$0xff]
  %v7166 = vld [vmem:[%s7131 + $0x110] sm:$0xff]
  %v7167 = vld [vmem:[%s7131 + $0x118] sm:$0xff]
  %v7168 = vld [vmem:[%s7131 + $0x120] sm:$0xff]
  %v7169 = vld [vmem:[%s7131 + $0x128] sm:$0xff]
  %v7170 = vld [vmem:[%s7131 + $0x130] sm:$0xff]
  %v7171 = vld [vmem:[%s7131 + $0x138] sm:$0xff]
  %v7172 = vld [vmem:[%s7131 + $0x140] sm:$0xff]
  %v7173 = vld [vmem:[%s7131 + $0x148] sm:$0xff]
  %v7174 = vld [vmem:[%s7131 + $0x150] sm:$0xff]
  %v7175 = vld [vmem:[%s7131 + $0x158] sm:$0xff]
  %v7176 = vld [vmem:[%s7131 + $0x160] sm:$0xff]
  %v7177 = vld [vmem:[%s7131 + $0x168] sm:$0xff]
  %v7178 = vld [vmem:[%s7131 + $0x170] sm:$0xff]
  %v7179 = vld [vmem:[%s7131 + $0x178] sm:$0xff]
  %v7180 = vld [vmem:[%s7131 + $0x180] sm:$0xff]
  %v7181 = vld [vmem:[%s7131 + $0x188] sm:$0xff]
  %v7182 = vld [vmem:[%s7131 + $0x190] sm:$0xff]
  %v7183 = vld [vmem:[%s7131 + $0x198] sm:$0xff]
  %v7184 = vld [vmem:[%s7131 + $0x1a0] sm:$0xff]
  %v7185 = vld [vmem:[%s7131 + $0x1a8] sm:$0xff]
  %v7186 = vld [vmem:[%s7131 + $0x1b0] sm:$0xff]
  %v7187 = vld [vmem:[%s7131 + $0x1b8] sm:$0xff]
  %v7188 = vld [vmem:[%s7131 + $0x1c0] sm:$0xff]
  %v7189 = vld [vmem:[%s7131 + $0x1c8] sm:$0xff]
  %v7190 = vld [vmem:[%s7131 + $0x1d0] sm:$0xff]
  %v7191 = vld [vmem:[%s7131 + $0x1d8] sm:$0xff]
  %v7192 = vld [vmem:[%s7131 + $0x1e0] sm:$0xff]
  %v7193 = vld [vmem:[%s7131 + $0x1e8] sm:$0xff]
  %v7194 = vld [vmem:[%s7131 + $0x1f0] sm:$0xff]
  %v7195 = vld [vmem:[%s7131 + $0x1f8] sm:$0xff]
  %v7196 = vld [vmem:[%s7131 + $0x200] sm:$0xff]
  %v7197 = vld [vmem:[%s7131 + $0x208] sm:$0xff]
  %v7198 = vld [vmem:[%s7131 + $0x210] sm:$0xff]
  %v7199 = vld [vmem:[%s7131 + $0x218] sm:$0xff]
  %v7200 = vld [vmem:[%s7131 + $0x220] sm:$0xff]
  %v7201 = vld [vmem:[%s7131 + $0x228] sm:$0xff]
  %v7202 = vld [vmem:[%s7131 + $0x230] sm:$0xff]
  %v7203 = vld [vmem:[%s7131 + $0x238] sm:$0xff]
  %v7204 = vld [vmem:[%s7131 + $0x240] sm:$0xff]
  %v7205 = vld [vmem:[%s7131 + $0x248] sm:$0xff]
  %v7206 = vld [vmem:[%s7131 + $0x250] sm:$0xff]
  %v7207 = vld [vmem:[%s7131 + $0x258] sm:$0xff]
  %v7208 = vld [vmem:[%s7131 + $0x260] sm:$0xff]
  %v7209 = vld [vmem:[%s7131 + $0x268] sm:$0xff]
  %v7210 = vld [vmem:[%s7131 + $0x270] sm:$0xff]
  %v7211 = vld [vmem:[%s7131 + $0x278] sm:$0xff]
  %v7212 = vld [vmem:[%s7131 + $0x280] sm:$0xff]
  %v7213 = vld [vmem:[%s7131 + $0x288] sm:$0xff]
  %v7214 = vld [vmem:[%s7131 + $0x290] sm:$0xff]
  %v7215 = vld [vmem:[%s7131 + $0x298] sm:$0xff]
  %v7216 = vld [vmem:[%s7131 + $0x2a0] sm:$0xff]
  %v7217 = vld [vmem:[%s7131 + $0x2a8] sm:$0xff]
  %v7218 = vld [vmem:[%s7131 + $0x2b0] sm:$0xff]
  %v7219 = vld [vmem:[%s7131 + $0x2b8] sm:$0xff]
  %v7220 = vld [vmem:[%s7131 + $0x2c0] sm:$0xff]
  %v7221 = vld [vmem:[%s7131 + $0x2c8] sm:$0xff]
  %v7222 = vld [vmem:[%s7131 + $0x2d0] sm:$0xff]
  %v7223 = vld [vmem:[%s7131 + $0x2d8] sm:$0xff]
  %v7224 = vld [vmem:[%s7131 + $0x2e0] sm:$0xff]
  %v7225 = vld [vmem:[%s7131 + $0x2e8] sm:$0xff]
  %v7226 = vld [vmem:[%s7131 + $0x2f0] sm:$0xff]
  %v7227 = vld [vmem:[%s7131 + $0x2f8] sm:$0xff]
  %v7228 = vld [vmem:[%s7131 + $0x300] sm:$0xff]
  %v7229 = vld [vmem:[%s7131 + $0x308] sm:$0xff]
  %v7230 = vld [vmem:[%s7131 + $0x310] sm:$0xff]
  %v7231 = vld [vmem:[%s7131 + $0x318] sm:$0xff]
  %v7232 = vld [vmem:[%s7131 + $0x320] sm:$0xff]
  %v7233 = vld [vmem:[%s7131 + $0x328] sm:$0xff]
  %v7234 = vld [vmem:[%s7131 + $0x330] sm:$0xff]
  %v7235 = vld [vmem:[%s7131 + $0x338] sm:$0xff]
  %v7236 = vld [vmem:[%s7131 + $0x340] sm:$0xff]
  %v7237 = vld [vmem:[%s7131 + $0x348] sm:$0xff]
  %v7238 = vld [vmem:[%s7131 + $0x350] sm:$0xff]
  %v7239 = vld [vmem:[%s7131 + $0x358] sm:$0xff]
  %v7240 = vld [vmem:[%s7131 + $0x360] sm:$0xff]
  %v7241 = vld [vmem:[%s7131 + $0x368] sm:$0xff]
  %v7242 = vld [vmem:[%s7131 + $0x370] sm:$0xff]
  %v7243 = vld [vmem:[%s7131 + $0x378] sm:$0xff]
  %v7244 = vld [vmem:[%s7131 + $0x380] sm:$0xff]
  %v7245 = vld [vmem:[%s7131 + $0x388] sm:$0xff]
  %v7246 = vld [vmem:[%s7131 + $0x390] sm:$0xff]
  %v7247 = vld [vmem:[%s7131 + $0x398] sm:$0xff]
  %v7248 = vld [vmem:[%s7131 + $0x3a0] sm:$0xff]
  %v7249 = vld [vmem:[%s7131 + $0x3a8] sm:$0xff]
  %v7250 = vld [vmem:[%s7131 + $0x3b0] sm:$0xff]
  %v7251 = vld [vmem:[%s7131 + $0x3b8] sm:$0xff]
  %v7252 = vld [vmem:[%s7131 + $0x3c0] sm:$0xff]
  %v7253 = vld [vmem:[%s7131 + $0x3c8] sm:$0xff]
  %v7254 = vld [vmem:[%s7131 + $0x3d0] sm:$0xff]
  %v7255 = vld [vmem:[%s7131 + $0x3d8] sm:$0xff]
  %v7256 = vld [vmem:[%s7131 + $0x3e0] sm:$0xff]
  %v7257 = vld [vmem:[%s7131 + $0x3e8] sm:$0xff]
  %v7258 = vld [vmem:[%s7131 + $0x3f0] sm:$0xff]
  %v7259 = vld [vmem:[%s7131 + $0x3f8] sm:$0xff]
  %v7260 = vld [vmem:[%s7131 + $0x400] sm:$0xff]
  %v7261 = vld [vmem:[%s7131 + $0x408] sm:$0xff]
  %v7262 = vld [vmem:[%s7131 + $0x410] sm:$0xff]
  %v7263 = vld [vmem:[%s7131 + $0x418] sm:$0xff]
  %v7264 = vld [vmem:[%s7131 + $0x420] sm:$0xff]
  %v7265 = vld [vmem:[%s7131 + $0x428] sm:$0xff]
  %v7266 = vld [vmem:[%s7131 + $0x430] sm:$0xff]
  %v7267 = vld [vmem:[%s7131 + $0x438] sm:$0xff]
  %v7268 = vld [vmem:[%s7131 + $0x440] sm:$0xff]
  %v7269 = vld [vmem:[%s7131 + $0x448] sm:$0xff]
  %v7270 = vld [vmem:[%s7131 + $0x450] sm:$0xff]
  %v7271 = vld [vmem:[%s7131 + $0x458] sm:$0xff]
  %v7272 = vld [vmem:[%s7131 + $0x460] sm:$0xff]
  %v7273 = vld [vmem:[%s7131 + $0x468] sm:$0xff]
  %v7274 = vld [vmem:[%s7131 + $0x470] sm:$0xff]
  %v7275 = vld [vmem:[%s7131 + $0x478] sm:$0xff]
  %v7276 = vld [vmem:[%s7131 + $0x480] sm:$0xff]
  %v7277 = vld [vmem:[%s7131 + $0x488] sm:$0xff]
  %v7278 = vld [vmem:[%s7131 + $0x490] sm:$0xff]
  %v7279 = vld [vmem:[%s7131 + $0x498] sm:$0xff]
  %v7280 = vld [vmem:[%s7131 + $0x4a0] sm:$0xff]
  %v7281 = vld [vmem:[%s7131 + $0x4a8] sm:$0xff]
  %v7282 = vld [vmem:[%s7131 + $0x4b0] sm:$0xff]
  %v7283 = vld [vmem:[%s7131 + $0x4b8] sm:$0xff]
  %v7284 = vld [vmem:[%s7131 + $0x4c0] sm:$0xff]
  %v7285 = vld [vmem:[%s7131 + $0x4c8] sm:$0xff]
  %v7286 = vld [vmem:[%s7131 + $0x4d0] sm:$0xff]
  %v7287 = vld [vmem:[%s7131 + $0x4d8] sm:$0xff]
  %v7288 = vld [vmem:[%s7131 + $0x4e0] sm:$0xff]
  %v7289 = vld [vmem:[%s7131 + $0x4e8] sm:$0xff]
  %v7290 = vld [vmem:[%s7131 + $0x4f0] sm:$0xff]
  %v7291 = vld [vmem:[%s7131 + $0x4f8] sm:$0xff]
  %v7298 = vunpack.c.l.b16 %v7125
  %v7299 = vunpack.c.h.b16 %v7125
  %v7300 = vunpack.c.l.b16 %v7126
  %v7301 = vunpack.c.l.b16 %v7127
  %v7302 = vunpack.c.h.b16 %v7127
  %v7303 = vunpack.c.l.b16 %v7128
  %v7304 = vunpack.c.l.b16 %v7129
  %v7305 = vunpack.c.h.b16 %v7129
  %v7306 = vunpack.c.l.b16 %v7130
  %v7307 = vpack.c.b16 %v7301, %v7298
  %v7308 = vpack.c.b16 %v7302, %v7299
  %v7309 = vpack.c.b16 %v7303, %v7300
  %v7310 = vpack.c.b16 %v7304, %v7304
  %v7311 = vpack.c.b16 %v7305, %v7305
  %v7312 = vpack.c.b16 %v7306, %v7306
  %v7477 = vunpack.c.l.b16 %v7132
  %v7478 = vunpack.c.h.b16 %v7132
  %v7479 = vunpack.c.l.b16 %v7133
  %v7480 = vunpack.c.h.b16 %v7133
  %v7481 = vunpack.c.l.b16 %v7134
  %v7482 = vunpack.c.h.b16 %v7134
  %v7483 = vunpack.c.l.b16 %v7135
  %v7484 = vunpack.c.h.b16 %v7135
  %v7485 = vunpack.c.l.b16 %v7136
  %v7486 = vunpack.c.h.b16 %v7136
  %v7487 = vunpack.c.l.b16 %v7137
  %v7488 = vunpack.c.h.b16 %v7137
  %v7489 = vunpack.c.l.b16 %v7138
  %v7490 = vunpack.c.h.b16 %v7138
  %v7491 = vunpack.c.l.b16 %v7139
  %v7492 = vunpack.c.h.b16 %v7139
  %v7493 = vunpack.c.l.b16 %v7140
  %v7494 = vunpack.c.h.b16 %v7140
  %v7495 = vunpack.c.l.b16 %v7141
  %v7496 = vunpack.c.h.b16 %v7141
  %v7497 = vunpack.c.l.b16 %v7142
  %v7498 = vunpack.c.h.b16 %v7142
  %v7499 = vunpack.c.l.b16 %v7143
  %v7500 = vunpack.c.h.b16 %v7143
  %v7501 = vunpack.c.l.b16 %v7144
  %v7502 = vunpack.c.h.b16 %v7144
  %v7503 = vunpack.c.l.b16 %v7145
  %v7504 = vunpack.c.h.b16 %v7145
  %v7505 = vunpack.c.l.b16 %v7146
  %v7506 = vunpack.c.h.b16 %v7146
  %v7507 = vunpack.c.l.b16 %v7147
  %v7508 = vunpack.c.h.b16 %v7147
  %v7509 = vunpack.c.l.b16 %v7148
  %v7510 = vunpack.c.h.b16 %v7148
  %v7511 = vunpack.c.l.b16 %v7149
  %v7512 = vunpack.c.h.b16 %v7149
  %v7513 = vunpack.c.l.b16 %v7150
  %v7514 = vunpack.c.h.b16 %v7150
  %v7515 = vunpack.c.l.b16 %v7151
  %v7516 = vunpack.c.h.b16 %v7151
  %v7517 = vunpack.c.l.b16 %v7152
  %v7518 = vunpack.c.h.b16 %v7152
  %v7519 = vunpack.c.l.b16 %v7153
  %v7520 = vunpack.c.h.b16 %v7153
  %v7521 = vunpack.c.l.b16 %v7154
  %v7522 = vunpack.c.h.b16 %v7154
  %v7523 = vunpack.c.l.b16 %v7155
  %v7524 = vunpack.c.h.b16 %v7155
  %v7525 = vunpack.c.l.b16 %v7156
  %v7526 = vunpack.c.h.b16 %v7156
  %v7527 = vunpack.c.l.b16 %v7157
  %v7528 = vunpack.c.h.b16 %v7157
  %v7529 = vunpack.c.l.b16 %v7158
  %v7530 = vunpack.c.h.b16 %v7158
  %v7531 = vunpack.c.l.b16 %v7159
  %v7532 = vunpack.c.h.b16 %v7159
  %v7533 = vunpack.c.l.b16 %v7160
  %v7534 = vunpack.c.h.b16 %v7160
  %v7535 = vunpack.c.l.b16 %v7161
  %v7536 = vunpack.c.h.b16 %v7161
  %v7537 = vunpack.c.l.b16 %v7162
  %v7538 = vunpack.c.h.b16 %v7162
  %v7539 = vunpack.c.l.b16 %v7163
  %v7540 = vunpack.c.h.b16 %v7163
  %v7541 = vunpack.c.l.b16 %v7164
  %v7542 = vunpack.c.h.b16 %v7164
  %v7543 = vunpack.c.l.b16 %v7165
  %v7544 = vunpack.c.h.b16 %v7165
  %v7545 = vunpack.c.l.b16 %v7166
  %v7546 = vunpack.c.h.b16 %v7166
  %v7547 = vunpack.c.l.b16 %v7167
  %v7548 = vunpack.c.h.b16 %v7167
  %v7549 = vunpack.c.l.b16 %v7168
  %v7550 = vunpack.c.h.b16 %v7168
  %v7551 = vunpack.c.l.b16 %v7169
  %v7552 = vunpack.c.h.b16 %v7169
  %v7553 = vunpack.c.l.b16 %v7170
  %v7554 = vunpack.c.h.b16 %v7170
  %v7555 = vunpack.c.l.b16 %v7171
  %v7556 = vunpack.c.h.b16 %v7171
  %v7557 = vunpack.c.l.b16 %v7172
  %v7558 = vunpack.c.h.b16 %v7172
  %v7559 = vunpack.c.l.b16 %v7173
  %v7560 = vunpack.c.h.b16 %v7173
  %v7561 = vunpack.c.l.b16 %v7174
  %v7562 = vunpack.c.h.b16 %v7174
  %v7563 = vunpack.c.l.b16 %v7175
  %v7564 = vunpack.c.h.b16 %v7175
  %v7565 = vunpack.c.l.b16 %v7176
  %v7566 = vunpack.c.h.b16 %v7176
  %v7567 = vunpack.c.l.b16 %v7177
  %v7568 = vunpack.c.h.b16 %v7177
  %v7569 = vunpack.c.l.b16 %v7178
  %v7570 = vunpack.c.h.b16 %v7178
  %v7571 = vunpack.c.l.b16 %v7179
  %v7572 = vunpack.c.h.b16 %v7179
  %v7573 = vunpack.c.l.b16 %v7180
  %v7574 = vunpack.c.h.b16 %v7180
  %v7575 = vunpack.c.l.b16 %v7181
  %v7576 = vunpack.c.h.b16 %v7181
  %v7577 = vunpack.c.l.b16 %v7182
  %v7578 = vunpack.c.h.b16 %v7182
  %v7579 = vunpack.c.l.b16 %v7183
  %v7580 = vunpack.c.h.b16 %v7183
  %v7581 = vunpack.c.l.b16 %v7184
  %v7582 = vunpack.c.h.b16 %v7184
  %v7583 = vunpack.c.l.b16 %v7185
  %v7584 = vunpack.c.h.b16 %v7185
  %v7585 = vunpack.c.l.b16 %v7186
  %v7586 = vunpack.c.h.b16 %v7186
  %v7587 = vunpack.c.l.b16 %v7187
  %v7588 = vunpack.c.h.b16 %v7187
  %v7589 = vunpack.c.l.b16 %v7188
  %v7590 = vunpack.c.h.b16 %v7188
  %v7591 = vunpack.c.l.b16 %v7189
  %v7592 = vunpack.c.h.b16 %v7189
  %v7593 = vunpack.c.l.b16 %v7190
  %v7594 = vunpack.c.h.b16 %v7190
  %v7595 = vunpack.c.l.b16 %v7191
  %v7596 = vunpack.c.h.b16 %v7191
  %v7597 = vunpack.c.l.b16 %v7192
  %v7598 = vunpack.c.h.b16 %v7192
  %v7599 = vunpack.c.l.b16 %v7193
  %v7600 = vunpack.c.h.b16 %v7193
  %v7601 = vunpack.c.l.b16 %v7194
  %v7602 = vunpack.c.h.b16 %v7194
  %v7603 = vunpack.c.l.b16 %v7195
  %v7604 = vunpack.c.h.b16 %v7195
  %v7605 = vunpack.c.l.b16 %v7196
  %v7606 = vunpack.c.h.b16 %v7196
  %v7607 = vunpack.c.l.b16 %v7197
  %v7608 = vunpack.c.h.b16 %v7197
  %v7609 = vunpack.c.l.b16 %v7198
  %v7610 = vunpack.c.h.b16 %v7198
  %v7611 = vunpack.c.l.b16 %v7199
  %v7612 = vunpack.c.h.b16 %v7199
  %v7613 = vunpack.c.l.b16 %v7200
  %v7614 = vunpack.c.h.b16 %v7200
  %v7615 = vunpack.c.l.b16 %v7201
  %v7616 = vunpack.c.h.b16 %v7201
  %v7617 = vunpack.c.l.b16 %v7202
  %v7618 = vunpack.c.h.b16 %v7202
  %v7619 = vunpack.c.l.b16 %v7203
  %v7620 = vunpack.c.h.b16 %v7203
  %v7621 = vunpack.c.l.b16 %v7204
  %v7622 = vunpack.c.h.b16 %v7204
  %v7623 = vunpack.c.l.b16 %v7205
  %v7624 = vunpack.c.h.b16 %v7205
  %v7625 = vunpack.c.l.b16 %v7206
  %v7626 = vunpack.c.h.b16 %v7206
  %v7627 = vunpack.c.l.b16 %v7207
  %v7628 = vunpack.c.h.b16 %v7207
  %v7629 = vunpack.c.l.b16 %v7208
  %v7630 = vunpack.c.h.b16 %v7208
  %v7631 = vunpack.c.l.b16 %v7209
  %v7632 = vunpack.c.h.b16 %v7209
  %v7633 = vunpack.c.l.b16 %v7210
  %v7634 = vunpack.c.h.b16 %v7210
  %v7635 = vunpack.c.l.b16 %v7211
  %v7636 = vunpack.c.h.b16 %v7211
  %v7637 = vunpack.c.l.b16 %v7212
  %v7638 = vunpack.c.h.b16 %v7212
  %v7639 = vunpack.c.l.b16 %v7213
  %v7640 = vunpack.c.h.b16 %v7213
  %v7641 = vunpack.c.l.b16 %v7214
  %v7642 = vunpack.c.h.b16 %v7214
  %v7643 = vunpack.c.l.b16 %v7215
  %v7644 = vunpack.c.h.b16 %v7215
  %v7645 = vunpack.c.l.b16 %v7216
  %v7646 = vunpack.c.h.b16 %v7216
  %v7647 = vunpack.c.l.b16 %v7217
  %v7648 = vunpack.c.h.b16 %v7217
  %v7649 = vunpack.c.l.b16 %v7218
  %v7650 = vunpack.c.h.b16 %v7218
  %v7651 = vunpack.c.l.b16 %v7219
  %v7652 = vunpack.c.h.b16 %v7219
  %v7653 = vunpack.c.l.b16 %v7220
  %v7654 = vunpack.c.h.b16 %v7220
  %v7655 = vunpack.c.l.b16 %v7221
  %v7656 = vunpack.c.h.b16 %v7221
  %v7657 = vunpack.c.l.b16 %v7222
  %v7658 = vunpack.c.h.b16 %v7222
  %v7659 = vunpack.c.l.b16 %v7223
  %v7660 = vunpack.c.h.b16 %v7223
  %v7661 = vunpack.c.l.b16 %v7224
  %v7662 = vunpack.c.h.b16 %v7224
  %v7663 = vunpack.c.l.b16 %v7225
  %v7664 = vunpack.c.h.b16 %v7225
  %v7665 = vunpack.c.l.b16 %v7226
  %v7666 = vunpack.c.h.b16 %v7226
  %v7667 = vunpack.c.l.b16 %v7227
  %v7668 = vunpack.c.h.b16 %v7227
  %v7669 = vunpack.c.l.b16 %v7228
  %v7670 = vunpack.c.h.b16 %v7228
  %v7671 = vunpack.c.l.b16 %v7229
  %v7672 = vunpack.c.h.b16 %v7229
  %v7673 = vunpack.c.l.b16 %v7230
  %v7674 = vunpack.c.h.b16 %v7230
  %v7675 = vunpack.c.l.b16 %v7231
  %v7676 = vunpack.c.h.b16 %v7231
  %v7677 = vunpack.c.l.b16 %v7232
  %v7678 = vunpack.c.h.b16 %v7232
  %v7679 = vunpack.c.l.b16 %v7233
  %v7680 = vunpack.c.h.b16 %v7233
  %v7681 = vunpack.c.l.b16 %v7234
  %v7682 = vunpack.c.h.b16 %v7234
  %v7683 = vunpack.c.l.b16 %v7235
  %v7684 = vunpack.c.h.b16 %v7235
  %v7685 = vunpack.c.l.b16 %v7236
  %v7686 = vunpack.c.h.b16 %v7236
  %v7687 = vunpack.c.l.b16 %v7237
  %v7688 = vunpack.c.h.b16 %v7237
  %v7689 = vunpack.c.l.b16 %v7238
  %v7690 = vunpack.c.h.b16 %v7238
  %v7691 = vunpack.c.l.b16 %v7239
  %v7692 = vunpack.c.h.b16 %v7239
  %v7693 = vunpack.c.l.b16 %v7240
  %v7694 = vunpack.c.h.b16 %v7240
  %v7695 = vunpack.c.l.b16 %v7241
  %v7696 = vunpack.c.h.b16 %v7241
  %v7697 = vunpack.c.l.b16 %v7242
  %v7698 = vunpack.c.h.b16 %v7242
  %v7699 = vunpack.c.l.b16 %v7243
  %v7700 = vunpack.c.h.b16 %v7243
  %v7701 = vunpack.c.l.b16 %v7244
  %v7702 = vunpack.c.h.b16 %v7244
  %v7703 = vunpack.c.l.b16 %v7245
  %v7704 = vunpack.c.h.b16 %v7245
  %v7705 = vunpack.c.l.b16 %v7246
  %v7706 = vunpack.c.h.b16 %v7246
  %v7707 = vunpack.c.l.b16 %v7247
  %v7708 = vunpack.c.h.b16 %v7247
  %v7709 = vunpack.c.l.b16 %v7248
  %v7710 = vunpack.c.h.b16 %v7248
  %v7711 = vunpack.c.l.b16 %v7249
  %v7712 = vunpack.c.h.b16 %v7249
  %v7713 = vunpack.c.l.b16 %v7250
  %v7714 = vunpack.c.h.b16 %v7250
  %v7715 = vunpack.c.l.b16 %v7251
  %v7716 = vunpack.c.h.b16 %v7251
  %v7717 = vunpack.c.l.b16 %v7252
  %v7718 = vunpack.c.h.b16 %v7252
  %v7719 = vunpack.c.l.b16 %v7253
  %v7720 = vunpack.c.h.b16 %v7253
  %v7721 = vunpack.c.l.b16 %v7254
  %v7722 = vunpack.c.h.b16 %v7254
  %v7723 = vunpack.c.l.b16 %v7255
  %v7724 = vunpack.c.h.b16 %v7255
  %v7725 = vunpack.c.l.b16 %v7256
  %v7726 = vunpack.c.h.b16 %v7256
  %v7727 = vunpack.c.l.b16 %v7257
  %v7728 = vunpack.c.h.b16 %v7257
  %v7729 = vunpack.c.l.b16 %v7258
  %v7730 = vunpack.c.h.b16 %v7258
  %v7731 = vunpack.c.l.b16 %v7259
  %v7732 = vunpack.c.h.b16 %v7259
  %v7733 = vunpack.c.l.b16 %v7260
  %v7734 = vunpack.c.h.b16 %v7260
  %v7735 = vunpack.c.l.b16 %v7261
  %v7736 = vunpack.c.h.b16 %v7261
  %v7737 = vunpack.c.l.b16 %v7262
  %v7738 = vunpack.c.h.b16 %v7262
  %v7739 = vunpack.c.l.b16 %v7263
  %v7740 = vunpack.c.h.b16 %v7263
  %v7741 = vunpack.c.l.b16 %v7264
  %v7742 = vunpack.c.h.b16 %v7264
  %v7743 = vunpack.c.l.b16 %v7265
  %v7744 = vunpack.c.h.b16 %v7265
  %v7745 = vunpack.c.l.b16 %v7266
  %v7746 = vunpack.c.h.b16 %v7266
  %v7747 = vunpack.c.l.b16 %v7267
  %v7748 = vunpack.c.h.b16 %v7267
  %v7749 = vunpack.c.l.b16 %v7268
  %v7750 = vunpack.c.h.b16 %v7268
  %v7751 = vunpack.c.l.b16 %v7269
  %v7752 = vunpack.c.h.b16 %v7269
  %v7753 = vunpack.c.l.b16 %v7270
  %v7754 = vunpack.c.h.b16 %v7270
  %v7755 = vunpack.c.l.b16 %v7271
  %v7756 = vunpack.c.h.b16 %v7271
  %v7757 = vunpack.c.l.b16 %v7272
  %v7758 = vunpack.c.h.b16 %v7272
  %v7759 = vunpack.c.l.b16 %v7273
  %v7760 = vunpack.c.h.b16 %v7273
  %v7761 = vunpack.c.l.b16 %v7274
  %v7762 = vunpack.c.h.b16 %v7274
  %v7763 = vunpack.c.l.b16 %v7275
  %v7764 = vunpack.c.h.b16 %v7275
  %v7765 = vunpack.c.l.b16 %v7276
  %v7766 = vunpack.c.h.b16 %v7276
  %v7767 = vunpack.c.l.b16 %v7277
  %v7768 = vunpack.c.h.b16 %v7277
  %v7769 = vunpack.c.l.b16 %v7278
  %v7770 = vunpack.c.h.b16 %v7278
  %v7771 = vunpack.c.l.b16 %v7279
  %v7772 = vunpack.c.h.b16 %v7279
  %v7773 = vunpack.c.l.b16 %v7280
  %v7774 = vunpack.c.h.b16 %v7280
  %v7775 = vunpack.c.l.b16 %v7281
  %v7776 = vunpack.c.h.b16 %v7281
  %v7777 = vunpack.c.l.b16 %v7282
  %v7778 = vunpack.c.h.b16 %v7282
  %v7779 = vunpack.c.l.b16 %v7283
  %v7780 = vunpack.c.h.b16 %v7283
  %v7781 = vunpack.c.l.b16 %v7284
  %v7782 = vunpack.c.h.b16 %v7284
  %v7783 = vunpack.c.l.b16 %v7285
  %v7784 = vunpack.c.h.b16 %v7285
  %v7785 = vunpack.c.l.b16 %v7286
  %v7786 = vunpack.c.h.b16 %v7286
  %v7787 = vunpack.c.l.b16 %v7287
  %v7788 = vunpack.c.h.b16 %v7287
  %v7789 = vunpack.c.l.b16 %v7288
  %v7790 = vunpack.c.h.b16 %v7288
  %v7791 = vunpack.c.l.b16 %v7289
  %v7792 = vunpack.c.h.b16 %v7289
  %v7793 = vunpack.c.l.b16 %v7290
  %v7794 = vunpack.c.h.b16 %v7290
  %v7795 = vunpack.c.l.b16 %v7291
  %v7796 = vunpack.c.h.b16 %v7291
  %v7797 = vpack.c.b16 %v7485, %v7477
  %v7798 = vpack.c.b16 %v7486, %v7478
  %v7799 = vpack.c.b16 %v7487, %v7479
  %v7800 = vpack.c.b16 %v7488, %v7480
  %v7801 = vpack.c.b16 %v7489, %v7481
  %v7802 = vpack.c.b16 %v7490, %v7482
  %v7803 = vpack.c.b16 %v7491, %v7483
  %v7804 = vpack.c.b16 %v7492, %v7484
  %v7805 = vpack.c.b16 %v7501, %v7493
  %v7806 = vpack.c.b16 %v7502, %v7494
  %v7807 = vpack.c.b16 %v7503, %v7495
  %v7808 = vpack.c.b16 %v7504, %v7496
  %v7809 = vpack.c.b16 %v7505, %v7497
  %v7810 = vpack.c.b16 %v7506, %v7498
  %v7811 = vpack.c.b16 %v7507, %v7499
  %v7812 = vpack.c.b16 %v7508, %v7500
  %v7813 = vpack.c.b16 %v7517, %v7509
  %v7814 = vpack.c.b16 %v7518, %v7510
  %v7815 = vpack.c.b16 %v7519, %v7511
  %v7816 = vpack.c.b16 %v7520, %v7512
  %v7817 = vpack.c.b16 %v7521, %v7513
  %v7818 = vpack.c.b16 %v7522, %v7514
  %v7819 = vpack.c.b16 %v7523, %v7515
  %v7820 = vpack.c.b16 %v7524, %v7516
  %v7821 = vpack.c.b16 %v7533, %v7525
  %v7822 = vpack.c.b16 %v7534, %v7526
  %v7823 = vpack.c.b16 %v7535, %v7527
  %v7824 = vpack.c.b16 %v7536, %v7528
  %v7825 = vpack.c.b16 %v7537, %v7529
  %v7826 = vpack.c.b16 %v7538, %v7530
  %v7827 = vpack.c.b16 %v7539, %v7531
  %v7828 = vpack.c.b16 %v7540, %v7532
  %v7829 = vpack.c.b16 %v7549, %v7541
  %v7830 = vpack.c.b16 %v7550, %v7542
  %v7831 = vpack.c.b16 %v7551, %v7543
  %v7832 = vpack.c.b16 %v7552, %v7544
  %v7833 = vpack.c.b16 %v7553, %v7545
  %v7834 = vpack.c.b16 %v7554, %v7546
  %v7835 = vpack.c.b16 %v7555, %v7547
  %v7836 = vpack.c.b16 %v7556, %v7548
  %v7837 = vpack.c.b16 %v7565, %v7557
  %v7838 = vpack.c.b16 %v7566, %v7558
  %v7839 = vpack.c.b16 %v7567, %v7559
  %v7840 = vpack.c.b16 %v7568, %v7560
  %v7841 = vpack.c.b16 %v7569, %v7561
  %v7842 = vpack.c.b16 %v7570, %v7562
  %v7843 = vpack.c.b16 %v7571, %v7563
  %v7844 = vpack.c.b16 %v7572, %v7564
  %v7845 = vpack.c.b16 %v7581, %v7573
  %v7846 = vpack.c.b16 %v7582, %v7574
  %v7847 = vpack.c.b16 %v7583, %v7575
  %v7848 = vpack.c.b16 %v7584, %v7576
  %v7849 = vpack.c.b16 %v7585, %v7577
  %v7850 = vpack.c.b16 %v7586, %v7578
  %v7851 = vpack.c.b16 %v7587, %v7579
  %v7852 = vpack.c.b16 %v7588, %v7580
  %v7853 = vpack.c.b16 %v7597, %v7589
  %v7854 = vpack.c.b16 %v7598, %v7590
  %v7855 = vpack.c.b16 %v7599, %v7591
  %v7856 = vpack.c.b16 %v7600, %v7592
  %v7857 = vpack.c.b16 %v7601, %v7593
  %v7858 = vpack.c.b16 %v7602, %v7594
  %v7859 = vpack.c.b16 %v7603, %v7595
  %v7860 = vpack.c.b16 %v7604, %v7596
  %v7861 = vpack.c.b16 %v7613, %v7605
  %v7862 = vpack.c.b16 %v7614, %v7606
  %v7863 = vpack.c.b16 %v7615, %v7607
  %v7864 = vpack.c.b16 %v7616, %v7608
  %v7865 = vpack.c.b16 %v7617, %v7609
  %v7866 = vpack.c.b16 %v7618, %v7610
  %v7867 = vpack.c.b16 %v7619, %v7611
  %v7868 = vpack.c.b16 %v7620, %v7612
  %v7869 = vpack.c.b16 %v7629, %v7621
  %v7870 = vpack.c.b16 %v7630, %v7622
  %v7871 = vpack.c.b16 %v7631, %v7623
  %v7872 = vpack.c.b16 %v7632, %v7624
  %v7873 = vpack.c.b16 %v7633, %v7625
  %v7874 = vpack.c.b16 %v7634, %v7626
  %v7875 = vpack.c.b16 %v7635, %v7627
  %v7876 = vpack.c.b16 %v7636, %v7628
  %v7877 = vpack.c.b16 %v7645, %v7637
  %v7878 = vpack.c.b16 %v7646, %v7638
  %v7879 = vpack.c.b16 %v7647, %v7639
  %v7880 = vpack.c.b16 %v7648, %v7640
  %v7881 = vpack.c.b16 %v7649, %v7641
  %v7882 = vpack.c.b16 %v7650, %v7642
  %v7883 = vpack.c.b16 %v7651, %v7643
  %v7884 = vpack.c.b16 %v7652, %v7644
  %v7885 = vpack.c.b16 %v7661, %v7653
  %v7886 = vpack.c.b16 %v7662, %v7654
  %v7887 = vpack.c.b16 %v7663, %v7655
  %v7888 = vpack.c.b16 %v7664, %v7656
  %v7889 = vpack.c.b16 %v7665, %v7657
  %v7890 = vpack.c.b16 %v7666, %v7658
  %v7891 = vpack.c.b16 %v7667, %v7659
  %v7892 = vpack.c.b16 %v7668, %v7660
  %v7893 = vpack.c.b16 %v7677, %v7669
  %v7894 = vpack.c.b16 %v7678, %v7670
  %v7895 = vpack.c.b16 %v7679, %v7671
  %v7896 = vpack.c.b16 %v7680, %v7672
  %v7897 = vpack.c.b16 %v7681, %v7673
  %v7898 = vpack.c.b16 %v7682, %v7674
  %v7899 = vpack.c.b16 %v7683, %v7675
  %v7900 = vpack.c.b16 %v7684, %v7676
  %v7901 = vpack.c.b16 %v7693, %v7685
  %v7902 = vpack.c.b16 %v7694, %v7686
  %v7903 = vpack.c.b16 %v7695, %v7687
  %v7904 = vpack.c.b16 %v7696, %v7688
  %v7905 = vpack.c.b16 %v7697, %v7689
  %v7906 = vpack.c.b16 %v7698, %v7690
  %v7907 = vpack.c.b16 %v7699, %v7691
  %v7908 = vpack.c.b16 %v7700, %v7692
  %v7909 = vpack.c.b16 %v7709, %v7701
  %v7910 = vpack.c.b16 %v7710, %v7702
  %v7911 = vpack.c.b16 %v7711, %v7703
  %v7912 = vpack.c.b16 %v7712, %v7704
  %v7913 = vpack.c.b16 %v7713, %v7705
  %v7914 = vpack.c.b16 %v7714, %v7706
  %v7915 = vpack.c.b16 %v7715, %v7707
  %v7916 = vpack.c.b16 %v7716, %v7708
  %v7917 = vpack.c.b16 %v7725, %v7717
  %v7918 = vpack.c.b16 %v7726, %v7718
  %v7919 = vpack.c.b16 %v7727, %v7719
  %v7920 = vpack.c.b16 %v7728, %v7720
  %v7921 = vpack.c.b16 %v7729, %v7721
  %v7922 = vpack.c.b16 %v7730, %v7722
  %v7923 = vpack.c.b16 %v7731, %v7723
  %v7924 = vpack.c.b16 %v7732, %v7724
  %v7925 = vpack.c.b16 %v7741, %v7733
  %v7926 = vpack.c.b16 %v7742, %v7734
  %v7927 = vpack.c.b16 %v7743, %v7735
  %v7928 = vpack.c.b16 %v7744, %v7736
  %v7929 = vpack.c.b16 %v7745, %v7737
  %v7930 = vpack.c.b16 %v7746, %v7738
  %v7931 = vpack.c.b16 %v7747, %v7739
  %v7932 = vpack.c.b16 %v7748, %v7740
  %v7933 = vpack.c.b16 %v7757, %v7749
  %v7934 = vpack.c.b16 %v7758, %v7750
  %v7935 = vpack.c.b16 %v7759, %v7751
  %v7936 = vpack.c.b16 %v7760, %v7752
  %v7937 = vpack.c.b16 %v7761, %v7753
  %v7938 = vpack.c.b16 %v7762, %v7754
  %v7939 = vpack.c.b16 %v7763, %v7755
  %v7940 = vpack.c.b16 %v7764, %v7756
  %v7941 = vpack.c.b16 %v7773, %v7765
  %v7942 = vpack.c.b16 %v7774, %v7766
  %v7943 = vpack.c.b16 %v7775, %v7767
  %v7944 = vpack.c.b16 %v7776, %v7768
  %v7945 = vpack.c.b16 %v7777, %v7769
  %v7946 = vpack.c.b16 %v7778, %v7770
  %v7947 = vpack.c.b16 %v7779, %v7771
  %v7948 = vpack.c.b16 %v7780, %v7772
  %v7949 = vpack.c.b16 %v7789, %v7781
  %v7950 = vpack.c.b16 %v7790, %v7782
  %v7951 = vpack.c.b16 %v7791, %v7783
  %v7952 = vpack.c.b16 %v7792, %v7784
  %v7953 = vpack.c.b16 %v7793, %v7785
  %v7954 = vpack.c.b16 %v7794, %v7786
  %v7955 = vpack.c.b16 %v7795, %v7787
  %v7956 = vpack.c.b16 %v7796, %v7788
  %v8118 = vsel %vm1177, %v7309, 0
  %v8121 = vsel %vm1177, %v7312, 0
  %8123 = vmatprep.subr.bf16.mxu0 %v7798
  %8124 = vmatpush1.bf16.msra.mxu0 %v7797
  %8125 = vmatprep.subr.bf16.mxu0 %v7806
  %8126 = vmatpush1.bf16.msra.mxu0 %v7805
  %8127 = vmatprep.subr.bf16.mxu0 %v7814
  %8128 = vmatpush1.bf16.msra.mxu0 %v7813
  %8129 = vmatprep.subr.bf16.mxu0 %v7822
  %8130 = vmatpush1.bf16.msra.mxu0 %v7821
  %8131 = vmatprep.subr.bf16.mxu0 %v7830
  %8132 = vmatpush1.bf16.msra.mxu0 %v7829
  %8133 = vmatprep.subr.bf16.mxu0 %v7838
  %8134 = vmatpush1.bf16.msra.mxu0 %v7837
  %8135 = vmatprep.subr.bf16.mxu0 %v7846
  %8136 = vmatpush1.bf16.msra.mxu0 %v7845
  %8137 = vmatprep.subr.bf16.mxu0 %v7854
  %8138 = vmatpush1.bf16.msra.mxu0 %v7853
  %8139 = vmatprep.subr.bf16.mxu0 %v7862
  %8140 = vmatpush1.bf16.msra.mxu0 %v7861
  %8141 = vmatprep.subr.bf16.mxu0 %v7870
  %8142 = vmatpush1.bf16.msra.mxu0 %v7869
  %8143 = vmatprep.subr.bf16.mxu0 %v7878
  %8144 = vmatpush1.bf16.msra.mxu0 %v7877
  %8145 = vmatprep.subr.bf16.mxu0 %v7886
  %8146 = vmatpush1.bf16.msra.mxu0 %v7885
  %8147 = vmatprep.subr.bf16.mxu0 %v7894
  %8148 = vmatpush1.bf16.msra.mxu0 %v7893
  %8149 = vmatprep.subr.bf16.mxu0 %v7902
  %8150 = vmatpush1.bf16.msra.mxu0 %v7901
  %8151 = vmatprep.subr.bf16.mxu0 %v7910
  %8152 = vmatpush1.bf16.msra.mxu0 %v7909
  %8153 = vmatprep.subr.bf16.mxu0 %v7918
  %8154 = vmatpush1.bf16.msra.mxu0 %v7917
  %8155 = vmatprep.mubr.bf16.mxu0 %v7308
  %8156 = vmatmul.mubr.bf16.gmra.mrb[0].mxu0 %v7307
  %v8157 = vpop.f32.mrb[0].mxu0
  %v8158 = vadd.f32 0.0, %v8157
  %v8159 = vpop.f32.mrb[0].mxu0
  %v8160 = vadd.f32 0.0, %v8159
  %v8161 = vpop.f32.mrb[0].mxu0
  %v8162 = vadd.f32 0.0, %v8161
  %v8163 = vpop.f32.mrb[0].mxu0
  %v8164 = vadd.f32 0.0, %v8163
  %8165 = vmatprep.mubr.bf16.mxu0 %v7311
  %8166 = vmatmul.mubr.bf16.gmra.mrb[0].mxu0 %v7310
  %v8167 = vpop.f32.mrb[0].mxu0
  %v8168 = vadd.f32 0.0, %v8167
  %v8169 = vpop.f32.mrb[0].mxu0
  %v8170 = vadd.f32 0.0, %v8169
  %v8171 = vpop.f32.mrb[0].mxu0
  %v8172 = vpop.f32.mrb[0].mxu0
  %8173 = vdwg.mxu0
  %8174 = vmatprep.subr.bf16.mxu0 %v7926
  %8175 = vmatpush1.bf16.msra.mxu0 %v7925
  %8176 = vmatprep.subr.bf16.mxu0 %v7934
  %8177 = vmatpush1.bf16.msra.mxu0 %v7933
  %8178 = vmatprep.subr.bf16.mxu0 %v7942
  %8179 = vmatpush1.bf16.msra.mxu0 %v7941
  %8180 = vmatprep.subr.bf16.mxu0 %v7950
  %8181 = vmatpush1.bf16.msra.mxu0 %v7949
  %8182 = vmatprep.subr.bf16.mxu0 0
  %8183 = vmatpush1.bf16.msra.mxu0 0
  %8184 = vmatprep.subr.bf16.mxu0 0
  %8185 = vmatpush1.bf16.msra.mxu0 0
  %8186 = vmatprep.subr.bf16.mxu0 0
  %8187 = vmatpush1.bf16.msra.mxu0 0
  %8188 = vmatprep.subr.bf16.mxu0 0
  %8189 = vmatpush1.bf16.msra.mxu0 0
  %8190 = vmatprep.subr.bf16.mxu0 0
  %8191 = vmatpush1.bf16.msra.mxu0 0
  %8192 = vmatprep.subr.bf16.mxu0 0
  %8193 = vmatpush1.bf16.msra.mxu0 0
  %8194 = vmatprep.subr.bf16.mxu0 0
  %8195 = vmatpush1.bf16.msra.mxu0 0
  %8196 = vmatprep.subr.bf16.mxu0 0
  %8197 = vmatpush1.bf16.msra.mxu0 0
  %8198 = vmatprep.subr.bf16.mxu0 0
  %8199 = vmatpush1.bf16.msra.mxu0 0
  %8200 = vmatprep.subr.bf16.mxu0 0
  %8201 = vmatpush1.bf16.msra.mxu0 0
  %8202 = vmatprep.subr.bf16.mxu0 0
  %8203 = vmatpush1.bf16.msra.mxu0 0
  %8204 = vmatprep.subr.bf16.mxu0 0
  %8205 = vmatpush1.bf16.msra.mxu0 0
  %8206 = vmatprep.mubr.bf16.mxu0 0
  %8207 = vmatmul.mubr.bf16.gmra.mrb[0].mxu0 %v8118
  %v8208 = vpop.f32.mrb[0].mxu0
  %v8209 = vadd.f32 %v8158, %v8208
  %v8210 = vpop.f32.mrb[0].mxu0
  %v8211 = vadd.f32 %v8160, %v8210
  %v8212 = vpop.f32.mrb[0].mxu0
  %v8213 = vadd.f32 %v8162, %v8212
  %v8214 = vpop.f32.mrb[0].mxu0
  %v8215 = vadd.f32 %v8164, %v8214
  %8216 = vmatprep.mubr.bf16.mxu0 0
  %8217 = vmatmul.mubr.bf16.gmra.mrb[0].mxu0 %v8121
  %v8218 = vpop.f32.mrb[0].mxu0
  %v8219 = vadd.f32 %v8168, %v8218
  %v8220 = vpop.f32.mrb[0].mxu0
  %v8221 = vadd.f32 %v8170, %v8220
  %v8222 = vpop.f32.mrb[0].mxu0
  %v8223 = vpop.f32.mrb[0].mxu0
  %8224 = vdwg.mxu0
  %8225 = vmatprep.subr.bf16.mxu0 %v7800
  %8226 = vmatpush1.bf16.msra.mxu0 %v7799
  %8227 = vmatprep.subr.bf16.mxu0 %v7808
  %8228 = vmatpush1.bf16.msra.mxu0 %v7807
  %8229 = vmatprep.subr.bf16.mxu0 %v7816
  %8230 = vmatpush1.bf16.msra.mxu0 %v7815
  %8231 = vmatprep.subr.bf16.mxu0 %v7824
  %8232 = vmatpush1.bf16.msra.mxu0 %v7823
  %8233 = vmatprep.subr.bf16.mxu0 %v7832
  %8234 = vmatpush1.bf16.msra.mxu0 %v7831
  %8235 = vmatprep.subr.bf16.mxu0 %v7840
  %8236 = vmatpush1.bf16.msra.mxu0 %v7839
  %8237 = vmatprep.subr.bf16.mxu0 %v7848
  %8238 = vmatpush1.bf16.msra.mxu0 %v7847
  %8239 = vmatprep.subr.bf16.mxu0 %v7856
  %8240 = vmatpush1.bf16.msra.mxu0 %v7855
  %8241 = vmatprep.subr.bf16.mxu0 %v7864
  %8242 = vmatpush1.bf16.msra.mxu0 %v7863
  %8243 = vmatprep.subr.bf16.mxu0 %v7872
  %8244 = vmatpush1.bf16.msra.mxu0 %v7871
  %8245 = vmatprep.subr.bf16.mxu0 %v7880
  %8246 = vmatpush1.bf16.msra.mxu0 %v7879
  %8247 = vmatprep.subr.bf16.mxu0 %v7888
  %8248 = vmatpush1.bf16.msra.mxu0 %v7887
  %8249 = vmatprep.subr.bf16.mxu0 %v7896
  %8250 = vmatpush1.bf16.msra.mxu0 %v7895
  %8251 = vmatprep.subr.bf16.mxu0 %v7904
  %8252 = vmatpush1.bf16.msra.mxu0 %v7903
  %8253 = vmatprep.subr.bf16.mxu0 %v7912
  %8254 = vmatpush1.bf16.msra.mxu0 %v7911
  %8255 = vmatprep.subr.bf16.mxu0 %v7920
  %8256 = vmatpush1.bf16.msra.mxu0 %v7919
  %8257 = vmatprep.mubr.bf16.mxu0 %v7308
  %8258 = vmatmul.mubr.bf16.gmra.mrb[0].mxu0 %v7307
  %v8259 = vpop.f32.mrb[0].mxu0
  %v8260 = vadd.f32 0.0, %v8259
  %v8261 = vpop.f32.mrb[0].mxu0
  %v8262 = vadd.f32 0.0, %v8261
  %v8263 = vpop.f32.mrb[0].mxu0
  %v8264 = vadd.f32 0.0, %v8263
  %v8265 = vpop.f32.mrb[0].mxu0
  %v8266 = vadd.f32 0.0, %v8265
  %8267 = vmatprep.mubr.bf16.mxu0 %v7311
  %8268 = vmatmul.mubr.bf16.gmra.mrb[0].mxu0 %v7310
  %v8269 = vpop.f32.mrb[0].mxu0
  %v8270 = vadd.f32 0.0, %v8269
  %v8271 = vpop.f32.mrb[0].mxu0
  %v8272 = vadd.f32 0.0, %v8271
  %v8273 = vpop.f32.mrb[0].mxu0
  %v8274 = vpop.f32.mrb[0].mxu0
  %8275 = vdwg.mxu0
  %8276 = vmatprep.subr.bf16.mxu0 %v7928
  %8277 = vmatpush1.bf16.msra.mxu0 %v7927
  %8278 = vmatprep.subr.bf16.mxu0 %v7936
  %8279 = vmatpush1.bf16.msra.mxu0 %v7935
  %8280 = vmatprep.subr.bf16.mxu0 %v7944
  %8281 = vmatpush1.bf16.msra.mxu0 %v7943
  %8282 = vmatprep.subr.bf16.mxu0 %v7952
  %8283 = vmatpush1.bf16.msra.mxu0 %v7951
  %8284 = vmatprep.subr.bf16.mxu0 0
  %8285 = vmatpush1.bf16.msra.mxu0 0
  %8286 = vmatprep.subr.bf16.mxu0 0
  %8287 = vmatpush1.bf16.msra.mxu0 0
  %8288 = vmatprep.subr.bf16.mxu0 0
  %8289 = vmatpush1.bf16.msra.mxu0 0
  %8290 = vmatprep.subr.bf16.mxu0 0
  %8291 = vmatpush1.bf16.msra.mxu0 0
  %8292 = vmatprep.subr.bf16.mxu0 0
  %8293 = vmatpush1.bf16.msra.mxu0 0
  %8294 = vmatprep.subr.bf16.mxu0 0
  %8295 = vmatpush1.bf16.msra.mxu0 0
  %8296 = vmatprep.subr.bf16.mxu0 0
  %8297 = vmatpush1.bf16.msra.mxu0 0
  %8298 = vmatprep.subr.bf16.mxu0 0
  %8299 = vmatpush1.bf16.msra.mxu0 0
  %8300 = vmatprep.subr.bf16.mxu0 0
  %8301 = vmatpush1.bf16.msra.mxu0 0
  %8302 = vmatprep.subr.bf16.mxu0 0
  %8303 = vmatpush1.bf16.msra.mxu0 0
  %8304 = vmatprep.subr.bf16.mxu0 0
  %8305 = vmatpush1.bf16.msra.mxu0 0
  %8306 = vmatprep.subr.bf16.mxu0 0
  %8307 = vmatpush1.bf16.msra.mxu0 0
  %8308 = vmatprep.mubr.bf16.mxu0 0
  %8309 = vmatmul.mubr.bf16.gmra.mrb[0].mxu0 %v8118
  %v8310 = vpop.f32.mrb[0].mxu0
  %v8311 = vadd.f32 %v8260, %v8310
  %v8312 = vpop.f32.mrb[0].mxu0
  %v8313 = vadd.f32 %v8262, %v8312
  %v8314 = vpop.f32.mrb[0].mxu0
  %v8315 = vadd.f32 %v8264, %v8314
  %v8316 = vpop.f32.mrb[0].mxu0
  %v8317 = vadd.f32 %v8266, %v8316
  %8318 = vmatprep.mubr.bf16.mxu0 0
  %8319 = vmatmul.mubr.bf16.gmra.mrb[0].mxu0 %v8121
  %v8320 = vpop.f32.mrb[0].mxu0
  %v8321 = vadd.f32 %v8270, %v8320
  %v8322 = vpop.f32.mrb[0].mxu0
  %v8323 = vadd.f32 %v8272, %v8322
  %v8324 = vpop.f32.mrb[0].mxu0
  %v8325 = vpop.f32.mrb[0].mxu0
  %8326 = vdwg.mxu0
  %8327 = vmatprep.subr.bf16.mxu0 %v7802
  %8328 = vmatpush1.bf16.msra.mxu0 %v7801
  %8329 = vmatprep.subr.bf16.mxu0 %v7810
  %8330 = vmatpush1.bf16.msra.mxu0 %v7809
  %8331 = vmatprep.subr.bf16.mxu0 %v7818
  %8332 = vmatpush1.bf16.msra.mxu0 %v7817
  %8333 = vmatprep.subr.bf16.mxu0 %v7826
  %8334 = vmatpush1.bf16.msra.mxu0 %v7825
  %8335 = vmatprep.subr.bf16.mxu0 %v7834
  %8336 = vmatpush1.bf16.msra.mxu0 %v7833
  %8337 = vmatprep.subr.bf16.mxu0 %v7842
  %8338 = vmatpush1.bf16.msra.mxu0 %v7841
  %8339 = vmatprep.subr.bf16.mxu0 %v7850
  %8340 = vmatpush1.bf16.msra.mxu0 %v7849
  %8341 = vmatprep.subr.bf16.mxu0 %v7858
  %8342 = vmatpush1.bf16.msra.mxu0 %v7857
  %8343 = vmatprep.subr.bf16.mxu0 %v7866
  %8344 = vmatpush1.bf16.msra.mxu0 %v7865
  %8345 = vmatprep.subr.bf16.mxu0 %v7874
  %8346 = vmatpush1.bf16.msra.mxu0 %v7873
  %8347 = vmatprep.subr.bf16.mxu0 %v7882
  %8348 = vmatpush1.bf16.msra.mxu0 %v7881
  %8349 = vmatprep.subr.bf16.mxu0 %v7890
  %8350 = vmatpush1.bf16.msra.mxu0 %v7889
  %8351 = vmatprep.subr.bf16.mxu0 %v7898
  %8352 = vmatpush1.bf16.msra.mxu0 %v7897
  %8353 = vmatprep.subr.bf16.mxu0 %v7906
  %8354 = vmatpush1.bf16.msra.mxu0 %v7905
  %8355 = vmatprep.subr.bf16.mxu0 %v7914
  %8356 = vmatpush1.bf16.msra.mxu0 %v7913
  %8357 = vmatprep.subr.bf16.mxu0 %v7922
  %8358 = vmatpush1.bf16.msra.mxu0 %v7921
  %8359 = vmatprep.mubr.bf16.mxu0 %v7308
  %8360 = vmatmul.mubr.bf16.gmra.mrb[0].mxu0 %v7307
  %v8361 = vpop.f32.mrb[0].mxu0
  %v8362 = vadd.f32 0.0, %v8361
  %v8363 = vpop.f32.mrb[0].mxu0
  %v8364 = vadd.f32 0.0, %v8363
  %v8365 = vpop.f32.mrb[0].mxu0
  %v8366 = vadd.f32 0.0, %v8365
  %v8367 = vpop.f32.mrb[0].mxu0
  %v8368 = vadd.f32 0.0, %v8367
  %8369 = vmatprep.mubr.bf16.mxu0 %v7311
  %8370 = vmatmul.mubr.bf16.gmra.mrb[0].mxu0 %v7310
  %v8371 = vpop.f32.mrb[0].mxu0
  %v8372 = vadd.f32 0.0, %v8371
  %v8373 = vpop.f32.mrb[0].mxu0
  %v8374 = vadd.f32 0.0, %v8373
  %v8375 = vpop.f32.mrb[0].mxu0
  %v8376 = vpop.f32.mrb[0].mxu0
  %8377 = vdwg.mxu0
  %8378 = vmatprep.subr.bf16.mxu0 %v7930
  %8379 = vmatpush1.bf16.msra.mxu0 %v7929
  %8380 = vmatprep.subr.bf16.mxu0 %v7938
  %8381 = vmatpush1.bf16.msra.mxu0 %v7937
  %8382 = vmatprep.subr.bf16.mxu0 %v7946
  %8383 = vmatpush1.bf16.msra.mxu0 %v7945
  %8384 = vmatprep.subr.bf16.mxu0 %v7954
  %8385 = vmatpush1.bf16.msra.mxu0 %v7953
  %8386 = vmatprep.subr.bf16.mxu0 0
  %8387 = vmatpush1.bf16.msra.mxu0 0
  %8388 = vmatprep.subr.bf16.mxu0 0
  %8389 = vmatpush1.bf16.msra.mxu0 0
  %8390 = vmatprep.subr.bf16.mxu0 0
  %8391 = vmatpush1.bf16.msra.mxu0 0
  %8392 = vmatprep.subr.bf16.mxu0 0
  %8393 = vmatpush1.bf16.msra.mxu0 0
  %8394 = vmatprep.subr.bf16.mxu0 0
  %8395 = vmatpush1.bf16.msra.mxu0 0
  %8396 = vmatprep.subr.bf16.mxu0 0
  %8397 = vmatpush1.bf16.msra.mxu0 0
  %8398 = vmatprep.subr.bf16.mxu0 0
  %8399 = vmatpush1.bf16.msra.mxu0 0
  %8400 = vmatprep.subr.bf16.mxu0 0
  %8401 = vmatpush1.bf16.msra.mxu0 0
  %8402 = vmatprep.subr.bf16.mxu0 0
  %8403 = vmatpush1.bf16.msra.mxu0 0
  %8404 = vmatprep.subr.bf16.mxu0 0
  %8405 = vmatpush1.bf16.msra.mxu0 0
  %8406 = vmatprep.subr.bf16.mxu0 0
  %8407 = vmatpush1.bf16.msra.mxu0 0
  %8408 = vmatprep.subr.bf16.mxu0 0
  %8409 = vmatpush1.bf16.msra.mxu0 0
  %8410 = vmatprep.mubr.bf16.mxu0 0
  %8411 = vmatmul.mubr.bf16.gmra.mrb[0].mxu0 %v8118
  %v8412 = vpop.f32.mrb[0].mxu0
  %v8413 = vadd.f32 %v8362, %v8412
  %v8414 = vpop.f32.mrb[0].mxu0
  %v8415 = vadd.f32 %v8364, %v8414
  %v8416 = vpop.f32.mrb[0].mxu0
  %v8417 = vadd.f32 %v8366, %v8416
  %v8418 = vpop.f32.mrb[0].mxu0
  %v8419 = vadd.f32 %v8368, %v8418
  %8420 = vmatprep.mubr.bf16.mxu0 0
  %8421 = vmatmul.mubr.bf16.gmra.mrb[0].mxu0 %v8121
  %v8422 = vpop.f32.mrb[0].mxu0
  %v8423 = vadd.f32 %v8372, %v8422
  %v8424 = vpop.f32.mrb[0].mxu0
  %v8425 = vadd.f32 %v8374, %v8424
  %v8426 = vpop.f32.mrb[0].mxu0
  %v8427 = vpop.f32.mrb[0].mxu0
  %8428 = vdwg.mxu0
  %8429 = vmatprep.subr.bf16.mxu0 %v7804
  %8430 = vmatpush1.bf16.msra.mxu0 %v7803
  %8431 = vmatprep.subr.bf16.mxu0 %v7812
  %8432 = vmatpush1.bf16.msra.mxu0 %v7811
  %8433 = vmatprep.subr.bf16.mxu0 %v7820
  %8434 = vmatpush1.bf16.msra.mxu0 %v7819
  %8435 = vmatprep.subr.bf16.mxu0 %v7828
  %8436 = vmatpush1.bf16.msra.mxu0 %v7827
  %8437 = vmatprep.subr.bf16.mxu0 %v7836
  %8438 = vmatpush1.bf16.msra.mxu0 %v7835
  %8439 = vmatprep.subr.bf16.mxu0 %v7844
  %8440 = vmatpush1.bf16.msra.mxu0 %v7843
  %8441 = vmatprep.subr.bf16.mxu0 %v7852
  %8442 = vmatpush1.bf16.msra.mxu0 %v7851
  %8443 = vmatprep.subr.bf16.mxu0 %v7860
  %8444 = vmatpush1.bf16.msra.mxu0 %v7859
  %8445 = vmatprep.subr.bf16.mxu0 %v7868
  %8446 = vmatpush1.bf16.msra.mxu0 %v7867
  %8447 = vmatprep.subr.bf16.mxu0 %v7876
  %8448 = vmatpush1.bf16.msra.mxu0 %v7875
  %8449 = vmatprep.subr.bf16.mxu0 %v7884
  %8450 = vmatpush1.bf16.msra.mxu0 %v7883
  %8451 = vmatprep.subr.bf16.mxu0 %v7892
  %8452 = vmatpush1.bf16.msra.mxu0 %v7891
  %8453 = vmatprep.subr.bf16.mxu0 %v7900
  %8454 = vmatpush1.bf16.msra.mxu0 %v7899
  %8455 = vmatprep.subr.bf16.mxu0 %v7908
  %8456 = vmatpush1.bf16.msra.mxu0 %v7907
  %8457 = vmatprep.subr.bf16.mxu0 %v7916
  %8458 = vmatpush1.bf16.msra.mxu0 %v7915
  %8459 = vmatprep.subr.bf16.mxu0 %v7924
  %8460 = vmatpush1.bf16.msra.mxu0 %v7923
  %8461 = vmatprep.mubr.bf16.mxu0 %v7308
  %8462 = vmatmul.mubr.bf16.gmra.mrb[0].mxu0 %v7307
  %v8463 = vpop.f32.mrb[0].mxu0
  %v8464 = vadd.f32 0.0, %v8463
  %v8465 = vpop.f32.mrb[0].mxu0
  %v8466 = vadd.f32 0.0, %v8465
  %v8467 = vpop.f32.mrb[0].mxu0
  %v8468 = vadd.f32 0.0, %v8467
  %v8469 = vpop.f32.mrb[0].mxu0
  %v8470 = vadd.f32 0.0, %v8469
  %8471 = vmatprep.mubr.bf16.mxu0 %v7311
  %8472 = vmatmul.mubr.bf16.gmra.mrb[0].mxu0 %v7310
  %v8473 = vpop.f32.mrb[0].mxu0
  %v8474 = vadd.f32 0.0, %v8473
  %v8475 = vpop.f32.mrb[0].mxu0
  %v8476 = vadd.f32 0.0, %v8475
  %v8477 = vpop.f32.mrb[0].mxu0
  %v8478 = vpop.f32.mrb[0].mxu0
  %8479 = vdwg.mxu0
  %8480 = vmatprep.subr.bf16.mxu0 %v7932
  %8481 = vmatpush1.bf16.msra.mxu0 %v7931
  %8482 = vmatprep.subr.bf16.mxu0 %v7940
  %8483 = vmatpush1.bf16.msra.mxu0 %v7939
  %8484 = vmatprep.subr.bf16.mxu0 %v7948
  %8485 = vmatpush1.bf16.msra.mxu0 %v7947
  %8486 = vmatprep.subr.bf16.mxu0 %v7956
  %8487 = vmatpush1.bf16.msra.mxu0 %v7955
  %8488 = vmatprep.subr.bf16.mxu0 0
  %8489 = vmatpush1.bf16.msra.mxu0 0
  %8490 = vmatprep.subr.bf16.mxu0 0
  %8491 = vmatpush1.bf16.msra.mxu0 0
  %8492 = vmatprep.subr.bf16.mxu0 0
  %8493 = vmatpush1.bf16.msra.mxu0 0
  %8494 = vmatprep.subr.bf16.mxu0 0
  %8495 = vmatpush1.bf16.msra.mxu0 0
  %8496 = vmatprep.subr.bf16.mxu0 0
  %8497 = vmatpush1.bf16.msra.mxu0 0
  %8498 = vmatprep.subr.bf16.mxu0 0
  %8499 = vmatpush1.bf16.msra.mxu0 0
  %8500 = vmatprep.subr.bf16.mxu0 0
  %8501 = vmatpush1.bf16.msra.mxu0 0
  %8502 = vmatprep.subr.bf16.mxu0 0
  %8503 = vmatpush1.bf16.msra.mxu0 0
  %8504 = vmatprep.subr.bf16.mxu0 0
  %8505 = vmatpush1.bf16.msra.mxu0 0
  %8506 = vmatprep.subr.bf16.mxu0 0
  %8507 = vmatpush1.bf16.msra.mxu0 0
  %8508 = vmatprep.subr.bf16.mxu0 0
  %8509 = vmatpush1.bf16.msra.mxu0 0
  %8510 = vmatprep.subr.bf16.mxu0 0
  %8511 = vmatpush1.bf16.msra.mxu0 0
  %8512 = vmatprep.mubr.bf16.mxu0 0
  %8513 = vmatmul.mubr.bf16.gmra.mrb[0].mxu0 %v8118
  %v8514 = vpop.f32.mrb[0].mxu0
  %v8515 = vadd.f32 %v8464, %v8514
  %v8516 = vpop.f32.mrb[0].mxu0
  %v8517 = vadd.f32 %v8466, %v8516
  %v8518 = vpop.f32.mrb[0].mxu0
  %v8519 = vadd.f32 %v8468, %v8518
  %v8520 = vpop.f32.mrb[0].mxu0
  %v8521 = vadd.f32 %v8470, %v8520
  %8522 = vmatprep.mubr.bf16.mxu0 0
  %8523 = vmatmul.mubr.bf16.gmra.mrb[0].mxu0 %v8121
  %v8524 = vpop.f32.mrb[0].mxu0
  %v8525 = vadd.f32 %v8474, %v8524
  %v8526 = vpop.f32.mrb[0].mxu0
  %v8527 = vadd.f32 %v8476, %v8526
  %v8528 = vpop.f32.mrb[0].mxu0
  %v8529 = vpop.f32.mrb[0].mxu0
  %8530 = vdwg.mxu0
  %v8531 = vadd.f32 %v7100, %v8209
  %v8532 = vadd.f32 %v7101, %v8211
  %v8533 = vadd.f32 %v7102, %v8311
  %v8534 = vadd.f32 %v7103, %v8313
  %v8535 = vadd.f32 %v7104, %v8413
  %v8536 = vadd.f32 %v7105, %v8415
  %v8537 = vadd.f32 %v7106, %v8515
  %v8538 = vadd.f32 %v7107, %v8517
  %v8539 = vadd.f32 %v7108, %v8213
  %v8540 = vadd.f32 %v7109, %v8215
  %v8541 = vadd.f32 %v7110, %v8315
  %v8542 = vadd.f32 %v7111, %v8317
  %v8543 = vadd.f32 %v7112, %v8417
  %v8544 = vadd.f32 %v7113, %v8419
  %v8545 = vadd.f32 %v7114, %v8519
  %v8546 = vadd.f32 %v7115, %v8521
  %v8547 = vadd.f32 %v7116, %v8219
  %v8548 = vadd.f32 %v7117, %v8221
  %v8549 = vadd.f32 %v7118, %v8321
  %v8550 = vadd.f32 %v7119, %v8323
  %v8551 = vadd.f32 %v7120, %v8423
  %v8552 = vadd.f32 %v7121, %v8425
  %v8553 = vadd.f32 %v7122, %v8525
  %v8554 = vadd.f32 %v7123, %v8527
  %v8555 = vld [vmem:[%s2] sm:$0xff]
  %v8557 = vlaneseq
  %v8558 = vshrl.u32 %v8557, 7
  %v8559 = vsub.s32 0, %v8558
  %v8560 = vrot.slane %v8555, %v8559
  %v8561 = vlaneseq
  %v8562 = vshrl.u32 %v8561, 7
  %v8563 = vsub.s32 1, %v8562
  %v8564 = vrot.slane %v8555, %v8563
  %v8565 = vlaneseq
  %v8566 = vshrl.u32 %v8565, 7
  %v8567 = vsub.s32 2, %v8566
  %v8568 = vrot.slane %v8555, %v8567
  %v8569 = vlaneseq
  %v8570 = vshrl.u32 %v8569, 7
  %v8571 = vsub.s32 3, %v8570
  %v8572 = vrot.slane %v8555, %v8571
  %v8573 = vlaneseq
  %v8574 = vshrl.u32 %v8573, 7
  %v8575 = vsub.s32 4, %v8574
  %v8576 = vrot.slane %v8555, %v8575
  %v8577 = vlaneseq
  %v8578 = vshrl.u32 %v8577, 7
  %v8579 = vsub.s32 5, %v8578
  %v8580 = vrot.slane %v8555, %v8579
  %v8581 = vlaneseq
  %v8582 = vshrl.u32 %v8581, 7
  %v8583 = vsub.s32 6, %v8582
  %v8584 = vrot.slane %v8555, %v8583
  %v8585 = vlaneseq
  %v8586 = vshrl.u32 %v8585, 7
  %v8587 = vsub.s32 7, %v8586
  %v8588 = vrot.slane %v8555, %v8587
  %v8597 = vmul.f32 %v8531, %v8560
  %v8598 = vmul.f32 %v8532, %v8564
  %v8599 = vmul.f32 %v8533, %v8568
  %v8600 = vmul.f32 %v8534, %v8572
  %v8601 = vmul.f32 %v8535, %v8576
  %v8602 = vmul.f32 %v8536, %v8580
  %v8603 = vmul.f32 %v8537, %v8584
  %v8604 = vmul.f32 %v8538, %v8588
  %v8605 = vmul.f32 %v8539, %v8560
  %v8606 = vmul.f32 %v8540, %v8564
  %v8607 = vmul.f32 %v8541, %v8568
  %v8608 = vmul.f32 %v8542, %v8572
  %v8609 = vmul.f32 %v8543, %v8576
  %v8610 = vmul.f32 %v8544, %v8580
  %v8611 = vmul.f32 %v8545, %v8584
  %v8612 = vmul.f32 %v8546, %v8588
  %v8613 = vmul.f32 %v8547, %v8560
  %v8614 = vmul.f32 %v8548, %v8564
  %v8615 = vmul.f32 %v8549, %v8568
  %v8616 = vmul.f32 %v8550, %v8572
  %v8617 = vmul.f32 %v8551, %v8576
  %v8618 = vmul.f32 %v8552, %v8580
  %v8619 = vmul.f32 %v8553, %v8584
  %v8620 = vmul.f32 %v8554, %v8588
  %v8621 = vld [vmem:[%s3] sm:$0xff]
  %v8623 = vlaneseq
  %v8624 = vshrl.u32 %v8623, 7
  %v8625 = vsub.s32 0, %v8624
  %v8626 = vrot.slane %v8621, %v8625
  %v8627 = vlaneseq
  %v8628 = vshrl.u32 %v8627, 7
  %v8629 = vsub.s32 1, %v8628
  %v8630 = vrot.slane %v8621, %v8629
  %v8631 = vlaneseq
  %v8632 = vshrl.u32 %v8631, 7
  %v8633 = vsub.s32 2, %v8632
  %v8634 = vrot.slane %v8621, %v8633
  %v8635 = vlaneseq
  %v8636 = vshrl.u32 %v8635, 7
  %v8637 = vsub.s32 3, %v8636
  %v8638 = vrot.slane %v8621, %v8637
  %v8639 = vlaneseq
  %v8640 = vshrl.u32 %v8639, 7
  %v8641 = vsub.s32 4, %v8640
  %v8642 = vrot.slane %v8621, %v8641
  %v8643 = vlaneseq
  %v8644 = vshrl.u32 %v8643, 7
  %v8645 = vsub.s32 5, %v8644
  %v8646 = vrot.slane %v8621, %v8645
  %v8647 = vlaneseq
  %v8648 = vshrl.u32 %v8647, 7
  %v8649 = vsub.s32 6, %v8648
  %v8650 = vrot.slane %v8621, %v8649
  %v8651 = vlaneseq
  %v8652 = vshrl.u32 %v8651, 7
  %v8653 = vsub.s32 7, %v8652
  %v8654 = vrot.slane %v8621, %v8653
  %v8663 = vadd.f32 %v8597, %v8626
  %v8664 = vadd.f32 %v8598, %v8630
  %v8665 = vadd.f32 %v8599, %v8634
  %v8666 = vadd.f32 %v8600, %v8638
  %v8667 = vadd.f32 %v8601, %v8642
  %v8668 = vadd.f32 %v8602, %v8646
  %v8669 = vadd.f32 %v8603, %v8650
  %v8670 = vadd.f32 %v8604, %v8654
  %v8671 = vadd.f32 %v8605, %v8626
  %v8672 = vadd.f32 %v8606, %v8630
  %v8673 = vadd.f32 %v8607, %v8634
  %v8674 = vadd.f32 %v8608, %v8638
  %v8675 = vadd.f32 %v8609, %v8642
  %v8676 = vadd.f32 %v8610, %v8646
  %v8677 = vadd.f32 %v8611, %v8650
  %v8678 = vadd.f32 %v8612, %v8654
  %v8679 = vadd.f32 %v8613, %v8626
  %v8680 = vadd.f32 %v8614, %v8630
  %v8681 = vadd.f32 %v8615, %v8634
  %v8682 = vadd.f32 %v8616, %v8638
  %v8683 = vadd.f32 %v8617, %v8642
  %v8684 = vadd.f32 %v8618, %v8646
  %v8685 = vadd.f32 %v8619, %v8650
  %v8686 = vadd.f32 %v8620, %v8654
  %v8687 = vmax.f32 %v8663, %v8665
  %v8688 = vmax.f32 %v8664, %v8666
  %v8689 = vmax.f32 %v8671, %v8673
  %v8690 = vmax.f32 %v8672, %v8674
  %v8691 = vmax.f32 %v8679, %v8681
  %v8692 = vmax.f32 %v8680, %v8682
  %v8693 = vmax.f32 %v8667, %v8669
  %v8694 = vmax.f32 %v8668, %v8670
  %v8695 = vmax.f32 %v8675, %v8677
  %v8696 = vmax.f32 %v8676, %v8678
  %v8697 = vmax.f32 %v8683, %v8685
  %v8698 = vmax.f32 %v8684, %v8686
  %v8699 = vmax.f32 %v8687, %v8693
  %v8700 = vmax.f32 %v8688, %v8694
  %v8701 = vmax.f32 %v8689, %v8695
  %v8702 = vmax.f32 %v8690, %v8696
  %v8703 = vmax.f32 %v8691, %v8697
  %v8704 = vmax.f32 %v8692, %v8698
  %v8705 = vmax.f32 %v8699, 0.0
  %v8706 = vmax.f32 %v8700, 0.0
  %v8707 = vmax.f32 %v8701, 0.0
  %v8708 = vmax.f32 %v8702, 0.0
  %v8709 = vmax.f32 %v8703, 0.0
  %v8710 = vmax.f32 %v8704, 0.0
  %v8711 = vpack.c.bf16 %v8707, %v8705
  %v8712 = vpack.c.bf16 %v8708, %v8706
  %v8713 = vpack.c.bf16 %v8709, %v8709
  %v8714 = vpack.c.bf16 %v8710, %v8710
  %v8719 = vunpack.c.l.b16 %v8711
  %v8720 = vunpack.c.l.b16 %v8712
  %v8721 = vunpack.c.h.b16 %v8711
  %v8722 = vunpack.c.h.b16 %v8712
  %v8723 = vunpack.c.l.b16 %v8713
  %v8724 = vunpack.c.l.b16 %v8714
  %v8725 = vpack.c.b16 %v8720, %v8719
  %v8726 = vpack.c.b16 %v8722, %v8721
  %v8727 = vpack.c.b16 %v8724, %v8723
  %8731 = vst [vmem:[%s4] sm:$0xff] %v8725
  %8732 = vst [vmem:[%s4 + $0x8] sm:$0xff] %v8726
  %8733 = vst [vmem:[%s4 + $0x10] sm:$0x33] %v8727
  // Predicated region
  $region18: #{convnet_forward.4} parent=0 // pred_check
    _
  $region19: #{convnet_forward.4} parent=0 // pred_check_branch
    %8735 = sbr.rel (0) target = $region21
  $region20: #{convnet_forward.4} parent=0 // pred_region
    _
  $region21: #{convnet_forward.4} parent=0 // pred_fallthru
    _
  // Predicated region
  $region22: #{convnet_forward.4} parent=0 // pred_check
    _
  $region23: #{convnet_forward.4} parent=0 // pred_check_branch
    %8737 = sbr.rel (0) target = $region25
  $region24: #{convnet_forward.4} parent=0 // pred_region
    _
  $region25: #{convnet_forward.4} parent=0 // pred_fallthru
    _

</llo_original>
